<compile_context>
chip_gen: v7x
topology: tpu7x:2x2x1
jax: 0.10.0
libtpu: 0.0.40
codegen_flags: <defaults>
</compile_context>

<pallas_src>
import functools

import jax
import jax.numpy as jnp
from jax.experimental import pallas as pl
from jax.experimental.pallas import tpu as pltpu

LN_EPS = 1e-12  # BERT default

# Row layout of the packed per-layer "smalls" tensor (L, 9, H).
_ROW_BQ, _ROW_BK, _ROW_BV, _ROW_BO, _ROW_B2 = 0, 1, 2, 3, 4
_ROW_LN1G, _ROW_LN1B, _ROW_LN2G, _ROW_LN2B = 5, 6, 7, 8


def _layernorm(x, gamma, beta):
    mean = jnp.mean(x, axis=-1, keepdims=True)
    var = jnp.mean((x - mean) ** 2, axis=-1, keepdims=True)
    return (x - mean) * jax.lax.rsqrt(var + LN_EPS) * gamma + beta


# ----------------------------- Pallas kernel ------------------------------- #

def fused_encoder_kernel(x_ref, emb_g_ref, emb_b_ref,
                         wq_ref, wk_ref, wv_ref, wo_ref, w1_ref, w2_ref,
                         small_ref, b1_ref,
                         o_ref, h_ref, *, num_heads):
    """One grid step = (batch tile b, encoder layer l).

    The residual stream is carried in the VMEM scratch `h_ref` across the
    'arbitrary' layer axis (re-initialised with the embedding LayerNorm at
    l == 0), so layer l+1 weight DMA overlaps layer l compute and only the
    CLS rows are written back to HBM, once, at l == L-1.
    """
    l = pl.program_id(1)
    TB, S, H = x_ref.shape
    nh = num_heads
    hd = H // nh

    @pl.when(l == 0)
    def _():
        # Fused embedding LayerNorm, straight into the VMEM carry.
        emb = x_ref[...].reshape(TB * S, H)
        h_ref[...] = _layernorm(emb, emb_g_ref[...], emb_b_ref[...])

    x = h_ref[...]                                   # (TB*S, H) f32 residual

    # Packed per-layer biases / LN params: one small DMA instead of ~10.
    sm = small_ref[0]                                # (9, H) f32
    bq = sm[_ROW_BQ:_ROW_BQ + 1]
    bk = sm[_ROW_BK:_ROW_BK + 1]
    bv = sm[_ROW_BV:_ROW_BV + 1]
    bo = sm[_ROW_BO:_ROW_BO + 1]
    b2 = sm[_ROW_B2:_ROW_B2 + 1]
    ln1g = sm[_ROW_LN1G:_ROW_LN1G + 1]
    ln1b = sm[_ROW_LN1B:_ROW_LN1B + 1]
    ln2g = sm[_ROW_LN2G:_ROW_LN2G + 1]
    ln2b = sm[_ROW_LN2B:_ROW_LN2B + 1]
    b1 = b1_ref[0]                                   # (1, F) f32

    # ---- self-attention (1/sqrt(hd) already folded into wq/bq) ------------ #
    xb = x.astype(jnp.bfloat16)                      # bf16 MXU in, f32 accum
    q = jnp.dot(xb, wq_ref[0], preferred_element_type=jnp.float32) + bq
    k = jnp.dot(xb, wk_ref[0], preferred_element_type=jnp.float32) + bk
    v = jnp.dot(xb, wv_ref[0], preferred_element_type=jnp.float32) + bv

    q16 = q.astype(jnp.bfloat16)
    k16 = k.astype(jnp.bfloat16)
    v16 = v.astype(jnp.bfloat16)

    # Attention is per-batch-element (no cross-batch mixing); TB is small and
    # static, so unroll it while keeping head-batched einsums.
    ctxs = []
    for b in range(TB):
        r0 = b * S
        qh = q16[r0:r0 + S].reshape(S, nh, hd)
        kh = k16[r0:r0 + S].reshape(S, nh, hd)
        vh = v16[r0:r0 + S].reshape(S, nh, hd)
        scores = jnp.einsum('qhd,khd->hqk', qh, kh,
                            preferred_element_type=jnp.float32)   # (nh, S, S)
        scores = scores - jnp.max(scores, axis=-1, keepdims=True)
        p = jnp.exp(scores)
        p = p * pl.reciprocal(jnp.sum(p, axis=-1, keepdims=True), approx=True)
        ctx_b = jnp.einsum('hqk,khd->qhd', p.astype(jnp.bfloat16), vh,
                           preferred_element_type=jnp.float32)
        ctxs.append(ctx_b.reshape(S, H))
    ctx = jnp.concatenate(ctxs, axis=0)              # (TB*S, H) f32

    attn_out = (jnp.dot(ctx.astype(jnp.bfloat16), wo_ref[0],
                        preferred_element_type=jnp.float32) + bo)
    y = _layernorm(x + attn_out, ln1g, ln1b)          # f32

    # ---- feed-forward ------------------------------------------------------ #
    hmid = (jnp.dot(y.astype(jnp.bfloat16), w1_ref[0],
                    preferred_element_type=jnp.float32) + b1)
    # TODO(synk): HF BERT uses exact (erf) GELU; tanh approximation used here.
    hmid = jax.nn.gelu(hmid, approximate=True)
    ffn_out = (jnp.dot(hmid.astype(jnp.bfloat16), w2_ref[0],
                       preferred_element_type=jnp.float32) + b2)
    h_new = _layernorm(y + ffn_out, ln2g, ln2b)
    h_ref[...] = h_new

    @pl.when(l == pl.num_programs(1) - 1)
    def _():
        # Only the CLS row of each batch element goes back to HBM.
        for b in range(TB):
            o_ref[b] = h_new[b * S:b * S + 1, :]


# ------------------------------ wrapper ------------------------------------ #

def _pick_batch_tile(B, max_tile=8):
    tb = min(B, max_tile)
    while B % tb:
        tb -= 1
    return tb


def _vmem_limit_bytes(default=48 * 1024 * 1024):
    # ~75% of physical VMEM, capped at 100 MiB: ≈96-100 MiB on v5e/v6e
    # (128 MiB physical), ≈48 MiB on v7x (64 MiB physical).
    try:
        cap = getattr(pltpu.get_tpu_info(), "vmem_capacity_bytes", None)
    except Exception:
        cap = None
    if not cap:
        return default
    return int(min(cap * 3 // 4, 100 * 1024 * 1024))


def bert_encoder(emb, kp, num_heads, batch_tile=None):
    B, S, H = emb.shape
    L = kp["wq"].shape[0]
    TB = batch_tile or _pick_batch_tile(B)
    assert B % TB == 0

    layer_spec = lambda arr: pl.BlockSpec((1,) + arr.shape[1:],
                                          lambda b, l: (l, 0, 0))
    const_spec = lambda arr: pl.BlockSpec(arr.shape, lambda b, l: (0, 0))

    in_specs = [
        pl.BlockSpec((TB, S, H), lambda b, l: (b, 0, 0)),   # embeddings (l-const)
        const_spec(kp["emb_ln_g"]), const_spec(kp["emb_ln_b"]),
        layer_spec(kp["wq"]), layer_spec(kp["wk"]), layer_spec(kp["wv"]),
        layer_spec(kp["wo"]), layer_spec(kp["w1"]), layer_spec(kp["w2"]),
        layer_spec(kp["smalls"]), layer_spec(kp["b1"]),
    ]
    out_spec = pl.BlockSpec((TB, 1, H), lambda b, l: (b, 0, 0))

    cls = pl.pallas_call(
        functools.partial(fused_encoder_kernel, num_heads=num_heads),
        out_shape=jax.ShapeDtypeStruct((B, 1, H), jnp.float32),
        grid=(B // TB, L),                            # L (carry axis) last
        in_specs=in_specs,
        out_specs=out_spec,                           # CLS only, l-resident
        scratch_shapes=[pltpu.VMEM((TB * S, H), jnp.float32)],
        compiler_params=pltpu.CompilerParams(
            dimension_semantics=("parallel", "arbitrary"),
            vmem_limit_bytes=_vmem_limit_bytes()),
    )(emb, kp["emb_ln_g"], kp["emb_ln_b"],
      kp["wq"], kp["wk"], kp["wv"], kp["wo"], kp["w1"], kp["w2"],
      kp["smalls"], kp["b1"])
    return cls[:, 0]                                  # (B, H)


# --------------------------- parameter handling ----------------------------- #

def init_params(key, vocab, max_pos, H, F, L):
    ks = jax.random.split(key, 16)
    nrm = lambda k, shape: 0.02 * jax.random.normal(k, shape, jnp.float32)
    ones = lambda shape: jnp.ones(shape, jnp.float32)
    zeros = lambda shape: jnp.zeros(shape, jnp.float32)
    return {
        "tok_emb": nrm(ks[0], (vocab, H)),
        "pos_emb": nrm(ks[1], (max_pos, H)),
        "type_emb": nrm(ks[2], (2, H)),
        "emb_ln_g": ones((1, H)), "emb_ln_b": zeros((1, H)),
        "wq": nrm(ks[3], (L, H, H)), "bq": nrm(ks[9], (L, H)),
        "wk": nrm(ks[4], (L, H, H)), "bk": nrm(ks[10], (L, H)),
        "wv": nrm(ks[5], (L, H, H)), "bv": nrm(ks[11], (L, H)),
        "wo": nrm(ks[6], (L, H, H)), "bo": nrm(ks[12], (L, H)),
        "ln1_g": ones((L, H)), "ln1_b": zeros((L, H)),
        "w1": nrm(ks[7], (L, H, F)), "b1": nrm(ks[13], (L, F)),
        "w2": nrm(ks[8], (L, F, H)), "b2": nrm(ks[14], (L, H)),
        "ln2_g": ones((L, H)), "ln2_b": zeros((L, H)),
    }


def prepare_params(params, num_heads):
    """One-time parameter transform (outside jit): fold 1/sqrt(hd) into wq/bq,
    cast matmul weights to bf16, and pack the per-layer small tensors."""
    H = params["wq"].shape[-1]
    hd = H // num_heads
    scale = 1.0 / float(hd) ** 0.5
    smalls = jnp.stack(
        [params["bq"] * scale, params["bk"], params["bv"], params["bo"],
         params["b2"], params["ln1_g"], params["ln1_b"],
         params["ln2_g"], params["ln2_b"]], axis=1)   # (L, 9, H) f32
    return {
        "tok_emb": params["tok_emb"],
        "pos_emb": params["pos_emb"],
        "type_emb": params["type_emb"],
        "emb_ln_g": params["emb_ln_g"],
        "emb_ln_b": params["emb_ln_b"],
        "wq": (params["wq"] * scale).astype(jnp.bfloat16),
        "wk": params["wk"].astype(jnp.bfloat16),
        "wv": params["wv"].astype(jnp.bfloat16),
        "wo": params["wo"].astype(jnp.bfloat16),
        "w1": params["w1"].astype(jnp.bfloat16),
        "w2": params["w2"].astype(jnp.bfloat16),
        "smalls": smalls,
        "b1": params["b1"][:, None, :],               # (L, 1, F) f32
    }


# ------------------------------ forward ------------------------------------ #

def kosimct_forward(token_ids, kp, num_heads):
    # Glue outside the kernel: embedding gathers (token/pos/type add); the
    # kernel itself returns only last_hidden_state[:, 0].
    B, S = token_ids.shape
    emb = (kp["tok_emb"][token_ids]
           + kp["pos_emb"][jnp.arange(S)][None, :, :]
           + kp["type_emb"][0][None, None, :])
    # TODO(synk): no attention_mask path (matches HF attention_mask=None ->
    # all-ones); dropout omitted (inference/eval semantics).
    return bert_encoder(emb, kp, num_heads)           # (B, H)


if __name__ == "__main__":
    B, S, H, F = 2, 128, 128, 512
    NUM_HEADS, NUM_LAYERS = 2, 2
    VOCAB, MAX_POS = 512, 128

    key = jax.random.PRNGKey(0)
    k_ids, k_params = jax.random.split(key)
    token_ids = jax.random.randint(k_ids, (B, S), 0, VOCAB, dtype=jnp.int32)
    params = init_params(k_params, VOCAB, MAX_POS, H, F, NUM_LAYERS)
    kparams = prepare_params(params, NUM_HEADS)       # bf16 cast / pack once

    fwd = jax.jit(functools.partial(kosimct_forward, num_heads=NUM_HEADS))
    out = jax.block_until_ready(fwd(token_ids, kparams))
    assert out.shape == (B, H) and out.dtype == jnp.float32
    assert bool(jnp.all(jnp.isfinite(out)))
    print("KERNEL_OK")
</pallas_src>

<mosaic_0001>
module attributes {stable_mosaic.version = 11 : i64} {
  func.func @fused_encoder_kernel(%arg0: i32, %arg1: i32, %arg2: memref<2x128x128xf32, #tpu.memory_space<vmem>>, %arg3: memref<1x128xf32, #tpu.memory_space<vmem>>, %arg4: memref<1x128xf32, #tpu.memory_space<vmem>>, %arg5: memref<1x128x128xbf16, #tpu.memory_space<vmem>>, %arg6: memref<1x128x128xbf16, #tpu.memory_space<vmem>>, %arg7: memref<1x128x128xbf16, #tpu.memory_space<vmem>>, %arg8: memref<1x128x128xbf16, #tpu.memory_space<vmem>>, %arg9: memref<1x128x512xbf16, #tpu.memory_space<vmem>>, %arg10: memref<1x512x128xbf16, #tpu.memory_space<vmem>>, %arg11: memref<1x9x128xf32, #tpu.memory_space<vmem>>, %arg12: memref<1x1x512xf32, #tpu.memory_space<vmem>>, %arg13: memref<2x1x128xf32, #tpu.memory_space<vmem>>, %arg14: memref<256x128xf32, #tpu.memory_space<vmem>>) attributes {dimension_semantics = [#tpu.dimension_semantics<parallel>, #tpu.dimension_semantics<arbitrary>], iteration_bounds = array<i64: 1, 2>, scalar_prefetch = 0 : i64, scratch_operands = 1 : i64, tpu.core_type = #tpu.core_type<tc>, window_params = [{transform_indices = @transform_0, window_bounds = array<i64: 2, 128, 128>}, {pipeline_mode = #tpu.pipeline_mode<synchronous>, transform_indices = @transform_1, window_bounds = array<i64: 1, 128>}, {pipeline_mode = #tpu.pipeline_mode<synchronous>, transform_indices = @transform_2, window_bounds = array<i64: 1, 128>}, {transform_indices = @transform_3, window_bounds = array<i64: 1, 128, 128>}, {transform_indices = @transform_4, window_bounds = array<i64: 1, 128, 128>}, {transform_indices = @transform_5, window_bounds = array<i64: 1, 128, 128>}, {transform_indices = @transform_6, window_bounds = array<i64: 1, 128, 128>}, {transform_indices = @transform_7, window_bounds = array<i64: 1, 128, 512>}, {transform_indices = @transform_8, window_bounds = array<i64: 1, 512, 128>}, {transform_indices = @transform_9, window_bounds = array<i64: 1, 9, 128>}, {transform_indices = @transform_10, window_bounds = array<i64: 1, 1, 512>}, {transform_indices = @transform_11, window_bounds = array<i64: 2, 1, 128>}]} {
    %c0_i32 = arith.constant 0 : i32
    %0 = arith.cmpi eq, %arg1, %c0_i32 : i32
    %1 = arith.extui %0 : i1 to i32
    %c0_i32_0 = arith.constant 0 : i32
    %2 = arith.cmpi ne, %1, %c0_i32_0 : i32
    scf.if %2 {
      %c0_56 = arith.constant 0 : index
      %c0_57 = arith.constant 0 : index
      %c0_58 = arith.constant 0 : index
      %160 = vector.load %arg2[%c0_56, %c0_57, %c0_58] : memref<2x128x128xf32, #tpu.memory_space<vmem>>, vector<2x128x128xf32>
      %161 = vector.shape_cast %160 : vector<2x128x128xf32> to vector<256x128xf32>
      %c0_59 = arith.constant 0 : index
      %c0_60 = arith.constant 0 : index
      %162 = vector.load %arg3[%c0_59, %c0_60] : memref<1x128xf32, #tpu.memory_space<vmem>>, vector<1x128xf32>
      %c0_61 = arith.constant 0 : index
      %c0_62 = arith.constant 0 : index
      %163 = vector.load %arg4[%c0_61, %c0_62] : memref<1x128xf32, #tpu.memory_space<vmem>>, vector<1x128xf32>
      %cst_63 = arith.constant dense<0.000000e+00> : vector<256xf32>
      %164 = vector.multi_reduction <add>, %161, %cst_63 [1] : vector<256x128xf32> to vector<256xf32>
      %165 = vector.shape_cast %164 : vector<256xf32> to vector<256x1xf32>
      %cst_64 = arith.constant 1.280000e+02 : f32
      %166 = vector.broadcast %cst_64 : f32 to vector<256x1xf32>
      %167 = arith.divf %165, %166 : vector<256x1xf32>
      %168 = vector.broadcast %167 : vector<256x1xf32> to vector<256x128xf32>
      %169 = arith.subf %161, %168 : vector<256x128xf32>
      %170 = arith.mulf %169, %169 : vector<256x128xf32>
      %cst_65 = arith.constant dense<0.000000e+00> : vector<256xf32>
      %171 = vector.multi_reduction <add>, %170, %cst_65 [1] : vector<256x128xf32> to vector<256xf32>
      %172 = vector.shape_cast %171 : vector<256xf32> to vector<256x1xf32>
      %cst_66 = arith.constant 1.280000e+02 : f32
      %173 = vector.broadcast %cst_66 : f32 to vector<256x1xf32>
      %174 = arith.divf %172, %173 : vector<256x1xf32>
      %175 = vector.broadcast %167 : vector<256x1xf32> to vector<256x128xf32>
      %176 = arith.subf %161, %175 : vector<256x128xf32>
      %cst_67 = arith.constant 9.99999996E-13 : f32
      %177 = vector.broadcast %cst_67 : f32 to vector<256x1xf32>
      %178 = arith.addf %174, %177 : vector<256x1xf32>
      %179 = math.rsqrt %178 : vector<256x1xf32>
      %180 = vector.broadcast %179 : vector<256x1xf32> to vector<256x128xf32>
      %181 = arith.mulf %176, %180 : vector<256x128xf32>
      %182 = vector.broadcast %162 : vector<1x128xf32> to vector<256x128xf32>
      %183 = arith.mulf %181, %182 : vector<256x128xf32>
      %184 = vector.broadcast %163 : vector<1x128xf32> to vector<256x128xf32>
      %185 = arith.addf %183, %184 : vector<256x128xf32>
      %c0_68 = arith.constant 0 : index
      %c0_69 = arith.constant 0 : index
      %186 = vector.load %arg14[%c0_68, %c0_69] : memref<256x128xf32, #tpu.memory_space<vmem>>, vector<256x128xf32>
      tpu.vector_store %arg14[%c0_68, %c0_69], %185 {strides = array<i32>} : memref<256x128xf32, #tpu.memory_space<vmem>>, vector<256x128xf32>,
    } else {
    }
    %c0 = arith.constant 0 : index
    %c0_1 = arith.constant 0 : index
    %3 = vector.load %arg14[%c0, %c0_1] : memref<256x128xf32, #tpu.memory_space<vmem>>, vector<256x128xf32>
    %c0_2 = arith.constant 0 : index
    %c0_3 = arith.constant 0 : index
    %c0_4 = arith.constant 0 : index
    %4 = vector.load %arg11[%c0_2, %c0_3, %c0_4] : memref<1x9x128xf32, #tpu.memory_space<vmem>>, vector<1x9x128xf32>
    %5 = vector.shape_cast %4 : vector<1x9x128xf32> to vector<9x128xf32>
    %6 = vector.extract_strided_slice %5 {offsets = [0, 0], sizes = [1, 128], strides = [1, 1]} : vector<9x128xf32> to vector<1x128xf32>
    %7 = vector.extract_strided_slice %5 {offsets = [1, 0], sizes = [1, 128], strides = [1, 1]} : vector<9x128xf32> to vector<1x128xf32>
    %8 = vector.extract_strided_slice %5 {offsets = [2, 0], sizes = [1, 128], strides = [1, 1]} : vector<9x128xf32> to vector<1x128xf32>
    %9 = vector.extract_strided_slice %5 {offsets = [3, 0], sizes = [1, 128], strides = [1, 1]} : vector<9x128xf32> to vector<1x128xf32>
    %10 = vector.extract_strided_slice %5 {offsets = [4, 0], sizes = [1, 128], strides = [1, 1]} : vector<9x128xf32> to vector<1x128xf32>
    %11 = vector.extract_strided_slice %5 {offsets = [5, 0], sizes = [1, 128], strides = [1, 1]} : vector<9x128xf32> to vector<1x128xf32>
    %12 = vector.extract_strided_slice %5 {offsets = [6, 0], sizes = [1, 128], strides = [1, 1]} : vector<9x128xf32> to vector<1x128xf32>
    %13 = vector.extract_strided_slice %5 {offsets = [7, 0], sizes = [1, 128], strides = [1, 1]} : vector<9x128xf32> to vector<1x128xf32>
    %14 = vector.extract_strided_slice %5 {offsets = [8, 0], sizes = [1, 128], strides = [1, 1]} : vector<9x128xf32> to vector<1x128xf32>
    %c0_5 = arith.constant 0 : index
    %c0_6 = arith.constant 0 : index
    %c0_7 = arith.constant 0 : index
    %15 = vector.load %arg12[%c0_5, %c0_6, %c0_7] : memref<1x1x512xf32, #tpu.memory_space<vmem>>, vector<1x1x512xf32>
    %16 = vector.shape_cast %15 : vector<1x1x512xf32> to vector<1x512xf32>
    %17 = arith.truncf %3 : vector<256x128xf32> to vector<256x128xbf16>
    %c0_8 = arith.constant 0 : index
    %c0_9 = arith.constant 0 : index
    %c0_10 = arith.constant 0 : index
    %18 = vector.load %arg5[%c0_8, %c0_9, %c0_10] : memref<1x128x128xbf16, #tpu.memory_space<vmem>>, vector<1x128x128xbf16>
    %19 = vector.shape_cast %18 : vector<1x128x128xbf16> to vector<128x128xbf16>
    %cst = arith.constant dense<0.000000e+00> : vector<256x128xf32>
    %20 = tpu.matmul %17, %19, %cst {dimension_numbers = #tpu.dot_dimension_numbers<[1], [0], [0], [1], [0, 0, 1, 1], [], []>} : vector<256x128xbf16>, vector<128x128xbf16>, vector<256x128xf32> -> vector<256x128xf32>
    %21 = vector.broadcast %6 : vector<1x128xf32> to vector<256x128xf32>
    %22 = arith.addf %20, %21 : vector<256x128xf32>
    %c0_11 = arith.constant 0 : index
    %c0_12 = arith.constant 0 : index
    %c0_13 = arith.constant 0 : index
    %23 = vector.load %arg6[%c0_11, %c0_12, %c0_13] : memref<1x128x128xbf16, #tpu.memory_space<vmem>>, vector<1x128x128xbf16>
    %24 = vector.shape_cast %23 : vector<1x128x128xbf16> to vector<128x128xbf16>
    %cst_14 = arith.constant dense<0.000000e+00> : vector<256x128xf32>
    %25 = tpu.matmul %17, %24, %cst_14 {dimension_numbers = #tpu.dot_dimension_numbers<[1], [0], [0], [1], [0, 0, 1, 1], [], []>} : vector<256x128xbf16>, vector<128x128xbf16>, vector<256x128xf32> -> vector<256x128xf32>
    %26 = vector.broadcast %7 : vector<1x128xf32> to vector<256x128xf32>
    %27 = arith.addf %25, %26 : vector<256x128xf32>
    %c0_15 = arith.constant 0 : index
    %c0_16 = arith.constant 0 : index
    %c0_17 = arith.constant 0 : index
    %28 = vector.load %arg7[%c0_15, %c0_16, %c0_17] : memref<1x128x128xbf16, #tpu.memory_space<vmem>>, vector<1x128x128xbf16>
    %29 = vector.shape_cast %28 : vector<1x128x128xbf16> to vector<128x128xbf16>
    %cst_18 = arith.constant dense<0.000000e+00> : vector<256x128xf32>
    %30 = tpu.matmul %17, %29, %cst_18 {dimension_numbers = #tpu.dot_dimension_numbers<[1], [0], [0], [1], [0, 0, 1, 1], [], []>} : vector<256x128xbf16>, vector<128x128xbf16>, vector<256x128xf32> -> vector<256x128xf32>
    %31 = vector.broadcast %8 : vector<1x128xf32> to vector<256x128xf32>
    %32 = arith.addf %30, %31 : vector<256x128xf32>
    %33 = arith.truncf %22 : vector<256x128xf32> to vector<256x128xbf16>
    %34 = arith.truncf %27 : vector<256x128xf32> to vector<256x128xbf16>
    %35 = arith.truncf %32 : vector<256x128xf32> to vector<256x128xbf16>
    %36 = vector.extract_strided_slice %33 {offsets = [0, 0], sizes = [128, 128], strides = [1, 1]} : vector<256x128xbf16> to vector<128x128xbf16>
    %37 = vector.shape_cast %36 : vector<128x128xbf16> to vector<128x2x64xbf16>
    %38 = vector.extract_strided_slice %34 {offsets = [0, 0], sizes = [128, 128], strides = [1, 1]} : vector<256x128xbf16> to vector<128x128xbf16>
    %39 = vector.shape_cast %38 : vector<128x128xbf16> to vector<128x2x64xbf16>
    %40 = vector.extract_strided_slice %35 {offsets = [0, 0], sizes = [128, 128], strides = [1, 1]} : vector<256x128xbf16> to vector<128x128xbf16>
    %41 = vector.shape_cast %40 : vector<128x128xbf16> to vector<128x2x64xbf16>
    "tpu.trace_start"() <{level = 10 : i32, message = "qhd,khd->hqk"}> : () -> ()
    %cst_19 = arith.constant dense<0.000000e+00> : vector<2x128x128xf32>
    %42 = tpu.matmul %37, %39, %cst_19 {dimension_numbers = #tpu.dot_dimension_numbers<[2], [2], [0], [0], [0, 1, 0, 0, 1, 0], [1], [1]>} : vector<128x2x64xbf16>, vector<128x2x64xbf16>, vector<2x128x128xf32> -> vector<2x128x128xf32>
    "tpu.trace_stop"() : () -> ()
    %cst_20 = arith.constant dense<0xFF800000> : vector<2x128xf32>
    %43 = vector.multi_reduction <maximumf>, %42, %cst_20 [2] : vector<2x128x128xf32> to vector<2x128xf32>
    %44 = vector.shape_cast %43 : vector<2x128xf32> to vector<2x128x1xf32>
    %45 = vector.broadcast %44 : vector<2x128x1xf32> to vector<2x128x128xf32>
    %46 = arith.subf %42, %45 : vector<2x128x128xf32>
    %47 = math.exp %46 : vector<2x128x128xf32>
    %cst_21 = arith.constant dense<0.000000e+00> : vector<2x128xf32>
    %48 = vector.multi_reduction <add>, %47, %cst_21 [2] : vector<2x128x128xf32> to vector<2x128xf32>
    %49 = vector.shape_cast %48 : vector<2x128xf32> to vector<2x128x1xf32>
    %50 = tpu.reciprocal %49 {approx = true} : vector<2x128x1xf32> -> vector<2x128x1xf32>
    %51 = vector.broadcast %50 : vector<2x128x1xf32> to vector<2x128x128xf32>
    %52 = arith.mulf %47, %51 : vector<2x128x128xf32>
    %53 = arith.truncf %52 : vector<2x128x128xf32> to vector<2x128x128xbf16>
    "tpu.trace_start"() <{level = 10 : i32, message = "hqk,khd->qhd"}> : () -> ()
    %cst_22 = arith.constant dense<0.000000e+00> : vector<2x64x128xf32>
    %54 = tpu.matmul %41, %53, %cst_22 {dimension_numbers = #tpu.dot_dimension_numbers<[0], [2], [2], [1], [0, 1, 0, 2, 1, 1], [1], [0]>} : vector<128x2x64xbf16>, vector<2x128x128xbf16>, vector<2x64x128xf32> -> vector<2x64x128xf32>
    %55 = tpu.transpose %54, [2, 0, 1] : vector<2x64x128xf32> -> vector<128x2x64xf32>
    "tpu.trace_stop"() : () -> ()
    %56 = vector.shape_cast %55 : vector<128x2x64xf32> to vector<128x128xf32>
    %57 = vector.extract_strided_slice %33 {offsets = [128, 0], sizes = [128, 128], strides = [1, 1]} : vector<256x128xbf16> to vector<128x128xbf16>
    %58 = vector.shape_cast %57 : vector<128x128xbf16> to vector<128x2x64xbf16>
    %59 = vector.extract_strided_slice %34 {offsets = [128, 0], sizes = [128, 128], strides = [1, 1]} : vector<256x128xbf16> to vector<128x128xbf16>
    %60 = vector.shape_cast %59 : vector<128x128xbf16> to vector<128x2x64xbf16>
    %61 = vector.extract_strided_slice %35 {offsets = [128, 0], sizes = [128, 128], strides = [1, 1]} : vector<256x128xbf16> to vector<128x128xbf16>
    %62 = vector.shape_cast %61 : vector<128x128xbf16> to vector<128x2x64xbf16>
    "tpu.trace_start"() <{level = 10 : i32, message = "qhd,khd->hqk"}> : () -> ()
    %cst_23 = arith.constant dense<0.000000e+00> : vector<2x128x128xf32>
    %63 = tpu.matmul %58, %60, %cst_23 {dimension_numbers = #tpu.dot_dimension_numbers<[2], [2], [0], [0], [0, 1, 0, 0, 1, 0], [1], [1]>} : vector<128x2x64xbf16>, vector<128x2x64xbf16>, vector<2x128x128xf32> -> vector<2x128x128xf32>
    "tpu.trace_stop"() : () -> ()
    %cst_24 = arith.constant dense<0xFF800000> : vector<2x128xf32>
    %64 = vector.multi_reduction <maximumf>, %63, %cst_24 [2] : vector<2x128x128xf32> to vector<2x128xf32>
    %65 = vector.shape_cast %64 : vector<2x128xf32> to vector<2x128x1xf32>
    %66 = vector.broadcast %65 : vector<2x128x1xf32> to vector<2x128x128xf32>
    %67 = arith.subf %63, %66 : vector<2x128x128xf32>
    %68 = math.exp %67 : vector<2x128x128xf32>
    %cst_25 = arith.constant dense<0.000000e+00> : vector<2x128xf32>
    %69 = vector.multi_reduction <add>, %68, %cst_25 [2] : vector<2x128x128xf32> to vector<2x128xf32>
    %70 = vector.shape_cast %69 : vector<2x128xf32> to vector<2x128x1xf32>
    %71 = tpu.reciprocal %70 {approx = true} : vector<2x128x1xf32> -> vector<2x128x1xf32>
    %72 = vector.broadcast %71 : vector<2x128x1xf32> to vector<2x128x128xf32>
    %73 = arith.mulf %68, %72 : vector<2x128x128xf32>
    %74 = arith.truncf %73 : vector<2x128x128xf32> to vector<2x128x128xbf16>
    "tpu.trace_start"() <{level = 10 : i32, message = "hqk,khd->qhd"}> : () -> ()
    %cst_26 = arith.constant dense<0.000000e+00> : vector<2x64x128xf32>
    %75 = tpu.matmul %62, %74, %cst_26 {dimension_numbers = #tpu.dot_dimension_numbers<[0], [2], [2], [1], [0, 1, 0, 2, 1, 1], [1], [0]>} : vector<128x2x64xbf16>, vector<2x128x128xbf16>, vector<2x64x128xf32> -> vector<2x64x128xf32>
    %76 = tpu.transpose %75, [2, 0, 1] : vector<2x64x128xf32> -> vector<128x2x64xf32>
    "tpu.trace_stop"() : () -> ()
    %77 = vector.shape_cast %76 : vector<128x2x64xf32> to vector<128x128xf32>
    %78 = tpu.concatenate %56, %77 in 0 : vector<128x128xf32>, vector<128x128xf32> -> vector<256x128xf32>
    %79 = arith.truncf %78 : vector<256x128xf32> to vector<256x128xbf16>
    %c0_27 = arith.constant 0 : index
    %c0_28 = arith.constant 0 : index
    %c0_29 = arith.constant 0 : index
    %80 = vector.load %arg8[%c0_27, %c0_28, %c0_29] : memref<1x128x128xbf16, #tpu.memory_space<vmem>>, vector<1x128x128xbf16>
    %81 = vector.shape_cast %80 : vector<1x128x128xbf16> to vector<128x128xbf16>
    %cst_30 = arith.constant dense<0.000000e+00> : vector<256x128xf32>
    %82 = tpu.matmul %79, %81, %cst_30 {dimension_numbers = #tpu.dot_dimension_numbers<[1], [0], [0], [1], [0, 0, 1, 1], [], []>} : vector<256x128xbf16>, vector<128x128xbf16>, vector<256x128xf32> -> vector<256x128xf32>
    %83 = vector.broadcast %9 : vector<1x128xf32> to vector<256x128xf32>
    %84 = arith.addf %82, %83 : vector<256x128xf32>
    %85 = arith.addf %3, %84 : vector<256x128xf32>
    %cst_31 = arith.constant dense<0.000000e+00> : vector<256xf32>
    %86 = vector.multi_reduction <add>, %85, %cst_31 [1] : vector<256x128xf32> to vector<256xf32>
    %87 = vector.shape_cast %86 : vector<256xf32> to vector<256x1xf32>
    %cst_32 = arith.constant 1.280000e+02 : f32
    %88 = vector.broadcast %cst_32 : f32 to vector<256x1xf32>
    %89 = arith.divf %87, %88 : vector<256x1xf32>
    %90 = vector.broadcast %89 : vector<256x1xf32> to vector<256x128xf32>
    %91 = arith.subf %85, %90 : vector<256x128xf32>
    %92 = arith.mulf %91, %91 : vector<256x128xf32>
    %cst_33 = arith.constant dense<0.000000e+00> : vector<256xf32>
    %93 = vector.multi_reduction <add>, %92, %cst_33 [1] : vector<256x128xf32> to vector<256xf32>
    %94 = vector.shape_cast %93 : vector<256xf32> to vector<256x1xf32>
    %cst_34 = arith.constant 1.280000e+02 : f32
    %95 = vector.broadcast %cst_34 : f32 to vector<256x1xf32>
    %96 = arith.divf %94, %95 : vector<256x1xf32>
    %97 = vector.broadcast %89 : vector<256x1xf32> to vector<256x128xf32>
    %98 = arith.subf %85, %97 : vector<256x128xf32>
    %cst_35 = arith.constant 9.99999996E-13 : f32
    %99 = vector.broadcast %cst_35 : f32 to vector<256x1xf32>
    %100 = arith.addf %96, %99 : vector<256x1xf32>
    %101 = math.rsqrt %100 : vector<256x1xf32>
    %102 = vector.broadcast %101 : vector<256x1xf32> to vector<256x128xf32>
    %103 = arith.mulf %98, %102 : vector<256x128xf32>
    %104 = vector.broadcast %11 : vector<1x128xf32> to vector<256x128xf32>
    %105 = arith.mulf %103, %104 : vector<256x128xf32>
    %106 = vector.broadcast %12 : vector<1x128xf32> to vector<256x128xf32>
    %107 = arith.addf %105, %106 : vector<256x128xf32>
    %108 = arith.truncf %107 : vector<256x128xf32> to vector<256x128xbf16>
    %c0_36 = arith.constant 0 : index
    %c0_37 = arith.constant 0 : index
    %c0_38 = arith.constant 0 : index
    %109 = vector.load %arg9[%c0_36, %c0_37, %c0_38] : memref<1x128x512xbf16, #tpu.memory_space<vmem>>, vector<1x128x512xbf16>
    %110 = vector.shape_cast %109 : vector<1x128x512xbf16> to vector<128x512xbf16>
    %cst_39 = arith.constant dense<0.000000e+00> : vector<256x512xf32>
    %111 = tpu.matmul %108, %110, %cst_39 {dimension_numbers = #tpu.dot_dimension_numbers<[1], [0], [0], [1], [0, 0, 1, 1], [], []>} : vector<256x128xbf16>, vector<128x512xbf16>, vector<256x512xf32> -> vector<256x512xf32>
    %112 = vector.broadcast %16 : vector<1x512xf32> to vector<256x512xf32>
    %113 = arith.addf %111, %112 : vector<256x512xf32>
    %114 = arith.mulf %113, %113 : vector<256x512xf32>
    %115 = arith.mulf %113, %114 : vector<256x512xf32>
    %cst_40 = arith.constant 4.471500e-02 : f32
    %116 = vector.broadcast %cst_40 : f32 to vector<256x512xf32>
    %117 = arith.mulf %116, %115 : vector<256x512xf32>
    %118 = arith.addf %113, %117 : vector<256x512xf32>
    %cst_41 = arith.constant 0.797884583 : f32
    %119 = vector.broadcast %cst_41 : f32 to vector<256x512xf32>
    %120 = arith.mulf %119, %118 : vector<256x512xf32>
    %121 = math.tanh %120 : vector<256x512xf32>
    %cst_42 = arith.constant 1.000000e+00 : f32
    %122 = vector.broadcast %cst_42 : f32 to vector<256x512xf32>
    %123 = arith.addf %122, %121 : vector<256x512xf32>
    %cst_43 = arith.constant 5.000000e-01 : f32
    %124 = vector.broadcast %cst_43 : f32 to vector<256x512xf32>
    %125 = arith.mulf %124, %123 : vector<256x512xf32>
    %126 = arith.mulf %113, %125 : vector<256x512xf32>
    %127 = arith.truncf %126 : vector<256x512xf32> to vector<256x512xbf16>
    %c0_44 = arith.constant 0 : index
    %c0_45 = arith.constant 0 : index
    %c0_46 = arith.constant 0 : index
    %128 = vector.load %arg10[%c0_44, %c0_45, %c0_46] : memref<1x512x128xbf16, #tpu.memory_space<vmem>>, vector<1x512x128xbf16>
    %129 = vector.shape_cast %128 : vector<1x512x128xbf16> to vector<512x128xbf16>
    %cst_47 = arith.constant dense<0.000000e+00> : vector<256x128xf32>
    %130 = tpu.matmul %127, %129, %cst_47 {dimension_numbers = #tpu.dot_dimension_numbers<[1], [0], [0], [1], [0, 0, 1, 1], [], []>} : vector<256x512xbf16>, vector<512x128xbf16>, vector<256x128xf32> -> vector<256x128xf32>
    %131 = vector.broadcast %10 : vector<1x128xf32> to vector<256x128xf32>
    %132 = arith.addf %130, %131 : vector<256x128xf32>
    %133 = arith.addf %107, %132 : vector<256x128xf32>
    %cst_48 = arith.constant dense<0.000000e+00> : vector<256xf32>
    %134 = vector.multi_reduction <add>, %133, %cst_48 [1] : vector<256x128xf32> to vector<256xf32>
    %135 = vector.shape_cast %134 : vector<256xf32> to vector<256x1xf32>
    %cst_49 = arith.constant 1.280000e+02 : f32
    %136 = vector.broadcast %cst_49 : f32 to vector<256x1xf32>
    %137 = arith.divf %135, %136 : vector<256x1xf32>
    %138 = vector.broadcast %137 : vector<256x1xf32> to vector<256x128xf32>
    %139 = arith.subf %133, %138 : vector<256x128xf32>
    %140 = arith.mulf %139, %139 : vector<256x128xf32>
    %cst_50 = arith.constant dense<0.000000e+00> : vector<256xf32>
    %141 = vector.multi_reduction <add>, %140, %cst_50 [1] : vector<256x128xf32> to vector<256xf32>
    %142 = vector.shape_cast %141 : vector<256xf32> to vector<256x1xf32>
    %cst_51 = arith.constant 1.280000e+02 : f32
    %143 = vector.broadcast %cst_51 : f32 to vector<256x1xf32>
    %144 = arith.divf %142, %143 : vector<256x1xf32>
    %145 = vector.broadcast %137 : vector<256x1xf32> to vector<256x128xf32>
    %146 = arith.subf %133, %145 : vector<256x128xf32>
    %cst_52 = arith.constant 9.99999996E-13 : f32
    %147 = vector.broadcast %cst_52 : f32 to vector<256x1xf32>
    %148 = arith.addf %144, %147 : vector<256x1xf32>
    %149 = math.rsqrt %148 : vector<256x1xf32>
    %150 = vector.broadcast %149 : vector<256x1xf32> to vector<256x128xf32>
    %151 = arith.mulf %146, %150 : vector<256x128xf32>
    %152 = vector.broadcast %13 : vector<1x128xf32> to vector<256x128xf32>
    %153 = arith.mulf %151, %152 : vector<256x128xf32>
    %154 = vector.broadcast %14 : vector<1x128xf32> to vector<256x128xf32>
    %155 = arith.addf %153, %154 : vector<256x128xf32>
    %c0_53 = arith.constant 0 : index
    %c0_54 = arith.constant 0 : index
    %156 = vector.load %arg14[%c0_53, %c0_54] : memref<256x128xf32, #tpu.memory_space<vmem>>, vector<256x128xf32>
    tpu.vector_store %arg14[%c0_53, %c0_54], %155 {strides = array<i32>} : memref<256x128xf32, #tpu.memory_space<vmem>>, vector<256x128xf32>,
    %c1_i32 = arith.constant 1 : i32
    %157 = arith.cmpi eq, %arg1, %c1_i32 : i32
    %158 = arith.extui %157 : i1 to i32
    %c0_i32_55 = arith.constant 0 : i32
    %159 = arith.cmpi ne, %158, %c0_i32_55 : i32
    scf.if %159 {
      %160 = vector.extract_strided_slice %155 {offsets = [0, 0], sizes = [1, 128], strides = [1, 1]} : vector<256x128xf32> to vector<1x128xf32>
      %c0_56 = arith.constant 0 : index
      %c0_57 = arith.constant 0 : index
      %c0_58 = arith.constant 0 : index
      %161 = vector.load %arg13[%c0_56, %c0_57, %c0_58] : memref<2x1x128xf32, #tpu.memory_space<vmem>>, vector<1x1x128xf32>
      %162 = vector.shape_cast %161 : vector<1x1x128xf32> to vector<1x128xf32>
      %163 = vector.shape_cast %160 : vector<1x128xf32> to vector<1x1x128xf32>
      tpu.vector_store %arg13[%c0_56, %c0_57, %c0_58], %163 {strides = array<i32>} : memref<2x1x128xf32, #tpu.memory_space<vmem>>, vector<1x1x128xf32>,
      %164 = vector.extract_strided_slice %155 {offsets = [128, 0], sizes = [1, 128], strides = [1, 1]} : vector<256x128xf32> to vector<1x128xf32>
      %c1 = arith.constant 1 : index
      %c0_59 = arith.constant 0 : index
      %c0_60 = arith.constant 0 : index
      %165 = vector.load %arg13[%c1, %c0_59, %c0_60] : memref<2x1x128xf32, #tpu.memory_space<vmem>>, vector<1x1x128xf32>
      %166 = vector.shape_cast %165 : vector<1x1x128xf32> to vector<1x128xf32>
      %167 = vector.shape_cast %164 : vector<1x128xf32> to vector<1x1x128xf32>
      tpu.vector_store %arg13[%c1, %c0_59, %c0_60], %167 {strides = array<i32>} : memref<2x1x128xf32, #tpu.memory_space<vmem>>, vector<1x1x128xf32>,
    } else {
    }
    return
  }
  func.func @transform_0(%arg0: i32, %arg1: i32) -> (i32, i32, i32) {
    %c0_i32 = arith.constant 0 : i32
    %c0_i32_0 = arith.constant 0 : i32
    %c0_i32_1 = arith.constant 0 : i32
    return %arg0, %c0_i32, %c0_i32_0 : i32, i32, i32
  }
  func.func @transform_1(%arg0: i32, %arg1: i32) -> (i32, i32) {
    %c0_i32 = arith.constant 0 : i32
    %c0_i32_0 = arith.constant 0 : i32
    %c0_i32_1 = arith.constant 0 : i32
    return %c0_i32, %c0_i32_0 : i32, i32
  }
  func.func @transform_2(%arg0: i32, %arg1: i32) -> (i32, i32) {
    %c0_i32 = arith.constant 0 : i32
    %c0_i32_0 = arith.constant 0 : i32
    %c0_i32_1 = arith.constant 0 : i32
    return %c0_i32, %c0_i32_0 : i32, i32
  }
  func.func @transform_3(%arg0: i32, %arg1: i32) -> (i32, i32, i32) {
    %c0_i32 = arith.constant 0 : i32
    %c0_i32_0 = arith.constant 0 : i32
    %c0_i32_1 = arith.constant 0 : i32
    return %arg1, %c0_i32, %c0_i32_0 : i32, i32, i32
  }
  func.func @transform_4(%arg0: i32, %arg1: i32) -> (i32, i32, i32) {
    %c0_i32 = arith.constant 0 : i32
    %c0_i32_0 = arith.constant 0 : i32
    %c0_i32_1 = arith.constant 0 : i32
    return %arg1, %c0_i32, %c0_i32_0 : i32, i32, i32
  }
  func.func @transform_5(%arg0: i32, %arg1: i32) -> (i32, i32, i32) {
    %c0_i32 = arith.constant 0 : i32
    %c0_i32_0 = arith.constant 0 : i32
    %c0_i32_1 = arith.constant 0 : i32
    return %arg1, %c0_i32, %c0_i32_0 : i32, i32, i32
  }
  func.func @transform_6(%arg0: i32, %arg1: i32) -> (i32, i32, i32) {
    %c0_i32 = arith.constant 0 : i32
    %c0_i32_0 = arith.constant 0 : i32
    %c0_i32_1 = arith.constant 0 : i32
    return %arg1, %c0_i32, %c0_i32_0 : i32, i32, i32
  }
  func.func @transform_7(%arg0: i32, %arg1: i32) -> (i32, i32, i32) {
    %c0_i32 = arith.constant 0 : i32
    %c0_i32_0 = arith.constant 0 : i32
    %c0_i32_1 = arith.constant 0 : i32
    return %arg1, %c0_i32, %c0_i32_0 : i32, i32, i32
  }
  func.func @transform_8(%arg0: i32, %arg1: i32) -> (i32, i32, i32) {
    %c0_i32 = arith.constant 0 : i32
    %c0_i32_0 = arith.constant 0 : i32
    %c0_i32_1 = arith.constant 0 : i32
    return %arg1, %c0_i32, %c0_i32_0 : i32, i32, i32
  }
  func.func @transform_9(%arg0: i32, %arg1: i32) -> (i32, i32, i32) {
    %c0_i32 = arith.constant 0 : i32
    %c0_i32_0 = arith.constant 0 : i32
    %c0_i32_1 = arith.constant 0 : i32
    return %arg1, %c0_i32, %c0_i32_0 : i32, i32, i32
  }
  func.func @transform_10(%arg0: i32, %arg1: i32) -> (i32, i32, i32) {
    %c0_i32 = arith.constant 0 : i32
    %c0_i32_0 = arith.constant 0 : i32
    %c0_i32_1 = arith.constant 0 : i32
    return %arg1, %c0_i32, %c0_i32_0 : i32, i32, i32
  }
  func.func @transform_11(%arg0: i32, %arg1: i32) -> (i32, i32, i32) {
    %c0_i32 = arith.constant 0 : i32
    %c0_i32_0 = arith.constant 0 : i32
    %c0_i32_1 = arith.constant 0 : i32
    return %arg0, %c0_i32, %c0_i32_0 : i32, i32, i32
  }
}

</mosaic_0001>

<llo_original>
// kernel: kosimct_forward.1
$region0: #{kosimct_forward.1}
  #allocation0 [shape = 'u32[]', space=smem, size = 0x4, offset = 0x4, fixed_abs, tag = 'smem constant byte address 0x4 - core index']
  #allocation1 [shape = 'u32[144,128]{1,0:T(1,128)}', space=vmem, size = 0x12000, scoped, tag = 'internal scratch']
  #allocation2 [shape = 'f32[256,128]{1,0:T(8,128)}', space=vmem, size = 0x20000, scoped, tag = 'scratch operand']
  %s0 = inlined_call_operand.vmem [shape: f32[2,128,128], index: 0, kind: input, shape index: {}]
  %s1 = inlined_call_operand.vmem [shape: f32[1,128], index: 1, kind: input, shape index: {}]
  %s2 = inlined_call_operand.vmem [shape: f32[1,128], index: 2, kind: input, shape index: {}]
  %s3 = inlined_call_operand.vmem [shape: bf16[2,128,128], index: 3, kind: input, shape index: {}]
  %s4 = inlined_call_operand.vmem [shape: bf16[2,128,128], index: 4, kind: input, shape index: {}]
  %s5 = inlined_call_operand.vmem [shape: bf16[2,128,128], index: 5, kind: input, shape index: {}]
  %s6 = inlined_call_operand.vmem [shape: bf16[2,128,128], index: 6, kind: input, shape index: {}]
  %s7 = inlined_call_operand.vmem [shape: bf16[2,128,512], index: 7, kind: input, shape index: {}]
  %s8 = inlined_call_operand.vmem [shape: bf16[2,512,128], index: 8, kind: input, shape index: {}]
  %s9 = inlined_call_operand.vmem [shape: f32[2,9,128], index: 9, kind: input, shape index: {}]
  %s10 = inlined_call_operand.vmem [shape: f32[2,1,512], index: 10, kind: input, shape index: {}]
  %s11 = inlined_call_operand.hbm [shape: f32[2,1,128], index: 11, kind: output, shape index: {}]
  %s12 = sld [smem:[#allocation0]]
  $region85: #{kosimct_forward.1} parent=0
    _
  %s14 = ssub.s32 1, %s12
  %s15 = scalar_select 0, %s14, %s12
  $region1: #{kosimct_forward.1} parent=0
    #allocation3 [shape = 'u8[1024]{0}', space=vmem, size = 0x400, scoped, tag = 'output window, operand 0, single buffered']
    #allocation4 [shape = 's32[2]{0}', space=sflag, size = 0x8, scoped, tag = 'scoped memory for kosimct_forward.1']
    %16 = vsyncpa [#allocation4], 0
    loop: start=0, step=1, limit=4
    $region2: #{kosimct_forward.1} parent=1 // loop_pre_header
      _
    $region3: #{kosimct_forward.1} parent=1 // loop_header
      %s18 = sphi 0, %s22
      %p19 = scmp.ge.s32.totalorder %s18, 4
      %s25 = sphi 0, %s37
      %s26 = sphi 0, %s33
      %s27 = sphi 0, %s25
      %s28 = sphi 0, %s26
      %s29 = sphi 0, %s27
      %s30 = sphi 0, %s28
      %s40 = sphi 0, %s42
      %s43 = sphi 0, %s40
      %s44 = sphi 0, %s43
      %s60 = sphi 0, %s44
      %s64 = sphi 0, %s64
      %s66 = sphi 0, %s64
      %s67 = sphi 0, %s66
      %s81 = sphi 0, %s67
      %s85 = sphi 0, %s85
      %s87 = sphi 0, %s85
      %s88 = sphi 0, %s87
      %s102 = sphi 0, %s88
      %s108 = sphi 0, %s110
      %s111 = sphi 0, %s108
      %s112 = sphi 0, %s111
      %s128 = sphi 0, %s112
      %s134 = sphi 0, %s136
      %s137 = sphi 0, %s134
      %s138 = sphi 0, %s137
      %s154 = sphi 0, %s138
      %s160 = sphi 0, %s162
      %s163 = sphi 0, %s160
      %s164 = sphi 0, %s163
      %s180 = sphi 0, %s164
      %s186 = sphi 0, %s188
      %s189 = sphi 0, %s186
      %s190 = sphi 0, %s189
      %s206 = sphi 0, %s190
      %s212 = sphi 0, %s214
      %s215 = sphi 0, %s212
      %s216 = sphi 0, %s215
      %s232 = sphi 0, %s216
      %s238 = sphi 0, %s240
      %s241 = sphi 0, %s238
      %s242 = sphi 0, %s241
      %s258 = sphi 0, %s242
      %s264 = sphi 0, %s266
      %s267 = sphi 0, %s264
      %s268 = sphi 0, %s267
      %s284 = sphi 0, %s268
      %s290 = sphi 0, %s292
      %s293 = sphi 0, %s290
      %s294 = sphi 0, %s293
      %s310 = sphi 0, %s294
      %s316 = sphi 0, %s318
      %s319 = sphi 0, %s316
      %s320 = sphi 0, %s319
      %s336 = sphi 0, %s320
    $region4: #{kosimct_forward.1} parent=1 // loop_header_branch
      %21 = sbr.rel (%p19) target = $region8
    $region5: #{kosimct_forward.1} parent=1 // loop_body
      %s23 = ssub.s32 %s18, 1
      %s24 = ssub.s32 %s18, 2
      %s31 = sadd.s32 1, %s26
      %p32 = scmp.ge.s32.totalorder %s31, 2
      %s33 = scalar_select %p32, 0, %s31
      %s34 = sadd.s32 1, %s25
      %s35 = scalar_select %p32, %s34, %s25
      %p36 = scmp.ge.s32.totalorder %s35, 1
      %s37 = scalar_select %p36, 0, %s35
      %s38 = ssub.s32 %s25, %s37
      %p39 = scmp.eq.s32.totalorder %s38, 0
      %s41 = sadd.s32 %s40, 1
      %s42 = scalar_select %p39, %s40, %s41
      %p45 = pneg %p39
      %p46 = scmp.eq.s32.totalorder %s18, 1
      %p47 = por %p45, %p46
      %p48 = scmp.ne.s32.totalorder %s40, %s43
      %p49 = scmp.eq.s32.totalorder %s18, 0
      %p50 = por %p48, %p49
      %p51 = scmp.ne.s32.totalorder %s40, %s43
      %p52 = scmp.eq.s32.totalorder %s23, 1
      %p53 = por %p51, %p52
      %p54 = scmp.ne.s32.totalorder %s43, %s44
      %p55 = scmp.eq.s32.totalorder %s23, 0
      %p56 = por %p54, %p55
      %p57 = scmp.ne.s32.totalorder %s43, %s44
      %p58 = scmp.eq.s32.totalorder %s24, 1
      %p59 = por %p57, %p58
      %p61 = scmp.ne.s32.totalorder %s44, %s60
      %p62 = scmp.eq.s32.totalorder %s24, 0
      %p63 = por %p61, %p62
      %s65 = sadd.s32 %s64, 1
      %p68 = scmp.eq.s32.totalorder %s18, 1
      %p69 = scmp.ne.s32.totalorder %s64, %s66
      %p70 = scmp.eq.s32.totalorder %s18, 0
      %p71 = por %p69, %p70
      %p72 = scmp.ne.s32.totalorder %s64, %s66
      %p73 = scmp.eq.s32.totalorder %s23, 1
      %p74 = por %p72, %p73
      %p75 = scmp.ne.s32.totalorder %s66, %s67
      %p76 = scmp.eq.s32.totalorder %s23, 0
      %p77 = por %p75, %p76
      %p78 = scmp.ne.s32.totalorder %s66, %s67
      %p79 = scmp.eq.s32.totalorder %s24, 1
      %p80 = por %p78, %p79
      %p82 = scmp.ne.s32.totalorder %s67, %s81
      %p83 = scmp.eq.s32.totalorder %s24, 0
      %p84 = por %p82, %p83
      %s86 = sadd.s32 %s85, 1
      %p89 = scmp.eq.s32.totalorder %s18, 1
      %p90 = scmp.ne.s32.totalorder %s85, %s87
      %p91 = scmp.eq.s32.totalorder %s18, 0
      %p92 = por %p90, %p91
      %p93 = scmp.ne.s32.totalorder %s85, %s87
      %p94 = scmp.eq.s32.totalorder %s23, 1
      %p95 = por %p93, %p94
      %p96 = scmp.ne.s32.totalorder %s87, %s88
      %p97 = scmp.eq.s32.totalorder %s23, 0
      %p98 = por %p96, %p97
      %p99 = scmp.ne.s32.totalorder %s87, %s88
      %p100 = scmp.eq.s32.totalorder %s24, 1
      %p101 = por %p99, %p100
      %p103 = scmp.ne.s32.totalorder %s88, %s102
      %p104 = scmp.eq.s32.totalorder %s24, 0
      %p105 = por %p103, %p104
      %s106 = ssub.s32 %s26, %s33
      %p107 = scmp.eq.s32.totalorder %s106, 0
      %s109 = sadd.s32 %s108, 1
      %s110 = scalar_select %p107, %s108, %s109
      %p113 = pneg %p107
      %p114 = scmp.eq.s32.totalorder %s18, 1
      %p115 = por %p113, %p114
      %p116 = scmp.ne.s32.totalorder %s108, %s111
      %p117 = scmp.eq.s32.totalorder %s18, 0
      %p118 = por %p116, %p117
      %p119 = scmp.ne.s32.totalorder %s108, %s111
      %p120 = scmp.eq.s32.totalorder %s23, 1
      %p121 = por %p119, %p120
      %p122 = scmp.ne.s32.totalorder %s111, %s112
      %p123 = scmp.eq.s32.totalorder %s23, 0
      %p124 = por %p122, %p123
      %p125 = scmp.ne.s32.totalorder %s111, %s112
      %p126 = scmp.eq.s32.totalorder %s24, 1
      %p127 = por %p125, %p126
      %p129 = scmp.ne.s32.totalorder %s112, %s128
      %p130 = scmp.eq.s32.totalorder %s24, 0
      %p131 = por %p129, %p130
      %s132 = ssub.s32 %s26, %s33
      %p133 = scmp.eq.s32.totalorder %s132, 0
      %s135 = sadd.s32 %s134, 1
      %s136 = scalar_select %p133, %s134, %s135
      %p139 = pneg %p133
      %p140 = scmp.eq.s32.totalorder %s18, 1
      %p141 = por %p139, %p140
      %p142 = scmp.ne.s32.totalorder %s134, %s137
      %p143 = scmp.eq.s32.totalorder %s18, 0
      %p144 = por %p142, %p143
      %p145 = scmp.ne.s32.totalorder %s134, %s137
      %p146 = scmp.eq.s32.totalorder %s23, 1
      %p147 = por %p145, %p146
      %p148 = scmp.ne.s32.totalorder %s137, %s138
      %p149 = scmp.eq.s32.totalorder %s23, 0
      %p150 = por %p148, %p149
      %p151 = scmp.ne.s32.totalorder %s137, %s138
      %p152 = scmp.eq.s32.totalorder %s24, 1
      %p153 = por %p151, %p152
      %p155 = scmp.ne.s32.totalorder %s138, %s154
      %p156 = scmp.eq.s32.totalorder %s24, 0
      %p157 = por %p155, %p156
      %s158 = ssub.s32 %s26, %s33
      %p159 = scmp.eq.s32.totalorder %s158, 0
      %s161 = sadd.s32 %s160, 1
      %s162 = scalar_select %p159, %s160, %s161
      %p165 = pneg %p159
      %p166 = scmp.eq.s32.totalorder %s18, 1
      %p167 = por %p165, %p166
      %p168 = scmp.ne.s32.totalorder %s160, %s163
      %p169 = scmp.eq.s32.totalorder %s18, 0
      %p170 = por %p168, %p169
      %p171 = scmp.ne.s32.totalorder %s160, %s163
      %p172 = scmp.eq.s32.totalorder %s23, 1
      %p173 = por %p171, %p172
      %p174 = scmp.ne.s32.totalorder %s163, %s164
      %p175 = scmp.eq.s32.totalorder %s23, 0
      %p176 = por %p174, %p175
      %p177 = scmp.ne.s32.totalorder %s163, %s164
      %p178 = scmp.eq.s32.totalorder %s24, 1
      %p179 = por %p177, %p178
      %p181 = scmp.ne.s32.totalorder %s164, %s180
      %p182 = scmp.eq.s32.totalorder %s24, 0
      %p183 = por %p181, %p182
      %s184 = ssub.s32 %s26, %s33
      %p185 = scmp.eq.s32.totalorder %s184, 0
      %s187 = sadd.s32 %s186, 1
      %s188 = scalar_select %p185, %s186, %s187
      %p191 = pneg %p185
      %p192 = scmp.eq.s32.totalorder %s18, 1
      %p193 = por %p191, %p192
      %p194 = scmp.ne.s32.totalorder %s186, %s189
      %p195 = scmp.eq.s32.totalorder %s18, 0
      %p196 = por %p194, %p195
      %p197 = scmp.ne.s32.totalorder %s186, %s189
      %p198 = scmp.eq.s32.totalorder %s23, 1
      %p199 = por %p197, %p198
      %p200 = scmp.ne.s32.totalorder %s189, %s190
      %p201 = scmp.eq.s32.totalorder %s23, 0
      %p202 = por %p200, %p201
      %p203 = scmp.ne.s32.totalorder %s189, %s190
      %p204 = scmp.eq.s32.totalorder %s24, 1
      %p205 = por %p203, %p204
      %p207 = scmp.ne.s32.totalorder %s190, %s206
      %p208 = scmp.eq.s32.totalorder %s24, 0
      %p209 = por %p207, %p208
      %s210 = ssub.s32 %s26, %s33
      %p211 = scmp.eq.s32.totalorder %s210, 0
      %s213 = sadd.s32 %s212, 1
      %s214 = scalar_select %p211, %s212, %s213
      %p217 = pneg %p211
      %p218 = scmp.eq.s32.totalorder %s18, 1
      %p219 = por %p217, %p218
      %p220 = scmp.ne.s32.totalorder %s212, %s215
      %p221 = scmp.eq.s32.totalorder %s18, 0
      %p222 = por %p220, %p221
      %p223 = scmp.ne.s32.totalorder %s212, %s215
      %p224 = scmp.eq.s32.totalorder %s23, 1
      %p225 = por %p223, %p224
      %p226 = scmp.ne.s32.totalorder %s215, %s216
      %p227 = scmp.eq.s32.totalorder %s23, 0
      %p228 = por %p226, %p227
      %p229 = scmp.ne.s32.totalorder %s215, %s216
      %p230 = scmp.eq.s32.totalorder %s24, 1
      %p231 = por %p229, %p230
      %p233 = scmp.ne.s32.totalorder %s216, %s232
      %p234 = scmp.eq.s32.totalorder %s24, 0
      %p235 = por %p233, %p234
      %s236 = ssub.s32 %s26, %s33
      %p237 = scmp.eq.s32.totalorder %s236, 0
      %s239 = sadd.s32 %s238, 1
      %s240 = scalar_select %p237, %s238, %s239
      %p243 = pneg %p237
      %p244 = scmp.eq.s32.totalorder %s18, 1
      %p245 = por %p243, %p244
      %p246 = scmp.ne.s32.totalorder %s238, %s241
      %p247 = scmp.eq.s32.totalorder %s18, 0
      %p248 = por %p246, %p247
      %p249 = scmp.ne.s32.totalorder %s238, %s241
      %p250 = scmp.eq.s32.totalorder %s23, 1
      %p251 = por %p249, %p250
      %p252 = scmp.ne.s32.totalorder %s241, %s242
      %p253 = scmp.eq.s32.totalorder %s23, 0
      %p254 = por %p252, %p253
      %p255 = scmp.ne.s32.totalorder %s241, %s242
      %p256 = scmp.eq.s32.totalorder %s24, 1
      %p257 = por %p255, %p256
      %p259 = scmp.ne.s32.totalorder %s242, %s258
      %p260 = scmp.eq.s32.totalorder %s24, 0
      %p261 = por %p259, %p260
      %s262 = ssub.s32 %s26, %s33
      %p263 = scmp.eq.s32.totalorder %s262, 0
      %s265 = sadd.s32 %s264, 1
      %s266 = scalar_select %p263, %s264, %s265
      %p269 = pneg %p263
      %p270 = scmp.eq.s32.totalorder %s18, 1
      %p271 = por %p269, %p270
      %p272 = scmp.ne.s32.totalorder %s264, %s267
      %p273 = scmp.eq.s32.totalorder %s18, 0
      %p274 = por %p272, %p273
      %p275 = scmp.ne.s32.totalorder %s264, %s267
      %p276 = scmp.eq.s32.totalorder %s23, 1
      %p277 = por %p275, %p276
      %p278 = scmp.ne.s32.totalorder %s267, %s268
      %p279 = scmp.eq.s32.totalorder %s23, 0
      %p280 = por %p278, %p279
      %p281 = scmp.ne.s32.totalorder %s267, %s268
      %p282 = scmp.eq.s32.totalorder %s24, 1
      %p283 = por %p281, %p282
      %p285 = scmp.ne.s32.totalorder %s268, %s284
      %p286 = scmp.eq.s32.totalorder %s24, 0
      %p287 = por %p285, %p286
      %s288 = ssub.s32 %s26, %s33
      %p289 = scmp.eq.s32.totalorder %s288, 0
      %s291 = sadd.s32 %s290, 1
      %s292 = scalar_select %p289, %s290, %s291
      %p295 = pneg %p289
      %p296 = scmp.eq.s32.totalorder %s18, 1
      %p297 = por %p295, %p296
      %p298 = scmp.ne.s32.totalorder %s290, %s293
      %p299 = scmp.eq.s32.totalorder %s18, 0
      %p300 = por %p298, %p299
      %p301 = scmp.ne.s32.totalorder %s290, %s293
      %p302 = scmp.eq.s32.totalorder %s23, 1
      %p303 = por %p301, %p302
      %p304 = scmp.ne.s32.totalorder %s293, %s294
      %p305 = scmp.eq.s32.totalorder %s23, 0
      %p306 = por %p304, %p305
      %p307 = scmp.ne.s32.totalorder %s293, %s294
      %p308 = scmp.eq.s32.totalorder %s24, 1
      %p309 = por %p307, %p308
      %p311 = scmp.ne.s32.totalorder %s294, %s310
      %p312 = scmp.eq.s32.totalorder %s24, 0
      %p313 = por %p311, %p312
      %s314 = ssub.s32 %s25, %s37
      %p315 = scmp.eq.s32.totalorder %s314, 0
      %s317 = sadd.s32 %s316, 1
      %s318 = scalar_select %p315, %s316, %s317
      %p321 = pneg %p315
      %p322 = scmp.eq.s32.totalorder %s18, 1
      %p323 = por %p321, %p322
      %p324 = scmp.ne.s32.totalorder %s316, %s319
      %p325 = scmp.eq.s32.totalorder %s18, 0
      %p326 = por %p324, %p325
      %p327 = scmp.ne.s32.totalorder %s316, %s319
      %p328 = scmp.eq.s32.totalorder %s23, 1
      %p329 = por %p327, %p328
      %p330 = scmp.ne.s32.totalorder %s319, %s320
      %p331 = scmp.eq.s32.totalorder %s23, 0
      %p332 = por %p330, %p331
      %p333 = scmp.ne.s32.totalorder %s319, %s320
      %p334 = scmp.eq.s32.totalorder %s24, 1
      %p335 = por %p333, %p334
      %p337 = scmp.ne.s32.totalorder %s320, %s336
      %p338 = scmp.eq.s32.totalorder %s24, 0
      %p339 = por %p337, %p338
      %p340 = scmp.le.s32.totalorder 1, %s18
      %p341 = scmp.lt.s32.totalorder %s18, 3
      %p342 = pnand %p340, %p341
      %p343 = pneg %p342
      // Predicated region
      $region9: #{kosimct_forward.1} parent=5 // pred_check
        _
      $region10: #{kosimct_forward.1} parent=5 // pred_check_branch
        %345 = sbr.rel (%p342) target = $region12
      $region11: #{kosimct_forward.1} parent=5 // pred_region
        %s346 = ssub.s32 %s18, 1
        // Predicated region
        $region13: #{kosimct_forward.1} parent=11 // pred_check
          %p347 = pneg %p56
        $region14: #{kosimct_forward.1} parent=11 // pred_check_branch
          %349 = sbr.rel (%p347) target = $region16
        $region15: #{kosimct_forward.1} parent=11 // pred_region
          %s350 = smul.u32 2, %s27
          %p351 = scmp.lt.s32.totalorder %s350, 1
          %s352 = scalar_select %p351, %s350, 1
          %s353 = smul.addr %s352, 16
          %s354 = smul.addr %s353, 8
          %s355 = scalar_lea.vmem %s0, %s354
          %s356 = smul.u32 2, %s27
        $region16: #{kosimct_forward.1} parent=11 // pred_fallthru
          _
        // Predicated region
        $region17: #{kosimct_forward.1} parent=11 // pred_check
          %p357 = pneg %p77
        $region18: #{kosimct_forward.1} parent=11 // pred_check_branch
          %359 = sbr.rel (%p357) target = $region20
        $region19: #{kosimct_forward.1} parent=11 // pred_region
          _
        $region20: #{kosimct_forward.1} parent=11 // pred_fallthru
          _
        // Predicated region
        $region21: #{kosimct_forward.1} parent=11 // pred_check
          %p360 = pneg %p98
        $region22: #{kosimct_forward.1} parent=11 // pred_check_branch
          %362 = sbr.rel (%p360) target = $region24
        $region23: #{kosimct_forward.1} parent=11 // pred_region
          _
        $region24: #{kosimct_forward.1} parent=11 // pred_fallthru
          _
      $region12: #{kosimct_forward.1} parent=5 // pred_fallthru
        _
      %p363 = scmp.lt.s32.totalorder %s18, 2
      // Predicated region
      $region25: #{kosimct_forward.1} parent=5 // pred_check
        %p364 = pneg %p363
      $region26: #{kosimct_forward.1} parent=5 // pred_check_branch
        %366 = sbr.rel (%p364) target = $region28
      $region27: #{kosimct_forward.1} parent=5 // pred_region
        // Predicated region
        $region29: #{kosimct_forward.1} parent=27 // pred_check
          %p367 = pneg %p118
        $region30: #{kosimct_forward.1} parent=27 // pred_check_branch
          %369 = sbr.rel (%p367) target = $region32
        $region31: #{kosimct_forward.1} parent=27 // pred_region
          %p370 = scmp.lt.s32.totalorder %s26, 1
          %s371 = scalar_select %p370, %s26, 1
          %s372 = smul.addr %s371, 16
          %s373 = smul.addr %s372, 4
          %s374 = scalar_lea.vmem %s3, %s373
        $region32: #{kosimct_forward.1} parent=27 // pred_fallthru
          _
        // Predicated region
        $region33: #{kosimct_forward.1} parent=27 // pred_check
          %p375 = pneg %p144
        $region34: #{kosimct_forward.1} parent=27 // pred_check_branch
          %377 = sbr.rel (%p375) target = $region36
        $region35: #{kosimct_forward.1} parent=27 // pred_region
          %p378 = scmp.lt.s32.totalorder %s26, 1
          %s379 = scalar_select %p378, %s26, 1
          %s380 = smul.addr %s379, 16
          %s381 = smul.addr %s380, 4
          %s382 = scalar_lea.vmem %s4, %s381
        $region36: #{kosimct_forward.1} parent=27 // pred_fallthru
          _
        // Predicated region
        $region37: #{kosimct_forward.1} parent=27 // pred_check
          %p383 = pneg %p170
        $region38: #{kosimct_forward.1} parent=27 // pred_check_branch
          %385 = sbr.rel (%p383) target = $region40
        $region39: #{kosimct_forward.1} parent=27 // pred_region
          %p386 = scmp.lt.s32.totalorder %s26, 1
          %s387 = scalar_select %p386, %s26, 1
          %s388 = smul.addr %s387, 16
          %s389 = smul.addr %s388, 4
          %s390 = scalar_lea.vmem %s5, %s389
        $region40: #{kosimct_forward.1} parent=27 // pred_fallthru
          _
        // Predicated region
        $region41: #{kosimct_forward.1} parent=27 // pred_check
          %p391 = pneg %p196
        $region42: #{kosimct_forward.1} parent=27 // pred_check_branch
          %393 = sbr.rel (%p391) target = $region44
        $region43: #{kosimct_forward.1} parent=27 // pred_region
          %p394 = scmp.lt.s32.totalorder %s26, 1
          %s395 = scalar_select %p394, %s26, 1
          %s396 = smul.addr %s395, 16
          %s397 = smul.addr %s396, 4
          %s398 = scalar_lea.vmem %s6, %s397
        $region44: #{kosimct_forward.1} parent=27 // pred_fallthru
          _
        // Predicated region
        $region45: #{kosimct_forward.1} parent=27 // pred_check
          %p399 = pneg %p222
        $region46: #{kosimct_forward.1} parent=27 // pred_check_branch
          %401 = sbr.rel (%p399) target = $region48
        $region47: #{kosimct_forward.1} parent=27 // pred_region
          %p402 = scmp.lt.s32.totalorder %s26, 1
          %s403 = scalar_select %p402, %s26, 1
          %s404 = smul.addr %s403, 64
          %s405 = smul.addr %s404, 4
          %s406 = scalar_lea.vmem %s7, %s405
        $region48: #{kosimct_forward.1} parent=27 // pred_fallthru
          _
        // Predicated region
        $region49: #{kosimct_forward.1} parent=27 // pred_check
          %p407 = pneg %p248
        $region50: #{kosimct_forward.1} parent=27 // pred_check_branch
          %409 = sbr.rel (%p407) target = $region52
        $region51: #{kosimct_forward.1} parent=27 // pred_region
          %p410 = scmp.lt.s32.totalorder %s26, 1
          %s411 = scalar_select %p410, %s26, 1
          %s412 = smul.addr %s411, 64
          %s413 = smul.addr %s412, 4
          %s414 = scalar_lea.vmem %s8, %s413
        $region52: #{kosimct_forward.1} parent=27 // pred_fallthru
          _
        // Predicated region
        $region53: #{kosimct_forward.1} parent=27 // pred_check
          %p415 = pneg %p274
        $region54: #{kosimct_forward.1} parent=27 // pred_check_branch
          %417 = sbr.rel (%p415) target = $region56
        $region55: #{kosimct_forward.1} parent=27 // pred_region
          %p418 = scmp.lt.s32.totalorder %s26, 1
          %s419 = scalar_select %p418, %s26, 1
          %s420 = smul.addr %s419, 2
          %s421 = smul.addr %s420, 8
          %s422 = scalar_lea.vmem %s9, %s421
        $region56: #{kosimct_forward.1} parent=27 // pred_fallthru
          _
        // Predicated region
        $region57: #{kosimct_forward.1} parent=27 // pred_check
          %p423 = pneg %p300
        $region58: #{kosimct_forward.1} parent=27 // pred_check_branch
          %425 = sbr.rel (%p423) target = $region60
        $region59: #{kosimct_forward.1} parent=27 // pred_region
          %p426 = scmp.lt.s32.totalorder %s26, 1
          %s427 = scalar_select %p426, %s26, 1
          %s428 = smul.addr %s427, 4
          %s429 = scalar_lea.vmem %s10, %s428
        $region60: #{kosimct_forward.1} parent=27 // pred_fallthru
          _
      $region28: #{kosimct_forward.1} parent=5 // pred_fallthru
        _
      %p430 = scmp.le.s32.totalorder 1, %s18
      %p431 = scmp.lt.s32.totalorder %s18, 3
      %p432 = pnand %p430, %p431
      %p433 = pneg %p432
      // Predicated region
      $region61: #{kosimct_forward.1} parent=5 // pred_check
        _
      $region62: #{kosimct_forward.1} parent=5 // pred_check_branch
        %435 = sbr.rel (%p432) target = $region64
      $region63: #{kosimct_forward.1} parent=5 // pred_region
        %s436 = ssub.s32 %s18, 1
        %s437 = smul.u32 2, %s27
        %p438 = scmp.lt.s32.totalorder %s437, 1
        %s439 = scalar_select %p438, %s437, 1
        %s440 = smul.addr %s439, 16
        %s441 = smul.addr %s440, 8
        %s442 = scalar_lea.vmem %s0, %s441
        %p443 = pneg %p56
        %p444 = pneg %p53
        %p445 = pneg %p77
        %p446 = pneg %p74
        %p447 = pneg %p98
        %p448 = pneg %p95
        %p449 = scmp.lt.s32.totalorder %s28, 1
        %s450 = scalar_select %p449, %s28, 1
        %s451 = smul.addr %s450, 16
        %s452 = smul.addr %s451, 4
        %s453 = scalar_lea.vmem %s3, %s452
        %p454 = pneg %p124
        %p455 = pneg %p121
        %p456 = scmp.lt.s32.totalorder %s28, 1
        %s457 = scalar_select %p456, %s28, 1
        %s458 = smul.addr %s457, 16
        %s459 = smul.addr %s458, 4
        %s460 = scalar_lea.vmem %s4, %s459
        %p461 = pneg %p150
        %p462 = pneg %p147
        %p463 = scmp.lt.s32.totalorder %s28, 1
        %s464 = scalar_select %p463, %s28, 1
        %s465 = smul.addr %s464, 16
        %s466 = smul.addr %s465, 4
        %s467 = scalar_lea.vmem %s5, %s466
        %p468 = pneg %p176
        %p469 = pneg %p173
        %p470 = scmp.lt.s32.totalorder %s28, 1
        %s471 = scalar_select %p470, %s28, 1
        %s472 = smul.addr %s471, 16
        %s473 = smul.addr %s472, 4
        %s474 = scalar_lea.vmem %s6, %s473
        %p475 = pneg %p202
        %p476 = pneg %p199
        %p477 = scmp.lt.s32.totalorder %s28, 1
        %s478 = scalar_select %p477, %s28, 1
        %s479 = smul.addr %s478, 64
        %s480 = smul.addr %s479, 4
        %s481 = scalar_lea.vmem %s7, %s480
        %p482 = pneg %p228
        %p483 = pneg %p225
        %p484 = scmp.lt.s32.totalorder %s28, 1
        %s485 = scalar_select %p484, %s28, 1
        %s486 = smul.addr %s485, 64
        %s487 = smul.addr %s486, 4
        %s488 = scalar_lea.vmem %s8, %s487
        %p489 = pneg %p254
        %p490 = pneg %p251
        %p491 = scmp.lt.s32.totalorder %s28, 1
        %s492 = scalar_select %p491, %s28, 1
        %s493 = smul.addr %s492, 2
        %s494 = smul.addr %s493, 8
        %s495 = scalar_lea.vmem %s9, %s494
        %p496 = pneg %p280
        %p497 = pneg %p277
        %p498 = scmp.lt.s32.totalorder %s28, 1
        %s499 = scalar_select %p498, %s28, 1
        %s500 = smul.addr %s499, 4
        %s501 = scalar_lea.vmem %s10, %s500
        %p502 = pneg %p306
        %p503 = pneg %p303
        %p504 = pneg %p332
        %p505 = pneg %p329
        %s506 = smul.u32 2, %s27
        %p507 = scmp.lt.s32.totalorder %s506, 1
        %s508 = scalar_select %p507, %s506, 1
        %s509 = smul.addr %s508, 16
        %s510 = smul.addr %s509, 8
        %s511 = scalar_lea.vmem %s0, %s510
        %s512 = smul.u32 2, %s27
        %p513 = scmp.lt.s32.totalorder %s28, 1
        %s514 = scalar_select %p513, %s28, 1
        %s515 = smul.addr %s514, 16
        %s516 = smul.addr %s515, 4
        %s517 = scalar_lea.vmem %s3, %s516
        %p518 = scmp.lt.s32.totalorder %s28, 1
        %s519 = scalar_select %p518, %s28, 1
        %s520 = smul.addr %s519, 16
        %s521 = smul.addr %s520, 4
        %s522 = scalar_lea.vmem %s4, %s521
        %p523 = scmp.lt.s32.totalorder %s28, 1
        %s524 = scalar_select %p523, %s28, 1
        %s525 = smul.addr %s524, 16
        %s526 = smul.addr %s525, 4
        %s527 = scalar_lea.vmem %s5, %s526
        %p528 = scmp.lt.s32.totalorder %s28, 1
        %s529 = scalar_select %p528, %s28, 1
        %s530 = smul.addr %s529, 16
        %s531 = smul.addr %s530, 4
        %s532 = scalar_lea.vmem %s6, %s531
        %p533 = scmp.lt.s32.totalorder %s28, 1
        %s534 = scalar_select %p533, %s28, 1
        %s535 = smul.addr %s534, 64
        %s536 = smul.addr %s535, 4
        %s537 = scalar_lea.vmem %s7, %s536
        %p538 = scmp.lt.s32.totalorder %s28, 1
        %s539 = scalar_select %p538, %s28, 1
        %s540 = smul.addr %s539, 64
        %s541 = smul.addr %s540, 4
        %s542 = scalar_lea.vmem %s8, %s541
        %p543 = scmp.lt.s32.totalorder %s28, 1
        %s544 = scalar_select %p543, %s28, 1
        %s545 = smul.addr %s544, 2
        %s546 = smul.addr %s545, 8
        %s547 = scalar_lea.vmem %s9, %s546
        %p548 = scmp.lt.s32.totalorder %s28, 1
        %s549 = scalar_select %p548, %s28, 1
        %s550 = smul.addr %s549, 4
        %s551 = scalar_lea.vmem %s10, %s550
        %s552 = smul.u32 2, %s27
        %p554 = scmp.eq.s32.totalorder %s28, 0
        // Predicated region
        $region65: #{kosimct_forward.1} parent=63 // pred_check
          %p555 = pneg %p554
        $region66: #{kosimct_forward.1} parent=63 // pred_check_branch
          %557 = sbr.rel (%p555) target = $region68
        $region67: #{kosimct_forward.1} parent=63 // pred_region
          %v558 = vld [vmem:[%s511] sm:$0xff]
          %v559 = vld [vmem:[%s511 + $0x8] sm:$0xff]
          %v560 = vld [vmem:[%s511 + $0x10] sm:$0xff]
          %v561 = vld [vmem:[%s511 + $0x18] sm:$0xff]
          %v562 = vld [vmem:[%s511 + $0x20] sm:$0xff]
          %v563 = vld [vmem:[%s511 + $0x28] sm:$0xff]
          %v564 = vld [vmem:[%s511 + $0x30] sm:$0xff]
          %v565 = vld [vmem:[%s511 + $0x38] sm:$0xff]
          %v566 = vld [vmem:[%s511 + $0x40] sm:$0xff]
          %v567 = vld [vmem:[%s511 + $0x48] sm:$0xff]
          %v568 = vld [vmem:[%s511 + $0x50] sm:$0xff]
          %v569 = vld [vmem:[%s511 + $0x58] sm:$0xff]
          %v570 = vld [vmem:[%s511 + $0x60] sm:$0xff]
          %v571 = vld [vmem:[%s511 + $0x68] sm:$0xff]
          %v572 = vld [vmem:[%s511 + $0x70] sm:$0xff]
          %v573 = vld [vmem:[%s511 + $0x78] sm:$0xff]
          %v574 = vld [vmem:[%s511 + $0x80] sm:$0xff]
          %v575 = vld [vmem:[%s511 + $0x88] sm:$0xff]
          %v576 = vld [vmem:[%s511 + $0x90] sm:$0xff]
          %v577 = vld [vmem:[%s511 + $0x98] sm:$0xff]
          %v578 = vld [vmem:[%s511 + $0xa0] sm:$0xff]
          %v579 = vld [vmem:[%s511 + $0xa8] sm:$0xff]
          %v580 = vld [vmem:[%s511 + $0xb0] sm:$0xff]
          %v581 = vld [vmem:[%s511 + $0xb8] sm:$0xff]
          %v582 = vld [vmem:[%s511 + $0xc0] sm:$0xff]
          %v583 = vld [vmem:[%s511 + $0xc8] sm:$0xff]
          %v584 = vld [vmem:[%s511 + $0xd0] sm:$0xff]
          %v585 = vld [vmem:[%s511 + $0xd8] sm:$0xff]
          %v586 = vld [vmem:[%s511 + $0xe0] sm:$0xff]
          %v587 = vld [vmem:[%s511 + $0xe8] sm:$0xff]
          %v588 = vld [vmem:[%s511 + $0xf0] sm:$0xff]
          %v589 = vld [vmem:[%s511 + $0xf8] sm:$0xff]
          %v590 = vld [vmem:[%s1] sm:$0x1]
          %v591 = vld [vmem:[%s2] sm:$0x1]
          %592 = vadd.xlane.f32.xlu0 %v558
          %v593 = vpop.xlane.xlu0 %592
          %594 = vadd.xlane.f32.xlu0 %v559
          %v595 = vpop.xlane.xlu0 %594
          %596 = vadd.xlane.f32.xlu0 %v560
          %v597 = vpop.xlane.xlu0 %596
          %598 = vadd.xlane.f32.xlu0 %v561
          %v599 = vpop.xlane.xlu0 %598
          %600 = vadd.xlane.f32.xlu0 %v562
          %v601 = vpop.xlane.xlu0 %600
          %602 = vadd.xlane.f32.xlu0 %v563
          %v603 = vpop.xlane.xlu0 %602
          %604 = vadd.xlane.f32.xlu0 %v564
          %v605 = vpop.xlane.xlu0 %604
          %606 = vadd.xlane.f32.xlu0 %v565
          %v607 = vpop.xlane.xlu0 %606
          %608 = vadd.xlane.f32.xlu0 %v566
          %v609 = vpop.xlane.xlu0 %608
          %610 = vadd.xlane.f32.xlu0 %v567
          %v611 = vpop.xlane.xlu0 %610
          %612 = vadd.xlane.f32.xlu0 %v568
          %v613 = vpop.xlane.xlu0 %612
          %614 = vadd.xlane.f32.xlu0 %v569
          %v615 = vpop.xlane.xlu0 %614
          %616 = vadd.xlane.f32.xlu0 %v570
          %v617 = vpop.xlane.xlu0 %616
          %618 = vadd.xlane.f32.xlu0 %v571
          %v619 = vpop.xlane.xlu0 %618
          %620 = vadd.xlane.f32.xlu0 %v572
          %v621 = vpop.xlane.xlu0 %620
          %622 = vadd.xlane.f32.xlu0 %v573
          %v623 = vpop.xlane.xlu0 %622
          %624 = vadd.xlane.f32.xlu0 %v574
          %v625 = vpop.xlane.xlu0 %624
          %626 = vadd.xlane.f32.xlu0 %v575
          %v627 = vpop.xlane.xlu0 %626
          %628 = vadd.xlane.f32.xlu0 %v576
          %v629 = vpop.xlane.xlu0 %628
          %630 = vadd.xlane.f32.xlu0 %v577
          %v631 = vpop.xlane.xlu0 %630
          %632 = vadd.xlane.f32.xlu0 %v578
          %v633 = vpop.xlane.xlu0 %632
          %634 = vadd.xlane.f32.xlu0 %v579
          %v635 = vpop.xlane.xlu0 %634
          %636 = vadd.xlane.f32.xlu0 %v580
          %v637 = vpop.xlane.xlu0 %636
          %638 = vadd.xlane.f32.xlu0 %v581
          %v639 = vpop.xlane.xlu0 %638
          %640 = vadd.xlane.f32.xlu0 %v582
          %v641 = vpop.xlane.xlu0 %640
          %642 = vadd.xlane.f32.xlu0 %v583
          %v643 = vpop.xlane.xlu0 %642
          %644 = vadd.xlane.f32.xlu0 %v584
          %v645 = vpop.xlane.xlu0 %644
          %646 = vadd.xlane.f32.xlu0 %v585
          %v647 = vpop.xlane.xlu0 %646
          %648 = vadd.xlane.f32.xlu0 %v586
          %v649 = vpop.xlane.xlu0 %648
          %650 = vadd.xlane.f32.xlu0 %v587
          %v651 = vpop.xlane.xlu0 %650
          %652 = vadd.xlane.f32.xlu0 %v588
          %v653 = vpop.xlane.xlu0 %652
          %654 = vadd.xlane.f32.xlu0 %v589
          %v655 = vpop.xlane.xlu0 %654
          %v656 = vrcp.pop 128.0
          %v657 = vmul.f32 %v593, %v656
          %v658 = vmul.f32 %v595, %v656
          %v659 = vmul.f32 %v597, %v656
          %v660 = vmul.f32 %v599, %v656
          %v661 = vmul.f32 %v601, %v656
          %v662 = vmul.f32 %v603, %v656
          %v663 = vmul.f32 %v605, %v656
          %v664 = vmul.f32 %v607, %v656
          %v665 = vmul.f32 %v609, %v656
          %v666 = vmul.f32 %v611, %v656
          %v667 = vmul.f32 %v613, %v656
          %v668 = vmul.f32 %v615, %v656
          %v669 = vmul.f32 %v617, %v656
          %v670 = vmul.f32 %v619, %v656
          %v671 = vmul.f32 %v621, %v656
          %v672 = vmul.f32 %v623, %v656
          %v673 = vmul.f32 %v625, %v656
          %v674 = vmul.f32 %v627, %v656
          %v675 = vmul.f32 %v629, %v656
          %v676 = vmul.f32 %v631, %v656
          %v677 = vmul.f32 %v633, %v656
          %v678 = vmul.f32 %v635, %v656
          %v679 = vmul.f32 %v637, %v656
          %v680 = vmul.f32 %v639, %v656
          %v681 = vmul.f32 %v641, %v656
          %v682 = vmul.f32 %v643, %v656
          %v683 = vmul.f32 %v645, %v656
          %v684 = vmul.f32 %v647, %v656
          %v685 = vmul.f32 %v649, %v656
          %v686 = vmul.f32 %v651, %v656
          %v687 = vmul.f32 %v653, %v656
          %v688 = vmul.f32 %v655, %v656
          %v689 = vsub.f32 %v558, %v657
          %v690 = vsub.f32 %v559, %v658
          %v691 = vsub.f32 %v560, %v659
          %v692 = vsub.f32 %v561, %v660
          %v693 = vsub.f32 %v562, %v661
          %v694 = vsub.f32 %v563, %v662
          %v695 = vsub.f32 %v564, %v663
          %v696 = vsub.f32 %v565, %v664
          %v697 = vsub.f32 %v566, %v665
          %v698 = vsub.f32 %v567, %v666
          %v699 = vsub.f32 %v568, %v667
          %v700 = vsub.f32 %v569, %v668
          %v701 = vsub.f32 %v570, %v669
          %v702 = vsub.f32 %v571, %v670
          %v703 = vsub.f32 %v572, %v671
          %v704 = vsub.f32 %v573, %v672
          %v705 = vsub.f32 %v574, %v673
          %v706 = vsub.f32 %v575, %v674
          %v707 = vsub.f32 %v576, %v675
          %v708 = vsub.f32 %v577, %v676
          %v709 = vsub.f32 %v578, %v677
          %v710 = vsub.f32 %v579, %v678
          %v711 = vsub.f32 %v580, %v679
          %v712 = vsub.f32 %v581, %v680
          %v713 = vsub.f32 %v582, %v681
          %v714 = vsub.f32 %v583, %v682
          %v715 = vsub.f32 %v584, %v683
          %v716 = vsub.f32 %v585, %v684
          %v717 = vsub.f32 %v586, %v685
          %v718 = vsub.f32 %v587, %v686
          %v719 = vsub.f32 %v588, %v687
          %v720 = vsub.f32 %v589, %v688
          %v721 = vmul.f32 %v689, %v689
          %v722 = vmul.f32 %v690, %v690
          %v723 = vmul.f32 %v691, %v691
          %v724 = vmul.f32 %v692, %v692
          %v725 = vmul.f32 %v693, %v693
          %v726 = vmul.f32 %v694, %v694
          %v727 = vmul.f32 %v695, %v695
          %v728 = vmul.f32 %v696, %v696
          %v729 = vmul.f32 %v697, %v697
          %v730 = vmul.f32 %v698, %v698
          %v731 = vmul.f32 %v699, %v699
          %v732 = vmul.f32 %v700, %v700
          %v733 = vmul.f32 %v701, %v701
          %v734 = vmul.f32 %v702, %v702
          %v735 = vmul.f32 %v703, %v703
          %v736 = vmul.f32 %v704, %v704
          %v737 = vmul.f32 %v705, %v705
          %v738 = vmul.f32 %v706, %v706
          %v739 = vmul.f32 %v707, %v707
          %v740 = vmul.f32 %v708, %v708
          %v741 = vmul.f32 %v709, %v709
          %v742 = vmul.f32 %v710, %v710
          %v743 = vmul.f32 %v711, %v711
          %v744 = vmul.f32 %v712, %v712
          %v745 = vmul.f32 %v713, %v713
          %v746 = vmul.f32 %v714, %v714
          %v747 = vmul.f32 %v715, %v715
          %v748 = vmul.f32 %v716, %v716
          %v749 = vmul.f32 %v717, %v717
          %v750 = vmul.f32 %v718, %v718
          %v751 = vmul.f32 %v719, %v719
          %v752 = vmul.f32 %v720, %v720
          %753 = vadd.xlane.f32.xlu0 %v721
          %v754 = vpop.xlane.xlu0 %753
          %755 = vadd.xlane.f32.xlu0 %v722
          %v756 = vpop.xlane.xlu0 %755
          %757 = vadd.xlane.f32.xlu0 %v723
          %v758 = vpop.xlane.xlu0 %757
          %759 = vadd.xlane.f32.xlu0 %v724
          %v760 = vpop.xlane.xlu0 %759
          %761 = vadd.xlane.f32.xlu0 %v725
          %v762 = vpop.xlane.xlu0 %761
          %763 = vadd.xlane.f32.xlu0 %v726
          %v764 = vpop.xlane.xlu0 %763
          %765 = vadd.xlane.f32.xlu0 %v727
          %v766 = vpop.xlane.xlu0 %765
          %767 = vadd.xlane.f32.xlu0 %v728
          %v768 = vpop.xlane.xlu0 %767
          %769 = vadd.xlane.f32.xlu0 %v729
          %v770 = vpop.xlane.xlu0 %769
          %771 = vadd.xlane.f32.xlu0 %v730
          %v772 = vpop.xlane.xlu0 %771
          %773 = vadd.xlane.f32.xlu0 %v731
          %v774 = vpop.xlane.xlu0 %773
          %775 = vadd.xlane.f32.xlu0 %v732
          %v776 = vpop.xlane.xlu0 %775
          %777 = vadd.xlane.f32.xlu0 %v733
          %v778 = vpop.xlane.xlu0 %777
          %779 = vadd.xlane.f32.xlu0 %v734
          %v780 = vpop.xlane.xlu0 %779
          %781 = vadd.xlane.f32.xlu0 %v735
          %v782 = vpop.xlane.xlu0 %781
          %783 = vadd.xlane.f32.xlu0 %v736
          %v784 = vpop.xlane.xlu0 %783
          %785 = vadd.xlane.f32.xlu0 %v737
          %v786 = vpop.xlane.xlu0 %785
          %787 = vadd.xlane.f32.xlu0 %v738
          %v788 = vpop.xlane.xlu0 %787
          %789 = vadd.xlane.f32.xlu0 %v739
          %v790 = vpop.xlane.xlu0 %789
          %791 = vadd.xlane.f32.xlu0 %v740
          %v792 = vpop.xlane.xlu0 %791
          %793 = vadd.xlane.f32.xlu0 %v741
          %v794 = vpop.xlane.xlu0 %793
          %795 = vadd.xlane.f32.xlu0 %v742
          %v796 = vpop.xlane.xlu0 %795
          %797 = vadd.xlane.f32.xlu0 %v743
          %v798 = vpop.xlane.xlu0 %797
          %799 = vadd.xlane.f32.xlu0 %v744
          %v800 = vpop.xlane.xlu0 %799
          %801 = vadd.xlane.f32.xlu0 %v745
          %v802 = vpop.xlane.xlu0 %801
          %803 = vadd.xlane.f32.xlu0 %v746
          %v804 = vpop.xlane.xlu0 %803
          %805 = vadd.xlane.f32.xlu0 %v747
          %v806 = vpop.xlane.xlu0 %805
          %807 = vadd.xlane.f32.xlu0 %v748
          %v808 = vpop.xlane.xlu0 %807
          %809 = vadd.xlane.f32.xlu0 %v749
          %v810 = vpop.xlane.xlu0 %809
          %811 = vadd.xlane.f32.xlu0 %v750
          %v812 = vpop.xlane.xlu0 %811
          %813 = vadd.xlane.f32.xlu0 %v751
          %v814 = vpop.xlane.xlu0 %813
          %815 = vadd.xlane.f32.xlu0 %v752
          %v816 = vpop.xlane.xlu0 %815
          %v817 = vmul.f32 %v754, %v656
          %v818 = vmul.f32 %v756, %v656
          %v819 = vmul.f32 %v758, %v656
          %v820 = vmul.f32 %v760, %v656
          %v821 = vmul.f32 %v762, %v656
          %v822 = vmul.f32 %v764, %v656
          %v823 = vmul.f32 %v766, %v656
          %v824 = vmul.f32 %v768, %v656
          %v825 = vmul.f32 %v770, %v656
          %v826 = vmul.f32 %v772, %v656
          %v827 = vmul.f32 %v774, %v656
          %v828 = vmul.f32 %v776, %v656
          %v829 = vmul.f32 %v778, %v656
          %v830 = vmul.f32 %v780, %v656
          %v831 = vmul.f32 %v782, %v656
          %v832 = vmul.f32 %v784, %v656
          %v833 = vmul.f32 %v786, %v656
          %v834 = vmul.f32 %v788, %v656
          %v835 = vmul.f32 %v790, %v656
          %v836 = vmul.f32 %v792, %v656
          %v837 = vmul.f32 %v794, %v656
          %v838 = vmul.f32 %v796, %v656
          %v839 = vmul.f32 %v798, %v656
          %v840 = vmul.f32 %v800, %v656
          %v841 = vmul.f32 %v802, %v656
          %v842 = vmul.f32 %v804, %v656
          %v843 = vmul.f32 %v806, %v656
          %v844 = vmul.f32 %v808, %v656
          %v845 = vmul.f32 %v810, %v656
          %v846 = vmul.f32 %v812, %v656
          %v847 = vmul.f32 %v814, %v656
          %v848 = vmul.f32 %v816, %v656
          %v849 = vadd.f32 %v817, 1e-12
          %v850 = vadd.f32 %v818, 1e-12
          %v851 = vadd.f32 %v819, 1e-12
          %v852 = vadd.f32 %v820, 1e-12
          %v853 = vadd.f32 %v821, 1e-12
          %v854 = vadd.f32 %v822, 1e-12
          %v855 = vadd.f32 %v823, 1e-12
          %v856 = vadd.f32 %v824, 1e-12
          %v857 = vadd.f32 %v825, 1e-12
          %v858 = vadd.f32 %v826, 1e-12
          %v859 = vadd.f32 %v827, 1e-12
          %v860 = vadd.f32 %v828, 1e-12
          %v861 = vadd.f32 %v829, 1e-12
          %v862 = vadd.f32 %v830, 1e-12
          %v863 = vadd.f32 %v831, 1e-12
          %v864 = vadd.f32 %v832, 1e-12
          %v865 = vadd.f32 %v833, 1e-12
          %v866 = vadd.f32 %v834, 1e-12
          %v867 = vadd.f32 %v835, 1e-12
          %v868 = vadd.f32 %v836, 1e-12
          %v869 = vadd.f32 %v837, 1e-12
          %v870 = vadd.f32 %v838, 1e-12
          %v871 = vadd.f32 %v839, 1e-12
          %v872 = vadd.f32 %v840, 1e-12
          %v873 = vadd.f32 %v841, 1e-12
          %v874 = vadd.f32 %v842, 1e-12
          %v875 = vadd.f32 %v843, 1e-12
          %v876 = vadd.f32 %v844, 1e-12
          %v877 = vadd.f32 %v845, 1e-12
          %v878 = vadd.f32 %v846, 1e-12
          %v879 = vadd.f32 %v847, 1e-12
          %v880 = vadd.f32 %v848, 1e-12
          %v881 = vrsqrt.pop %v849
          %v882 = vrsqrt.pop %v850
          %v883 = vrsqrt.pop %v851
          %v884 = vrsqrt.pop %v852
          %v885 = vrsqrt.pop %v853
          %v886 = vrsqrt.pop %v854
          %v887 = vrsqrt.pop %v855
          %v888 = vrsqrt.pop %v856
          %v889 = vrsqrt.pop %v857
          %v890 = vrsqrt.pop %v858
          %v891 = vrsqrt.pop %v859
          %v892 = vrsqrt.pop %v860
          %v893 = vrsqrt.pop %v861
          %v894 = vrsqrt.pop %v862
          %v895 = vrsqrt.pop %v863
          %v896 = vrsqrt.pop %v864
          %v897 = vrsqrt.pop %v865
          %v898 = vrsqrt.pop %v866
          %v899 = vrsqrt.pop %v867
          %v900 = vrsqrt.pop %v868
          %v901 = vrsqrt.pop %v869
          %v902 = vrsqrt.pop %v870
          %v903 = vrsqrt.pop %v871
          %v904 = vrsqrt.pop %v872
          %v905 = vrsqrt.pop %v873
          %v906 = vrsqrt.pop %v874
          %v907 = vrsqrt.pop %v875
          %v908 = vrsqrt.pop %v876
          %v909 = vrsqrt.pop %v877
          %v910 = vrsqrt.pop %v878
          %v911 = vrsqrt.pop %v879
          %v912 = vrsqrt.pop %v880
          %v913 = vmul.f32 %v689, %v881
          %v914 = vmul.f32 %v690, %v882
          %v915 = vmul.f32 %v691, %v883
          %v916 = vmul.f32 %v692, %v884
          %v917 = vmul.f32 %v693, %v885
          %v918 = vmul.f32 %v694, %v886
          %v919 = vmul.f32 %v695, %v887
          %v920 = vmul.f32 %v696, %v888
          %v921 = vmul.f32 %v697, %v889
          %v922 = vmul.f32 %v698, %v890
          %v923 = vmul.f32 %v699, %v891
          %v924 = vmul.f32 %v700, %v892
          %v925 = vmul.f32 %v701, %v893
          %v926 = vmul.f32 %v702, %v894
          %v927 = vmul.f32 %v703, %v895
          %v928 = vmul.f32 %v704, %v896
          %v929 = vmul.f32 %v705, %v897
          %v930 = vmul.f32 %v706, %v898
          %v931 = vmul.f32 %v707, %v899
          %v932 = vmul.f32 %v708, %v900
          %v933 = vmul.f32 %v709, %v901
          %v934 = vmul.f32 %v710, %v902
          %v935 = vmul.f32 %v711, %v903
          %v936 = vmul.f32 %v712, %v904
          %v937 = vmul.f32 %v713, %v905
          %v938 = vmul.f32 %v714, %v906
          %v939 = vmul.f32 %v715, %v907
          %v940 = vmul.f32 %v716, %v908
          %v941 = vmul.f32 %v717, %v909
          %v942 = vmul.f32 %v718, %v910
          %v943 = vmul.f32 %v719, %v911
          %v944 = vmul.f32 %v720, %v912
          %v946 = vlaneseq
          %v947 = vshrl.u32 %v946, 7
          %v948 = vsub.s32 0, %v947
          %v949 = vrot.slane %v590, %v948
          %v951 = vmul.f32 %v913, %v949
          %v952 = vmul.f32 %v914, %v949
          %v953 = vmul.f32 %v915, %v949
          %v954 = vmul.f32 %v916, %v949
          %v955 = vmul.f32 %v917, %v949
          %v956 = vmul.f32 %v918, %v949
          %v957 = vmul.f32 %v919, %v949
          %v958 = vmul.f32 %v920, %v949
          %v959 = vmul.f32 %v921, %v949
          %v960 = vmul.f32 %v922, %v949
          %v961 = vmul.f32 %v923, %v949
          %v962 = vmul.f32 %v924, %v949
          %v963 = vmul.f32 %v925, %v949
          %v964 = vmul.f32 %v926, %v949
          %v965 = vmul.f32 %v927, %v949
          %v966 = vmul.f32 %v928, %v949
          %v967 = vmul.f32 %v929, %v949
          %v968 = vmul.f32 %v930, %v949
          %v969 = vmul.f32 %v931, %v949
          %v970 = vmul.f32 %v932, %v949
          %v971 = vmul.f32 %v933, %v949
          %v972 = vmul.f32 %v934, %v949
          %v973 = vmul.f32 %v935, %v949
          %v974 = vmul.f32 %v936, %v949
          %v975 = vmul.f32 %v937, %v949
          %v976 = vmul.f32 %v938, %v949
          %v977 = vmul.f32 %v939, %v949
          %v978 = vmul.f32 %v940, %v949
          %v979 = vmul.f32 %v941, %v949
          %v980 = vmul.f32 %v942, %v949
          %v981 = vmul.f32 %v943, %v949
          %v982 = vmul.f32 %v944, %v949
          %v984 = vlaneseq
          %v985 = vshrl.u32 %v984, 7
          %v986 = vsub.s32 0, %v985
          %v987 = vrot.slane %v591, %v986
          %v989 = vadd.f32 %v951, %v987
          %v990 = vadd.f32 %v952, %v987
          %v991 = vadd.f32 %v953, %v987
          %v992 = vadd.f32 %v954, %v987
          %v993 = vadd.f32 %v955, %v987
          %v994 = vadd.f32 %v956, %v987
          %v995 = vadd.f32 %v957, %v987
          %v996 = vadd.f32 %v958, %v987
          %v997 = vadd.f32 %v959, %v987
          %v998 = vadd.f32 %v960, %v987
          %v999 = vadd.f32 %v961, %v987
          %v1000 = vadd.f32 %v962, %v987
          %v1001 = vadd.f32 %v963, %v987
          %v1002 = vadd.f32 %v964, %v987
          %v1003 = vadd.f32 %v965, %v987
          %v1004 = vadd.f32 %v966, %v987
          %v1005 = vadd.f32 %v967, %v987
          %v1006 = vadd.f32 %v968, %v987
          %v1007 = vadd.f32 %v969, %v987
          %v1008 = vadd.f32 %v970, %v987
          %v1009 = vadd.f32 %v971, %v987
          %v1010 = vadd.f32 %v972, %v987
          %v1011 = vadd.f32 %v973, %v987
          %v1012 = vadd.f32 %v974, %v987
          %v1013 = vadd.f32 %v975, %v987
          %v1014 = vadd.f32 %v976, %v987
          %v1015 = vadd.f32 %v977, %v987
          %v1016 = vadd.f32 %v978, %v987
          %v1017 = vadd.f32 %v979, %v987
          %v1018 = vadd.f32 %v980, %v987
          %v1019 = vadd.f32 %v981, %v987
          %v1020 = vadd.f32 %v982, %v987
          %1021 = vst [vmem:[#allocation2] sm:$0xff] %v989
          %1022 = vst [vmem:[#allocation2 + $0x8] sm:$0xff] %v990
          %1023 = vst [vmem:[#allocation2 + $0x10] sm:$0xff] %v991
          %1024 = vst [vmem:[#allocation2 + $0x18] sm:$0xff] %v992
          %1025 = vst [vmem:[#allocation2 + $0x20] sm:$0xff] %v993
          %1026 = vst [vmem:[#allocation2 + $0x28] sm:$0xff] %v994
          %1027 = vst [vmem:[#allocation2 + $0x30] sm:$0xff] %v995
          %1028 = vst [vmem:[#allocation2 + $0x38] sm:$0xff] %v996
          %1029 = vst [vmem:[#allocation2 + $0x40] sm:$0xff] %v997
          %1030 = vst [vmem:[#allocation2 + $0x48] sm:$0xff] %v998
          %1031 = vst [vmem:[#allocation2 + $0x50] sm:$0xff] %v999
          %1032 = vst [vmem:[#allocation2 + $0x58] sm:$0xff] %v1000
          %1033 = vst [vmem:[#allocation2 + $0x60] sm:$0xff] %v1001
          %1034 = vst [vmem:[#allocation2 + $0x68] sm:$0xff] %v1002
          %1035 = vst [vmem:[#allocation2 + $0x70] sm:$0xff] %v1003
          %1036 = vst [vmem:[#allocation2 + $0x78] sm:$0xff] %v1004
          %1037 = vst [vmem:[#allocation2 + $0x80] sm:$0xff] %v1005
          %1038 = vst [vmem:[#allocation2 + $0x88] sm:$0xff] %v1006
          %1039 = vst [vmem:[#allocation2 + $0x90] sm:$0xff] %v1007
          %1040 = vst [vmem:[#allocation2 + $0x98] sm:$0xff] %v1008
          %1041 = vst [vmem:[#allocation2 + $0xa0] sm:$0xff] %v1009
          %1042 = vst [vmem:[#allocation2 + $0xa8] sm:$0xff] %v1010
          %1043 = vst [vmem:[#allocation2 + $0xb0] sm:$0xff] %v1011
          %1044 = vst [vmem:[#allocation2 + $0xb8] sm:$0xff] %v1012
          %1045 = vst [vmem:[#allocation2 + $0xc0] sm:$0xff] %v1013
          %1046 = vst [vmem:[#allocation2 + $0xc8] sm:$0xff] %v1014
          %1047 = vst [vmem:[#allocation2 + $0xd0] sm:$0xff] %v1015
          %1048 = vst [vmem:[#allocation2 + $0xd8] sm:$0xff] %v1016
          %1049 = vst [vmem:[#allocation2 + $0xe0] sm:$0xff] %v1017
          %1050 = vst [vmem:[#allocation2 + $0xe8] sm:$0xff] %v1018
          %1051 = vst [vmem:[#allocation2 + $0xf0] sm:$0xff] %v1019
          %1052 = vst [vmem:[#allocation2 + $0xf8] sm:$0xff] %v1020
        $region68: #{kosimct_forward.1} parent=63 // pred_fallthru
          _
        %v1053 = vld [vmem:[#allocation2] sm:$0xff]
        %v1054 = vld [vmem:[#allocation2 + $0x8] sm:$0xff]
        %v1055 = vld [vmem:[#allocation2 + $0x10] sm:$0xff]
        %v1056 = vld [vmem:[#allocation2 + $0x18] sm:$0xff]
        %v1057 = vld [vmem:[#allocation2 + $0x20] sm:$0xff]
        %v1058 = vld [vmem:[#allocation2 + $0x28] sm:$0xff]
        %v1059 = vld [vmem:[#allocation2 + $0x30] sm:$0xff]
        %v1060 = vld [vmem:[#allocation2 + $0x38] sm:$0xff]
        %v1061 = vld [vmem:[#allocation2 + $0x40] sm:$0xff]
        %v1062 = vld [vmem:[#allocation2 + $0x48] sm:$0xff]
        %v1063 = vld [vmem:[#allocation2 + $0x50] sm:$0xff]
        %v1064 = vld [vmem:[#allocation2 + $0x58] sm:$0xff]
        %v1065 = vld [vmem:[#allocation2 + $0x60] sm:$0xff]
        %v1066 = vld [vmem:[#allocation2 + $0x68] sm:$0xff]
        %v1067 = vld [vmem:[#allocation2 + $0x70] sm:$0xff]
        %v1068 = vld [vmem:[#allocation2 + $0x78] sm:$0xff]
        %v1069 = vld [vmem:[#allocation2 + $0x80] sm:$0xff]
        %v1070 = vld [vmem:[#allocation2 + $0x88] sm:$0xff]
        %v1071 = vld [vmem:[#allocation2 + $0x90] sm:$0xff]
        %v1072 = vld [vmem:[#allocation2 + $0x98] sm:$0xff]
        %v1073 = vld [vmem:[#allocation2 + $0xa0] sm:$0xff]
        %v1074 = vld [vmem:[#allocation2 + $0xa8] sm:$0xff]
        %v1075 = vld [vmem:[#allocation2 + $0xb0] sm:$0xff]
        %v1076 = vld [vmem:[#allocation2 + $0xb8] sm:$0xff]
        %v1077 = vld [vmem:[#allocation2 + $0xc0] sm:$0xff]
        %v1078 = vld [vmem:[#allocation2 + $0xc8] sm:$0xff]
        %v1079 = vld [vmem:[#allocation2 + $0xd0] sm:$0xff]
        %v1080 = vld [vmem:[#allocation2 + $0xd8] sm:$0xff]
        %v1081 = vld [vmem:[#allocation2 + $0xe0] sm:$0xff]
        %v1082 = vld [vmem:[#allocation2 + $0xe8] sm:$0xff]
        %v1083 = vld [vmem:[#allocation2 + $0xf0] sm:$0xff]
        %v1084 = vld [vmem:[#allocation2 + $0xf8] sm:$0xff]
        %v1085 = vld [vmem:[%s547] sm:$0xff]
        %v1086 = vld [vmem:[%s547 + $0x8] sm:$0x1]
        %v1087 = vld [vmem:[%s551] sm:$0xf]
        %v1088 = vpack.c.bf16 %v1054, %v1053
        %v1089 = vpack.c.bf16 %v1056, %v1055
        %v1090 = vpack.c.bf16 %v1058, %v1057
        %v1091 = vpack.c.bf16 %v1060, %v1059
        %v1092 = vpack.c.bf16 %v1062, %v1061
        %v1093 = vpack.c.bf16 %v1064, %v1063
        %v1094 = vpack.c.bf16 %v1066, %v1065
        %v1095 = vpack.c.bf16 %v1068, %v1067
        %v1096 = vpack.c.bf16 %v1070, %v1069
        %v1097 = vpack.c.bf16 %v1072, %v1071
        %v1098 = vpack.c.bf16 %v1074, %v1073
        %v1099 = vpack.c.bf16 %v1076, %v1075
        %v1100 = vpack.c.bf16 %v1078, %v1077
        %v1101 = vpack.c.bf16 %v1080, %v1079
        %v1102 = vpack.c.bf16 %v1082, %v1081
        %v1103 = vpack.c.bf16 %v1084, %v1083
        %v1104 = vld [vmem:[%s517] sm:$0xf]
        %v1105 = vld [vmem:[%s517 + $0x4] sm:$0xf]
        %v1106 = vld [vmem:[%s517 + $0x8] sm:$0xf]
        %v1107 = vld [vmem:[%s517 + $0xc] sm:$0xf]
        %v1108 = vld [vmem:[%s517 + $0x10] sm:$0xf]
        %v1109 = vld [vmem:[%s517 + $0x14] sm:$0xf]
        %v1110 = vld [vmem:[%s517 + $0x18] sm:$0xf]
        %v1111 = vld [vmem:[%s517 + $0x1c] sm:$0xf]
        %v1112 = vld [vmem:[%s517 + $0x20] sm:$0xf]
        %v1113 = vld [vmem:[%s517 + $0x24] sm:$0xf]
        %v1114 = vld [vmem:[%s517 + $0x28] sm:$0xf]
        %v1115 = vld [vmem:[%s517 + $0x2c] sm:$0xf]
        %v1116 = vld [vmem:[%s517 + $0x30] sm:$0xf]
        %v1117 = vld [vmem:[%s517 + $0x34] sm:$0xf]
        %v1118 = vld [vmem:[%s517 + $0x38] sm:$0xf]
        %v1119 = vld [vmem:[%s517 + $0x3c] sm:$0xf]
        %v1120 = vlaneseq
        %v1121 = vshrl.u32 %v1120, 7
        %v1122 = vsub.s32 0, %v1121
        %v1123 = vrot.slane %v1085, %v1122
        %v1140 = vunpack.c.l.b16 %v1104
        %v1141 = vunpack.c.l.b16 %v1105
        %v1142 = vunpack.c.l.b16 %v1106
        %v1143 = vunpack.c.l.b16 %v1107
        %v1144 = vunpack.c.l.b16 %v1108
        %v1145 = vunpack.c.l.b16 %v1109
        %v1146 = vunpack.c.l.b16 %v1110
        %v1147 = vunpack.c.l.b16 %v1111
        %v1148 = vunpack.c.l.b16 %v1112
        %v1149 = vunpack.c.l.b16 %v1113
        %v1150 = vunpack.c.l.b16 %v1114
        %v1151 = vunpack.c.l.b16 %v1115
        %v1152 = vunpack.c.l.b16 %v1116
        %v1153 = vunpack.c.l.b16 %v1117
        %v1154 = vunpack.c.l.b16 %v1118
        %v1155 = vunpack.c.l.b16 %v1119
        %v1156 = vpack.c.b16 %v1141, %v1140
        %v1157 = vpack.c.b16 %v1143, %v1142
        %v1158 = vpack.c.b16 %v1145, %v1144
        %v1159 = vpack.c.b16 %v1147, %v1146
        %v1160 = vpack.c.b16 %v1149, %v1148
        %v1161 = vpack.c.b16 %v1151, %v1150
        %v1162 = vpack.c.b16 %v1153, %v1152
        %v1163 = vpack.c.b16 %v1155, %v1154
        %1172 = vmatprep.subr.bf16.mxu0 0
        %1173 = vmatpush1.bf16.msra.mxu0 %v1156
        %1174 = vmatprep.subr.bf16.mxu0 0
        %1175 = vmatpush1.bf16.msra.mxu0 %v1157
        %1176 = vmatprep.subr.bf16.mxu0 0
        %1177 = vmatpush1.bf16.msra.mxu0 %v1158
        %1178 = vmatprep.subr.bf16.mxu0 0
        %1179 = vmatpush1.bf16.msra.mxu0 %v1159
        %1180 = vmatprep.subr.bf16.mxu0 0
        %1181 = vmatpush1.bf16.msra.mxu0 %v1160
        %1182 = vmatprep.subr.bf16.mxu0 0
        %1183 = vmatpush1.bf16.msra.mxu0 %v1161
        %1184 = vmatprep.subr.bf16.mxu0 0
        %1185 = vmatpush1.bf16.msra.mxu0 %v1162
        %1186 = vmatprep.subr.bf16.mxu0 0
        %1187 = vmatpush1.bf16.msra.mxu0 %v1163
        %1188 = vmatprep.subr.bf16.mxu0 0
        %1189 = vmatpush1.bf16.msra.mxu0 0
        %1190 = vmatprep.subr.bf16.mxu0 0
        %1191 = vmatpush1.bf16.msra.mxu0 0
        %1192 = vmatprep.subr.bf16.mxu0 0
        %1193 = vmatpush1.bf16.msra.mxu0 0
        %1194 = vmatprep.subr.bf16.mxu0 0
        %1195 = vmatpush1.bf16.msra.mxu0 0
        %1196 = vmatprep.subr.bf16.mxu0 0
        %1197 = vmatpush1.bf16.msra.mxu0 0
        %1198 = vmatprep.subr.bf16.mxu0 0
        %1199 = vmatpush1.bf16.msra.mxu0 0
        %1200 = vmatprep.subr.bf16.mxu0 0
        %1201 = vmatpush1.bf16.msra.mxu0 0
        %1202 = vmatprep.subr.bf16.mxu0 0
        %1203 = vmatpush1.bf16.msra.mxu0 0
        %1204 = vmatprep.mubr.bf16.mxu0 0
        %1205 = vmatmul.mubr.bf16.gmra.mrb[0].mxu0 %v1088
        %v1206 = vpop.f32.mrb[0].mxu0
        %v1207 = vadd.f32 %v1123, %v1206
        %v1208 = vpop.f32.mrb[0].mxu0
        %v1209 = vpop.f32.mrb[0].mxu0
        %v1210 = vadd.f32 %v1123, %v1209
        %v1211 = vpop.f32.mrb[0].mxu0
        %1212 = vmatprep.mubr.bf16.mxu0 0
        %1213 = vmatmul.mubr.bf16.gmra.mrb[0].mxu0 %v1089
        %v1214 = vpop.f32.mrb[0].mxu0
        %v1215 = vadd.f32 %v1123, %v1214
        %v1216 = vpop.f32.mrb[0].mxu0
        %v1217 = vpop.f32.mrb[0].mxu0
        %v1218 = vadd.f32 %v1123, %v1217
        %v1219 = vpop.f32.mrb[0].mxu0
        %1220 = vmatprep.mubr.bf16.mxu0 0
        %1221 = vmatmul.mubr.bf16.gmra.mrb[0].mxu0 %v1090
        %v1222 = vpop.f32.mrb[0].mxu0
        %v1223 = vadd.f32 %v1123, %v1222
        %v1224 = vpop.f32.mrb[0].mxu0
        %v1225 = vpop.f32.mrb[0].mxu0
        %v1226 = vadd.f32 %v1123, %v1225
        %v1227 = vpop.f32.mrb[0].mxu0
        %1228 = vmatprep.mubr.bf16.mxu0 0
        %1229 = vmatmul.mubr.bf16.gmra.mrb[0].mxu0 %v1091
        %v1230 = vpop.f32.mrb[0].mxu0
        %v1231 = vadd.f32 %v1123, %v1230
        %v1232 = vpop.f32.mrb[0].mxu0
        %v1233 = vpop.f32.mrb[0].mxu0
        %v1234 = vadd.f32 %v1123, %v1233
        %v1235 = vpop.f32.mrb[0].mxu0
        %1236 = vmatprep.mubr.bf16.mxu0 0
        %1237 = vmatmul.mubr.bf16.gmra.mrb[0].mxu0 %v1092
        %v1238 = vpop.f32.mrb[0].mxu0
        %v1239 = vadd.f32 %v1123, %v1238
        %v1240 = vpop.f32.mrb[0].mxu0
        %v1241 = vpop.f32.mrb[0].mxu0
        %v1242 = vadd.f32 %v1123, %v1241
        %v1243 = vpop.f32.mrb[0].mxu0
        %1244 = vmatprep.mubr.bf16.mxu0 0
        %1245 = vmatmul.mubr.bf16.gmra.mrb[0].mxu0 %v1093
        %v1246 = vpop.f32.mrb[0].mxu0
        %v1247 = vadd.f32 %v1123, %v1246
        %v1248 = vpop.f32.mrb[0].mxu0
        %v1249 = vpop.f32.mrb[0].mxu0
        %v1250 = vadd.f32 %v1123, %v1249
        %v1251 = vpop.f32.mrb[0].mxu0
        %1252 = vmatprep.mubr.bf16.mxu0 0
        %1253 = vmatmul.mubr.bf16.gmra.mrb[0].mxu0 %v1094
        %v1254 = vpop.f32.mrb[0].mxu0
        %v1255 = vadd.f32 %v1123, %v1254
        %v1256 = vpop.f32.mrb[0].mxu0
        %v1257 = vpop.f32.mrb[0].mxu0
        %v1258 = vadd.f32 %v1123, %v1257
        %v1259 = vpop.f32.mrb[0].mxu0
        %1260 = vmatprep.mubr.bf16.mxu0 0
        %1261 = vmatmul.mubr.bf16.gmra.mrb[0].mxu0 %v1095
        %v1262 = vpop.f32.mrb[0].mxu0
        %v1263 = vadd.f32 %v1123, %v1262
        %v1264 = vpop.f32.mrb[0].mxu0
        %v1265 = vpop.f32.mrb[0].mxu0
        %v1266 = vadd.f32 %v1123, %v1265
        %v1267 = vpop.f32.mrb[0].mxu0
        %1268 = vmatprep.mubr.bf16.mxu0 0
        %1269 = vmatmul.mubr.bf16.gmra.mrb[0].mxu0 %v1096
        %v1270 = vpop.f32.mrb[0].mxu0
        %v1271 = vadd.f32 %v1123, %v1270
        %v1272 = vpop.f32.mrb[0].mxu0
        %v1273 = vpop.f32.mrb[0].mxu0
        %v1274 = vadd.f32 %v1123, %v1273
        %v1275 = vpop.f32.mrb[0].mxu0
        %1276 = vmatprep.mubr.bf16.mxu0 0
        %1277 = vmatmul.mubr.bf16.gmra.mrb[0].mxu0 %v1097
        %v1278 = vpop.f32.mrb[0].mxu0
        %v1279 = vadd.f32 %v1123, %v1278
        %v1280 = vpop.f32.mrb[0].mxu0
        %v1281 = vpop.f32.mrb[0].mxu0
        %v1282 = vadd.f32 %v1123, %v1281
        %v1283 = vpop.f32.mrb[0].mxu0
        %1284 = vmatprep.mubr.bf16.mxu0 0
        %1285 = vmatmul.mubr.bf16.gmra.mrb[0].mxu0 %v1098
        %v1286 = vpop.f32.mrb[0].mxu0
        %v1287 = vadd.f32 %v1123, %v1286
        %v1288 = vpop.f32.mrb[0].mxu0
        %v1289 = vpop.f32.mrb[0].mxu0
        %v1290 = vadd.f32 %v1123, %v1289
        %v1291 = vpop.f32.mrb[0].mxu0
        %1292 = vmatprep.mubr.bf16.mxu0 0
        %1293 = vmatmul.mubr.bf16.gmra.mrb[0].mxu0 %v1099
        %v1294 = vpop.f32.mrb[0].mxu0
        %v1295 = vadd.f32 %v1123, %v1294
        %v1296 = vpop.f32.mrb[0].mxu0
        %v1297 = vpop.f32.mrb[0].mxu0
        %v1298 = vadd.f32 %v1123, %v1297
        %v1299 = vpop.f32.mrb[0].mxu0
        %1300 = vmatprep.mubr.bf16.mxu0 0
        %1301 = vmatmul.mubr.bf16.gmra.mrb[0].mxu0 %v1100
        %v1302 = vpop.f32.mrb[0].mxu0
        %v1303 = vadd.f32 %v1123, %v1302
        %v1304 = vpop.f32.mrb[0].mxu0
        %v1305 = vpop.f32.mrb[0].mxu0
        %v1306 = vadd.f32 %v1123, %v1305
        %v1307 = vpop.f32.mrb[0].mxu0
        %1308 = vmatprep.mubr.bf16.mxu0 0
        %1309 = vmatmul.mubr.bf16.gmra.mrb[0].mxu0 %v1101
        %v1310 = vpop.f32.mrb[0].mxu0
        %v1311 = vadd.f32 %v1123, %v1310
        %v1312 = vpop.f32.mrb[0].mxu0
        %v1313 = vpop.f32.mrb[0].mxu0
        %v1314 = vadd.f32 %v1123, %v1313
        %v1315 = vpop.f32.mrb[0].mxu0
        %1316 = vmatprep.mubr.bf16.mxu0 0
        %1317 = vmatmul.mubr.bf16.gmra.mrb[0].mxu0 %v1102
        %v1318 = vpop.f32.mrb[0].mxu0
        %v1319 = vadd.f32 %v1123, %v1318
        %v1320 = vpop.f32.mrb[0].mxu0
        %v1321 = vpop.f32.mrb[0].mxu0
        %v1322 = vadd.f32 %v1123, %v1321
        %v1323 = vpop.f32.mrb[0].mxu0
        %1324 = vmatprep.mubr.bf16.mxu0 0
        %1325 = vmatmul.mubr.bf16.gmra.mrb[0].mxu0 %v1103
        %v1326 = vpop.f32.mrb[0].mxu0
        %v1327 = vadd.f32 %v1123, %v1326
        %v1328 = vpop.f32.mrb[0].mxu0
        %v1329 = vpop.f32.mrb[0].mxu0
        %v1330 = vadd.f32 %v1123, %v1329
        %v1331 = vpop.f32.mrb[0].mxu0
        %1332 = vdwg.mxu0
        %v1333 = vld [vmem:[%s522] sm:$0xf]
        %v1334 = vld [vmem:[%s522 + $0x4] sm:$0xf]
        %v1335 = vld [vmem:[%s522 + $0x8] sm:$0xf]
        %v1336 = vld [vmem:[%s522 + $0xc] sm:$0xf]
        %v1337 = vld [vmem:[%s522 + $0x10] sm:$0xf]
        %v1338 = vld [vmem:[%s522 + $0x14] sm:$0xf]
        %v1339 = vld [vmem:[%s522 + $0x18] sm:$0xf]
        %v1340 = vld [vmem:[%s522 + $0x1c] sm:$0xf]
        %v1341 = vld [vmem:[%s522 + $0x20] sm:$0xf]
        %v1342 = vld [vmem:[%s522 + $0x24] sm:$0xf]
        %v1343 = vld [vmem:[%s522 + $0x28] sm:$0xf]
        %v1344 = vld [vmem:[%s522 + $0x2c] sm:$0xf]
        %v1345 = vld [vmem:[%s522 + $0x30] sm:$0xf]
        %v1346 = vld [vmem:[%s522 + $0x34] sm:$0xf]
        %v1347 = vld [vmem:[%s522 + $0x38] sm:$0xf]
        %v1348 = vld [vmem:[%s522 + $0x3c] sm:$0xf]
        %v1349 = vlaneseq
        %v1350 = vshrl.u32 %v1349, 7
        %v1351 = vsub.s32 1, %v1350
        %v1352 = vrot.slane %v1085, %v1351
        %v1369 = vunpack.c.l.b16 %v1333
        %v1370 = vunpack.c.l.b16 %v1334
        %v1371 = vunpack.c.l.b16 %v1335
        %v1372 = vunpack.c.l.b16 %v1336
        %v1373 = vunpack.c.l.b16 %v1337
        %v1374 = vunpack.c.l.b16 %v1338
        %v1375 = vunpack.c.l.b16 %v1339
        %v1376 = vunpack.c.l.b16 %v1340
        %v1377 = vunpack.c.l.b16 %v1341
        %v1378 = vunpack.c.l.b16 %v1342
        %v1379 = vunpack.c.l.b16 %v1343
        %v1380 = vunpack.c.l.b16 %v1344
        %v1381 = vunpack.c.l.b16 %v1345
        %v1382 = vunpack.c.l.b16 %v1346
        %v1383 = vunpack.c.l.b16 %v1347
        %v1384 = vunpack.c.l.b16 %v1348
        %v1385 = vpack.c.b16 %v1370, %v1369
        %v1386 = vpack.c.b16 %v1372, %v1371
        %v1387 = vpack.c.b16 %v1374, %v1373
        %v1388 = vpack.c.b16 %v1376, %v1375
        %v1389 = vpack.c.b16 %v1378, %v1377
        %v1390 = vpack.c.b16 %v1380, %v1379
        %v1391 = vpack.c.b16 %v1382, %v1381
        %v1392 = vpack.c.b16 %v1384, %v1383
        %1401 = vmatprep.subr.bf16.mxu0 0
        %1402 = vmatpush1.bf16.msra.mxu0 %v1385
        %1403 = vmatprep.subr.bf16.mxu0 0
        %1404 = vmatpush1.bf16.msra.mxu0 %v1386
        %1405 = vmatprep.subr.bf16.mxu0 0
        %1406 = vmatpush1.bf16.msra.mxu0 %v1387
        %1407 = vmatprep.subr.bf16.mxu0 0
        %1408 = vmatpush1.bf16.msra.mxu0 %v1388
        %1409 = vmatprep.subr.bf16.mxu0 0
        %1410 = vmatpush1.bf16.msra.mxu0 %v1389
        %1411 = vmatprep.subr.bf16.mxu0 0
        %1412 = vmatpush1.bf16.msra.mxu0 %v1390
        %1413 = vmatprep.subr.bf16.mxu0 0
        %1414 = vmatpush1.bf16.msra.mxu0 %v1391
        %1415 = vmatprep.subr.bf16.mxu0 0
        %1416 = vmatpush1.bf16.msra.mxu0 %v1392
        %1417 = vmatprep.subr.bf16.mxu0 0
        %1418 = vmatpush1.bf16.msra.mxu0 0
        %1419 = vmatprep.subr.bf16.mxu0 0
        %1420 = vmatpush1.bf16.msra.mxu0 0
        %1421 = vmatprep.subr.bf16.mxu0 0
        %1422 = vmatpush1.bf16.msra.mxu0 0
        %1423 = vmatprep.subr.bf16.mxu0 0
        %1424 = vmatpush1.bf16.msra.mxu0 0
        %1425 = vmatprep.subr.bf16.mxu0 0
        %1426 = vmatpush1.bf16.msra.mxu0 0
        %1427 = vmatprep.subr.bf16.mxu0 0
        %1428 = vmatpush1.bf16.msra.mxu0 0
        %1429 = vmatprep.subr.bf16.mxu0 0
        %1430 = vmatpush1.bf16.msra.mxu0 0
        %1431 = vmatprep.subr.bf16.mxu0 0
        %1432 = vmatpush1.bf16.msra.mxu0 0
        %1433 = vmatprep.mubr.bf16.mxu0 0
        %1434 = vmatmul.mubr.bf16.gmra.mrb[0].mxu0 %v1088
        %v1435 = vpop.f32.mrb[0].mxu0
        %v1436 = vadd.f32 %v1352, %v1435
        %v1437 = vpop.f32.mrb[0].mxu0
        %v1438 = vpop.f32.mrb[0].mxu0
        %v1439 = vadd.f32 %v1352, %v1438
        %v1440 = vpop.f32.mrb[0].mxu0
        %1441 = vmatprep.mubr.bf16.mxu0 0
        %1442 = vmatmul.mubr.bf16.gmra.mrb[0].mxu0 %v1089
        %v1443 = vpop.f32.mrb[0].mxu0
        %v1444 = vadd.f32 %v1352, %v1443
        %v1445 = vpop.f32.mrb[0].mxu0
        %v1446 = vpop.f32.mrb[0].mxu0
        %v1447 = vadd.f32 %v1352, %v1446
        %v1448 = vpop.f32.mrb[0].mxu0
        %1449 = vmatprep.mubr.bf16.mxu0 0
        %1450 = vmatmul.mubr.bf16.gmra.mrb[0].mxu0 %v1090
        %v1451 = vpop.f32.mrb[0].mxu0
        %v1452 = vadd.f32 %v1352, %v1451
        %v1453 = vpop.f32.mrb[0].mxu0
        %v1454 = vpop.f32.mrb[0].mxu0
        %v1455 = vadd.f32 %v1352, %v1454
        %v1456 = vpop.f32.mrb[0].mxu0
        %1457 = vmatprep.mubr.bf16.mxu0 0
        %1458 = vmatmul.mubr.bf16.gmra.mrb[0].mxu0 %v1091
        %v1459 = vpop.f32.mrb[0].mxu0
        %v1460 = vadd.f32 %v1352, %v1459
        %v1461 = vpop.f32.mrb[0].mxu0
        %v1462 = vpop.f32.mrb[0].mxu0
        %v1463 = vadd.f32 %v1352, %v1462
        %v1464 = vpop.f32.mrb[0].mxu0
        %1465 = vmatprep.mubr.bf16.mxu0 0
        %1466 = vmatmul.mubr.bf16.gmra.mrb[0].mxu0 %v1092
        %v1467 = vpop.f32.mrb[0].mxu0
        %v1468 = vadd.f32 %v1352, %v1467
        %v1469 = vpop.f32.mrb[0].mxu0
        %v1470 = vpop.f32.mrb[0].mxu0
        %v1471 = vadd.f32 %v1352, %v1470
        %v1472 = vpop.f32.mrb[0].mxu0
        %1473 = vmatprep.mubr.bf16.mxu0 0
        %1474 = vmatmul.mubr.bf16.gmra.mrb[0].mxu0 %v1093
        %v1475 = vpop.f32.mrb[0].mxu0
        %v1476 = vadd.f32 %v1352, %v1475
        %v1477 = vpop.f32.mrb[0].mxu0
        %v1478 = vpop.f32.mrb[0].mxu0
        %v1479 = vadd.f32 %v1352, %v1478
        %v1480 = vpop.f32.mrb[0].mxu0
        %1481 = vmatprep.mubr.bf16.mxu0 0
        %1482 = vmatmul.mubr.bf16.gmra.mrb[0].mxu0 %v1094
        %v1483 = vpop.f32.mrb[0].mxu0
        %v1484 = vadd.f32 %v1352, %v1483
        %v1485 = vpop.f32.mrb[0].mxu0
        %v1486 = vpop.f32.mrb[0].mxu0
        %v1487 = vadd.f32 %v1352, %v1486
        %v1488 = vpop.f32.mrb[0].mxu0
        %1489 = vmatprep.mubr.bf16.mxu0 0
        %1490 = vmatmul.mubr.bf16.gmra.mrb[0].mxu0 %v1095
        %v1491 = vpop.f32.mrb[0].mxu0
        %v1492 = vadd.f32 %v1352, %v1491
        %v1493 = vpop.f32.mrb[0].mxu0
        %v1494 = vpop.f32.mrb[0].mxu0
        %v1495 = vadd.f32 %v1352, %v1494
        %v1496 = vpop.f32.mrb[0].mxu0
        %1497 = vmatprep.mubr.bf16.mxu0 0
        %1498 = vmatmul.mubr.bf16.gmra.mrb[0].mxu0 %v1096
        %v1499 = vpop.f32.mrb[0].mxu0
        %v1500 = vadd.f32 %v1352, %v1499
        %v1501 = vpop.f32.mrb[0].mxu0
        %v1502 = vpop.f32.mrb[0].mxu0
        %v1503 = vadd.f32 %v1352, %v1502
        %v1504 = vpop.f32.mrb[0].mxu0
        %1505 = vmatprep.mubr.bf16.mxu0 0
        %1506 = vmatmul.mubr.bf16.gmra.mrb[0].mxu0 %v1097
        %v1507 = vpop.f32.mrb[0].mxu0
        %v1508 = vadd.f32 %v1352, %v1507
        %v1509 = vpop.f32.mrb[0].mxu0
        %v1510 = vpop.f32.mrb[0].mxu0
        %v1511 = vadd.f32 %v1352, %v1510
        %v1512 = vpop.f32.mrb[0].mxu0
        %1513 = vmatprep.mubr.bf16.mxu0 0
        %1514 = vmatmul.mubr.bf16.gmra.mrb[0].mxu0 %v1098
        %v1515 = vpop.f32.mrb[0].mxu0
        %v1516 = vadd.f32 %v1352, %v1515
        %v1517 = vpop.f32.mrb[0].mxu0
        %v1518 = vpop.f32.mrb[0].mxu0
        %v1519 = vadd.f32 %v1352, %v1518
        %v1520 = vpop.f32.mrb[0].mxu0
        %1521 = vmatprep.mubr.bf16.mxu0 0
        %1522 = vmatmul.mubr.bf16.gmra.mrb[0].mxu0 %v1099
        %v1523 = vpop.f32.mrb[0].mxu0
        %v1524 = vadd.f32 %v1352, %v1523
        %v1525 = vpop.f32.mrb[0].mxu0
        %v1526 = vpop.f32.mrb[0].mxu0
        %v1527 = vadd.f32 %v1352, %v1526
        %v1528 = vpop.f32.mrb[0].mxu0
        %1529 = vmatprep.mubr.bf16.mxu0 0
        %1530 = vmatmul.mubr.bf16.gmra.mrb[0].mxu0 %v1100
        %v1531 = vpop.f32.mrb[0].mxu0
        %v1532 = vadd.f32 %v1352, %v1531
        %v1533 = vpop.f32.mrb[0].mxu0
        %v1534 = vpop.f32.mrb[0].mxu0
        %v1535 = vadd.f32 %v1352, %v1534
        %v1536 = vpop.f32.mrb[0].mxu0
        %1537 = vmatprep.mubr.bf16.mxu0 0
        %1538 = vmatmul.mubr.bf16.gmra.mrb[0].mxu0 %v1101
        %v1539 = vpop.f32.mrb[0].mxu0
        %v1540 = vadd.f32 %v1352, %v1539
        %v1541 = vpop.f32.mrb[0].mxu0
        %v1542 = vpop.f32.mrb[0].mxu0
        %v1543 = vadd.f32 %v1352, %v1542
        %v1544 = vpop.f32.mrb[0].mxu0
        %1545 = vmatprep.mubr.bf16.mxu0 0
        %1546 = vmatmul.mubr.bf16.gmra.mrb[0].mxu0 %v1102
        %v1547 = vpop.f32.mrb[0].mxu0
        %v1548 = vadd.f32 %v1352, %v1547
        %v1549 = vpop.f32.mrb[0].mxu0
        %v1550 = vpop.f32.mrb[0].mxu0
        %v1551 = vadd.f32 %v1352, %v1550
        %v1552 = vpop.f32.mrb[0].mxu0
        %1553 = vmatprep.mubr.bf16.mxu0 0
        %1554 = vmatmul.mubr.bf16.gmra.mrb[0].mxu0 %v1103
        %v1555 = vpop.f32.mrb[0].mxu0
        %v1556 = vadd.f32 %v1352, %v1555
        %v1557 = vpop.f32.mrb[0].mxu0
        %v1558 = vpop.f32.mrb[0].mxu0
        %v1559 = vadd.f32 %v1352, %v1558
        %v1560 = vpop.f32.mrb[0].mxu0
        %1561 = vdwg.mxu0
        %v1562 = vld [vmem:[%s527] sm:$0xf]
        %v1563 = vld [vmem:[%s527 + $0x4] sm:$0xf]
        %v1564 = vld [vmem:[%s527 + $0x8] sm:$0xf]
        %v1565 = vld [vmem:[%s527 + $0xc] sm:$0xf]
        %v1566 = vld [vmem:[%s527 + $0x10] sm:$0xf]
        %v1567 = vld [vmem:[%s527 + $0x14] sm:$0xf]
        %v1568 = vld [vmem:[%s527 + $0x18] sm:$0xf]
        %v1569 = vld [vmem:[%s527 + $0x1c] sm:$0xf]
        %v1570 = vld [vmem:[%s527 + $0x20] sm:$0xf]
        %v1571 = vld [vmem:[%s527 + $0x24] sm:$0xf]
        %v1572 = vld [vmem:[%s527 + $0x28] sm:$0xf]
        %v1573 = vld [vmem:[%s527 + $0x2c] sm:$0xf]
        %v1574 = vld [vmem:[%s527 + $0x30] sm:$0xf]
        %v1575 = vld [vmem:[%s527 + $0x34] sm:$0xf]
        %v1576 = vld [vmem:[%s527 + $0x38] sm:$0xf]
        %v1577 = vld [vmem:[%s527 + $0x3c] sm:$0xf]
        %v1578 = vlaneseq
        %v1579 = vshrl.u32 %v1578, 7
        %v1580 = vsub.s32 2, %v1579
        %v1581 = vrot.slane %v1085, %v1580
        %v1598 = vunpack.c.l.b16 %v1562
        %v1599 = vunpack.c.l.b16 %v1563
        %v1600 = vunpack.c.l.b16 %v1564
        %v1601 = vunpack.c.l.b16 %v1565
        %v1602 = vunpack.c.l.b16 %v1566
        %v1603 = vunpack.c.l.b16 %v1567
        %v1604 = vunpack.c.l.b16 %v1568
        %v1605 = vunpack.c.l.b16 %v1569
        %v1606 = vunpack.c.l.b16 %v1570
        %v1607 = vunpack.c.l.b16 %v1571
        %v1608 = vunpack.c.l.b16 %v1572
        %v1609 = vunpack.c.l.b16 %v1573
        %v1610 = vunpack.c.l.b16 %v1574
        %v1611 = vunpack.c.l.b16 %v1575
        %v1612 = vunpack.c.l.b16 %v1576
        %v1613 = vunpack.c.l.b16 %v1577
        %v1614 = vpack.c.b16 %v1599, %v1598
        %v1615 = vpack.c.b16 %v1601, %v1600
        %v1616 = vpack.c.b16 %v1603, %v1602
        %v1617 = vpack.c.b16 %v1605, %v1604
        %v1618 = vpack.c.b16 %v1607, %v1606
        %v1619 = vpack.c.b16 %v1609, %v1608
        %v1620 = vpack.c.b16 %v1611, %v1610
        %v1621 = vpack.c.b16 %v1613, %v1612
        %1630 = vmatprep.subr.bf16.mxu0 0
        %1631 = vmatpush1.bf16.msra.mxu0 %v1614
        %1632 = vmatprep.subr.bf16.mxu0 0
        %1633 = vmatpush1.bf16.msra.mxu0 %v1615
        %1634 = vmatprep.subr.bf16.mxu0 0
        %1635 = vmatpush1.bf16.msra.mxu0 %v1616
        %1636 = vmatprep.subr.bf16.mxu0 0
        %1637 = vmatpush1.bf16.msra.mxu0 %v1617
        %1638 = vmatprep.subr.bf16.mxu0 0
        %1639 = vmatpush1.bf16.msra.mxu0 %v1618
        %1640 = vmatprep.subr.bf16.mxu0 0
        %1641 = vmatpush1.bf16.msra.mxu0 %v1619
        %1642 = vmatprep.subr.bf16.mxu0 0
        %1643 = vmatpush1.bf16.msra.mxu0 %v1620
        %1644 = vmatprep.subr.bf16.mxu0 0
        %1645 = vmatpush1.bf16.msra.mxu0 %v1621
        %1646 = vmatprep.subr.bf16.mxu0 0
        %1647 = vmatpush1.bf16.msra.mxu0 0
        %1648 = vmatprep.subr.bf16.mxu0 0
        %1649 = vmatpush1.bf16.msra.mxu0 0
        %1650 = vmatprep.subr.bf16.mxu0 0
        %1651 = vmatpush1.bf16.msra.mxu0 0
        %1652 = vmatprep.subr.bf16.mxu0 0
        %1653 = vmatpush1.bf16.msra.mxu0 0
        %1654 = vmatprep.subr.bf16.mxu0 0
        %1655 = vmatpush1.bf16.msra.mxu0 0
        %1656 = vmatprep.subr.bf16.mxu0 0
        %1657 = vmatpush1.bf16.msra.mxu0 0
        %1658 = vmatprep.subr.bf16.mxu0 0
        %1659 = vmatpush1.bf16.msra.mxu0 0
        %1660 = vmatprep.subr.bf16.mxu0 0
        %1661 = vmatpush1.bf16.msra.mxu0 0
        %1662 = vmatprep.mubr.bf16.mxu0 0
        %1663 = vmatmul.mubr.bf16.gmra.mrb[0].mxu0 %v1088
        %v1664 = vpop.f32.mrb[0].mxu0
        %v1665 = vadd.f32 %v1581, %v1664
        %v1666 = vpop.f32.mrb[0].mxu0
        %v1667 = vpop.f32.mrb[0].mxu0
        %v1668 = vadd.f32 %v1581, %v1667
        %v1669 = vpop.f32.mrb[0].mxu0
        %1670 = vmatprep.mubr.bf16.mxu0 0
        %1671 = vmatmul.mubr.bf16.gmra.mrb[0].mxu0 %v1089
        %v1672 = vpop.f32.mrb[0].mxu0
        %v1673 = vadd.f32 %v1581, %v1672
        %v1674 = vpop.f32.mrb[0].mxu0
        %v1675 = vpop.f32.mrb[0].mxu0
        %v1676 = vadd.f32 %v1581, %v1675
        %v1677 = vpop.f32.mrb[0].mxu0
        %1678 = vmatprep.mubr.bf16.mxu0 0
        %1679 = vmatmul.mubr.bf16.gmra.mrb[0].mxu0 %v1090
        %v1680 = vpop.f32.mrb[0].mxu0
        %v1681 = vadd.f32 %v1581, %v1680
        %v1682 = vpop.f32.mrb[0].mxu0
        %v1683 = vpop.f32.mrb[0].mxu0
        %v1684 = vadd.f32 %v1581, %v1683
        %v1685 = vpop.f32.mrb[0].mxu0
        %1686 = vmatprep.mubr.bf16.mxu0 0
        %1687 = vmatmul.mubr.bf16.gmra.mrb[0].mxu0 %v1091
        %v1688 = vpop.f32.mrb[0].mxu0
        %v1689 = vadd.f32 %v1581, %v1688
        %v1690 = vpop.f32.mrb[0].mxu0
        %v1691 = vpop.f32.mrb[0].mxu0
        %v1692 = vadd.f32 %v1581, %v1691
        %v1693 = vpop.f32.mrb[0].mxu0
        %1694 = vmatprep.mubr.bf16.mxu0 0
        %1695 = vmatmul.mubr.bf16.gmra.mrb[0].mxu0 %v1092
        %v1696 = vpop.f32.mrb[0].mxu0
        %v1697 = vadd.f32 %v1581, %v1696
        %v1698 = vpop.f32.mrb[0].mxu0
        %v1699 = vpop.f32.mrb[0].mxu0
        %v1700 = vadd.f32 %v1581, %v1699
        %v1701 = vpop.f32.mrb[0].mxu0
        %1702 = vmatprep.mubr.bf16.mxu0 0
        %1703 = vmatmul.mubr.bf16.gmra.mrb[0].mxu0 %v1093
        %v1704 = vpop.f32.mrb[0].mxu0
        %v1705 = vadd.f32 %v1581, %v1704
        %v1706 = vpop.f32.mrb[0].mxu0
        %v1707 = vpop.f32.mrb[0].mxu0
        %v1708 = vadd.f32 %v1581, %v1707
        %v1709 = vpop.f32.mrb[0].mxu0
        %1710 = vmatprep.mubr.bf16.mxu0 0
        %1711 = vmatmul.mubr.bf16.gmra.mrb[0].mxu0 %v1094
        %v1712 = vpop.f32.mrb[0].mxu0
        %v1713 = vadd.f32 %v1581, %v1712
        %v1714 = vpop.f32.mrb[0].mxu0
        %v1715 = vpop.f32.mrb[0].mxu0
        %v1716 = vadd.f32 %v1581, %v1715
        %v1717 = vpop.f32.mrb[0].mxu0
        %1718 = vmatprep.mubr.bf16.mxu0 0
        %1719 = vmatmul.mubr.bf16.gmra.mrb[0].mxu0 %v1095
        %v1720 = vpop.f32.mrb[0].mxu0
        %v1721 = vadd.f32 %v1581, %v1720
        %v1722 = vpop.f32.mrb[0].mxu0
        %v1723 = vpop.f32.mrb[0].mxu0
        %v1724 = vadd.f32 %v1581, %v1723
        %v1725 = vpop.f32.mrb[0].mxu0
        %1726 = vmatprep.mubr.bf16.mxu0 0
        %1727 = vmatmul.mubr.bf16.gmra.mrb[0].mxu0 %v1096
        %v1728 = vpop.f32.mrb[0].mxu0
        %v1729 = vadd.f32 %v1581, %v1728
        %v1730 = vpop.f32.mrb[0].mxu0
        %v1731 = vpop.f32.mrb[0].mxu0
        %v1732 = vadd.f32 %v1581, %v1731
        %v1733 = vpop.f32.mrb[0].mxu0
        %1734 = vmatprep.mubr.bf16.mxu0 0
        %1735 = vmatmul.mubr.bf16.gmra.mrb[0].mxu0 %v1097
        %v1736 = vpop.f32.mrb[0].mxu0
        %v1737 = vadd.f32 %v1581, %v1736
        %v1738 = vpop.f32.mrb[0].mxu0
        %v1739 = vpop.f32.mrb[0].mxu0
        %v1740 = vadd.f32 %v1581, %v1739
        %v1741 = vpop.f32.mrb[0].mxu0
        %1742 = vmatprep.mubr.bf16.mxu0 0
        %1743 = vmatmul.mubr.bf16.gmra.mrb[0].mxu0 %v1098
        %v1744 = vpop.f32.mrb[0].mxu0
        %v1745 = vadd.f32 %v1581, %v1744
        %v1746 = vpop.f32.mrb[0].mxu0
        %v1747 = vpop.f32.mrb[0].mxu0
        %v1748 = vadd.f32 %v1581, %v1747
        %v1749 = vpop.f32.mrb[0].mxu0
        %1750 = vmatprep.mubr.bf16.mxu0 0
        %1751 = vmatmul.mubr.bf16.gmra.mrb[0].mxu0 %v1099
        %v1752 = vpop.f32.mrb[0].mxu0
        %v1753 = vadd.f32 %v1581, %v1752
        %v1754 = vpop.f32.mrb[0].mxu0
        %v1755 = vpop.f32.mrb[0].mxu0
        %v1756 = vadd.f32 %v1581, %v1755
        %v1757 = vpop.f32.mrb[0].mxu0
        %1758 = vmatprep.mubr.bf16.mxu0 0
        %1759 = vmatmul.mubr.bf16.gmra.mrb[0].mxu0 %v1100
        %v1760 = vpop.f32.mrb[0].mxu0
        %v1761 = vadd.f32 %v1581, %v1760
        %v1762 = vpop.f32.mrb[0].mxu0
        %v1763 = vpop.f32.mrb[0].mxu0
        %v1764 = vadd.f32 %v1581, %v1763
        %v1765 = vpop.f32.mrb[0].mxu0
        %1766 = vmatprep.mubr.bf16.mxu0 0
        %1767 = vmatmul.mubr.bf16.gmra.mrb[0].mxu0 %v1101
        %v1768 = vpop.f32.mrb[0].mxu0
        %v1769 = vadd.f32 %v1581, %v1768
        %v1770 = vpop.f32.mrb[0].mxu0
        %v1771 = vpop.f32.mrb[0].mxu0
        %v1772 = vadd.f32 %v1581, %v1771
        %v1773 = vpop.f32.mrb[0].mxu0
        %1774 = vmatprep.mubr.bf16.mxu0 0
        %1775 = vmatmul.mubr.bf16.gmra.mrb[0].mxu0 %v1102
        %v1776 = vpop.f32.mrb[0].mxu0
        %v1777 = vadd.f32 %v1581, %v1776
        %v1778 = vpop.f32.mrb[0].mxu0
        %v1779 = vpop.f32.mrb[0].mxu0
        %v1780 = vadd.f32 %v1581, %v1779
        %v1781 = vpop.f32.mrb[0].mxu0
        %1782 = vmatprep.mubr.bf16.mxu0 0
        %1783 = vmatmul.mubr.bf16.gmra.mrb[0].mxu0 %v1103
        %v1784 = vpop.f32.mrb[0].mxu0
        %v1785 = vadd.f32 %v1581, %v1784
        %v1786 = vpop.f32.mrb[0].mxu0
        %v1787 = vpop.f32.mrb[0].mxu0
        %v1788 = vadd.f32 %v1581, %v1787
        %v1789 = vpop.f32.mrb[0].mxu0
        %1790 = vdwg.mxu0
        %v1791 = vpack.c.bf16 %v1210, %v1207
        %v1792 = vpack.c.bf16 %v1218, %v1215
        %v1793 = vpack.c.bf16 %v1226, %v1223
        %v1794 = vpack.c.bf16 %v1234, %v1231
        %v1795 = vpack.c.bf16 %v1242, %v1239
        %v1796 = vpack.c.bf16 %v1250, %v1247
        %v1797 = vpack.c.bf16 %v1258, %v1255
        %v1798 = vpack.c.bf16 %v1266, %v1263
        %v1799 = vpack.c.bf16 %v1274, %v1271
        %v1800 = vpack.c.bf16 %v1282, %v1279
        %v1801 = vpack.c.bf16 %v1290, %v1287
        %v1802 = vpack.c.bf16 %v1298, %v1295
        %v1803 = vpack.c.bf16 %v1306, %v1303
        %v1804 = vpack.c.bf16 %v1314, %v1311
        %v1805 = vpack.c.bf16 %v1322, %v1319
        %v1806 = vpack.c.bf16 %v1330, %v1327
        %v1807 = vpack.c.bf16 %v1439, %v1436
        %v1808 = vpack.c.bf16 %v1447, %v1444
        %v1809 = vpack.c.bf16 %v1455, %v1452
        %v1810 = vpack.c.bf16 %v1463, %v1460
        %v1811 = vpack.c.bf16 %v1471, %v1468
        %v1812 = vpack.c.bf16 %v1479, %v1476
        %v1813 = vpack.c.bf16 %v1487, %v1484
        %v1814 = vpack.c.bf16 %v1495, %v1492
        %v1815 = vpack.c.bf16 %v1503, %v1500
        %v1816 = vpack.c.bf16 %v1511, %v1508
        %v1817 = vpack.c.bf16 %v1519, %v1516
        %v1818 = vpack.c.bf16 %v1527, %v1524
        %v1819 = vpack.c.bf16 %v1535, %v1532
        %v1820 = vpack.c.bf16 %v1543, %v1540
        %v1821 = vpack.c.bf16 %v1551, %v1548
        %v1822 = vpack.c.bf16 %v1559, %v1556
        %v1823 = vpack.c.bf16 %v1668, %v1665
        %v1824 = vpack.c.bf16 %v1676, %v1673
        %v1825 = vpack.c.bf16 %v1684, %v1681
        %v1826 = vpack.c.bf16 %v1692, %v1689
        %v1827 = vpack.c.bf16 %v1700, %v1697
        %v1828 = vpack.c.bf16 %v1708, %v1705
        %v1829 = vpack.c.bf16 %v1716, %v1713
        %v1830 = vpack.c.bf16 %v1724, %v1721
        %v1831 = vpack.c.bf16 %v1732, %v1729
        %v1832 = vpack.c.bf16 %v1740, %v1737
        %v1833 = vpack.c.bf16 %v1748, %v1745
        %v1834 = vpack.c.bf16 %v1756, %v1753
        %v1835 = vpack.c.bf16 %v1764, %v1761
        %v1836 = vpack.c.bf16 %v1772, %v1769
        %v1837 = vpack.c.bf16 %v1780, %v1777
        %v1838 = vpack.c.bf16 %v1788, %v1785
        %1847 = vrot.lane.b32.xlu0 %v1791, 64
        %v1848 = vpop.permute.xlu0 %1847
        %1849 = vrot.lane.b32.xlu0 %v1792, 64
        %v1850 = vpop.permute.xlu0 %1849
        %1851 = vrot.lane.b32.xlu0 %v1793, 64
        %v1852 = vpop.permute.xlu0 %1851
        %1853 = vrot.lane.b32.xlu0 %v1794, 64
        %v1854 = vpop.permute.xlu0 %1853
        %1855 = vrot.lane.b32.xlu0 %v1795, 64
        %v1856 = vpop.permute.xlu0 %1855
        %1857 = vrot.lane.b32.xlu0 %v1796, 64
        %v1858 = vpop.permute.xlu0 %1857
        %1859 = vrot.lane.b32.xlu0 %v1797, 64
        %v1860 = vpop.permute.xlu0 %1859
        %1861 = vrot.lane.b32.xlu0 %v1798, 64
        %v1862 = vpop.permute.xlu0 %1861
        %1871 = vrot.lane.b32.xlu0 %v1807, 64
        %v1872 = vpop.permute.xlu0 %1871
        %1873 = vrot.lane.b32.xlu0 %v1808, 64
        %v1874 = vpop.permute.xlu0 %1873
        %1875 = vrot.lane.b32.xlu0 %v1809, 64
        %v1876 = vpop.permute.xlu0 %1875
        %1877 = vrot.lane.b32.xlu0 %v1810, 64
        %v1878 = vpop.permute.xlu0 %1877
        %1879 = vrot.lane.b32.xlu0 %v1811, 64
        %v1880 = vpop.permute.xlu0 %1879
        %1881 = vrot.lane.b32.xlu0 %v1812, 64
        %v1882 = vpop.permute.xlu0 %1881
        %1883 = vrot.lane.b32.xlu0 %v1813, 64
        %v1884 = vpop.permute.xlu0 %1883
        %1885 = vrot.lane.b32.xlu0 %v1814, 64
        %v1886 = vpop.permute.xlu0 %1885
        %1903 = vrot.lane.b32.xlu0 %v1823, 64
        %v1904 = vpop.permute.xlu0 %1903
        %1905 = vrot.lane.b32.xlu0 %v1824, 64
        %v1906 = vpop.permute.xlu0 %1905
        %1907 = vrot.lane.b32.xlu0 %v1825, 64
        %v1908 = vpop.permute.xlu0 %1907
        %1909 = vrot.lane.b32.xlu0 %v1826, 64
        %v1910 = vpop.permute.xlu0 %1909
        %1911 = vrot.lane.b32.xlu0 %v1827, 64
        %v1912 = vpop.permute.xlu0 %1911
        %1913 = vrot.lane.b32.xlu0 %v1828, 64
        %v1914 = vpop.permute.xlu0 %1913
        %1915 = vrot.lane.b32.xlu0 %v1829, 64
        %v1916 = vpop.permute.xlu0 %1915
        %1917 = vrot.lane.b32.xlu0 %v1830, 64
        %v1918 = vpop.permute.xlu0 %1917
        %1927 = vxpose.xlu0.c.b16.start [1/8] %v1807, 128
        %1928 = vxpose.xlu0.c.b16.cont [2/8] %v1808, 128
        %1929 = vxpose.xlu0.c.b16.cont [3/8] %v1809, 128
        %1930 = vxpose.xlu0.c.b16.cont [4/8] %v1810, 128
        %1931 = vxpose.xlu0.c.b16.cont [5/8] %v1811, 128
        %1932 = vxpose.xlu0.c.b16.cont [6/8] %v1812, 128
        %1933 = vxpose.xlu0.c.b16.cont [7/8] %v1813, 128
        %1934 = vxpose.xlu0.c.b16.end [8/8] %v1814, 128
        %v1935 = vpop.trf.xlu0
        %v1936 = vpop.trf.xlu0
        %v1937 = vpop.trf.xlu0
        %v1938 = vpop.trf.xlu0
        %v1939 = vpop.trf.xlu0
        %v1940 = vpop.trf.xlu0
        %v1941 = vpop.trf.xlu0
        %v1942 = vpop.trf.xlu0
        %1943 = vxpose.xlu0.c.b16.start [1/8] %v1872, 128
        %1944 = vxpose.xlu0.c.b16.cont [2/8] %v1874, 128
        %1945 = vxpose.xlu0.c.b16.cont [3/8] %v1876, 128
        %1946 = vxpose.xlu0.c.b16.cont [4/8] %v1878, 128
        %1947 = vxpose.xlu0.c.b16.cont [5/8] %v1880, 128
        %1948 = vxpose.xlu0.c.b16.cont [6/8] %v1882, 128
        %1949 = vxpose.xlu0.c.b16.cont [7/8] %v1884, 128
        %1950 = vxpose.xlu0.c.b16.end [8/8] %v1886, 128
        %v1951 = vpop.trf.xlu0
        %v1952 = vpop.trf.xlu0
        %v1953 = vpop.trf.xlu0
        %v1954 = vpop.trf.xlu0
        %v1955 = vpop.trf.xlu0
        %v1956 = vpop.trf.xlu0
        %v1957 = vpop.trf.xlu0
        %v1958 = vpop.trf.xlu0
        %vm1959 = vcmask 523264
        %v1961 = vsel %vm1959, %v1791, 0
        %v1964 = vsel %vm1959, %v1792, 0
        %v1967 = vsel %vm1959, %v1793, 0
        %v1970 = vsel %vm1959, %v1794, 0
        %v1973 = vsel %vm1959, %v1795, 0
        %v1976 = vsel %vm1959, %v1796, 0
        %v1979 = vsel %vm1959, %v1797, 0
        %v1982 = vsel %vm1959, %v1798, 0
        %1984 = vmatprep.subr.bf16.mxu0 0
        %1985 = vmatpush1.bf16.msra.mxu0 %v1935
        %1986 = vmatprep.subr.bf16.mxu0 0
        %1987 = vmatpush1.bf16.msra.mxu0 %v1936
        %1988 = vmatprep.subr.bf16.mxu0 0
        %1989 = vmatpush1.bf16.msra.mxu0 %v1937
        %1990 = vmatprep.subr.bf16.mxu0 0
        %1991 = vmatpush1.bf16.msra.mxu0 %v1938
        %1992 = vmatprep.subr.bf16.mxu0 0
        %1993 = vmatpush1.bf16.msra.mxu0 0
        %1994 = vmatprep.subr.bf16.mxu0 0
        %1995 = vmatpush1.bf16.msra.mxu0 0
        %1996 = vmatprep.subr.bf16.mxu0 0
        %1997 = vmatpush1.bf16.msra.mxu0 0
        %1998 = vmatprep.subr.bf16.mxu0 0
        %1999 = vmatpush1.bf16.msra.mxu0 0
        %2000 = vmatprep.subr.bf16.mxu0 0
        %2001 = vmatpush1.bf16.msra.mxu0 0
        %2002 = vmatprep.subr.bf16.mxu0 0
        %2003 = vmatpush1.bf16.msra.mxu0 0
        %2004 = vmatprep.subr.bf16.mxu0 0
        %2005 = vmatpush1.bf16.msra.mxu0 0
        %2006 = vmatprep.subr.bf16.mxu0 0
        %2007 = vmatpush1.bf16.msra.mxu0 0
        %2008 = vmatprep.subr.bf16.mxu0 0
        %2009 = vmatpush1.bf16.msra.mxu0 0
        %2010 = vmatprep.subr.bf16.mxu0 0
        %2011 = vmatpush1.bf16.msra.mxu0 0
        %2012 = vmatprep.subr.bf16.mxu0 0
        %2013 = vmatpush1.bf16.msra.mxu0 0
        %2014 = vmatprep.subr.bf16.mxu0 0
        %2015 = vmatpush1.bf16.msra.mxu0 0
        %2016 = vmatprep.mubr.bf16.mxu0 0
        %2017 = vmatmul.mubr.bf16.gmra.mrb[0].mxu0 %v1961
        %v2018 = vpop.f32.mrb[0].mxu0
        %v2019 = vadd.f32 0.0, %v2018
        %v2020 = vpop.f32.mrb[0].mxu0
        %v2021 = vpop.f32.mrb[0].mxu0
        %v2022 = vadd.f32 0.0, %v2021
        %v2023 = vpop.f32.mrb[0].mxu0
        %2024 = vmatprep.mubr.bf16.mxu0 0
        %2025 = vmatmul.mubr.bf16.gmra.mrb[0].mxu0 %v1964
        %v2026 = vpop.f32.mrb[0].mxu0
        %v2027 = vadd.f32 0.0, %v2026
        %v2028 = vpop.f32.mrb[0].mxu0
        %v2029 = vpop.f32.mrb[0].mxu0
        %v2030 = vadd.f32 0.0, %v2029
        %v2031 = vpop.f32.mrb[0].mxu0
        %2032 = vmatprep.mubr.bf16.mxu0 0
        %2033 = vmatmul.mubr.bf16.gmra.mrb[0].mxu0 %v1967
        %v2034 = vpop.f32.mrb[0].mxu0
        %v2035 = vadd.f32 0.0, %v2034
        %v2036 = vpop.f32.mrb[0].mxu0
        %v2037 = vpop.f32.mrb[0].mxu0
        %v2038 = vadd.f32 0.0, %v2037
        %v2039 = vpop.f32.mrb[0].mxu0
        %2040 = vmatprep.mubr.bf16.mxu0 0
        %2041 = vmatmul.mubr.bf16.gmra.mrb[0].mxu0 %v1970
        %v2042 = vpop.f32.mrb[0].mxu0
        %v2043 = vadd.f32 0.0, %v2042
        %v2044 = vpop.f32.mrb[0].mxu0
        %v2045 = vpop.f32.mrb[0].mxu0
        %v2046 = vadd.f32 0.0, %v2045
        %v2047 = vpop.f32.mrb[0].mxu0
        %2048 = vmatprep.mubr.bf16.mxu0 0
        %2049 = vmatmul.mubr.bf16.gmra.mrb[0].mxu0 %v1973
        %v2050 = vpop.f32.mrb[0].mxu0
        %v2051 = vadd.f32 0.0, %v2050
        %v2052 = vpop.f32.mrb[0].mxu0
        %v2053 = vpop.f32.mrb[0].mxu0
        %v2054 = vadd.f32 0.0, %v2053
        %v2055 = vpop.f32.mrb[0].mxu0
        %2056 = vmatprep.mubr.bf16.mxu0 0
        %2057 = vmatmul.mubr.bf16.gmra.mrb[0].mxu0 %v1976
        %v2058 = vpop.f32.mrb[0].mxu0
        %v2059 = vadd.f32 0.0, %v2058
        %v2060 = vpop.f32.mrb[0].mxu0
        %v2061 = vpop.f32.mrb[0].mxu0
        %v2062 = vadd.f32 0.0, %v2061
        %v2063 = vpop.f32.mrb[0].mxu0
        %2064 = vmatprep.mubr.bf16.mxu0 0
        %2065 = vmatmul.mubr.bf16.gmra.mrb[0].mxu0 %v1979
        %v2066 = vpop.f32.mrb[0].mxu0
        %v2067 = vadd.f32 0.0, %v2066
        %v2068 = vpop.f32.mrb[0].mxu0
        %v2069 = vpop.f32.mrb[0].mxu0
        %v2070 = vadd.f32 0.0, %v2069
        %v2071 = vpop.f32.mrb[0].mxu0
        %2072 = vmatprep.mubr.bf16.mxu0 0
        %2073 = vmatmul.mubr.bf16.gmra.mrb[0].mxu0 %v1982
        %v2074 = vpop.f32.mrb[0].mxu0
        %v2075 = vadd.f32 0.0, %v2074
        %v2076 = vpop.f32.mrb[0].mxu0
        %v2077 = vpop.f32.mrb[0].mxu0
        %v2078 = vadd.f32 0.0, %v2077
        %v2079 = vpop.f32.mrb[0].mxu0
        %2080 = vdwg.mxu0
        %v2082 = vsel %vm1959, %v1848, 0
        %v2085 = vsel %vm1959, %v1850, 0
        %v2088 = vsel %vm1959, %v1852, 0
        %v2091 = vsel %vm1959, %v1854, 0
        %v2094 = vsel %vm1959, %v1856, 0
        %v2097 = vsel %vm1959, %v1858, 0
        %v2100 = vsel %vm1959, %v1860, 0
        %v2103 = vsel %vm1959, %v1862, 0
        %2105 = vmatprep.subr.bf16.mxu0 0
        %2106 = vmatpush1.bf16.msra.mxu0 %v1951
        %2107 = vmatprep.subr.bf16.mxu0 0
        %2108 = vmatpush1.bf16.msra.mxu0 %v1952
        %2109 = vmatprep.subr.bf16.mxu0 0
        %2110 = vmatpush1.bf16.msra.mxu0 %v1953
        %2111 = vmatprep.subr.bf16.mxu0 0
        %2112 = vmatpush1.bf16.msra.mxu0 %v1954
        %2113 = vmatprep.subr.bf16.mxu0 0
        %2114 = vmatpush1.bf16.msra.mxu0 0
        %2115 = vmatprep.subr.bf16.mxu0 0
        %2116 = vmatpush1.bf16.msra.mxu0 0
        %2117 = vmatprep.subr.bf16.mxu0 0
        %2118 = vmatpush1.bf16.msra.mxu0 0
        %2119 = vmatprep.subr.bf16.mxu0 0
        %2120 = vmatpush1.bf16.msra.mxu0 0
        %2121 = vmatprep.subr.bf16.mxu0 0
        %2122 = vmatpush1.bf16.msra.mxu0 0
        %2123 = vmatprep.subr.bf16.mxu0 0
        %2124 = vmatpush1.bf16.msra.mxu0 0
        %2125 = vmatprep.subr.bf16.mxu0 0
        %2126 = vmatpush1.bf16.msra.mxu0 0
        %2127 = vmatprep.subr.bf16.mxu0 0
        %2128 = vmatpush1.bf16.msra.mxu0 0
        %2129 = vmatprep.subr.bf16.mxu0 0
        %2130 = vmatpush1.bf16.msra.mxu0 0
        %2131 = vmatprep.subr.bf16.mxu0 0
        %2132 = vmatpush1.bf16.msra.mxu0 0
        %2133 = vmatprep.subr.bf16.mxu0 0
        %2134 = vmatpush1.bf16.msra.mxu0 0
        %2135 = vmatprep.subr.bf16.mxu0 0
        %2136 = vmatpush1.bf16.msra.mxu0 0
        %2137 = vmatprep.mubr.bf16.mxu0 0
        %2138 = vmatmul.mubr.bf16.gmra.mrb[0].mxu0 %v2082
        %v2139 = vpop.f32.mrb[0].mxu0
        %v2140 = vadd.f32 0.0, %v2139
        %v2141 = vpop.f32.mrb[0].mxu0
        %v2142 = vpop.f32.mrb[0].mxu0
        %v2143 = vadd.f32 0.0, %v2142
        %v2144 = vpop.f32.mrb[0].mxu0
        %2145 = vmatprep.mubr.bf16.mxu0 0
        %2146 = vmatmul.mubr.bf16.gmra.mrb[0].mxu0 %v2085
        %v2147 = vpop.f32.mrb[0].mxu0
        %v2148 = vadd.f32 0.0, %v2147
        %v2149 = vpop.f32.mrb[0].mxu0
        %v2150 = vpop.f32.mrb[0].mxu0
        %v2151 = vadd.f32 0.0, %v2150
        %v2152 = vpop.f32.mrb[0].mxu0
        %2153 = vmatprep.mubr.bf16.mxu0 0
        %2154 = vmatmul.mubr.bf16.gmra.mrb[0].mxu0 %v2088
        %v2155 = vpop.f32.mrb[0].mxu0
        %v2156 = vadd.f32 0.0, %v2155
        %v2157 = vpop.f32.mrb[0].mxu0
        %v2158 = vpop.f32.mrb[0].mxu0
        %v2159 = vadd.f32 0.0, %v2158
        %v2160 = vpop.f32.mrb[0].mxu0
        %2161 = vmatprep.mubr.bf16.mxu0 0
        %2162 = vmatmul.mubr.bf16.gmra.mrb[0].mxu0 %v2091
        %v2163 = vpop.f32.mrb[0].mxu0
        %v2164 = vadd.f32 0.0, %v2163
        %v2165 = vpop.f32.mrb[0].mxu0
        %v2166 = vpop.f32.mrb[0].mxu0
        %v2167 = vadd.f32 0.0, %v2166
        %v2168 = vpop.f32.mrb[0].mxu0
        %2169 = vmatprep.mubr.bf16.mxu0 0
        %2170 = vmatmul.mubr.bf16.gmra.mrb[0].mxu0 %v2094
        %v2171 = vpop.f32.mrb[0].mxu0
        %v2172 = vadd.f32 0.0, %v2171
        %v2173 = vpop.f32.mrb[0].mxu0
        %v2174 = vpop.f32.mrb[0].mxu0
        %v2175 = vadd.f32 0.0, %v2174
        %v2176 = vpop.f32.mrb[0].mxu0
        %2177 = vmatprep.mubr.bf16.mxu0 0
        %2178 = vmatmul.mubr.bf16.gmra.mrb[0].mxu0 %v2097
        %v2179 = vpop.f32.mrb[0].mxu0
        %v2180 = vadd.f32 0.0, %v2179
        %v2181 = vpop.f32.mrb[0].mxu0
        %v2182 = vpop.f32.mrb[0].mxu0
        %v2183 = vadd.f32 0.0, %v2182
        %v2184 = vpop.f32.mrb[0].mxu0
        %2185 = vmatprep.mubr.bf16.mxu0 0
        %2186 = vmatmul.mubr.bf16.gmra.mrb[0].mxu0 %v2100
        %v2187 = vpop.f32.mrb[0].mxu0
        %v2188 = vadd.f32 0.0, %v2187
        %v2189 = vpop.f32.mrb[0].mxu0
        %v2190 = vpop.f32.mrb[0].mxu0
        %v2191 = vadd.f32 0.0, %v2190
        %v2192 = vpop.f32.mrb[0].mxu0
        %2193 = vmatprep.mubr.bf16.mxu0 0
        %2194 = vmatmul.mubr.bf16.gmra.mrb[0].mxu0 %v2103
        %v2195 = vpop.f32.mrb[0].mxu0
        %v2196 = vadd.f32 0.0, %v2195
        %v2197 = vpop.f32.mrb[0].mxu0
        %v2198 = vpop.f32.mrb[0].mxu0
        %v2199 = vadd.f32 0.0, %v2198
        %v2200 = vpop.f32.mrb[0].mxu0
        %2201 = vdwg.mxu0
        %2202 = vmax.xlane.f32.xlu0 %v2019
        %v2203 = vpop.xlane.xlu0 %2202
        %2204 = vmax.xlane.f32.xlu0 %v2022
        %v2205 = vpop.xlane.xlu0 %2204
        %2206 = vmax.xlane.f32.xlu0 %v2027
        %v2207 = vpop.xlane.xlu0 %2206
        %2208 = vmax.xlane.f32.xlu0 %v2030
        %v2209 = vpop.xlane.xlu0 %2208
        %2210 = vmax.xlane.f32.xlu0 %v2035
        %v2211 = vpop.xlane.xlu0 %2210
        %2212 = vmax.xlane.f32.xlu0 %v2038
        %v2213 = vpop.xlane.xlu0 %2212
        %2214 = vmax.xlane.f32.xlu0 %v2043
        %v2215 = vpop.xlane.xlu0 %2214
        %2216 = vmax.xlane.f32.xlu0 %v2046
        %v2217 = vpop.xlane.xlu0 %2216
        %2218 = vmax.xlane.f32.xlu0 %v2051
        %v2219 = vpop.xlane.xlu0 %2218
        %2220 = vmax.xlane.f32.xlu0 %v2054
        %v2221 = vpop.xlane.xlu0 %2220
        %2222 = vmax.xlane.f32.xlu0 %v2059
        %v2223 = vpop.xlane.xlu0 %2222
        %2224 = vmax.xlane.f32.xlu0 %v2062
        %v2225 = vpop.xlane.xlu0 %2224
        %2226 = vmax.xlane.f32.xlu0 %v2067
        %v2227 = vpop.xlane.xlu0 %2226
        %2228 = vmax.xlane.f32.xlu0 %v2070
        %v2229 = vpop.xlane.xlu0 %2228
        %2230 = vmax.xlane.f32.xlu0 %v2075
        %v2231 = vpop.xlane.xlu0 %2230
        %2232 = vmax.xlane.f32.xlu0 %v2078
        %v2233 = vpop.xlane.xlu0 %2232
        %2234 = vmax.xlane.f32.xlu0 %v2140
        %v2235 = vpop.xlane.xlu0 %2234
        %2236 = vmax.xlane.f32.xlu0 %v2143
        %v2237 = vpop.xlane.xlu0 %2236
        %2238 = vmax.xlane.f32.xlu0 %v2148
        %v2239 = vpop.xlane.xlu0 %2238
        %2240 = vmax.xlane.f32.xlu0 %v2151
        %v2241 = vpop.xlane.xlu0 %2240
        %2242 = vmax.xlane.f32.xlu0 %v2156
        %v2243 = vpop.xlane.xlu0 %2242
        %2244 = vmax.xlane.f32.xlu0 %v2159
        %v2245 = vpop.xlane.xlu0 %2244
        %2246 = vmax.xlane.f32.xlu0 %v2164
        %v2247 = vpop.xlane.xlu0 %2246
        %2248 = vmax.xlane.f32.xlu0 %v2167
        %v2249 = vpop.xlane.xlu0 %2248
        %2250 = vmax.xlane.f32.xlu0 %v2172
        %v2251 = vpop.xlane.xlu0 %2250
        %2252 = vmax.xlane.f32.xlu0 %v2175
        %v2253 = vpop.xlane.xlu0 %2252
        %2254 = vmax.xlane.f32.xlu0 %v2180
        %v2255 = vpop.xlane.xlu0 %2254
        %2256 = vmax.xlane.f32.xlu0 %v2183
        %v2257 = vpop.xlane.xlu0 %2256
        %2258 = vmax.xlane.f32.xlu0 %v2188
        %v2259 = vpop.xlane.xlu0 %2258
        %2260 = vmax.xlane.f32.xlu0 %v2191
        %v2261 = vpop.xlane.xlu0 %2260
        %2262 = vmax.xlane.f32.xlu0 %v2196
        %v2263 = vpop.xlane.xlu0 %2262
        %2264 = vmax.xlane.f32.xlu0 %v2199
        %v2265 = vpop.xlane.xlu0 %2264
        %v2266 = vsub.f32 %v2019, %v2203
        %v2267 = vsub.f32 %v2022, %v2205
        %v2268 = vsub.f32 %v2027, %v2207
        %v2269 = vsub.f32 %v2030, %v2209
        %v2270 = vsub.f32 %v2035, %v2211
        %v2271 = vsub.f32 %v2038, %v2213
        %v2272 = vsub.f32 %v2043, %v2215
        %v2273 = vsub.f32 %v2046, %v2217
        %v2274 = vsub.f32 %v2051, %v2219
        %v2275 = vsub.f32 %v2054, %v2221
        %v2276 = vsub.f32 %v2059, %v2223
        %v2277 = vsub.f32 %v2062, %v2225
        %v2278 = vsub.f32 %v2067, %v2227
        %v2279 = vsub.f32 %v2070, %v2229
        %v2280 = vsub.f32 %v2075, %v2231
        %v2281 = vsub.f32 %v2078, %v2233
        %v2282 = vsub.f32 %v2140, %v2235
        %v2283 = vsub.f32 %v2143, %v2237
        %v2284 = vsub.f32 %v2148, %v2239
        %v2285 = vsub.f32 %v2151, %v2241
        %v2286 = vsub.f32 %v2156, %v2243
        %v2287 = vsub.f32 %v2159, %v2245
        %v2288 = vsub.f32 %v2164, %v2247
        %v2289 = vsub.f32 %v2167, %v2249
        %v2290 = vsub.f32 %v2172, %v2251
        %v2291 = vsub.f32 %v2175, %v2253
        %v2292 = vsub.f32 %v2180, %v2255
        %v2293 = vsub.f32 %v2183, %v2257
        %v2294 = vsub.f32 %v2188, %v2259
        %v2295 = vsub.f32 %v2191, %v2261
        %v2296 = vsub.f32 %v2196, %v2263
        %v2297 = vsub.f32 %v2199, %v2265
        %v2298 = vmul.f32 %v2266, 1.442695
        %v2299 = vpow.pop %v2298
        %v2300 = vmul.f32 %v2267, 1.442695
        %v2301 = vpow.pop %v2300
        %v2302 = vmul.f32 %v2268, 1.442695
        %v2303 = vpow.pop %v2302
        %v2304 = vmul.f32 %v2269, 1.442695
        %v2305 = vpow.pop %v2304
        %v2306 = vmul.f32 %v2270, 1.442695
        %v2307 = vpow.pop %v2306
        %v2308 = vmul.f32 %v2271, 1.442695
        %v2309 = vpow.pop %v2308
        %v2310 = vmul.f32 %v2272, 1.442695
        %v2311 = vpow.pop %v2310
        %v2312 = vmul.f32 %v2273, 1.442695
        %v2313 = vpow.pop %v2312
        %v2314 = vmul.f32 %v2274, 1.442695
        %v2315 = vpow.pop %v2314
        %v2316 = vmul.f32 %v2275, 1.442695
        %v2317 = vpow.pop %v2316
        %v2318 = vmul.f32 %v2276, 1.442695
        %v2319 = vpow.pop %v2318
        %v2320 = vmul.f32 %v2277, 1.442695
        %v2321 = vpow.pop %v2320
        %v2322 = vmul.f32 %v2278, 1.442695
        %v2323 = vpow.pop %v2322
        %v2324 = vmul.f32 %v2279, 1.442695
        %v2325 = vpow.pop %v2324
        %v2326 = vmul.f32 %v2280, 1.442695
        %v2327 = vpow.pop %v2326
        %v2328 = vmul.f32 %v2281, 1.442695
        %v2329 = vpow.pop %v2328
        %v2330 = vmul.f32 %v2282, 1.442695
        %v2331 = vpow.pop %v2330
        %v2332 = vmul.f32 %v2283, 1.442695
        %v2333 = vpow.pop %v2332
        %v2334 = vmul.f32 %v2284, 1.442695
        %v2335 = vpow.pop %v2334
        %v2336 = vmul.f32 %v2285, 1.442695
        %v2337 = vpow.pop %v2336
        %v2338 = vmul.f32 %v2286, 1.442695
        %v2339 = vpow.pop %v2338
        %v2340 = vmul.f32 %v2287, 1.442695
        %v2341 = vpow.pop %v2340
        %v2342 = vmul.f32 %v2288, 1.442695
        %v2343 = vpow.pop %v2342
        %v2344 = vmul.f32 %v2289, 1.442695
        %v2345 = vpow.pop %v2344
        %v2346 = vmul.f32 %v2290, 1.442695
        %v2347 = vpow.pop %v2346
        %v2348 = vmul.f32 %v2291, 1.442695
        %v2349 = vpow.pop %v2348
        %v2350 = vmul.f32 %v2292, 1.442695
        %v2351 = vpow.pop %v2350
        %v2352 = vmul.f32 %v2293, 1.442695
        %v2353 = vpow.pop %v2352
        %v2354 = vmul.f32 %v2294, 1.442695
        %v2355 = vpow.pop %v2354
        %v2356 = vmul.f32 %v2295, 1.442695
        %v2357 = vpow.pop %v2356
        %v2358 = vmul.f32 %v2296, 1.442695
        %v2359 = vpow.pop %v2358
        %v2360 = vmul.f32 %v2297, 1.442695
        %v2361 = vpow.pop %v2360
        %2362 = vadd.xlane.f32.xlu0 %v2299
        %v2363 = vpop.xlane.xlu0 %2362
        %2364 = vadd.xlane.f32.xlu0 %v2301
        %v2365 = vpop.xlane.xlu0 %2364
        %2366 = vadd.xlane.f32.xlu0 %v2303
        %v2367 = vpop.xlane.xlu0 %2366
        %2368 = vadd.xlane.f32.xlu0 %v2305
        %v2369 = vpop.xlane.xlu0 %2368
        %2370 = vadd.xlane.f32.xlu0 %v2307
        %v2371 = vpop.xlane.xlu0 %2370
        %2372 = vadd.xlane.f32.xlu0 %v2309
        %v2373 = vpop.xlane.xlu0 %2372
        %2374 = vadd.xlane.f32.xlu0 %v2311
        %v2375 = vpop.xlane.xlu0 %2374
        %2376 = vadd.xlane.f32.xlu0 %v2313
        %v2377 = vpop.xlane.xlu0 %2376
        %2378 = vadd.xlane.f32.xlu0 %v2315
        %v2379 = vpop.xlane.xlu0 %2378
        %2380 = vadd.xlane.f32.xlu0 %v2317
        %v2381 = vpop.xlane.xlu0 %2380
        %2382 = vadd.xlane.f32.xlu0 %v2319
        %v2383 = vpop.xlane.xlu0 %2382
        %2384 = vadd.xlane.f32.xlu0 %v2321
        %v2385 = vpop.xlane.xlu0 %2384
        %2386 = vadd.xlane.f32.xlu0 %v2323
        %v2387 = vpop.xlane.xlu0 %2386
        %2388 = vadd.xlane.f32.xlu0 %v2325
        %v2389 = vpop.xlane.xlu0 %2388
        %2390 = vadd.xlane.f32.xlu0 %v2327
        %v2391 = vpop.xlane.xlu0 %2390
        %2392 = vadd.xlane.f32.xlu0 %v2329
        %v2393 = vpop.xlane.xlu0 %2392
        %2394 = vadd.xlane.f32.xlu0 %v2331
        %v2395 = vpop.xlane.xlu0 %2394
        %2396 = vadd.xlane.f32.xlu0 %v2333
        %v2397 = vpop.xlane.xlu0 %2396
        %2398 = vadd.xlane.f32.xlu0 %v2335
        %v2399 = vpop.xlane.xlu0 %2398
        %2400 = vadd.xlane.f32.xlu0 %v2337
        %v2401 = vpop.xlane.xlu0 %2400
        %2402 = vadd.xlane.f32.xlu0 %v2339
        %v2403 = vpop.xlane.xlu0 %2402
        %2404 = vadd.xlane.f32.xlu0 %v2341
        %v2405 = vpop.xlane.xlu0 %2404
        %2406 = vadd.xlane.f32.xlu0 %v2343
        %v2407 = vpop.xlane.xlu0 %2406
        %2408 = vadd.xlane.f32.xlu0 %v2345
        %v2409 = vpop.xlane.xlu0 %2408
        %2410 = vadd.xlane.f32.xlu0 %v2347
        %v2411 = vpop.xlane.xlu0 %2410
        %2412 = vadd.xlane.f32.xlu0 %v2349
        %v2413 = vpop.xlane.xlu0 %2412
        %2414 = vadd.xlane.f32.xlu0 %v2351
        %v2415 = vpop.xlane.xlu0 %2414
        %2416 = vadd.xlane.f32.xlu0 %v2353
        %v2417 = vpop.xlane.xlu0 %2416
        %2418 = vadd.xlane.f32.xlu0 %v2355
        %v2419 = vpop.xlane.xlu0 %2418
        %2420 = vadd.xlane.f32.xlu0 %v2357
        %v2421 = vpop.xlane.xlu0 %2420
        %2422 = vadd.xlane.f32.xlu0 %v2359
        %v2423 = vpop.xlane.xlu0 %2422
        %2424 = vadd.xlane.f32.xlu0 %v2361
        %v2425 = vpop.xlane.xlu0 %2424
        %v2426 = vrcp.pop %v2363
        %v2427 = vrcp.pop %v2365
        %v2428 = vrcp.pop %v2367
        %v2429 = vrcp.pop %v2369
        %v2430 = vrcp.pop %v2371
        %v2431 = vrcp.pop %v2373
        %v2432 = vrcp.pop %v2375
        %v2433 = vrcp.pop %v2377
        %v2434 = vrcp.pop %v2379
        %v2435 = vrcp.pop %v2381
        %v2436 = vrcp.pop %v2383
        %v2437 = vrcp.pop %v2385
        %v2438 = vrcp.pop %v2387
        %v2439 = vrcp.pop %v2389
        %v2440 = vrcp.pop %v2391
        %v2441 = vrcp.pop %v2393
        %v2442 = vrcp.pop %v2395
        %v2443 = vrcp.pop %v2397
        %v2444 = vrcp.pop %v2399
        %v2445 = vrcp.pop %v2401
        %v2446 = vrcp.pop %v2403
        %v2447 = vrcp.pop %v2405
        %v2448 = vrcp.pop %v2407
        %v2449 = vrcp.pop %v2409
        %v2450 = vrcp.pop %v2411
        %v2451 = vrcp.pop %v2413
        %v2452 = vrcp.pop %v2415
        %v2453 = vrcp.pop %v2417
        %v2454 = vrcp.pop %v2419
        %v2455 = vrcp.pop %v2421
        %v2456 = vrcp.pop %v2423
        %v2457 = vrcp.pop %v2425
        %v2458 = vmul.f32 %v2299, %v2426
        %v2459 = vmul.f32 %v2301, %v2427
        %v2460 = vmul.f32 %v2303, %v2428
        %v2461 = vmul.f32 %v2305, %v2429
        %v2462 = vmul.f32 %v2307, %v2430
        %v2463 = vmul.f32 %v2309, %v2431
        %v2464 = vmul.f32 %v2311, %v2432
        %v2465 = vmul.f32 %v2313, %v2433
        %v2466 = vmul.f32 %v2315, %v2434
        %v2467 = vmul.f32 %v2317, %v2435
        %v2468 = vmul.f32 %v2319, %v2436
        %v2469 = vmul.f32 %v2321, %v2437
        %v2470 = vmul.f32 %v2323, %v2438
        %v2471 = vmul.f32 %v2325, %v2439
        %v2472 = vmul.f32 %v2327, %v2440
        %v2473 = vmul.f32 %v2329, %v2441
        %v2474 = vmul.f32 %v2331, %v2442
        %v2475 = vmul.f32 %v2333, %v2443
        %v2476 = vmul.f32 %v2335, %v2444
        %v2477 = vmul.f32 %v2337, %v2445
        %v2478 = vmul.f32 %v2339, %v2446
        %v2479 = vmul.f32 %v2341, %v2447
        %v2480 = vmul.f32 %v2343, %v2448
        %v2481 = vmul.f32 %v2345, %v2449
        %v2482 = vmul.f32 %v2347, %v2450
        %v2483 = vmul.f32 %v2349, %v2451
        %v2484 = vmul.f32 %v2351, %v2452
        %v2485 = vmul.f32 %v2353, %v2453
        %v2486 = vmul.f32 %v2355, %v2454
        %v2487 = vmul.f32 %v2357, %v2455
        %v2488 = vmul.f32 %v2359, %v2456
        %v2489 = vmul.f32 %v2361, %v2457
        %v2490 = vpack.c.bf16 %v2459, %v2458
        %v2491 = vpack.c.bf16 %v2461, %v2460
        %v2492 = vpack.c.bf16 %v2463, %v2462
        %v2493 = vpack.c.bf16 %v2465, %v2464
        %v2494 = vpack.c.bf16 %v2467, %v2466
        %v2495 = vpack.c.bf16 %v2469, %v2468
        %v2496 = vpack.c.bf16 %v2471, %v2470
        %v2497 = vpack.c.bf16 %v2473, %v2472
        %v2498 = vpack.c.bf16 %v2475, %v2474
        %v2499 = vpack.c.bf16 %v2477, %v2476
        %v2500 = vpack.c.bf16 %v2479, %v2478
        %v2501 = vpack.c.bf16 %v2481, %v2480
        %v2502 = vpack.c.bf16 %v2483, %v2482
        %v2503 = vpack.c.bf16 %v2485, %v2484
        %v2504 = vpack.c.bf16 %v2487, %v2486
        %v2505 = vpack.c.bf16 %v2489, %v2488
        %2506 = vxpose.xlu0.c.b16.start [1/8] %v1823, 128
        %2507 = vxpose.xlu0.c.b16.cont [2/8] %v1824, 128
        %2508 = vxpose.xlu0.c.b16.cont [3/8] %v1825, 128
        %2509 = vxpose.xlu0.c.b16.cont [4/8] %v1826, 128
        %2510 = vxpose.xlu0.c.b16.cont [5/8] %v1827, 128
        %2511 = vxpose.xlu0.c.b16.cont [6/8] %v1828, 128
        %2512 = vxpose.xlu0.c.b16.cont [7/8] %v1829, 128
        %2513 = vxpose.xlu0.c.b16.end [8/8] %v1830, 128
        %v2514 = vpop.trf.xlu0
        %v2515 = vpop.trf.xlu0
        %v2516 = vpop.trf.xlu0
        %v2517 = vpop.trf.xlu0
        %v2518 = vpop.trf.xlu0
        %v2519 = vpop.trf.xlu0
        %v2520 = vpop.trf.xlu0
        %v2521 = vpop.trf.xlu0
        %2522 = vxpose.xlu0.c.b16.start [1/8] %v1904, 128
        %2523 = vxpose.xlu0.c.b16.cont [2/8] %v1906, 128
        %2524 = vxpose.xlu0.c.b16.cont [3/8] %v1908, 128
        %2525 = vxpose.xlu0.c.b16.cont [4/8] %v1910, 128
        %2526 = vxpose.xlu0.c.b16.cont [5/8] %v1912, 128
        %2527 = vxpose.xlu0.c.b16.cont [6/8] %v1914, 128
        %2528 = vxpose.xlu0.c.b16.cont [7/8] %v1916, 128
        %2529 = vxpose.xlu0.c.b16.end [8/8] %v1918, 128
        %v2530 = vpop.trf.xlu0
        %v2531 = vpop.trf.xlu0
        %v2532 = vpop.trf.xlu0
        %v2533 = vpop.trf.xlu0
        %v2534 = vpop.trf.xlu0
        %v2535 = vpop.trf.xlu0
        %v2536 = vpop.trf.xlu0
        %v2537 = vpop.trf.xlu0
        %2538 = vmatprep.subr.bf16.mxu0 0
        %2539 = vmatpush1.bf16.xpose.msra.mxu0 %v2490
        %2540 = vmatprep.subr.bf16.mxu0 0
        %2541 = vmatpush1.bf16.xpose.msra.mxu0 %v2491
        %2542 = vmatprep.subr.bf16.mxu0 0
        %2543 = vmatpush1.bf16.xpose.msra.mxu0 %v2492
        %2544 = vmatprep.subr.bf16.mxu0 0
        %2545 = vmatpush1.bf16.xpose.msra.mxu0 %v2493
        %2546 = vmatprep.subr.bf16.mxu0 0
        %2547 = vmatpush1.bf16.xpose.msra.mxu0 %v2494
        %2548 = vmatprep.subr.bf16.mxu0 0
        %2549 = vmatpush1.bf16.xpose.msra.mxu0 %v2495
        %2550 = vmatprep.subr.bf16.mxu0 0
        %2551 = vmatpush1.bf16.xpose.msra.mxu0 %v2496
        %2552 = vmatprep.subr.bf16.mxu0 0
        %2553 = vmatpush1.bf16.xpose.msra.mxu0 %v2497
        %2554 = vmatprep.subr.bf16.mxu0 0
        %2555 = vmatpush1.bf16.xpose.msra.mxu0 0
        %2556 = vmatprep.subr.bf16.mxu0 0
        %2557 = vmatpush1.bf16.xpose.msra.mxu0 0
        %2558 = vmatprep.subr.bf16.mxu0 0
        %2559 = vmatpush1.bf16.xpose.msra.mxu0 0
        %2560 = vmatprep.subr.bf16.mxu0 0
        %2561 = vmatpush1.bf16.xpose.msra.mxu0 0
        %2562 = vmatprep.subr.bf16.mxu0 0
        %2563 = vmatpush1.bf16.xpose.msra.mxu0 0
        %2564 = vmatprep.subr.bf16.mxu0 0
        %2565 = vmatpush1.bf16.xpose.msra.mxu0 0
        %2566 = vmatprep.subr.bf16.mxu0 0
        %2567 = vmatpush1.bf16.xpose.msra.mxu0 0
        %2568 = vmatprep.subr.bf16.mxu0 0
        %2569 = vmatpush1.bf16.xpose.msra.mxu0 0
        %2570 = vmatprep.mubr.bf16.mxu0 0
        %2571 = vmatmul.mubr.bf16.gmra.mrb[0].mxu0 %v2514
        %v2572 = vpop.f32.mrb[0].mxu0
        %v2573 = vadd.f32 0.0, %v2572
        %v2574 = vpop.f32.mrb[0].mxu0
        %v2575 = vpop.f32.mrb[0].mxu0
        %v2576 = vadd.f32 0.0, %v2575
        %v2577 = vpop.f32.mrb[0].mxu0
        %2578 = vmatprep.mubr.bf16.mxu0 0
        %2579 = vmatmul.mubr.bf16.gmra.mrb[0].mxu0 %v2515
        %v2580 = vpop.f32.mrb[0].mxu0
        %v2581 = vadd.f32 0.0, %v2580
        %v2582 = vpop.f32.mrb[0].mxu0
        %v2583 = vpop.f32.mrb[0].mxu0
        %v2584 = vadd.f32 0.0, %v2583
        %v2585 = vpop.f32.mrb[0].mxu0
        %2586 = vmatprep.mubr.bf16.mxu0 0
        %2587 = vmatmul.mubr.bf16.gmra.mrb[0].mxu0 %v2516
        %v2588 = vpop.f32.mrb[0].mxu0
        %v2589 = vadd.f32 0.0, %v2588
        %v2590 = vpop.f32.mrb[0].mxu0
        %v2591 = vpop.f32.mrb[0].mxu0
        %v2592 = vadd.f32 0.0, %v2591
        %v2593 = vpop.f32.mrb[0].mxu0
        %2594 = vmatprep.mubr.bf16.mxu0 0
        %2595 = vmatmul.mubr.bf16.gmra.mrb[0].mxu0 %v2517
        %v2596 = vpop.f32.mrb[0].mxu0
        %v2597 = vadd.f32 0.0, %v2596
        %v2598 = vpop.f32.mrb[0].mxu0
        %v2599 = vpop.f32.mrb[0].mxu0
        %v2600 = vadd.f32 0.0, %v2599
        %v2601 = vpop.f32.mrb[0].mxu0
        %2602 = vdwg.mxu0
        %2603 = vmatprep.subr.bf16.mxu0 0
        %2604 = vmatpush1.bf16.xpose.msra.mxu0 %v2498
        %2605 = vmatprep.subr.bf16.mxu0 0
        %2606 = vmatpush1.bf16.xpose.msra.mxu0 %v2499
        %2607 = vmatprep.subr.bf16.mxu0 0
        %2608 = vmatpush1.bf16.xpose.msra.mxu0 %v2500
        %2609 = vmatprep.subr.bf16.mxu0 0
        %2610 = vmatpush1.bf16.xpose.msra.mxu0 %v2501
        %2611 = vmatprep.subr.bf16.mxu0 0
        %2612 = vmatpush1.bf16.xpose.msra.mxu0 %v2502
        %2613 = vmatprep.subr.bf16.mxu0 0
        %2614 = vmatpush1.bf16.xpose.msra.mxu0 %v2503
        %2615 = vmatprep.subr.bf16.mxu0 0
        %2616 = vmatpush1.bf16.xpose.msra.mxu0 %v2504
        %2617 = vmatprep.subr.bf16.mxu0 0
        %2618 = vmatpush1.bf16.xpose.msra.mxu0 %v2505
        %2619 = vmatprep.subr.bf16.mxu0 0
        %2620 = vmatpush1.bf16.xpose.msra.mxu0 0
        %2621 = vmatprep.subr.bf16.mxu0 0
        %2622 = vmatpush1.bf16.xpose.msra.mxu0 0
        %2623 = vmatprep.subr.bf16.mxu0 0
        %2624 = vmatpush1.bf16.xpose.msra.mxu0 0
        %2625 = vmatprep.subr.bf16.mxu0 0
        %2626 = vmatpush1.bf16.xpose.msra.mxu0 0
        %2627 = vmatprep.subr.bf16.mxu0 0
        %2628 = vmatpush1.bf16.xpose.msra.mxu0 0
        %2629 = vmatprep.subr.bf16.mxu0 0
        %2630 = vmatpush1.bf16.xpose.msra.mxu0 0
        %2631 = vmatprep.subr.bf16.mxu0 0
        %2632 = vmatpush1.bf16.xpose.msra.mxu0 0
        %2633 = vmatprep.subr.bf16.mxu0 0
        %2634 = vmatpush1.bf16.xpose.msra.mxu0 0
        %2635 = vmatprep.mubr.bf16.mxu0 0
        %2636 = vmatmul.mubr.bf16.gmra.mrb[0].mxu0 %v2530
        %v2637 = vpop.f32.mrb[0].mxu0
        %v2638 = vadd.f32 0.0, %v2637
        %v2639 = vpop.f32.mrb[0].mxu0
        %v2640 = vpop.f32.mrb[0].mxu0
        %v2641 = vadd.f32 0.0, %v2640
        %v2642 = vpop.f32.mrb[0].mxu0
        %2643 = vmatprep.mubr.bf16.mxu0 0
        %2644 = vmatmul.mubr.bf16.gmra.mrb[0].mxu0 %v2531
        %v2645 = vpop.f32.mrb[0].mxu0
        %v2646 = vadd.f32 0.0, %v2645
        %v2647 = vpop.f32.mrb[0].mxu0
        %v2648 = vpop.f32.mrb[0].mxu0
        %v2649 = vadd.f32 0.0, %v2648
        %v2650 = vpop.f32.mrb[0].mxu0
        %2651 = vmatprep.mubr.bf16.mxu0 0
        %2652 = vmatmul.mubr.bf16.gmra.mrb[0].mxu0 %v2532
        %v2653 = vpop.f32.mrb[0].mxu0
        %v2654 = vadd.f32 0.0, %v2653
        %v2655 = vpop.f32.mrb[0].mxu0
        %v2656 = vpop.f32.mrb[0].mxu0
        %v2657 = vadd.f32 0.0, %v2656
        %v2658 = vpop.f32.mrb[0].mxu0
        %2659 = vmatprep.mubr.bf16.mxu0 0
        %2660 = vmatmul.mubr.bf16.gmra.mrb[0].mxu0 %v2533
        %v2661 = vpop.f32.mrb[0].mxu0
        %v2662 = vadd.f32 0.0, %v2661
        %v2663 = vpop.f32.mrb[0].mxu0
        %v2664 = vpop.f32.mrb[0].mxu0
        %v2665 = vadd.f32 0.0, %v2664
        %v2666 = vpop.f32.mrb[0].mxu0
        %2667 = vdwg.mxu0
        %2668 = vxpose.xlu0.b32.start [1/16] %v2573, 128
        %2669 = vxpose.xlu0.b32.cont [2/16] %v2576, 128
        %2670 = vxpose.xlu0.b32.cont [3/16] %v2581, 128
        %2671 = vxpose.xlu0.b32.cont [4/16] %v2584, 128
        %2672 = vxpose.xlu0.b32.cont [5/16] %v2589, 128
        %2673 = vxpose.xlu0.b32.cont [6/16] %v2592, 128
        %2674 = vxpose.xlu0.b32.cont [7/16] %v2597, 128
        %2675 = vxpose.xlu0.b32.cont [8/16] %v2600, 128
        %2676 = vxpose.xlu0.b32.cont [9/16] 0.0, 128
        %2677 = vxpose.xlu0.b32.cont [10/16] 0.0, 128
        %2678 = vxpose.xlu0.b32.cont [11/16] 0.0, 128
        %2679 = vxpose.xlu0.b32.cont [12/16] 0.0, 128
        %2680 = vxpose.xlu0.b32.cont [13/16] 0.0, 128
        %2681 = vxpose.xlu0.b32.cont [14/16] 0.0, 128
        %2682 = vxpose.xlu0.b32.cont [15/16] 0.0, 128
        %2683 = vxpose.xlu0.b32.end [16/16] 0.0, 128
        %v2684 = vpop.trf.xlu0
        %v2685 = vpop.trf.xlu0
        %v2686 = vpop.trf.xlu0
        %v2687 = vpop.trf.xlu0
        %v2688 = vpop.trf.xlu0
        %v2689 = vpop.trf.xlu0
        %v2690 = vpop.trf.xlu0
        %v2691 = vpop.trf.xlu0
        %v2692 = vpop.trf.xlu0
        %v2693 = vpop.trf.xlu0
        %v2694 = vpop.trf.xlu0
        %v2695 = vpop.trf.xlu0
        %v2696 = vpop.trf.xlu0
        %v2697 = vpop.trf.xlu0
        %v2698 = vpop.trf.xlu0
        %v2699 = vpop.trf.xlu0
        %2700 = vxpose.xlu0.b32.start [1/16] %v2638, 128
        %2701 = vxpose.xlu0.b32.cont [2/16] %v2641, 128
        %2702 = vxpose.xlu0.b32.cont [3/16] %v2646, 128
        %2703 = vxpose.xlu0.b32.cont [4/16] %v2649, 128
        %2704 = vxpose.xlu0.b32.cont [5/16] %v2654, 128
        %2705 = vxpose.xlu0.b32.cont [6/16] %v2657, 128
        %2706 = vxpose.xlu0.b32.cont [7/16] %v2662, 128
        %2707 = vxpose.xlu0.b32.cont [8/16] %v2665, 128
        %2708 = vxpose.xlu0.b32.cont [9/16] 0.0, 128
        %2709 = vxpose.xlu0.b32.cont [10/16] 0.0, 128
        %2710 = vxpose.xlu0.b32.cont [11/16] 0.0, 128
        %2711 = vxpose.xlu0.b32.cont [12/16] 0.0, 128
        %2712 = vxpose.xlu0.b32.cont [13/16] 0.0, 128
        %2713 = vxpose.xlu0.b32.cont [14/16] 0.0, 128
        %2714 = vxpose.xlu0.b32.cont [15/16] 0.0, 128
        %2715 = vxpose.xlu0.b32.end [16/16] 0.0, 128
        %v2716 = vpop.trf.xlu0
        %v2717 = vpop.trf.xlu0
        %v2718 = vpop.trf.xlu0
        %v2719 = vpop.trf.xlu0
        %v2720 = vpop.trf.xlu0
        %v2721 = vpop.trf.xlu0
        %v2722 = vpop.trf.xlu0
        %v2723 = vpop.trf.xlu0
        %v2724 = vpop.trf.xlu0
        %v2725 = vpop.trf.xlu0
        %v2726 = vpop.trf.xlu0
        %v2727 = vpop.trf.xlu0
        %v2728 = vpop.trf.xlu0
        %v2729 = vpop.trf.xlu0
        %v2730 = vpop.trf.xlu0
        %v2731 = vpop.trf.xlu0
        %v2732 = vcombine.high %v2684, 0.0
        %v2734 = vunpack.c.l.s4 1983009808
        %v2735 = vunpack.c.0.s8 %v2734
        %v2736 = vlaneseq
        %v2737 = vshrl.u32 %v2736, 7
        %v2738 = vsub.s32 %v2735, %v2737
        %v2739 = vrot.slane %v2684, %v2738
        %v2741 = vunpack.c.l.s4 1983009808
        %v2742 = vunpack.c.0.s8 %v2741
        %v2743 = vlaneseq
        %v2744 = vshrl.u32 %v2743, 7
        %v2745 = vsub.s32 %v2742, %v2744
        %v2746 = vrot.slane %v2732, %v2745
        %v2747 = vcombine.high %v2716, 0.0
        %v2749 = vunpack.c.l.s4 1983009808
        %v2750 = vunpack.c.0.s8 %v2749
        %v2751 = vlaneseq
        %v2752 = vshrl.u32 %v2751, 7
        %v2753 = vsub.s32 %v2750, %v2752
        %v2754 = vrot.slane %v2716, %v2753
        %v2756 = vunpack.c.l.s4 1983009808
        %v2757 = vunpack.c.0.s8 %v2756
        %v2758 = vlaneseq
        %v2759 = vshrl.u32 %v2758, 7
        %v2760 = vsub.s32 %v2757, %v2759
        %v2761 = vrot.slane %v2747, %v2760
        %v2762 = vcombine.low %v2739, %v2754
        %v2763 = vcombine.high %v2739, %v2754
        %v2765 = vunpack.c.l.s4 1934713408
        %v2766 = vunpack.c.0.s8 %v2765
        %v2767 = vlaneseq
        %v2768 = vshrl.u32 %v2767, 7
        %v2769 = vsub.s32 %v2766, %v2768
        %v2770 = vrot.slane %v2762, %v2769
        %v2772 = vunpack.c.l.s4 1934713408
        %v2773 = vunpack.c.0.s8 %v2772
        %v2774 = vlaneseq
        %v2775 = vshrl.u32 %v2774, 7
        %v2776 = vsub.s32 %v2773, %v2775
        %v2777 = vrot.slane %v2763, %v2776
        %v2778 = vcombine.low %v2746, %v2761
        %v2779 = vcombine.high %v2746, %v2761
        %v2781 = vunpack.c.l.s4 1934713408
        %v2782 = vunpack.c.0.s8 %v2781
        %v2783 = vlaneseq
        %v2784 = vshrl.u32 %v2783, 7
        %v2785 = vsub.s32 %v2782, %v2784
        %v2786 = vrot.slane %v2778, %v2785
        %v2788 = vunpack.c.l.s4 1934713408
        %v2789 = vunpack.c.0.s8 %v2788
        %v2790 = vlaneseq
        %v2791 = vshrl.u32 %v2790, 7
        %v2792 = vsub.s32 %v2789, %v2791
        %v2793 = vrot.slane %v2779, %v2792
        %v2794 = vcombine.high %v2770, 0.0
        %v2795 = vcombine.high %v2777, 0.0
        %v2796 = vcombine.high %v2786, 0.0
        %v2797 = vcombine.high %v2793, 0.0
        %v2798 = vcombine.high %v2685, 0.0
        %v2800 = vunpack.c.l.s4 1983009808
        %v2801 = vunpack.c.0.s8 %v2800
        %v2802 = vlaneseq
        %v2803 = vshrl.u32 %v2802, 7
        %v2804 = vsub.s32 %v2801, %v2803
        %v2805 = vrot.slane %v2685, %v2804
        %v2807 = vunpack.c.l.s4 1983009808
        %v2808 = vunpack.c.0.s8 %v2807
        %v2809 = vlaneseq
        %v2810 = vshrl.u32 %v2809, 7
        %v2811 = vsub.s32 %v2808, %v2810
        %v2812 = vrot.slane %v2798, %v2811
        %v2813 = vcombine.high %v2717, 0.0
        %v2815 = vunpack.c.l.s4 1983009808
        %v2816 = vunpack.c.0.s8 %v2815
        %v2817 = vlaneseq
        %v2818 = vshrl.u32 %v2817, 7
        %v2819 = vsub.s32 %v2816, %v2818
        %v2820 = vrot.slane %v2717, %v2819
        %v2822 = vunpack.c.l.s4 1983009808
        %v2823 = vunpack.c.0.s8 %v2822
        %v2824 = vlaneseq
        %v2825 = vshrl.u32 %v2824, 7
        %v2826 = vsub.s32 %v2823, %v2825
        %v2827 = vrot.slane %v2813, %v2826
        %v2828 = vcombine.low %v2805, %v2820
        %v2829 = vcombine.high %v2805, %v2820
        %v2831 = vunpack.c.l.s4 1934713408
        %v2832 = vunpack.c.0.s8 %v2831
        %v2833 = vlaneseq
        %v2834 = vshrl.u32 %v2833, 7
        %v2835 = vsub.s32 %v2832, %v2834
        %v2836 = vrot.slane %v2828, %v2835
        %v2838 = vunpack.c.l.s4 1934713408
        %v2839 = vunpack.c.0.s8 %v2838
        %v2840 = vlaneseq
        %v2841 = vshrl.u32 %v2840, 7
        %v2842 = vsub.s32 %v2839, %v2841
        %v2843 = vrot.slane %v2829, %v2842
        %v2844 = vcombine.low %v2812, %v2827
        %v2845 = vcombine.high %v2812, %v2827
        %v2847 = vunpack.c.l.s4 1934713408
        %v2848 = vunpack.c.0.s8 %v2847
        %v2849 = vlaneseq
        %v2850 = vshrl.u32 %v2849, 7
        %v2851 = vsub.s32 %v2848, %v2850
        %v2852 = vrot.slane %v2844, %v2851
        %v2854 = vunpack.c.l.s4 1934713408
        %v2855 = vunpack.c.0.s8 %v2854
        %v2856 = vlaneseq
        %v2857 = vshrl.u32 %v2856, 7
        %v2858 = vsub.s32 %v2855, %v2857
        %v2859 = vrot.slane %v2845, %v2858
        %v2860 = vcombine.high %v2836, 0.0
        %v2861 = vcombine.high %v2843, 0.0
        %v2862 = vcombine.high %v2852, 0.0
        %v2863 = vcombine.high %v2859, 0.0
        %v2864 = vcombine.high %v2686, 0.0
        %v2866 = vunpack.c.l.s4 1983009808
        %v2867 = vunpack.c.0.s8 %v2866
        %v2868 = vlaneseq
        %v2869 = vshrl.u32 %v2868, 7
        %v2870 = vsub.s32 %v2867, %v2869
        %v2871 = vrot.slane %v2686, %v2870
        %v2873 = vunpack.c.l.s4 1983009808
        %v2874 = vunpack.c.0.s8 %v2873
        %v2875 = vlaneseq
        %v2876 = vshrl.u32 %v2875, 7
        %v2877 = vsub.s32 %v2874, %v2876
        %v2878 = vrot.slane %v2864, %v2877
        %v2879 = vcombine.high %v2718, 0.0
        %v2881 = vunpack.c.l.s4 1983009808
        %v2882 = vunpack.c.0.s8 %v2881
        %v2883 = vlaneseq
        %v2884 = vshrl.u32 %v2883, 7
        %v2885 = vsub.s32 %v2882, %v2884
        %v2886 = vrot.slane %v2718, %v2885
        %v2888 = vunpack.c.l.s4 1983009808
        %v2889 = vunpack.c.0.s8 %v2888
        %v2890 = vlaneseq
        %v2891 = vshrl.u32 %v2890, 7
        %v2892 = vsub.s32 %v2889, %v2891
        %v2893 = vrot.slane %v2879, %v2892
        %v2894 = vcombine.low %v2871, %v2886
        %v2895 = vcombine.high %v2871, %v2886
        %v2897 = vunpack.c.l.s4 1934713408
        %v2898 = vunpack.c.0.s8 %v2897
        %v2899 = vlaneseq
        %v2900 = vshrl.u32 %v2899, 7
        %v2901 = vsub.s32 %v2898, %v2900
        %v2902 = vrot.slane %v2894, %v2901
        %v2904 = vunpack.c.l.s4 1934713408
        %v2905 = vunpack.c.0.s8 %v2904
        %v2906 = vlaneseq
        %v2907 = vshrl.u32 %v2906, 7
        %v2908 = vsub.s32 %v2905, %v2907
        %v2909 = vrot.slane %v2895, %v2908
        %v2910 = vcombine.low %v2878, %v2893
        %v2911 = vcombine.high %v2878, %v2893
        %v2913 = vunpack.c.l.s4 1934713408
        %v2914 = vunpack.c.0.s8 %v2913
        %v2915 = vlaneseq
        %v2916 = vshrl.u32 %v2915, 7
        %v2917 = vsub.s32 %v2914, %v2916
        %v2918 = vrot.slane %v2910, %v2917
        %v2920 = vunpack.c.l.s4 1934713408
        %v2921 = vunpack.c.0.s8 %v2920
        %v2922 = vlaneseq
        %v2923 = vshrl.u32 %v2922, 7
        %v2924 = vsub.s32 %v2921, %v2923
        %v2925 = vrot.slane %v2911, %v2924
        %v2926 = vcombine.high %v2902, 0.0
        %v2927 = vcombine.high %v2909, 0.0
        %v2928 = vcombine.high %v2918, 0.0
        %v2929 = vcombine.high %v2925, 0.0
        %v2930 = vcombine.high %v2687, 0.0
        %v2932 = vunpack.c.l.s4 1983009808
        %v2933 = vunpack.c.0.s8 %v2932
        %v2934 = vlaneseq
        %v2935 = vshrl.u32 %v2934, 7
        %v2936 = vsub.s32 %v2933, %v2935
        %v2937 = vrot.slane %v2687, %v2936
        %v2939 = vunpack.c.l.s4 1983009808
        %v2940 = vunpack.c.0.s8 %v2939
        %v2941 = vlaneseq
        %v2942 = vshrl.u32 %v2941, 7
        %v2943 = vsub.s32 %v2940, %v2942
        %v2944 = vrot.slane %v2930, %v2943
        %v2945 = vcombine.high %v2719, 0.0
        %v2947 = vunpack.c.l.s4 1983009808
        %v2948 = vunpack.c.0.s8 %v2947
        %v2949 = vlaneseq
        %v2950 = vshrl.u32 %v2949, 7
        %v2951 = vsub.s32 %v2948, %v2950
        %v2952 = vrot.slane %v2719, %v2951
        %v2954 = vunpack.c.l.s4 1983009808
        %v2955 = vunpack.c.0.s8 %v2954
        %v2956 = vlaneseq
        %v2957 = vshrl.u32 %v2956, 7
        %v2958 = vsub.s32 %v2955, %v2957
        %v2959 = vrot.slane %v2945, %v2958
        %v2960 = vcombine.low %v2937, %v2952
        %v2961 = vcombine.high %v2937, %v2952
        %v2963 = vunpack.c.l.s4 1934713408
        %v2964 = vunpack.c.0.s8 %v2963
        %v2965 = vlaneseq
        %v2966 = vshrl.u32 %v2965, 7
        %v2967 = vsub.s32 %v2964, %v2966
        %v2968 = vrot.slane %v2960, %v2967
        %v2970 = vunpack.c.l.s4 1934713408
        %v2971 = vunpack.c.0.s8 %v2970
        %v2972 = vlaneseq
        %v2973 = vshrl.u32 %v2972, 7
        %v2974 = vsub.s32 %v2971, %v2973
        %v2975 = vrot.slane %v2961, %v2974
        %v2976 = vcombine.low %v2944, %v2959
        %v2977 = vcombine.high %v2944, %v2959
        %v2979 = vunpack.c.l.s4 1934713408
        %v2980 = vunpack.c.0.s8 %v2979
        %v2981 = vlaneseq
        %v2982 = vshrl.u32 %v2981, 7
        %v2983 = vsub.s32 %v2980, %v2982
        %v2984 = vrot.slane %v2976, %v2983
        %v2986 = vunpack.c.l.s4 1934713408
        %v2987 = vunpack.c.0.s8 %v2986
        %v2988 = vlaneseq
        %v2989 = vshrl.u32 %v2988, 7
        %v2990 = vsub.s32 %v2987, %v2989
        %v2991 = vrot.slane %v2977, %v2990
        %v2992 = vcombine.high %v2968, 0.0
        %v2993 = vcombine.high %v2975, 0.0
        %v2994 = vcombine.high %v2984, 0.0
        %v2995 = vcombine.high %v2991, 0.0
        %v2996 = vcombine.high %v2688, 0.0
        %v2998 = vunpack.c.l.s4 1983009808
        %v2999 = vunpack.c.0.s8 %v2998
        %v3000 = vlaneseq
        %v3001 = vshrl.u32 %v3000, 7
        %v3002 = vsub.s32 %v2999, %v3001
        %v3003 = vrot.slane %v2688, %v3002
        %v3005 = vunpack.c.l.s4 1983009808
        %v3006 = vunpack.c.0.s8 %v3005
        %v3007 = vlaneseq
        %v3008 = vshrl.u32 %v3007, 7
        %v3009 = vsub.s32 %v3006, %v3008
        %v3010 = vrot.slane %v2996, %v3009
        %v3011 = vcombine.high %v2720, 0.0
        %v3013 = vunpack.c.l.s4 1983009808
        %v3014 = vunpack.c.0.s8 %v3013
        %v3015 = vlaneseq
        %v3016 = vshrl.u32 %v3015, 7
        %v3017 = vsub.s32 %v3014, %v3016
        %v3018 = vrot.slane %v2720, %v3017
        %v3020 = vunpack.c.l.s4 1983009808
        %v3021 = vunpack.c.0.s8 %v3020
        %v3022 = vlaneseq
        %v3023 = vshrl.u32 %v3022, 7
        %v3024 = vsub.s32 %v3021, %v3023
        %v3025 = vrot.slane %v3011, %v3024
        %v3026 = vcombine.low %v3003, %v3018
        %v3027 = vcombine.high %v3003, %v3018
        %v3029 = vunpack.c.l.s4 1934713408
        %v3030 = vunpack.c.0.s8 %v3029
        %v3031 = vlaneseq
        %v3032 = vshrl.u32 %v3031, 7
        %v3033 = vsub.s32 %v3030, %v3032
        %v3034 = vrot.slane %v3026, %v3033
        %v3036 = vunpack.c.l.s4 1934713408
        %v3037 = vunpack.c.0.s8 %v3036
        %v3038 = vlaneseq
        %v3039 = vshrl.u32 %v3038, 7
        %v3040 = vsub.s32 %v3037, %v3039
        %v3041 = vrot.slane %v3027, %v3040
        %v3042 = vcombine.low %v3010, %v3025
        %v3043 = vcombine.high %v3010, %v3025
        %v3045 = vunpack.c.l.s4 1934713408
        %v3046 = vunpack.c.0.s8 %v3045
        %v3047 = vlaneseq
        %v3048 = vshrl.u32 %v3047, 7
        %v3049 = vsub.s32 %v3046, %v3048
        %v3050 = vrot.slane %v3042, %v3049
        %v3052 = vunpack.c.l.s4 1934713408
        %v3053 = vunpack.c.0.s8 %v3052
        %v3054 = vlaneseq
        %v3055 = vshrl.u32 %v3054, 7
        %v3056 = vsub.s32 %v3053, %v3055
        %v3057 = vrot.slane %v3043, %v3056
        %v3058 = vcombine.high %v3034, 0.0
        %v3059 = vcombine.high %v3041, 0.0
        %v3060 = vcombine.high %v3050, 0.0
        %v3061 = vcombine.high %v3057, 0.0
        %v3062 = vcombine.high %v2689, 0.0
        %v3064 = vunpack.c.l.s4 1983009808
        %v3065 = vunpack.c.0.s8 %v3064
        %v3066 = vlaneseq
        %v3067 = vshrl.u32 %v3066, 7
        %v3068 = vsub.s32 %v3065, %v3067
        %v3069 = vrot.slane %v2689, %v3068
        %v3071 = vunpack.c.l.s4 1983009808
        %v3072 = vunpack.c.0.s8 %v3071
        %v3073 = vlaneseq
        %v3074 = vshrl.u32 %v3073, 7
        %v3075 = vsub.s32 %v3072, %v3074
        %v3076 = vrot.slane %v3062, %v3075
        %v3077 = vcombine.high %v2721, 0.0
        %v3079 = vunpack.c.l.s4 1983009808
        %v3080 = vunpack.c.0.s8 %v3079
        %v3081 = vlaneseq
        %v3082 = vshrl.u32 %v3081, 7
        %v3083 = vsub.s32 %v3080, %v3082
        %v3084 = vrot.slane %v2721, %v3083
        %v3086 = vunpack.c.l.s4 1983009808
        %v3087 = vunpack.c.0.s8 %v3086
        %v3088 = vlaneseq
        %v3089 = vshrl.u32 %v3088, 7
        %v3090 = vsub.s32 %v3087, %v3089
        %v3091 = vrot.slane %v3077, %v3090
        %v3092 = vcombine.low %v3069, %v3084
        %v3093 = vcombine.high %v3069, %v3084
        %v3095 = vunpack.c.l.s4 1934713408
        %v3096 = vunpack.c.0.s8 %v3095
        %v3097 = vlaneseq
        %v3098 = vshrl.u32 %v3097, 7
        %v3099 = vsub.s32 %v3096, %v3098
        %v3100 = vrot.slane %v3092, %v3099
        %v3102 = vunpack.c.l.s4 1934713408
        %v3103 = vunpack.c.0.s8 %v3102
        %v3104 = vlaneseq
        %v3105 = vshrl.u32 %v3104, 7
        %v3106 = vsub.s32 %v3103, %v3105
        %v3107 = vrot.slane %v3093, %v3106
        %v3108 = vcombine.low %v3076, %v3091
        %v3109 = vcombine.high %v3076, %v3091
        %v3111 = vunpack.c.l.s4 1934713408
        %v3112 = vunpack.c.0.s8 %v3111
        %v3113 = vlaneseq
        %v3114 = vshrl.u32 %v3113, 7
        %v3115 = vsub.s32 %v3112, %v3114
        %v3116 = vrot.slane %v3108, %v3115
        %v3118 = vunpack.c.l.s4 1934713408
        %v3119 = vunpack.c.0.s8 %v3118
        %v3120 = vlaneseq
        %v3121 = vshrl.u32 %v3120, 7
        %v3122 = vsub.s32 %v3119, %v3121
        %v3123 = vrot.slane %v3109, %v3122
        %v3124 = vcombine.high %v3100, 0.0
        %v3125 = vcombine.high %v3107, 0.0
        %v3126 = vcombine.high %v3116, 0.0
        %v3127 = vcombine.high %v3123, 0.0
        %v3128 = vcombine.high %v2690, 0.0
        %v3130 = vunpack.c.l.s4 1983009808
        %v3131 = vunpack.c.0.s8 %v3130
        %v3132 = vlaneseq
        %v3133 = vshrl.u32 %v3132, 7
        %v3134 = vsub.s32 %v3131, %v3133
        %v3135 = vrot.slane %v2690, %v3134
        %v3137 = vunpack.c.l.s4 1983009808
        %v3138 = vunpack.c.0.s8 %v3137
        %v3139 = vlaneseq
        %v3140 = vshrl.u32 %v3139, 7
        %v3141 = vsub.s32 %v3138, %v3140
        %v3142 = vrot.slane %v3128, %v3141
        %v3143 = vcombine.high %v2722, 0.0
        %v3145 = vunpack.c.l.s4 1983009808
        %v3146 = vunpack.c.0.s8 %v3145
        %v3147 = vlaneseq
        %v3148 = vshrl.u32 %v3147, 7
        %v3149 = vsub.s32 %v3146, %v3148
        %v3150 = vrot.slane %v2722, %v3149
        %v3152 = vunpack.c.l.s4 1983009808
        %v3153 = vunpack.c.0.s8 %v3152
        %v3154 = vlaneseq
        %v3155 = vshrl.u32 %v3154, 7
        %v3156 = vsub.s32 %v3153, %v3155
        %v3157 = vrot.slane %v3143, %v3156
        %v3158 = vcombine.low %v3135, %v3150
        %v3159 = vcombine.high %v3135, %v3150
        %v3161 = vunpack.c.l.s4 1934713408
        %v3162 = vunpack.c.0.s8 %v3161
        %v3163 = vlaneseq
        %v3164 = vshrl.u32 %v3163, 7
        %v3165 = vsub.s32 %v3162, %v3164
        %v3166 = vrot.slane %v3158, %v3165
        %v3168 = vunpack.c.l.s4 1934713408
        %v3169 = vunpack.c.0.s8 %v3168
        %v3170 = vlaneseq
        %v3171 = vshrl.u32 %v3170, 7
        %v3172 = vsub.s32 %v3169, %v3171
        %v3173 = vrot.slane %v3159, %v3172
        %v3174 = vcombine.low %v3142, %v3157
        %v3175 = vcombine.high %v3142, %v3157
        %v3177 = vunpack.c.l.s4 1934713408
        %v3178 = vunpack.c.0.s8 %v3177
        %v3179 = vlaneseq
        %v3180 = vshrl.u32 %v3179, 7
        %v3181 = vsub.s32 %v3178, %v3180
        %v3182 = vrot.slane %v3174, %v3181
        %v3184 = vunpack.c.l.s4 1934713408
        %v3185 = vunpack.c.0.s8 %v3184
        %v3186 = vlaneseq
        %v3187 = vshrl.u32 %v3186, 7
        %v3188 = vsub.s32 %v3185, %v3187
        %v3189 = vrot.slane %v3175, %v3188
        %v3190 = vcombine.high %v3166, 0.0
        %v3191 = vcombine.high %v3173, 0.0
        %v3192 = vcombine.high %v3182, 0.0
        %v3193 = vcombine.high %v3189, 0.0
        %v3194 = vcombine.high %v2691, 0.0
        %v3196 = vunpack.c.l.s4 1983009808
        %v3197 = vunpack.c.0.s8 %v3196
        %v3198 = vlaneseq
        %v3199 = vshrl.u32 %v3198, 7
        %v3200 = vsub.s32 %v3197, %v3199
        %v3201 = vrot.slane %v2691, %v3200
        %v3203 = vunpack.c.l.s4 1983009808
        %v3204 = vunpack.c.0.s8 %v3203
        %v3205 = vlaneseq
        %v3206 = vshrl.u32 %v3205, 7
        %v3207 = vsub.s32 %v3204, %v3206
        %v3208 = vrot.slane %v3194, %v3207
        %v3209 = vcombine.high %v2723, 0.0
        %v3211 = vunpack.c.l.s4 1983009808
        %v3212 = vunpack.c.0.s8 %v3211
        %v3213 = vlaneseq
        %v3214 = vshrl.u32 %v3213, 7
        %v3215 = vsub.s32 %v3212, %v3214
        %v3216 = vrot.slane %v2723, %v3215
        %v3218 = vunpack.c.l.s4 1983009808
        %v3219 = vunpack.c.0.s8 %v3218
        %v3220 = vlaneseq
        %v3221 = vshrl.u32 %v3220, 7
        %v3222 = vsub.s32 %v3219, %v3221
        %v3223 = vrot.slane %v3209, %v3222
        %v3224 = vcombine.low %v3201, %v3216
        %v3225 = vcombine.high %v3201, %v3216
        %v3227 = vunpack.c.l.s4 1934713408
        %v3228 = vunpack.c.0.s8 %v3227
        %v3229 = vlaneseq
        %v3230 = vshrl.u32 %v3229, 7
        %v3231 = vsub.s32 %v3228, %v3230
        %v3232 = vrot.slane %v3224, %v3231
        %v3234 = vunpack.c.l.s4 1934713408
        %v3235 = vunpack.c.0.s8 %v3234
        %v3236 = vlaneseq
        %v3237 = vshrl.u32 %v3236, 7
        %v3238 = vsub.s32 %v3235, %v3237
        %v3239 = vrot.slane %v3225, %v3238
        %v3240 = vcombine.low %v3208, %v3223
        %v3241 = vcombine.high %v3208, %v3223
        %v3243 = vunpack.c.l.s4 1934713408
        %v3244 = vunpack.c.0.s8 %v3243
        %v3245 = vlaneseq
        %v3246 = vshrl.u32 %v3245, 7
        %v3247 = vsub.s32 %v3244, %v3246
        %v3248 = vrot.slane %v3240, %v3247
        %v3250 = vunpack.c.l.s4 1934713408
        %v3251 = vunpack.c.0.s8 %v3250
        %v3252 = vlaneseq
        %v3253 = vshrl.u32 %v3252, 7
        %v3254 = vsub.s32 %v3251, %v3253
        %v3255 = vrot.slane %v3241, %v3254
        %v3256 = vcombine.high %v3232, 0.0
        %v3257 = vcombine.high %v3239, 0.0
        %v3258 = vcombine.high %v3248, 0.0
        %v3259 = vcombine.high %v3255, 0.0
        %v3260 = vcombine.high %v2692, 0.0
        %v3262 = vunpack.c.l.s4 1983009808
        %v3263 = vunpack.c.0.s8 %v3262
        %v3264 = vlaneseq
        %v3265 = vshrl.u32 %v3264, 7
        %v3266 = vsub.s32 %v3263, %v3265
        %v3267 = vrot.slane %v2692, %v3266
        %v3269 = vunpack.c.l.s4 1983009808
        %v3270 = vunpack.c.0.s8 %v3269
        %v3271 = vlaneseq
        %v3272 = vshrl.u32 %v3271, 7
        %v3273 = vsub.s32 %v3270, %v3272
        %v3274 = vrot.slane %v3260, %v3273
        %v3275 = vcombine.high %v2724, 0.0
        %v3277 = vunpack.c.l.s4 1983009808
        %v3278 = vunpack.c.0.s8 %v3277
        %v3279 = vlaneseq
        %v3280 = vshrl.u32 %v3279, 7
        %v3281 = vsub.s32 %v3278, %v3280
        %v3282 = vrot.slane %v2724, %v3281
        %v3284 = vunpack.c.l.s4 1983009808
        %v3285 = vunpack.c.0.s8 %v3284
        %v3286 = vlaneseq
        %v3287 = vshrl.u32 %v3286, 7
        %v3288 = vsub.s32 %v3285, %v3287
        %v3289 = vrot.slane %v3275, %v3288
        %v3290 = vcombine.low %v3267, %v3282
        %v3291 = vcombine.high %v3267, %v3282
        %v3293 = vunpack.c.l.s4 1934713408
        %v3294 = vunpack.c.0.s8 %v3293
        %v3295 = vlaneseq
        %v3296 = vshrl.u32 %v3295, 7
        %v3297 = vsub.s32 %v3294, %v3296
        %v3298 = vrot.slane %v3290, %v3297
        %v3300 = vunpack.c.l.s4 1934713408
        %v3301 = vunpack.c.0.s8 %v3300
        %v3302 = vlaneseq
        %v3303 = vshrl.u32 %v3302, 7
        %v3304 = vsub.s32 %v3301, %v3303
        %v3305 = vrot.slane %v3291, %v3304
        %v3306 = vcombine.low %v3274, %v3289
        %v3307 = vcombine.high %v3274, %v3289
        %v3309 = vunpack.c.l.s4 1934713408
        %v3310 = vunpack.c.0.s8 %v3309
        %v3311 = vlaneseq
        %v3312 = vshrl.u32 %v3311, 7
        %v3313 = vsub.s32 %v3310, %v3312
        %v3314 = vrot.slane %v3306, %v3313
        %v3316 = vunpack.c.l.s4 1934713408
        %v3317 = vunpack.c.0.s8 %v3316
        %v3318 = vlaneseq
        %v3319 = vshrl.u32 %v3318, 7
        %v3320 = vsub.s32 %v3317, %v3319
        %v3321 = vrot.slane %v3307, %v3320
        %v3322 = vcombine.high %v3298, 0.0
        %v3323 = vcombine.high %v3305, 0.0
        %v3324 = vcombine.high %v3314, 0.0
        %v3325 = vcombine.high %v3321, 0.0
        %v3326 = vcombine.high %v2693, 0.0
        %v3328 = vunpack.c.l.s4 1983009808
        %v3329 = vunpack.c.0.s8 %v3328
        %v3330 = vlaneseq
        %v3331 = vshrl.u32 %v3330, 7
        %v3332 = vsub.s32 %v3329, %v3331
        %v3333 = vrot.slane %v2693, %v3332
        %v3335 = vunpack.c.l.s4 1983009808
        %v3336 = vunpack.c.0.s8 %v3335
        %v3337 = vlaneseq
        %v3338 = vshrl.u32 %v3337, 7
        %v3339 = vsub.s32 %v3336, %v3338
        %v3340 = vrot.slane %v3326, %v3339
        %v3341 = vcombine.high %v2725, 0.0
        %v3343 = vunpack.c.l.s4 1983009808
        %v3344 = vunpack.c.0.s8 %v3343
        %v3345 = vlaneseq
        %v3346 = vshrl.u32 %v3345, 7
        %v3347 = vsub.s32 %v3344, %v3346
        %v3348 = vrot.slane %v2725, %v3347
        %v3350 = vunpack.c.l.s4 1983009808
        %v3351 = vunpack.c.0.s8 %v3350
        %v3352 = vlaneseq
        %v3353 = vshrl.u32 %v3352, 7
        %v3354 = vsub.s32 %v3351, %v3353
        %v3355 = vrot.slane %v3341, %v3354
        %v3356 = vcombine.low %v3333, %v3348
        %v3357 = vcombine.high %v3333, %v3348
        %v3359 = vunpack.c.l.s4 1934713408
        %v3360 = vunpack.c.0.s8 %v3359
        %v3361 = vlaneseq
        %v3362 = vshrl.u32 %v3361, 7
        %v3363 = vsub.s32 %v3360, %v3362
        %v3364 = vrot.slane %v3356, %v3363
        %v3366 = vunpack.c.l.s4 1934713408
        %v3367 = vunpack.c.0.s8 %v3366
        %v3368 = vlaneseq
        %v3369 = vshrl.u32 %v3368, 7
        %v3370 = vsub.s32 %v3367, %v3369
        %v3371 = vrot.slane %v3357, %v3370
        %v3372 = vcombine.low %v3340, %v3355
        %v3373 = vcombine.high %v3340, %v3355
        %v3375 = vunpack.c.l.s4 1934713408
        %v3376 = vunpack.c.0.s8 %v3375
        %v3377 = vlaneseq
        %v3378 = vshrl.u32 %v3377, 7
        %v3379 = vsub.s32 %v3376, %v3378
        %v3380 = vrot.slane %v3372, %v3379
        %v3382 = vunpack.c.l.s4 1934713408
        %v3383 = vunpack.c.0.s8 %v3382
        %v3384 = vlaneseq
        %v3385 = vshrl.u32 %v3384, 7
        %v3386 = vsub.s32 %v3383, %v3385
        %v3387 = vrot.slane %v3373, %v3386
        %v3388 = vcombine.high %v3364, 0.0
        %v3389 = vcombine.high %v3371, 0.0
        %v3390 = vcombine.high %v3380, 0.0
        %v3391 = vcombine.high %v3387, 0.0
        %v3392 = vcombine.high %v2694, 0.0
        %v3394 = vunpack.c.l.s4 1983009808
        %v3395 = vunpack.c.0.s8 %v3394
        %v3396 = vlaneseq
        %v3397 = vshrl.u32 %v3396, 7
        %v3398 = vsub.s32 %v3395, %v3397
        %v3399 = vrot.slane %v2694, %v3398
        %v3401 = vunpack.c.l.s4 1983009808
        %v3402 = vunpack.c.0.s8 %v3401
        %v3403 = vlaneseq
        %v3404 = vshrl.u32 %v3403, 7
        %v3405 = vsub.s32 %v3402, %v3404
        %v3406 = vrot.slane %v3392, %v3405
        %v3407 = vcombine.high %v2726, 0.0
        %v3409 = vunpack.c.l.s4 1983009808
        %v3410 = vunpack.c.0.s8 %v3409
        %v3411 = vlaneseq
        %v3412 = vshrl.u32 %v3411, 7
        %v3413 = vsub.s32 %v3410, %v3412
        %v3414 = vrot.slane %v2726, %v3413
        %v3416 = vunpack.c.l.s4 1983009808
        %v3417 = vunpack.c.0.s8 %v3416
        %v3418 = vlaneseq
        %v3419 = vshrl.u32 %v3418, 7
        %v3420 = vsub.s32 %v3417, %v3419
        %v3421 = vrot.slane %v3407, %v3420
        %v3422 = vcombine.low %v3399, %v3414
        %v3423 = vcombine.high %v3399, %v3414
        %v3425 = vunpack.c.l.s4 1934713408
        %v3426 = vunpack.c.0.s8 %v3425
        %v3427 = vlaneseq
        %v3428 = vshrl.u32 %v3427, 7
        %v3429 = vsub.s32 %v3426, %v3428
        %v3430 = vrot.slane %v3422, %v3429
        %v3432 = vunpack.c.l.s4 1934713408
        %v3433 = vunpack.c.0.s8 %v3432
        %v3434 = vlaneseq
        %v3435 = vshrl.u32 %v3434, 7
        %v3436 = vsub.s32 %v3433, %v3435
        %v3437 = vrot.slane %v3423, %v3436
        %v3438 = vcombine.low %v3406, %v3421
        %v3439 = vcombine.high %v3406, %v3421
        %v3441 = vunpack.c.l.s4 1934713408
        %v3442 = vunpack.c.0.s8 %v3441
        %v3443 = vlaneseq
        %v3444 = vshrl.u32 %v3443, 7
        %v3445 = vsub.s32 %v3442, %v3444
        %v3446 = vrot.slane %v3438, %v3445
        %v3448 = vunpack.c.l.s4 1934713408
        %v3449 = vunpack.c.0.s8 %v3448
        %v3450 = vlaneseq
        %v3451 = vshrl.u32 %v3450, 7
        %v3452 = vsub.s32 %v3449, %v3451
        %v3453 = vrot.slane %v3439, %v3452
        %v3454 = vcombine.high %v3430, 0.0
        %v3455 = vcombine.high %v3437, 0.0
        %v3456 = vcombine.high %v3446, 0.0
        %v3457 = vcombine.high %v3453, 0.0
        %v3458 = vcombine.high %v2695, 0.0
        %v3460 = vunpack.c.l.s4 1983009808
        %v3461 = vunpack.c.0.s8 %v3460
        %v3462 = vlaneseq
        %v3463 = vshrl.u32 %v3462, 7
        %v3464 = vsub.s32 %v3461, %v3463
        %v3465 = vrot.slane %v2695, %v3464
        %v3467 = vunpack.c.l.s4 1983009808
        %v3468 = vunpack.c.0.s8 %v3467
        %v3469 = vlaneseq
        %v3470 = vshrl.u32 %v3469, 7
        %v3471 = vsub.s32 %v3468, %v3470
        %v3472 = vrot.slane %v3458, %v3471
        %v3473 = vcombine.high %v2727, 0.0
        %v3475 = vunpack.c.l.s4 1983009808
        %v3476 = vunpack.c.0.s8 %v3475
        %v3477 = vlaneseq
        %v3478 = vshrl.u32 %v3477, 7
        %v3479 = vsub.s32 %v3476, %v3478
        %v3480 = vrot.slane %v2727, %v3479
        %v3482 = vunpack.c.l.s4 1983009808
        %v3483 = vunpack.c.0.s8 %v3482
        %v3484 = vlaneseq
        %v3485 = vshrl.u32 %v3484, 7
        %v3486 = vsub.s32 %v3483, %v3485
        %v3487 = vrot.slane %v3473, %v3486
        %v3488 = vcombine.low %v3465, %v3480
        %v3489 = vcombine.high %v3465, %v3480
        %v3491 = vunpack.c.l.s4 1934713408
        %v3492 = vunpack.c.0.s8 %v3491
        %v3493 = vlaneseq
        %v3494 = vshrl.u32 %v3493, 7
        %v3495 = vsub.s32 %v3492, %v3494
        %v3496 = vrot.slane %v3488, %v3495
        %v3498 = vunpack.c.l.s4 1934713408
        %v3499 = vunpack.c.0.s8 %v3498
        %v3500 = vlaneseq
        %v3501 = vshrl.u32 %v3500, 7
        %v3502 = vsub.s32 %v3499, %v3501
        %v3503 = vrot.slane %v3489, %v3502
        %v3504 = vcombine.low %v3472, %v3487
        %v3505 = vcombine.high %v3472, %v3487
        %v3507 = vunpack.c.l.s4 1934713408
        %v3508 = vunpack.c.0.s8 %v3507
        %v3509 = vlaneseq
        %v3510 = vshrl.u32 %v3509, 7
        %v3511 = vsub.s32 %v3508, %v3510
        %v3512 = vrot.slane %v3504, %v3511
        %v3514 = vunpack.c.l.s4 1934713408
        %v3515 = vunpack.c.0.s8 %v3514
        %v3516 = vlaneseq
        %v3517 = vshrl.u32 %v3516, 7
        %v3518 = vsub.s32 %v3515, %v3517
        %v3519 = vrot.slane %v3505, %v3518
        %v3520 = vcombine.high %v3496, 0.0
        %v3521 = vcombine.high %v3503, 0.0
        %v3522 = vcombine.high %v3512, 0.0
        %v3523 = vcombine.high %v3519, 0.0
        %v3524 = vcombine.high %v2696, 0.0
        %v3526 = vunpack.c.l.s4 1983009808
        %v3527 = vunpack.c.0.s8 %v3526
        %v3528 = vlaneseq
        %v3529 = vshrl.u32 %v3528, 7
        %v3530 = vsub.s32 %v3527, %v3529
        %v3531 = vrot.slane %v2696, %v3530
        %v3533 = vunpack.c.l.s4 1983009808
        %v3534 = vunpack.c.0.s8 %v3533
        %v3535 = vlaneseq
        %v3536 = vshrl.u32 %v3535, 7
        %v3537 = vsub.s32 %v3534, %v3536
        %v3538 = vrot.slane %v3524, %v3537
        %v3539 = vcombine.high %v2728, 0.0
        %v3541 = vunpack.c.l.s4 1983009808
        %v3542 = vunpack.c.0.s8 %v3541
        %v3543 = vlaneseq
        %v3544 = vshrl.u32 %v3543, 7
        %v3545 = vsub.s32 %v3542, %v3544
        %v3546 = vrot.slane %v2728, %v3545
        %v3548 = vunpack.c.l.s4 1983009808
        %v3549 = vunpack.c.0.s8 %v3548
        %v3550 = vlaneseq
        %v3551 = vshrl.u32 %v3550, 7
        %v3552 = vsub.s32 %v3549, %v3551
        %v3553 = vrot.slane %v3539, %v3552
        %v3554 = vcombine.low %v3531, %v3546
        %v3555 = vcombine.high %v3531, %v3546
        %v3557 = vunpack.c.l.s4 1934713408
        %v3558 = vunpack.c.0.s8 %v3557
        %v3559 = vlaneseq
        %v3560 = vshrl.u32 %v3559, 7
        %v3561 = vsub.s32 %v3558, %v3560
        %v3562 = vrot.slane %v3554, %v3561
        %v3564 = vunpack.c.l.s4 1934713408
        %v3565 = vunpack.c.0.s8 %v3564
        %v3566 = vlaneseq
        %v3567 = vshrl.u32 %v3566, 7
        %v3568 = vsub.s32 %v3565, %v3567
        %v3569 = vrot.slane %v3555, %v3568
        %v3570 = vcombine.low %v3538, %v3553
        %v3571 = vcombine.high %v3538, %v3553
        %v3573 = vunpack.c.l.s4 1934713408
        %v3574 = vunpack.c.0.s8 %v3573
        %v3575 = vlaneseq
        %v3576 = vshrl.u32 %v3575, 7
        %v3577 = vsub.s32 %v3574, %v3576
        %v3578 = vrot.slane %v3570, %v3577
        %v3580 = vunpack.c.l.s4 1934713408
        %v3581 = vunpack.c.0.s8 %v3580
        %v3582 = vlaneseq
        %v3583 = vshrl.u32 %v3582, 7
        %v3584 = vsub.s32 %v3581, %v3583
        %v3585 = vrot.slane %v3571, %v3584
        %v3586 = vcombine.high %v3562, 0.0
        %v3587 = vcombine.high %v3569, 0.0
        %v3588 = vcombine.high %v3578, 0.0
        %v3589 = vcombine.high %v3585, 0.0
        %v3590 = vcombine.high %v2697, 0.0
        %v3592 = vunpack.c.l.s4 1983009808
        %v3593 = vunpack.c.0.s8 %v3592
        %v3594 = vlaneseq
        %v3595 = vshrl.u32 %v3594, 7
        %v3596 = vsub.s32 %v3593, %v3595
        %v3597 = vrot.slane %v2697, %v3596
        %v3599 = vunpack.c.l.s4 1983009808
        %v3600 = vunpack.c.0.s8 %v3599
        %v3601 = vlaneseq
        %v3602 = vshrl.u32 %v3601, 7
        %v3603 = vsub.s32 %v3600, %v3602
        %v3604 = vrot.slane %v3590, %v3603
        %v3605 = vcombine.high %v2729, 0.0
        %v3607 = vunpack.c.l.s4 1983009808
        %v3608 = vunpack.c.0.s8 %v3607
        %v3609 = vlaneseq
        %v3610 = vshrl.u32 %v3609, 7
        %v3611 = vsub.s32 %v3608, %v3610
        %v3612 = vrot.slane %v2729, %v3611
        %v3614 = vunpack.c.l.s4 1983009808
        %v3615 = vunpack.c.0.s8 %v3614
        %v3616 = vlaneseq
        %v3617 = vshrl.u32 %v3616, 7
        %v3618 = vsub.s32 %v3615, %v3617
        %v3619 = vrot.slane %v3605, %v3618
        %v3620 = vcombine.low %v3597, %v3612
        %v3621 = vcombine.high %v3597, %v3612
        %v3623 = vunpack.c.l.s4 1934713408
        %v3624 = vunpack.c.0.s8 %v3623
        %v3625 = vlaneseq
        %v3626 = vshrl.u32 %v3625, 7
        %v3627 = vsub.s32 %v3624, %v3626
        %v3628 = vrot.slane %v3620, %v3627
        %v3630 = vunpack.c.l.s4 1934713408
        %v3631 = vunpack.c.0.s8 %v3630
        %v3632 = vlaneseq
        %v3633 = vshrl.u32 %v3632, 7
        %v3634 = vsub.s32 %v3631, %v3633
        %v3635 = vrot.slane %v3621, %v3634
        %v3636 = vcombine.low %v3604, %v3619
        %v3637 = vcombine.high %v3604, %v3619
        %v3639 = vunpack.c.l.s4 1934713408
        %v3640 = vunpack.c.0.s8 %v3639
        %v3641 = vlaneseq
        %v3642 = vshrl.u32 %v3641, 7
        %v3643 = vsub.s32 %v3640, %v3642
        %v3644 = vrot.slane %v3636, %v3643
        %v3646 = vunpack.c.l.s4 1934713408
        %v3647 = vunpack.c.0.s8 %v3646
        %v3648 = vlaneseq
        %v3649 = vshrl.u32 %v3648, 7
        %v3650 = vsub.s32 %v3647, %v3649
        %v3651 = vrot.slane %v3637, %v3650
        %v3652 = vcombine.high %v3628, 0.0
        %v3653 = vcombine.high %v3635, 0.0
        %v3654 = vcombine.high %v3644, 0.0
        %v3655 = vcombine.high %v3651, 0.0
        %v3656 = vcombine.high %v2698, 0.0
        %v3658 = vunpack.c.l.s4 1983009808
        %v3659 = vunpack.c.0.s8 %v3658
        %v3660 = vlaneseq
        %v3661 = vshrl.u32 %v3660, 7
        %v3662 = vsub.s32 %v3659, %v3661
        %v3663 = vrot.slane %v2698, %v3662
        %v3665 = vunpack.c.l.s4 1983009808
        %v3666 = vunpack.c.0.s8 %v3665
        %v3667 = vlaneseq
        %v3668 = vshrl.u32 %v3667, 7
        %v3669 = vsub.s32 %v3666, %v3668
        %v3670 = vrot.slane %v3656, %v3669
        %v3671 = vcombine.high %v2730, 0.0
        %v3673 = vunpack.c.l.s4 1983009808
        %v3674 = vunpack.c.0.s8 %v3673
        %v3675 = vlaneseq
        %v3676 = vshrl.u32 %v3675, 7
        %v3677 = vsub.s32 %v3674, %v3676
        %v3678 = vrot.slane %v2730, %v3677
        %v3680 = vunpack.c.l.s4 1983009808
        %v3681 = vunpack.c.0.s8 %v3680
        %v3682 = vlaneseq
        %v3683 = vshrl.u32 %v3682, 7
        %v3684 = vsub.s32 %v3681, %v3683
        %v3685 = vrot.slane %v3671, %v3684
        %v3686 = vcombine.low %v3663, %v3678
        %v3687 = vcombine.high %v3663, %v3678
        %v3689 = vunpack.c.l.s4 1934713408
        %v3690 = vunpack.c.0.s8 %v3689
        %v3691 = vlaneseq
        %v3692 = vshrl.u32 %v3691, 7
        %v3693 = vsub.s32 %v3690, %v3692
        %v3694 = vrot.slane %v3686, %v3693
        %v3696 = vunpack.c.l.s4 1934713408
        %v3697 = vunpack.c.0.s8 %v3696
        %v3698 = vlaneseq
        %v3699 = vshrl.u32 %v3698, 7
        %v3700 = vsub.s32 %v3697, %v3699
        %v3701 = vrot.slane %v3687, %v3700
        %v3702 = vcombine.low %v3670, %v3685
        %v3703 = vcombine.high %v3670, %v3685
        %v3705 = vunpack.c.l.s4 1934713408
        %v3706 = vunpack.c.0.s8 %v3705
        %v3707 = vlaneseq
        %v3708 = vshrl.u32 %v3707, 7
        %v3709 = vsub.s32 %v3706, %v3708
        %v3710 = vrot.slane %v3702, %v3709
        %v3712 = vunpack.c.l.s4 1934713408
        %v3713 = vunpack.c.0.s8 %v3712
        %v3714 = vlaneseq
        %v3715 = vshrl.u32 %v3714, 7
        %v3716 = vsub.s32 %v3713, %v3715
        %v3717 = vrot.slane %v3703, %v3716
        %v3718 = vcombine.high %v3694, 0.0
        %v3719 = vcombine.high %v3701, 0.0
        %v3720 = vcombine.high %v3710, 0.0
        %v3721 = vcombine.high %v3717, 0.0
        %v3722 = vcombine.high %v2699, 0.0
        %v3724 = vunpack.c.l.s4 1983009808
        %v3725 = vunpack.c.0.s8 %v3724
        %v3726 = vlaneseq
        %v3727 = vshrl.u32 %v3726, 7
        %v3728 = vsub.s32 %v3725, %v3727
        %v3729 = vrot.slane %v2699, %v3728
        %v3731 = vunpack.c.l.s4 1983009808
        %v3732 = vunpack.c.0.s8 %v3731
        %v3733 = vlaneseq
        %v3734 = vshrl.u32 %v3733, 7
        %v3735 = vsub.s32 %v3732, %v3734
        %v3736 = vrot.slane %v3722, %v3735
        %v3737 = vcombine.high %v2731, 0.0
        %v3739 = vunpack.c.l.s4 1983009808
        %v3740 = vunpack.c.0.s8 %v3739
        %v3741 = vlaneseq
        %v3742 = vshrl.u32 %v3741, 7
        %v3743 = vsub.s32 %v3740, %v3742
        %v3744 = vrot.slane %v2731, %v3743
        %v3746 = vunpack.c.l.s4 1983009808
        %v3747 = vunpack.c.0.s8 %v3746
        %v3748 = vlaneseq
        %v3749 = vshrl.u32 %v3748, 7
        %v3750 = vsub.s32 %v3747, %v3749
        %v3751 = vrot.slane %v3737, %v3750
        %v3752 = vcombine.low %v3729, %v3744
        %v3753 = vcombine.high %v3729, %v3744
        %v3755 = vunpack.c.l.s4 1934713408
        %v3756 = vunpack.c.0.s8 %v3755
        %v3757 = vlaneseq
        %v3758 = vshrl.u32 %v3757, 7
        %v3759 = vsub.s32 %v3756, %v3758
        %v3760 = vrot.slane %v3752, %v3759
        %v3762 = vunpack.c.l.s4 1934713408
        %v3763 = vunpack.c.0.s8 %v3762
        %v3764 = vlaneseq
        %v3765 = vshrl.u32 %v3764, 7
        %v3766 = vsub.s32 %v3763, %v3765
        %v3767 = vrot.slane %v3753, %v3766
        %v3768 = vcombine.low %v3736, %v3751
        %v3769 = vcombine.high %v3736, %v3751
        %v3771 = vunpack.c.l.s4 1934713408
        %v3772 = vunpack.c.0.s8 %v3771
        %v3773 = vlaneseq
        %v3774 = vshrl.u32 %v3773, 7
        %v3775 = vsub.s32 %v3772, %v3774
        %v3776 = vrot.slane %v3768, %v3775
        %v3778 = vunpack.c.l.s4 1934713408
        %v3779 = vunpack.c.0.s8 %v3778
        %v3780 = vlaneseq
        %v3781 = vshrl.u32 %v3780, 7
        %v3782 = vsub.s32 %v3779, %v3781
        %v3783 = vrot.slane %v3769, %v3782
        %v3784 = vcombine.high %v3760, 0.0
        %v3785 = vcombine.high %v3767, 0.0
        %v3786 = vcombine.high %v3776, 0.0
        %v3787 = vcombine.high %v3783, 0.0
        %v3788 = vcombine.low %v2770, %v2777
        %v3790 = vunpack.c.l.s4 1983009808
        %v3791 = vunpack.c.0.s8 %v3790
        %v3792 = vlaneseq
        %v3793 = vshrl.u32 %v3792, 7
        %v3794 = vsub.s32 %v3791, %v3793
        %v3795 = vrot.slane %v3788, %v3794
        %v3796 = vcombine.low %v2794, %v2795
        %v3798 = vunpack.c.l.s4 1983009808
        %v3799 = vunpack.c.0.s8 %v3798
        %v3800 = vlaneseq
        %v3801 = vshrl.u32 %v3800, 7
        %v3802 = vsub.s32 %v3799, %v3801
        %v3803 = vrot.slane %v3796, %v3802
        %v3804 = vcombine.low %v2786, %v2793
        %v3806 = vunpack.c.l.s4 1983009808
        %v3807 = vunpack.c.0.s8 %v3806
        %v3808 = vlaneseq
        %v3809 = vshrl.u32 %v3808, 7
        %v3810 = vsub.s32 %v3807, %v3809
        %v3811 = vrot.slane %v3804, %v3810
        %v3812 = vcombine.low %v2796, %v2797
        %v3814 = vunpack.c.l.s4 1983009808
        %v3815 = vunpack.c.0.s8 %v3814
        %v3816 = vlaneseq
        %v3817 = vshrl.u32 %v3816, 7
        %v3818 = vsub.s32 %v3815, %v3817
        %v3819 = vrot.slane %v3812, %v3818
        %v3820 = vcombine.low %v3795, %v3803
        %v3822 = vunpack.c.l.s4 1934713408
        %v3823 = vunpack.c.0.s8 %v3822
        %v3824 = vlaneseq
        %v3825 = vshrl.u32 %v3824, 7
        %v3826 = vsub.s32 %v3823, %v3825
        %v3827 = vrot.slane %v3820, %v3826
        %v3828 = vcombine.low %v3811, %v3819
        %v3830 = vunpack.c.l.s4 1934713408
        %v3831 = vunpack.c.0.s8 %v3830
        %v3832 = vlaneseq
        %v3833 = vshrl.u32 %v3832, 7
        %v3834 = vsub.s32 %v3831, %v3833
        %v3835 = vrot.slane %v3828, %v3834
        %v3836 = vcombine.low %v3827, %v3835
        %v3837 = vcombine.high %v3827, %v3835
        %v3838 = vcombine.low %v2836, %v2843
        %v3840 = vunpack.c.l.s4 1983009808
        %v3841 = vunpack.c.0.s8 %v3840
        %v3842 = vlaneseq
        %v3843 = vshrl.u32 %v3842, 7
        %v3844 = vsub.s32 %v3841, %v3843
        %v3845 = vrot.slane %v3838, %v3844
        %v3846 = vcombine.low %v2860, %v2861
        %v3848 = vunpack.c.l.s4 1983009808
        %v3849 = vunpack.c.0.s8 %v3848
        %v3850 = vlaneseq
        %v3851 = vshrl.u32 %v3850, 7
        %v3852 = vsub.s32 %v3849, %v3851
        %v3853 = vrot.slane %v3846, %v3852
        %v3854 = vcombine.low %v2852, %v2859
        %v3856 = vunpack.c.l.s4 1983009808
        %v3857 = vunpack.c.0.s8 %v3856
        %v3858 = vlaneseq
        %v3859 = vshrl.u32 %v3858, 7
        %v3860 = vsub.s32 %v3857, %v3859
        %v3861 = vrot.slane %v3854, %v3860
        %v3862 = vcombine.low %v2862, %v2863
        %v3864 = vunpack.c.l.s4 1983009808
        %v3865 = vunpack.c.0.s8 %v3864
        %v3866 = vlaneseq
        %v3867 = vshrl.u32 %v3866, 7
        %v3868 = vsub.s32 %v3865, %v3867
        %v3869 = vrot.slane %v3862, %v3868
        %v3870 = vcombine.low %v3845, %v3853
        %v3872 = vunpack.c.l.s4 1934713408
        %v3873 = vunpack.c.0.s8 %v3872
        %v3874 = vlaneseq
        %v3875 = vshrl.u32 %v3874, 7
        %v3876 = vsub.s32 %v3873, %v3875
        %v3877 = vrot.slane %v3870, %v3876
        %v3878 = vcombine.low %v3861, %v3869
        %v3880 = vunpack.c.l.s4 1934713408
        %v3881 = vunpack.c.0.s8 %v3880
        %v3882 = vlaneseq
        %v3883 = vshrl.u32 %v3882, 7
        %v3884 = vsub.s32 %v3881, %v3883
        %v3885 = vrot.slane %v3878, %v3884
        %v3886 = vcombine.low %v3877, %v3885
        %v3887 = vcombine.high %v3877, %v3885
        %v3888 = vcombine.low %v2902, %v2909
        %v3890 = vunpack.c.l.s4 1983009808
        %v3891 = vunpack.c.0.s8 %v3890
        %v3892 = vlaneseq
        %v3893 = vshrl.u32 %v3892, 7
        %v3894 = vsub.s32 %v3891, %v3893
        %v3895 = vrot.slane %v3888, %v3894
        %v3896 = vcombine.low %v2926, %v2927
        %v3898 = vunpack.c.l.s4 1983009808
        %v3899 = vunpack.c.0.s8 %v3898
        %v3900 = vlaneseq
        %v3901 = vshrl.u32 %v3900, 7
        %v3902 = vsub.s32 %v3899, %v3901
        %v3903 = vrot.slane %v3896, %v3902
        %v3904 = vcombine.low %v2918, %v2925
        %v3906 = vunpack.c.l.s4 1983009808
        %v3907 = vunpack.c.0.s8 %v3906
        %v3908 = vlaneseq
        %v3909 = vshrl.u32 %v3908, 7
        %v3910 = vsub.s32 %v3907, %v3909
        %v3911 = vrot.slane %v3904, %v3910
        %v3912 = vcombine.low %v2928, %v2929
        %v3914 = vunpack.c.l.s4 1983009808
        %v3915 = vunpack.c.0.s8 %v3914
        %v3916 = vlaneseq
        %v3917 = vshrl.u32 %v3916, 7
        %v3918 = vsub.s32 %v3915, %v3917
        %v3919 = vrot.slane %v3912, %v3918
        %v3920 = vcombine.low %v3895, %v3903
        %v3922 = vunpack.c.l.s4 1934713408
        %v3923 = vunpack.c.0.s8 %v3922
        %v3924 = vlaneseq
        %v3925 = vshrl.u32 %v3924, 7
        %v3926 = vsub.s32 %v3923, %v3925
        %v3927 = vrot.slane %v3920, %v3926
        %v3928 = vcombine.low %v3911, %v3919
        %v3930 = vunpack.c.l.s4 1934713408
        %v3931 = vunpack.c.0.s8 %v3930
        %v3932 = vlaneseq
        %v3933 = vshrl.u32 %v3932, 7
        %v3934 = vsub.s32 %v3931, %v3933
        %v3935 = vrot.slane %v3928, %v3934
        %v3936 = vcombine.low %v3927, %v3935
        %v3937 = vcombine.high %v3927, %v3935
        %v3938 = vcombine.low %v2968, %v2975
        %v3940 = vunpack.c.l.s4 1983009808
        %v3941 = vunpack.c.0.s8 %v3940
        %v3942 = vlaneseq
        %v3943 = vshrl.u32 %v3942, 7
        %v3944 = vsub.s32 %v3941, %v3943
        %v3945 = vrot.slane %v3938, %v3944
        %v3946 = vcombine.low %v2992, %v2993
        %v3948 = vunpack.c.l.s4 1983009808
        %v3949 = vunpack.c.0.s8 %v3948
        %v3950 = vlaneseq
        %v3951 = vshrl.u32 %v3950, 7
        %v3952 = vsub.s32 %v3949, %v3951
        %v3953 = vrot.slane %v3946, %v3952
        %v3954 = vcombine.low %v2984, %v2991
        %v3956 = vunpack.c.l.s4 1983009808
        %v3957 = vunpack.c.0.s8 %v3956
        %v3958 = vlaneseq
        %v3959 = vshrl.u32 %v3958, 7
        %v3960 = vsub.s32 %v3957, %v3959
        %v3961 = vrot.slane %v3954, %v3960
        %v3962 = vcombine.low %v2994, %v2995
        %v3964 = vunpack.c.l.s4 1983009808
        %v3965 = vunpack.c.0.s8 %v3964
        %v3966 = vlaneseq
        %v3967 = vshrl.u32 %v3966, 7
        %v3968 = vsub.s32 %v3965, %v3967
        %v3969 = vrot.slane %v3962, %v3968
        %v3970 = vcombine.low %v3945, %v3953
        %v3972 = vunpack.c.l.s4 1934713408
        %v3973 = vunpack.c.0.s8 %v3972
        %v3974 = vlaneseq
        %v3975 = vshrl.u32 %v3974, 7
        %v3976 = vsub.s32 %v3973, %v3975
        %v3977 = vrot.slane %v3970, %v3976
        %v3978 = vcombine.low %v3961, %v3969
        %v3980 = vunpack.c.l.s4 1934713408
        %v3981 = vunpack.c.0.s8 %v3980
        %v3982 = vlaneseq
        %v3983 = vshrl.u32 %v3982, 7
        %v3984 = vsub.s32 %v3981, %v3983
        %v3985 = vrot.slane %v3978, %v3984
        %v3986 = vcombine.low %v3977, %v3985
        %v3987 = vcombine.high %v3977, %v3985
        %v3988 = vcombine.low %v3034, %v3041
        %v3990 = vunpack.c.l.s4 1983009808
        %v3991 = vunpack.c.0.s8 %v3990
        %v3992 = vlaneseq
        %v3993 = vshrl.u32 %v3992, 7
        %v3994 = vsub.s32 %v3991, %v3993
        %v3995 = vrot.slane %v3988, %v3994
        %v3996 = vcombine.low %v3058, %v3059
        %v3998 = vunpack.c.l.s4 1983009808
        %v3999 = vunpack.c.0.s8 %v3998
        %v4000 = vlaneseq
        %v4001 = vshrl.u32 %v4000, 7
        %v4002 = vsub.s32 %v3999, %v4001
        %v4003 = vrot.slane %v3996, %v4002
        %v4004 = vcombine.low %v3050, %v3057
        %v4006 = vunpack.c.l.s4 1983009808
        %v4007 = vunpack.c.0.s8 %v4006
        %v4008 = vlaneseq
        %v4009 = vshrl.u32 %v4008, 7
        %v4010 = vsub.s32 %v4007, %v4009
        %v4011 = vrot.slane %v4004, %v4010
        %v4012 = vcombine.low %v3060, %v3061
        %v4014 = vunpack.c.l.s4 1983009808
        %v4015 = vunpack.c.0.s8 %v4014
        %v4016 = vlaneseq
        %v4017 = vshrl.u32 %v4016, 7
        %v4018 = vsub.s32 %v4015, %v4017
        %v4019 = vrot.slane %v4012, %v4018
        %v4020 = vcombine.low %v3995, %v4003
        %v4022 = vunpack.c.l.s4 1934713408
        %v4023 = vunpack.c.0.s8 %v4022
        %v4024 = vlaneseq
        %v4025 = vshrl.u32 %v4024, 7
        %v4026 = vsub.s32 %v4023, %v4025
        %v4027 = vrot.slane %v4020, %v4026
        %v4028 = vcombine.low %v4011, %v4019
        %v4030 = vunpack.c.l.s4 1934713408
        %v4031 = vunpack.c.0.s8 %v4030
        %v4032 = vlaneseq
        %v4033 = vshrl.u32 %v4032, 7
        %v4034 = vsub.s32 %v4031, %v4033
        %v4035 = vrot.slane %v4028, %v4034
        %v4036 = vcombine.low %v4027, %v4035
        %v4037 = vcombine.high %v4027, %v4035
        %v4038 = vcombine.low %v3100, %v3107
        %v4040 = vunpack.c.l.s4 1983009808
        %v4041 = vunpack.c.0.s8 %v4040
        %v4042 = vlaneseq
        %v4043 = vshrl.u32 %v4042, 7
        %v4044 = vsub.s32 %v4041, %v4043
        %v4045 = vrot.slane %v4038, %v4044
        %v4046 = vcombine.low %v3124, %v3125
        %v4048 = vunpack.c.l.s4 1983009808
        %v4049 = vunpack.c.0.s8 %v4048
        %v4050 = vlaneseq
        %v4051 = vshrl.u32 %v4050, 7
        %v4052 = vsub.s32 %v4049, %v4051
        %v4053 = vrot.slane %v4046, %v4052
        %v4054 = vcombine.low %v3116, %v3123
        %v4056 = vunpack.c.l.s4 1983009808
        %v4057 = vunpack.c.0.s8 %v4056
        %v4058 = vlaneseq
        %v4059 = vshrl.u32 %v4058, 7
        %v4060 = vsub.s32 %v4057, %v4059
        %v4061 = vrot.slane %v4054, %v4060
        %v4062 = vcombine.low %v3126, %v3127
        %v4064 = vunpack.c.l.s4 1983009808
        %v4065 = vunpack.c.0.s8 %v4064
        %v4066 = vlaneseq
        %v4067 = vshrl.u32 %v4066, 7
        %v4068 = vsub.s32 %v4065, %v4067
        %v4069 = vrot.slane %v4062, %v4068
        %v4070 = vcombine.low %v4045, %v4053
        %v4072 = vunpack.c.l.s4 1934713408
        %v4073 = vunpack.c.0.s8 %v4072
        %v4074 = vlaneseq
        %v4075 = vshrl.u32 %v4074, 7
        %v4076 = vsub.s32 %v4073, %v4075
        %v4077 = vrot.slane %v4070, %v4076
        %v4078 = vcombine.low %v4061, %v4069
        %v4080 = vunpack.c.l.s4 1934713408
        %v4081 = vunpack.c.0.s8 %v4080
        %v4082 = vlaneseq
        %v4083 = vshrl.u32 %v4082, 7
        %v4084 = vsub.s32 %v4081, %v4083
        %v4085 = vrot.slane %v4078, %v4084
        %v4086 = vcombine.low %v4077, %v4085
        %v4087 = vcombine.high %v4077, %v4085
        %v4088 = vcombine.low %v3166, %v3173
        %v4090 = vunpack.c.l.s4 1983009808
        %v4091 = vunpack.c.0.s8 %v4090
        %v4092 = vlaneseq
        %v4093 = vshrl.u32 %v4092, 7
        %v4094 = vsub.s32 %v4091, %v4093
        %v4095 = vrot.slane %v4088, %v4094
        %v4096 = vcombine.low %v3190, %v3191
        %v4098 = vunpack.c.l.s4 1983009808
        %v4099 = vunpack.c.0.s8 %v4098
        %v4100 = vlaneseq
        %v4101 = vshrl.u32 %v4100, 7
        %v4102 = vsub.s32 %v4099, %v4101
        %v4103 = vrot.slane %v4096, %v4102
        %v4104 = vcombine.low %v3182, %v3189
        %v4106 = vunpack.c.l.s4 1983009808
        %v4107 = vunpack.c.0.s8 %v4106
        %v4108 = vlaneseq
        %v4109 = vshrl.u32 %v4108, 7
        %v4110 = vsub.s32 %v4107, %v4109
        %v4111 = vrot.slane %v4104, %v4110
        %v4112 = vcombine.low %v3192, %v3193
        %v4114 = vunpack.c.l.s4 1983009808
        %v4115 = vunpack.c.0.s8 %v4114
        %v4116 = vlaneseq
        %v4117 = vshrl.u32 %v4116, 7
        %v4118 = vsub.s32 %v4115, %v4117
        %v4119 = vrot.slane %v4112, %v4118
        %v4120 = vcombine.low %v4095, %v4103
        %v4122 = vunpack.c.l.s4 1934713408
        %v4123 = vunpack.c.0.s8 %v4122
        %v4124 = vlaneseq
        %v4125 = vshrl.u32 %v4124, 7
        %v4126 = vsub.s32 %v4123, %v4125
        %v4127 = vrot.slane %v4120, %v4126
        %v4128 = vcombine.low %v4111, %v4119
        %v4130 = vunpack.c.l.s4 1934713408
        %v4131 = vunpack.c.0.s8 %v4130
        %v4132 = vlaneseq
        %v4133 = vshrl.u32 %v4132, 7
        %v4134 = vsub.s32 %v4131, %v4133
        %v4135 = vrot.slane %v4128, %v4134
        %v4136 = vcombine.low %v4127, %v4135
        %v4137 = vcombine.high %v4127, %v4135
        %v4138 = vcombine.low %v3232, %v3239
        %v4140 = vunpack.c.l.s4 1983009808
        %v4141 = vunpack.c.0.s8 %v4140
        %v4142 = vlaneseq
        %v4143 = vshrl.u32 %v4142, 7
        %v4144 = vsub.s32 %v4141, %v4143
        %v4145 = vrot.slane %v4138, %v4144
        %v4146 = vcombine.low %v3256, %v3257
        %v4148 = vunpack.c.l.s4 1983009808
        %v4149 = vunpack.c.0.s8 %v4148
        %v4150 = vlaneseq
        %v4151 = vshrl.u32 %v4150, 7
        %v4152 = vsub.s32 %v4149, %v4151
        %v4153 = vrot.slane %v4146, %v4152
        %v4154 = vcombine.low %v3248, %v3255
        %v4156 = vunpack.c.l.s4 1983009808
        %v4157 = vunpack.c.0.s8 %v4156
        %v4158 = vlaneseq
        %v4159 = vshrl.u32 %v4158, 7
        %v4160 = vsub.s32 %v4157, %v4159
        %v4161 = vrot.slane %v4154, %v4160
        %v4162 = vcombine.low %v3258, %v3259
        %v4164 = vunpack.c.l.s4 1983009808
        %v4165 = vunpack.c.0.s8 %v4164
        %v4166 = vlaneseq
        %v4167 = vshrl.u32 %v4166, 7
        %v4168 = vsub.s32 %v4165, %v4167
        %v4169 = vrot.slane %v4162, %v4168
        %v4170 = vcombine.low %v4145, %v4153
        %v4172 = vunpack.c.l.s4 1934713408
        %v4173 = vunpack.c.0.s8 %v4172
        %v4174 = vlaneseq
        %v4175 = vshrl.u32 %v4174, 7
        %v4176 = vsub.s32 %v4173, %v4175
        %v4177 = vrot.slane %v4170, %v4176
        %v4178 = vcombine.low %v4161, %v4169
        %v4180 = vunpack.c.l.s4 1934713408
        %v4181 = vunpack.c.0.s8 %v4180
        %v4182 = vlaneseq
        %v4183 = vshrl.u32 %v4182, 7
        %v4184 = vsub.s32 %v4181, %v4183
        %v4185 = vrot.slane %v4178, %v4184
        %v4186 = vcombine.low %v4177, %v4185
        %v4187 = vcombine.high %v4177, %v4185
        %v4188 = vcombine.low %v3298, %v3305
        %v4190 = vunpack.c.l.s4 1983009808
        %v4191 = vunpack.c.0.s8 %v4190
        %v4192 = vlaneseq
        %v4193 = vshrl.u32 %v4192, 7
        %v4194 = vsub.s32 %v4191, %v4193
        %v4195 = vrot.slane %v4188, %v4194
        %v4196 = vcombine.low %v3322, %v3323
        %v4198 = vunpack.c.l.s4 1983009808
        %v4199 = vunpack.c.0.s8 %v4198
        %v4200 = vlaneseq
        %v4201 = vshrl.u32 %v4200, 7
        %v4202 = vsub.s32 %v4199, %v4201
        %v4203 = vrot.slane %v4196, %v4202
        %v4204 = vcombine.low %v3314, %v3321
        %v4206 = vunpack.c.l.s4 1983009808
        %v4207 = vunpack.c.0.s8 %v4206
        %v4208 = vlaneseq
        %v4209 = vshrl.u32 %v4208, 7
        %v4210 = vsub.s32 %v4207, %v4209
        %v4211 = vrot.slane %v4204, %v4210
        %v4212 = vcombine.low %v3324, %v3325
        %v4214 = vunpack.c.l.s4 1983009808
        %v4215 = vunpack.c.0.s8 %v4214
        %v4216 = vlaneseq
        %v4217 = vshrl.u32 %v4216, 7
        %v4218 = vsub.s32 %v4215, %v4217
        %v4219 = vrot.slane %v4212, %v4218
        %v4220 = vcombine.low %v4195, %v4203
        %v4222 = vunpack.c.l.s4 1934713408
        %v4223 = vunpack.c.0.s8 %v4222
        %v4224 = vlaneseq
        %v4225 = vshrl.u32 %v4224, 7
        %v4226 = vsub.s32 %v4223, %v4225
        %v4227 = vrot.slane %v4220, %v4226
        %v4228 = vcombine.low %v4211, %v4219
        %v4230 = vunpack.c.l.s4 1934713408
        %v4231 = vunpack.c.0.s8 %v4230
        %v4232 = vlaneseq
        %v4233 = vshrl.u32 %v4232, 7
        %v4234 = vsub.s32 %v4231, %v4233
        %v4235 = vrot.slane %v4228, %v4234
        %v4236 = vcombine.low %v4227, %v4235
        %v4237 = vcombine.high %v4227, %v4235
        %v4238 = vcombine.low %v3364, %v3371
        %v4240 = vunpack.c.l.s4 1983009808
        %v4241 = vunpack.c.0.s8 %v4240
        %v4242 = vlaneseq
        %v4243 = vshrl.u32 %v4242, 7
        %v4244 = vsub.s32 %v4241, %v4243
        %v4245 = vrot.slane %v4238, %v4244
        %v4246 = vcombine.low %v3388, %v3389
        %v4248 = vunpack.c.l.s4 1983009808
        %v4249 = vunpack.c.0.s8 %v4248
        %v4250 = vlaneseq
        %v4251 = vshrl.u32 %v4250, 7
        %v4252 = vsub.s32 %v4249, %v4251
        %v4253 = vrot.slane %v4246, %v4252
        %v4254 = vcombine.low %v3380, %v3387
        %v4256 = vunpack.c.l.s4 1983009808
        %v4257 = vunpack.c.0.s8 %v4256
        %v4258 = vlaneseq
        %v4259 = vshrl.u32 %v4258, 7
        %v4260 = vsub.s32 %v4257, %v4259
        %v4261 = vrot.slane %v4254, %v4260
        %v4262 = vcombine.low %v3390, %v3391
        %v4264 = vunpack.c.l.s4 1983009808
        %v4265 = vunpack.c.0.s8 %v4264
        %v4266 = vlaneseq
        %v4267 = vshrl.u32 %v4266, 7
        %v4268 = vsub.s32 %v4265, %v4267
        %v4269 = vrot.slane %v4262, %v4268
        %v4270 = vcombine.low %v4245, %v4253
        %v4272 = vunpack.c.l.s4 1934713408
        %v4273 = vunpack.c.0.s8 %v4272
        %v4274 = vlaneseq
        %v4275 = vshrl.u32 %v4274, 7
        %v4276 = vsub.s32 %v4273, %v4275
        %v4277 = vrot.slane %v4270, %v4276
        %v4278 = vcombine.low %v4261, %v4269
        %v4280 = vunpack.c.l.s4 1934713408
        %v4281 = vunpack.c.0.s8 %v4280
        %v4282 = vlaneseq
        %v4283 = vshrl.u32 %v4282, 7
        %v4284 = vsub.s32 %v4281, %v4283
        %v4285 = vrot.slane %v4278, %v4284
        %v4286 = vcombine.low %v4277, %v4285
        %v4287 = vcombine.high %v4277, %v4285
        %v4288 = vcombine.low %v3430, %v3437
        %v4290 = vunpack.c.l.s4 1983009808
        %v4291 = vunpack.c.0.s8 %v4290
        %v4292 = vlaneseq
        %v4293 = vshrl.u32 %v4292, 7
        %v4294 = vsub.s32 %v4291, %v4293
        %v4295 = vrot.slane %v4288, %v4294
        %v4296 = vcombine.low %v3454, %v3455
        %v4298 = vunpack.c.l.s4 1983009808
        %v4299 = vunpack.c.0.s8 %v4298
        %v4300 = vlaneseq
        %v4301 = vshrl.u32 %v4300, 7
        %v4302 = vsub.s32 %v4299, %v4301
        %v4303 = vrot.slane %v4296, %v4302
        %v4304 = vcombine.low %v3446, %v3453
        %v4306 = vunpack.c.l.s4 1983009808
        %v4307 = vunpack.c.0.s8 %v4306
        %v4308 = vlaneseq
        %v4309 = vshrl.u32 %v4308, 7
        %v4310 = vsub.s32 %v4307, %v4309
        %v4311 = vrot.slane %v4304, %v4310
        %v4312 = vcombine.low %v3456, %v3457
        %v4314 = vunpack.c.l.s4 1983009808
        %v4315 = vunpack.c.0.s8 %v4314
        %v4316 = vlaneseq
        %v4317 = vshrl.u32 %v4316, 7
        %v4318 = vsub.s32 %v4315, %v4317
        %v4319 = vrot.slane %v4312, %v4318
        %v4320 = vcombine.low %v4295, %v4303
        %v4322 = vunpack.c.l.s4 1934713408
        %v4323 = vunpack.c.0.s8 %v4322
        %v4324 = vlaneseq
        %v4325 = vshrl.u32 %v4324, 7
        %v4326 = vsub.s32 %v4323, %v4325
        %v4327 = vrot.slane %v4320, %v4326
        %v4328 = vcombine.low %v4311, %v4319
        %v4330 = vunpack.c.l.s4 1934713408
        %v4331 = vunpack.c.0.s8 %v4330
        %v4332 = vlaneseq
        %v4333 = vshrl.u32 %v4332, 7
        %v4334 = vsub.s32 %v4331, %v4333
        %v4335 = vrot.slane %v4328, %v4334
        %v4336 = vcombine.low %v4327, %v4335
        %v4337 = vcombine.high %v4327, %v4335
        %v4338 = vcombine.low %v3496, %v3503
        %v4340 = vunpack.c.l.s4 1983009808
        %v4341 = vunpack.c.0.s8 %v4340
        %v4342 = vlaneseq
        %v4343 = vshrl.u32 %v4342, 7
        %v4344 = vsub.s32 %v4341, %v4343
        %v4345 = vrot.slane %v4338, %v4344
        %v4346 = vcombine.low %v3520, %v3521
        %v4348 = vunpack.c.l.s4 1983009808
        %v4349 = vunpack.c.0.s8 %v4348
        %v4350 = vlaneseq
        %v4351 = vshrl.u32 %v4350, 7
        %v4352 = vsub.s32 %v4349, %v4351
        %v4353 = vrot.slane %v4346, %v4352
        %v4354 = vcombine.low %v3512, %v3519
        %v4356 = vunpack.c.l.s4 1983009808
        %v4357 = vunpack.c.0.s8 %v4356
        %v4358 = vlaneseq
        %v4359 = vshrl.u32 %v4358, 7
        %v4360 = vsub.s32 %v4357, %v4359
        %v4361 = vrot.slane %v4354, %v4360
        %v4362 = vcombine.low %v3522, %v3523
        %v4364 = vunpack.c.l.s4 1983009808
        %v4365 = vunpack.c.0.s8 %v4364
        %v4366 = vlaneseq
        %v4367 = vshrl.u32 %v4366, 7
        %v4368 = vsub.s32 %v4365, %v4367
        %v4369 = vrot.slane %v4362, %v4368
        %v4370 = vcombine.low %v4345, %v4353
        %v4372 = vunpack.c.l.s4 1934713408
        %v4373 = vunpack.c.0.s8 %v4372
        %v4374 = vlaneseq
        %v4375 = vshrl.u32 %v4374, 7
        %v4376 = vsub.s32 %v4373, %v4375
        %v4377 = vrot.slane %v4370, %v4376
        %v4378 = vcombine.low %v4361, %v4369
        %v4380 = vunpack.c.l.s4 1934713408
        %v4381 = vunpack.c.0.s8 %v4380
        %v4382 = vlaneseq
        %v4383 = vshrl.u32 %v4382, 7
        %v4384 = vsub.s32 %v4381, %v4383
        %v4385 = vrot.slane %v4378, %v4384
        %v4386 = vcombine.low %v4377, %v4385
        %v4387 = vcombine.high %v4377, %v4385
        %v4388 = vcombine.low %v3562, %v3569
        %v4390 = vunpack.c.l.s4 1983009808
        %v4391 = vunpack.c.0.s8 %v4390
        %v4392 = vlaneseq
        %v4393 = vshrl.u32 %v4392, 7
        %v4394 = vsub.s32 %v4391, %v4393
        %v4395 = vrot.slane %v4388, %v4394
        %v4396 = vcombine.low %v3586, %v3587
        %v4398 = vunpack.c.l.s4 1983009808
        %v4399 = vunpack.c.0.s8 %v4398
        %v4400 = vlaneseq
        %v4401 = vshrl.u32 %v4400, 7
        %v4402 = vsub.s32 %v4399, %v4401
        %v4403 = vrot.slane %v4396, %v4402
        %v4404 = vcombine.low %v3578, %v3585
        %v4406 = vunpack.c.l.s4 1983009808
        %v4407 = vunpack.c.0.s8 %v4406
        %v4408 = vlaneseq
        %v4409 = vshrl.u32 %v4408, 7
        %v4410 = vsub.s32 %v4407, %v4409
        %v4411 = vrot.slane %v4404, %v4410
        %v4412 = vcombine.low %v3588, %v3589
        %v4414 = vunpack.c.l.s4 1983009808
        %v4415 = vunpack.c.0.s8 %v4414
        %v4416 = vlaneseq
        %v4417 = vshrl.u32 %v4416, 7
        %v4418 = vsub.s32 %v4415, %v4417
        %v4419 = vrot.slane %v4412, %v4418
        %v4420 = vcombine.low %v4395, %v4403
        %v4422 = vunpack.c.l.s4 1934713408
        %v4423 = vunpack.c.0.s8 %v4422
        %v4424 = vlaneseq
        %v4425 = vshrl.u32 %v4424, 7
        %v4426 = vsub.s32 %v4423, %v4425
        %v4427 = vrot.slane %v4420, %v4426
        %v4428 = vcombine.low %v4411, %v4419
        %v4430 = vunpack.c.l.s4 1934713408
        %v4431 = vunpack.c.0.s8 %v4430
        %v4432 = vlaneseq
        %v4433 = vshrl.u32 %v4432, 7
        %v4434 = vsub.s32 %v4431, %v4433
        %v4435 = vrot.slane %v4428, %v4434
        %v4436 = vcombine.low %v4427, %v4435
        %v4437 = vcombine.high %v4427, %v4435
        %v4438 = vcombine.low %v3628, %v3635
        %v4440 = vunpack.c.l.s4 1983009808
        %v4441 = vunpack.c.0.s8 %v4440
        %v4442 = vlaneseq
        %v4443 = vshrl.u32 %v4442, 7
        %v4444 = vsub.s32 %v4441, %v4443
        %v4445 = vrot.slane %v4438, %v4444
        %v4446 = vcombine.low %v3652, %v3653
        %v4448 = vunpack.c.l.s4 1983009808
        %v4449 = vunpack.c.0.s8 %v4448
        %v4450 = vlaneseq
        %v4451 = vshrl.u32 %v4450, 7
        %v4452 = vsub.s32 %v4449, %v4451
        %v4453 = vrot.slane %v4446, %v4452
        %v4454 = vcombine.low %v3644, %v3651
        %v4456 = vunpack.c.l.s4 1983009808
        %v4457 = vunpack.c.0.s8 %v4456
        %v4458 = vlaneseq
        %v4459 = vshrl.u32 %v4458, 7
        %v4460 = vsub.s32 %v4457, %v4459
        %v4461 = vrot.slane %v4454, %v4460
        %v4462 = vcombine.low %v3654, %v3655
        %v4464 = vunpack.c.l.s4 1983009808
        %v4465 = vunpack.c.0.s8 %v4464
        %v4466 = vlaneseq
        %v4467 = vshrl.u32 %v4466, 7
        %v4468 = vsub.s32 %v4465, %v4467
        %v4469 = vrot.slane %v4462, %v4468
        %v4470 = vcombine.low %v4445, %v4453
        %v4472 = vunpack.c.l.s4 1934713408
        %v4473 = vunpack.c.0.s8 %v4472
        %v4474 = vlaneseq
        %v4475 = vshrl.u32 %v4474, 7
        %v4476 = vsub.s32 %v4473, %v4475
        %v4477 = vrot.slane %v4470, %v4476
        %v4478 = vcombine.low %v4461, %v4469
        %v4480 = vunpack.c.l.s4 1934713408
        %v4481 = vunpack.c.0.s8 %v4480
        %v4482 = vlaneseq
        %v4483 = vshrl.u32 %v4482, 7
        %v4484 = vsub.s32 %v4481, %v4483
        %v4485 = vrot.slane %v4478, %v4484
        %v4486 = vcombine.low %v4477, %v4485
        %v4487 = vcombine.high %v4477, %v4485
        %v4488 = vcombine.low %v3694, %v3701
        %v4490 = vunpack.c.l.s4 1983009808
        %v4491 = vunpack.c.0.s8 %v4490
        %v4492 = vlaneseq
        %v4493 = vshrl.u32 %v4492, 7
        %v4494 = vsub.s32 %v4491, %v4493
        %v4495 = vrot.slane %v4488, %v4494
        %v4496 = vcombine.low %v3718, %v3719
        %v4498 = vunpack.c.l.s4 1983009808
        %v4499 = vunpack.c.0.s8 %v4498
        %v4500 = vlaneseq
        %v4501 = vshrl.u32 %v4500, 7
        %v4502 = vsub.s32 %v4499, %v4501
        %v4503 = vrot.slane %v4496, %v4502
        %v4504 = vcombine.low %v3710, %v3717
        %v4506 = vunpack.c.l.s4 1983009808
        %v4507 = vunpack.c.0.s8 %v4506
        %v4508 = vlaneseq
        %v4509 = vshrl.u32 %v4508, 7
        %v4510 = vsub.s32 %v4507, %v4509
        %v4511 = vrot.slane %v4504, %v4510
        %v4512 = vcombine.low %v3720, %v3721
        %v4514 = vunpack.c.l.s4 1983009808
        %v4515 = vunpack.c.0.s8 %v4514
        %v4516 = vlaneseq
        %v4517 = vshrl.u32 %v4516, 7
        %v4518 = vsub.s32 %v4515, %v4517
        %v4519 = vrot.slane %v4512, %v4518
        %v4520 = vcombine.low %v4495, %v4503
        %v4522 = vunpack.c.l.s4 1934713408
        %v4523 = vunpack.c.0.s8 %v4522
        %v4524 = vlaneseq
        %v4525 = vshrl.u32 %v4524, 7
        %v4526 = vsub.s32 %v4523, %v4525
        %v4527 = vrot.slane %v4520, %v4526
        %v4528 = vcombine.low %v4511, %v4519
        %v4530 = vunpack.c.l.s4 1934713408
        %v4531 = vunpack.c.0.s8 %v4530
        %v4532 = vlaneseq
        %v4533 = vshrl.u32 %v4532, 7
        %v4534 = vsub.s32 %v4531, %v4533
        %v4535 = vrot.slane %v4528, %v4534
        %v4536 = vcombine.low %v4527, %v4535
        %v4537 = vcombine.high %v4527, %v4535
        %v4538 = vcombine.low %v3760, %v3767
        %v4540 = vunpack.c.l.s4 1983009808
        %v4541 = vunpack.c.0.s8 %v4540
        %v4542 = vlaneseq
        %v4543 = vshrl.u32 %v4542, 7
        %v4544 = vsub.s32 %v4541, %v4543
        %v4545 = vrot.slane %v4538, %v4544
        %v4546 = vcombine.low %v3784, %v3785
        %v4548 = vunpack.c.l.s4 1983009808
        %v4549 = vunpack.c.0.s8 %v4548
        %v4550 = vlaneseq
        %v4551 = vshrl.u32 %v4550, 7
        %v4552 = vsub.s32 %v4549, %v4551
        %v4553 = vrot.slane %v4546, %v4552
        %v4554 = vcombine.low %v3776, %v3783
        %v4556 = vunpack.c.l.s4 1983009808
        %v4557 = vunpack.c.0.s8 %v4556
        %v4558 = vlaneseq
        %v4559 = vshrl.u32 %v4558, 7
        %v4560 = vsub.s32 %v4557, %v4559
        %v4561 = vrot.slane %v4554, %v4560
        %v4562 = vcombine.low %v3786, %v3787
        %v4564 = vunpack.c.l.s4 1983009808
        %v4565 = vunpack.c.0.s8 %v4564
        %v4566 = vlaneseq
        %v4567 = vshrl.u32 %v4566, 7
        %v4568 = vsub.s32 %v4565, %v4567
        %v4569 = vrot.slane %v4562, %v4568
        %v4570 = vcombine.low %v4545, %v4553
        %v4572 = vunpack.c.l.s4 1934713408
        %v4573 = vunpack.c.0.s8 %v4572
        %v4574 = vlaneseq
        %v4575 = vshrl.u32 %v4574, 7
        %v4576 = vsub.s32 %v4573, %v4575
        %v4577 = vrot.slane %v4570, %v4576
        %v4578 = vcombine.low %v4561, %v4569
        %v4580 = vunpack.c.l.s4 1934713408
        %v4581 = vunpack.c.0.s8 %v4580
        %v4582 = vlaneseq
        %v4583 = vshrl.u32 %v4582, 7
        %v4584 = vsub.s32 %v4581, %v4583
        %v4585 = vrot.slane %v4578, %v4584
        %v4586 = vcombine.low %v4577, %v4585
        %v4587 = vcombine.high %v4577, %v4585
        %4604 = vrot.lane.b32.xlu0 %v3837, 64
        %v4605 = vpop.permute.xlu0 %4604
        %4606 = vrot.lane.b32.xlu0 %v3887, 64
        %v4607 = vpop.permute.xlu0 %4606
        %4608 = vrot.lane.b32.xlu0 %v3937, 64
        %v4609 = vpop.permute.xlu0 %4608
        %4610 = vrot.lane.b32.xlu0 %v3987, 64
        %v4611 = vpop.permute.xlu0 %4610
        %4612 = vrot.lane.b32.xlu0 %v4037, 64
        %v4613 = vpop.permute.xlu0 %4612
        %4614 = vrot.lane.b32.xlu0 %v4087, 64
        %v4615 = vpop.permute.xlu0 %4614
        %4616 = vrot.lane.b32.xlu0 %v4137, 64
        %v4617 = vpop.permute.xlu0 %4616
        %4618 = vrot.lane.b32.xlu0 %v4187, 64
        %v4619 = vpop.permute.xlu0 %4618
        %4620 = vrot.lane.b32.xlu0 %v4237, 64
        %v4621 = vpop.permute.xlu0 %4620
        %4622 = vrot.lane.b32.xlu0 %v4287, 64
        %v4623 = vpop.permute.xlu0 %4622
        %4624 = vrot.lane.b32.xlu0 %v4337, 64
        %v4625 = vpop.permute.xlu0 %4624
        %4626 = vrot.lane.b32.xlu0 %v4387, 64
        %v4627 = vpop.permute.xlu0 %4626
        %4628 = vrot.lane.b32.xlu0 %v4437, 64
        %v4629 = vpop.permute.xlu0 %4628
        %4630 = vrot.lane.b32.xlu0 %v4487, 64
        %v4631 = vpop.permute.xlu0 %4630
        %4632 = vrot.lane.b32.xlu0 %v4537, 64
        %v4633 = vpop.permute.xlu0 %4632
        %4634 = vrot.lane.b32.xlu0 %v4587, 64
        %v4635 = vpop.permute.xlu0 %4634
        %v4652 = vsel %vm1959, %v3836, %v4605
        %v4653 = vsel %vm1959, %v3886, %v4607
        %v4654 = vsel %vm1959, %v3936, %v4609
        %v4655 = vsel %vm1959, %v3986, %v4611
        %v4656 = vsel %vm1959, %v4036, %v4613
        %v4657 = vsel %vm1959, %v4086, %v4615
        %v4658 = vsel %vm1959, %v4136, %v4617
        %v4659 = vsel %vm1959, %v4186, %v4619
        %v4660 = vsel %vm1959, %v4236, %v4621
        %v4661 = vsel %vm1959, %v4286, %v4623
        %v4662 = vsel %vm1959, %v4336, %v4625
        %v4663 = vsel %vm1959, %v4386, %v4627
        %v4664 = vsel %vm1959, %v4436, %v4629
        %v4665 = vsel %vm1959, %v4486, %v4631
        %v4666 = vsel %vm1959, %v4536, %v4633
        %v4667 = vsel %vm1959, %v4586, %v4635
        %4676 = vrot.lane.b32.xlu0 %v1799, 64
        %v4677 = vpop.permute.xlu0 %4676
        %4678 = vrot.lane.b32.xlu0 %v1800, 64
        %v4679 = vpop.permute.xlu0 %4678
        %4680 = vrot.lane.b32.xlu0 %v1801, 64
        %v4681 = vpop.permute.xlu0 %4680
        %4682 = vrot.lane.b32.xlu0 %v1802, 64
        %v4683 = vpop.permute.xlu0 %4682
        %4684 = vrot.lane.b32.xlu0 %v1803, 64
        %v4685 = vpop.permute.xlu0 %4684
        %4686 = vrot.lane.b32.xlu0 %v1804, 64
        %v4687 = vpop.permute.xlu0 %4686
        %4688 = vrot.lane.b32.xlu0 %v1805, 64
        %v4689 = vpop.permute.xlu0 %4688
        %4690 = vrot.lane.b32.xlu0 %v1806, 64
        %v4691 = vpop.permute.xlu0 %4690
        %4700 = vrot.lane.b32.xlu0 %v1815, 64
        %v4701 = vpop.permute.xlu0 %4700
        %4702 = vrot.lane.b32.xlu0 %v1816, 64
        %v4703 = vpop.permute.xlu0 %4702
        %4704 = vrot.lane.b32.xlu0 %v1817, 64
        %v4705 = vpop.permute.xlu0 %4704
        %4706 = vrot.lane.b32.xlu0 %v1818, 64
        %v4707 = vpop.permute.xlu0 %4706
        %4708 = vrot.lane.b32.xlu0 %v1819, 64
        %v4709 = vpop.permute.xlu0 %4708
        %4710 = vrot.lane.b32.xlu0 %v1820, 64
        %v4711 = vpop.permute.xlu0 %4710
        %4712 = vrot.lane.b32.xlu0 %v1821, 64
        %v4713 = vpop.permute.xlu0 %4712
        %4714 = vrot.lane.b32.xlu0 %v1822, 64
        %v4715 = vpop.permute.xlu0 %4714
        %4732 = vrot.lane.b32.xlu0 %v1831, 64
        %v4733 = vpop.permute.xlu0 %4732
        %4734 = vrot.lane.b32.xlu0 %v1832, 64
        %v4735 = vpop.permute.xlu0 %4734
        %4736 = vrot.lane.b32.xlu0 %v1833, 64
        %v4737 = vpop.permute.xlu0 %4736
        %4738 = vrot.lane.b32.xlu0 %v1834, 64
        %v4739 = vpop.permute.xlu0 %4738
        %4740 = vrot.lane.b32.xlu0 %v1835, 64
        %v4741 = vpop.permute.xlu0 %4740
        %4742 = vrot.lane.b32.xlu0 %v1836, 64
        %v4743 = vpop.permute.xlu0 %4742
        %4744 = vrot.lane.b32.xlu0 %v1837, 64
        %v4745 = vpop.permute.xlu0 %4744
        %4746 = vrot.lane.b32.xlu0 %v1838, 64
        %v4747 = vpop.permute.xlu0 %4746
        %4756 = vxpose.xlu0.c.b16.start [1/8] %v1815, 128
        %4757 = vxpose.xlu0.c.b16.cont [2/8] %v1816, 128
        %4758 = vxpose.xlu0.c.b16.cont [3/8] %v1817, 128
        %4759 = vxpose.xlu0.c.b16.cont [4/8] %v1818, 128
        %4760 = vxpose.xlu0.c.b16.cont [5/8] %v1819, 128
        %4761 = vxpose.xlu0.c.b16.cont [6/8] %v1820, 128
        %4762 = vxpose.xlu0.c.b16.cont [7/8] %v1821, 128
        %4763 = vxpose.xlu0.c.b16.end [8/8] %v1822, 128
        %v4764 = vpop.trf.xlu0
        %v4765 = vpop.trf.xlu0
        %v4766 = vpop.trf.xlu0
        %v4767 = vpop.trf.xlu0
        %v4768 = vpop.trf.xlu0
        %v4769 = vpop.trf.xlu0
        %v4770 = vpop.trf.xlu0
        %v4771 = vpop.trf.xlu0
        %4772 = vxpose.xlu0.c.b16.start [1/8] %v4701, 128
        %4773 = vxpose.xlu0.c.b16.cont [2/8] %v4703, 128
        %4774 = vxpose.xlu0.c.b16.cont [3/8] %v4705, 128
        %4775 = vxpose.xlu0.c.b16.cont [4/8] %v4707, 128
        %4776 = vxpose.xlu0.c.b16.cont [5/8] %v4709, 128
        %4777 = vxpose.xlu0.c.b16.cont [6/8] %v4711, 128
        %4778 = vxpose.xlu0.c.b16.cont [7/8] %v4713, 128
        %4779 = vxpose.xlu0.c.b16.end [8/8] %v4715, 128
        %v4780 = vpop.trf.xlu0
        %v4781 = vpop.trf.xlu0
        %v4782 = vpop.trf.xlu0
        %v4783 = vpop.trf.xlu0
        %v4784 = vpop.trf.xlu0
        %v4785 = vpop.trf.xlu0
        %v4786 = vpop.trf.xlu0
        %v4787 = vpop.trf.xlu0
        %v4789 = vsel %vm1959, %v1799, 0
        %v4792 = vsel %vm1959, %v1800, 0
        %v4795 = vsel %vm1959, %v1801, 0
        %v4798 = vsel %vm1959, %v1802, 0
        %v4801 = vsel %vm1959, %v1803, 0
        %v4804 = vsel %vm1959, %v1804, 0
        %v4807 = vsel %vm1959, %v1805, 0
        %v4810 = vsel %vm1959, %v1806, 0
        %4812 = vmatprep.subr.bf16.mxu0 0
        %4813 = vmatpush1.bf16.msra.mxu0 %v4764
        %4814 = vmatprep.subr.bf16.mxu0 0
        %4815 = vmatpush1.bf16.msra.mxu0 %v4765
        %4816 = vmatprep.subr.bf16.mxu0 0
        %4817 = vmatpush1.bf16.msra.mxu0 %v4766
        %4818 = vmatprep.subr.bf16.mxu0 0
        %4819 = vmatpush1.bf16.msra.mxu0 %v4767
        %4820 = vmatprep.subr.bf16.mxu0 0
        %4821 = vmatpush1.bf16.msra.mxu0 0
        %4822 = vmatprep.subr.bf16.mxu0 0
        %4823 = vmatpush1.bf16.msra.mxu0 0
        %4824 = vmatprep.subr.bf16.mxu0 0
        %4825 = vmatpush1.bf16.msra.mxu0 0
        %4826 = vmatprep.subr.bf16.mxu0 0
        %4827 = vmatpush1.bf16.msra.mxu0 0
        %4828 = vmatprep.subr.bf16.mxu0 0
        %4829 = vmatpush1.bf16.msra.mxu0 0
        %4830 = vmatprep.subr.bf16.mxu0 0
        %4831 = vmatpush1.bf16.msra.mxu0 0
        %4832 = vmatprep.subr.bf16.mxu0 0
        %4833 = vmatpush1.bf16.msra.mxu0 0
        %4834 = vmatprep.subr.bf16.mxu0 0
        %4835 = vmatpush1.bf16.msra.mxu0 0
        %4836 = vmatprep.subr.bf16.mxu0 0
        %4837 = vmatpush1.bf16.msra.mxu0 0
        %4838 = vmatprep.subr.bf16.mxu0 0
        %4839 = vmatpush1.bf16.msra.mxu0 0
        %4840 = vmatprep.subr.bf16.mxu0 0
        %4841 = vmatpush1.bf16.msra.mxu0 0
        %4842 = vmatprep.subr.bf16.mxu0 0
        %4843 = vmatpush1.bf16.msra.mxu0 0
        %4844 = vmatprep.mubr.bf16.mxu0 0
        %4845 = vmatmul.mubr.bf16.gmra.mrb[0].mxu0 %v4789
        %v4846 = vpop.f32.mrb[0].mxu0
        %v4847 = vadd.f32 0.0, %v4846
        %v4848 = vpop.f32.mrb[0].mxu0
        %v4849 = vpop.f32.mrb[0].mxu0
        %v4850 = vadd.f32 0.0, %v4849
        %v4851 = vpop.f32.mrb[0].mxu0
        %4852 = vmatprep.mubr.bf16.mxu0 0
        %4853 = vmatmul.mubr.bf16.gmra.mrb[0].mxu0 %v4792
        %v4854 = vpop.f32.mrb[0].mxu0
        %v4855 = vadd.f32 0.0, %v4854
        %v4856 = vpop.f32.mrb[0].mxu0
        %v4857 = vpop.f32.mrb[0].mxu0
        %v4858 = vadd.f32 0.0, %v4857
        %v4859 = vpop.f32.mrb[0].mxu0
        %4860 = vmatprep.mubr.bf16.mxu0 0
        %4861 = vmatmul.mubr.bf16.gmra.mrb[0].mxu0 %v4795
        %v4862 = vpop.f32.mrb[0].mxu0
        %v4863 = vadd.f32 0.0, %v4862
        %v4864 = vpop.f32.mrb[0].mxu0
        %v4865 = vpop.f32.mrb[0].mxu0
        %v4866 = vadd.f32 0.0, %v4865
        %v4867 = vpop.f32.mrb[0].mxu0
        %4868 = vmatprep.mubr.bf16.mxu0 0
        %4869 = vmatmul.mubr.bf16.gmra.mrb[0].mxu0 %v4798
        %v4870 = vpop.f32.mrb[0].mxu0
        %v4871 = vadd.f32 0.0, %v4870
        %v4872 = vpop.f32.mrb[0].mxu0
        %v4873 = vpop.f32.mrb[0].mxu0
        %v4874 = vadd.f32 0.0, %v4873
        %v4875 = vpop.f32.mrb[0].mxu0
        %4876 = vmatprep.mubr.bf16.mxu0 0
        %4877 = vmatmul.mubr.bf16.gmra.mrb[0].mxu0 %v4801
        %v4878 = vpop.f32.mrb[0].mxu0
        %v4879 = vadd.f32 0.0, %v4878
        %v4880 = vpop.f32.mrb[0].mxu0
        %v4881 = vpop.f32.mrb[0].mxu0
        %v4882 = vadd.f32 0.0, %v4881
        %v4883 = vpop.f32.mrb[0].mxu0
        %4884 = vmatprep.mubr.bf16.mxu0 0
        %4885 = vmatmul.mubr.bf16.gmra.mrb[0].mxu0 %v4804
        %v4886 = vpop.f32.mrb[0].mxu0
        %v4887 = vadd.f32 0.0, %v4886
        %v4888 = vpop.f32.mrb[0].mxu0
        %v4889 = vpop.f32.mrb[0].mxu0
        %v4890 = vadd.f32 0.0, %v4889
        %v4891 = vpop.f32.mrb[0].mxu0
        %4892 = vmatprep.mubr.bf16.mxu0 0
        %4893 = vmatmul.mubr.bf16.gmra.mrb[0].mxu0 %v4807
        %v4894 = vpop.f32.mrb[0].mxu0
        %v4895 = vadd.f32 0.0, %v4894
        %v4896 = vpop.f32.mrb[0].mxu0
        %v4897 = vpop.f32.mrb[0].mxu0
        %v4898 = vadd.f32 0.0, %v4897
        %v4899 = vpop.f32.mrb[0].mxu0
        %4900 = vmatprep.mubr.bf16.mxu0 0
        %4901 = vmatmul.mubr.bf16.gmra.mrb[0].mxu0 %v4810
        %v4902 = vpop.f32.mrb[0].mxu0
        %v4903 = vadd.f32 0.0, %v4902
        %v4904 = vpop.f32.mrb[0].mxu0
        %v4905 = vpop.f32.mrb[0].mxu0
        %v4906 = vadd.f32 0.0, %v4905
        %v4907 = vpop.f32.mrb[0].mxu0
        %4908 = vdwg.mxu0
        %v4910 = vsel %vm1959, %v4677, 0
        %v4913 = vsel %vm1959, %v4679, 0
        %v4916 = vsel %vm1959, %v4681, 0
        %v4919 = vsel %vm1959, %v4683, 0
        %v4922 = vsel %vm1959, %v4685, 0
        %v4925 = vsel %vm1959, %v4687, 0
        %v4928 = vsel %vm1959, %v4689, 0
        %v4931 = vsel %vm1959, %v4691, 0
        %4933 = vmatprep.subr.bf16.mxu0 0
        %4934 = vmatpush1.bf16.msra.mxu0 %v4780
        %4935 = vmatprep.subr.bf16.mxu0 0
        %4936 = vmatpush1.bf16.msra.mxu0 %v4781
        %4937 = vmatprep.subr.bf16.mxu0 0
        %4938 = vmatpush1.bf16.msra.mxu0 %v4782
        %4939 = vmatprep.subr.bf16.mxu0 0
        %4940 = vmatpush1.bf16.msra.mxu0 %v4783
        %4941 = vmatprep.subr.bf16.mxu0 0
        %4942 = vmatpush1.bf16.msra.mxu0 0
        %4943 = vmatprep.subr.bf16.mxu0 0
        %4944 = vmatpush1.bf16.msra.mxu0 0
        %4945 = vmatprep.subr.bf16.mxu0 0
        %4946 = vmatpush1.bf16.msra.mxu0 0
        %4947 = vmatprep.subr.bf16.mxu0 0
        %4948 = vmatpush1.bf16.msra.mxu0 0
        %4949 = vmatprep.subr.bf16.mxu0 0
        %4950 = vmatpush1.bf16.msra.mxu0 0
        %4951 = vmatprep.subr.bf16.mxu0 0
        %4952 = vmatpush1.bf16.msra.mxu0 0
        %4953 = vmatprep.subr.bf16.mxu0 0
        %4954 = vmatpush1.bf16.msra.mxu0 0
        %4955 = vmatprep.subr.bf16.mxu0 0
        %4956 = vmatpush1.bf16.msra.mxu0 0
        %4957 = vmatprep.subr.bf16.mxu0 0
        %4958 = vmatpush1.bf16.msra.mxu0 0
        %4959 = vmatprep.subr.bf16.mxu0 0
        %4960 = vmatpush1.bf16.msra.mxu0 0
        %4961 = vmatprep.subr.bf16.mxu0 0
        %4962 = vmatpush1.bf16.msra.mxu0 0
        %4963 = vmatprep.subr.bf16.mxu0 0
        %4964 = vmatpush1.bf16.msra.mxu0 0
        %4965 = vmatprep.mubr.bf16.mxu0 0
        %4966 = vmatmul.mubr.bf16.gmra.mrb[0].mxu0 %v4910
        %v4967 = vpop.f32.mrb[0].mxu0
        %v4968 = vadd.f32 0.0, %v4967
        %v4969 = vpop.f32.mrb[0].mxu0
        %v4970 = vpop.f32.mrb[0].mxu0
        %v4971 = vadd.f32 0.0, %v4970
        %v4972 = vpop.f32.mrb[0].mxu0
        %4973 = vmatprep.mubr.bf16.mxu0 0
        %4974 = vmatmul.mubr.bf16.gmra.mrb[0].mxu0 %v4913
        %v4975 = vpop.f32.mrb[0].mxu0
        %v4976 = vadd.f32 0.0, %v4975
        %v4977 = vpop.f32.mrb[0].mxu0
        %v4978 = vpop.f32.mrb[0].mxu0
        %v4979 = vadd.f32 0.0, %v4978
        %v4980 = vpop.f32.mrb[0].mxu0
        %4981 = vmatprep.mubr.bf16.mxu0 0
        %4982 = vmatmul.mubr.bf16.gmra.mrb[0].mxu0 %v4916
        %v4983 = vpop.f32.mrb[0].mxu0
        %v4984 = vadd.f32 0.0, %v4983
        %v4985 = vpop.f32.mrb[0].mxu0
        %v4986 = vpop.f32.mrb[0].mxu0
        %v4987 = vadd.f32 0.0, %v4986
        %v4988 = vpop.f32.mrb[0].mxu0
        %4989 = vmatprep.mubr.bf16.mxu0 0
        %4990 = vmatmul.mubr.bf16.gmra.mrb[0].mxu0 %v4919
        %v4991 = vpop.f32.mrb[0].mxu0
        %v4992 = vadd.f32 0.0, %v4991
        %v4993 = vpop.f32.mrb[0].mxu0
        %v4994 = vpop.f32.mrb[0].mxu0
        %v4995 = vadd.f32 0.0, %v4994
        %v4996 = vpop.f32.mrb[0].mxu0
        %4997 = vmatprep.mubr.bf16.mxu0 0
        %4998 = vmatmul.mubr.bf16.gmra.mrb[0].mxu0 %v4922
        %v4999 = vpop.f32.mrb[0].mxu0
        %v5000 = vadd.f32 0.0, %v4999
        %v5001 = vpop.f32.mrb[0].mxu0
        %v5002 = vpop.f32.mrb[0].mxu0
        %v5003 = vadd.f32 0.0, %v5002
        %v5004 = vpop.f32.mrb[0].mxu0
        %5005 = vmatprep.mubr.bf16.mxu0 0
        %5006 = vmatmul.mubr.bf16.gmra.mrb[0].mxu0 %v4925
        %v5007 = vpop.f32.mrb[0].mxu0
        %v5008 = vadd.f32 0.0, %v5007
        %v5009 = vpop.f32.mrb[0].mxu0
        %v5010 = vpop.f32.mrb[0].mxu0
        %v5011 = vadd.f32 0.0, %v5010
        %v5012 = vpop.f32.mrb[0].mxu0
        %5013 = vmatprep.mubr.bf16.mxu0 0
        %5014 = vmatmul.mubr.bf16.gmra.mrb[0].mxu0 %v4928
        %v5015 = vpop.f32.mrb[0].mxu0
        %v5016 = vadd.f32 0.0, %v5015
        %v5017 = vpop.f32.mrb[0].mxu0
        %v5018 = vpop.f32.mrb[0].mxu0
        %v5019 = vadd.f32 0.0, %v5018
        %v5020 = vpop.f32.mrb[0].mxu0
        %5021 = vmatprep.mubr.bf16.mxu0 0
        %5022 = vmatmul.mubr.bf16.gmra.mrb[0].mxu0 %v4931
        %v5023 = vpop.f32.mrb[0].mxu0
        %v5024 = vadd.f32 0.0, %v5023
        %v5025 = vpop.f32.mrb[0].mxu0
        %v5026 = vpop.f32.mrb[0].mxu0
        %v5027 = vadd.f32 0.0, %v5026
        %v5028 = vpop.f32.mrb[0].mxu0
        %5029 = vdwg.mxu0
        %5030 = vmax.xlane.f32.xlu0 %v4847
        %v5031 = vpop.xlane.xlu0 %5030
        %5032 = vmax.xlane.f32.xlu0 %v4850
        %v5033 = vpop.xlane.xlu0 %5032
        %5034 = vmax.xlane.f32.xlu0 %v4855
        %v5035 = vpop.xlane.xlu0 %5034
        %5036 = vmax.xlane.f32.xlu0 %v4858
        %v5037 = vpop.xlane.xlu0 %5036
        %5038 = vmax.xlane.f32.xlu0 %v4863
        %v5039 = vpop.xlane.xlu0 %5038
        %5040 = vmax.xlane.f32.xlu0 %v4866
        %v5041 = vpop.xlane.xlu0 %5040
        %5042 = vmax.xlane.f32.xlu0 %v4871
        %v5043 = vpop.xlane.xlu0 %5042
        %5044 = vmax.xlane.f32.xlu0 %v4874
        %v5045 = vpop.xlane.xlu0 %5044
        %5046 = vmax.xlane.f32.xlu0 %v4879
        %v5047 = vpop.xlane.xlu0 %5046
        %5048 = vmax.xlane.f32.xlu0 %v4882
        %v5049 = vpop.xlane.xlu0 %5048
        %5050 = vmax.xlane.f32.xlu0 %v4887
        %v5051 = vpop.xlane.xlu0 %5050
        %5052 = vmax.xlane.f32.xlu0 %v4890
        %v5053 = vpop.xlane.xlu0 %5052
        %5054 = vmax.xlane.f32.xlu0 %v4895
        %v5055 = vpop.xlane.xlu0 %5054
        %5056 = vmax.xlane.f32.xlu0 %v4898
        %v5057 = vpop.xlane.xlu0 %5056
        %5058 = vmax.xlane.f32.xlu0 %v4903
        %v5059 = vpop.xlane.xlu0 %5058
        %5060 = vmax.xlane.f32.xlu0 %v4906
        %v5061 = vpop.xlane.xlu0 %5060
        %5062 = vmax.xlane.f32.xlu0 %v4968
        %v5063 = vpop.xlane.xlu0 %5062
        %5064 = vmax.xlane.f32.xlu0 %v4971
        %v5065 = vpop.xlane.xlu0 %5064
        %5066 = vmax.xlane.f32.xlu0 %v4976
        %v5067 = vpop.xlane.xlu0 %5066
        %5068 = vmax.xlane.f32.xlu0 %v4979
        %v5069 = vpop.xlane.xlu0 %5068
        %5070 = vmax.xlane.f32.xlu0 %v4984
        %v5071 = vpop.xlane.xlu0 %5070
        %5072 = vmax.xlane.f32.xlu0 %v4987
        %v5073 = vpop.xlane.xlu0 %5072
        %5074 = vmax.xlane.f32.xlu0 %v4992
        %v5075 = vpop.xlane.xlu0 %5074
        %5076 = vmax.xlane.f32.xlu0 %v4995
        %v5077 = vpop.xlane.xlu0 %5076
        %5078 = vmax.xlane.f32.xlu0 %v5000
        %v5079 = vpop.xlane.xlu0 %5078
        %5080 = vmax.xlane.f32.xlu0 %v5003
        %v5081 = vpop.xlane.xlu0 %5080
        %5082 = vmax.xlane.f32.xlu0 %v5008
        %v5083 = vpop.xlane.xlu0 %5082
        %5084 = vmax.xlane.f32.xlu0 %v5011
        %v5085 = vpop.xlane.xlu0 %5084
        %5086 = vmax.xlane.f32.xlu0 %v5016
        %v5087 = vpop.xlane.xlu0 %5086
        %5088 = vmax.xlane.f32.xlu0 %v5019
        %v5089 = vpop.xlane.xlu0 %5088
        %5090 = vmax.xlane.f32.xlu0 %v5024
        %v5091 = vpop.xlane.xlu0 %5090
        %5092 = vmax.xlane.f32.xlu0 %v5027
        %v5093 = vpop.xlane.xlu0 %5092
        %v5094 = vsub.f32 %v4847, %v5031
        %v5095 = vsub.f32 %v4850, %v5033
        %v5096 = vsub.f32 %v4855, %v5035
        %v5097 = vsub.f32 %v4858, %v5037
        %v5098 = vsub.f32 %v4863, %v5039
        %v5099 = vsub.f32 %v4866, %v5041
        %v5100 = vsub.f32 %v4871, %v5043
        %v5101 = vsub.f32 %v4874, %v5045
        %v5102 = vsub.f32 %v4879, %v5047
        %v5103 = vsub.f32 %v4882, %v5049
        %v5104 = vsub.f32 %v4887, %v5051
        %v5105 = vsub.f32 %v4890, %v5053
        %v5106 = vsub.f32 %v4895, %v5055
        %v5107 = vsub.f32 %v4898, %v5057
        %v5108 = vsub.f32 %v4903, %v5059
        %v5109 = vsub.f32 %v4906, %v5061
        %v5110 = vsub.f32 %v4968, %v5063
        %v5111 = vsub.f32 %v4971, %v5065
        %v5112 = vsub.f32 %v4976, %v5067
        %v5113 = vsub.f32 %v4979, %v5069
        %v5114 = vsub.f32 %v4984, %v5071
        %v5115 = vsub.f32 %v4987, %v5073
        %v5116 = vsub.f32 %v4992, %v5075
        %v5117 = vsub.f32 %v4995, %v5077
        %v5118 = vsub.f32 %v5000, %v5079
        %v5119 = vsub.f32 %v5003, %v5081
        %v5120 = vsub.f32 %v5008, %v5083
        %v5121 = vsub.f32 %v5011, %v5085
        %v5122 = vsub.f32 %v5016, %v5087
        %v5123 = vsub.f32 %v5019, %v5089
        %v5124 = vsub.f32 %v5024, %v5091
        %v5125 = vsub.f32 %v5027, %v5093
        %v5126 = vmul.f32 %v5094, 1.442695
        %v5127 = vpow.pop %v5126
        %v5128 = vmul.f32 %v5095, 1.442695
        %v5129 = vpow.pop %v5128
        %v5130 = vmul.f32 %v5096, 1.442695
        %v5131 = vpow.pop %v5130
        %v5132 = vmul.f32 %v5097, 1.442695
        %v5133 = vpow.pop %v5132
        %v5134 = vmul.f32 %v5098, 1.442695
        %v5135 = vpow.pop %v5134
        %v5136 = vmul.f32 %v5099, 1.442695
        %v5137 = vpow.pop %v5136
        %v5138 = vmul.f32 %v5100, 1.442695
        %v5139 = vpow.pop %v5138
        %v5140 = vmul.f32 %v5101, 1.442695
        %v5141 = vpow.pop %v5140
        %v5142 = vmul.f32 %v5102, 1.442695
        %v5143 = vpow.pop %v5142
        %v5144 = vmul.f32 %v5103, 1.442695
        %v5145 = vpow.pop %v5144
        %v5146 = vmul.f32 %v5104, 1.442695
        %v5147 = vpow.pop %v5146
        %v5148 = vmul.f32 %v5105, 1.442695
        %v5149 = vpow.pop %v5148
        %v5150 = vmul.f32 %v5106, 1.442695
        %v5151 = vpow.pop %v5150
        %v5152 = vmul.f32 %v5107, 1.442695
        %v5153 = vpow.pop %v5152
        %v5154 = vmul.f32 %v5108, 1.442695
        %v5155 = vpow.pop %v5154
        %v5156 = vmul.f32 %v5109, 1.442695
        %v5157 = vpow.pop %v5156
        %v5158 = vmul.f32 %v5110, 1.442695
        %v5159 = vpow.pop %v5158
        %v5160 = vmul.f32 %v5111, 1.442695
        %v5161 = vpow.pop %v5160
        %v5162 = vmul.f32 %v5112, 1.442695
        %v5163 = vpow.pop %v5162
        %v5164 = vmul.f32 %v5113, 1.442695
        %v5165 = vpow.pop %v5164
        %v5166 = vmul.f32 %v5114, 1.442695
        %v5167 = vpow.pop %v5166
        %v5168 = vmul.f32 %v5115, 1.442695
        %v5169 = vpow.pop %v5168
        %v5170 = vmul.f32 %v5116, 1.442695
        %v5171 = vpow.pop %v5170
        %v5172 = vmul.f32 %v5117, 1.442695
        %v5173 = vpow.pop %v5172
        %v5174 = vmul.f32 %v5118, 1.442695
        %v5175 = vpow.pop %v5174
        %v5176 = vmul.f32 %v5119, 1.442695
        %v5177 = vpow.pop %v5176
        %v5178 = vmul.f32 %v5120, 1.442695
        %v5179 = vpow.pop %v5178
        %v5180 = vmul.f32 %v5121, 1.442695
        %v5181 = vpow.pop %v5180
        %v5182 = vmul.f32 %v5122, 1.442695
        %v5183 = vpow.pop %v5182
        %v5184 = vmul.f32 %v5123, 1.442695
        %v5185 = vpow.pop %v5184
        %v5186 = vmul.f32 %v5124, 1.442695
        %v5187 = vpow.pop %v5186
        %v5188 = vmul.f32 %v5125, 1.442695
        %v5189 = vpow.pop %v5188
        %5190 = vadd.xlane.f32.xlu0 %v5127
        %v5191 = vpop.xlane.xlu0 %5190
        %5192 = vadd.xlane.f32.xlu0 %v5129
        %v5193 = vpop.xlane.xlu0 %5192
        %5194 = vadd.xlane.f32.xlu0 %v5131
        %v5195 = vpop.xlane.xlu0 %5194
        %5196 = vadd.xlane.f32.xlu0 %v5133
        %v5197 = vpop.xlane.xlu0 %5196
        %5198 = vadd.xlane.f32.xlu0 %v5135
        %v5199 = vpop.xlane.xlu0 %5198
        %5200 = vadd.xlane.f32.xlu0 %v5137
        %v5201 = vpop.xlane.xlu0 %5200
        %5202 = vadd.xlane.f32.xlu0 %v5139
        %v5203 = vpop.xlane.xlu0 %5202
        %5204 = vadd.xlane.f32.xlu0 %v5141
        %v5205 = vpop.xlane.xlu0 %5204
        %5206 = vadd.xlane.f32.xlu0 %v5143
        %v5207 = vpop.xlane.xlu0 %5206
        %5208 = vadd.xlane.f32.xlu0 %v5145
        %v5209 = vpop.xlane.xlu0 %5208
        %5210 = vadd.xlane.f32.xlu0 %v5147
        %v5211 = vpop.xlane.xlu0 %5210
        %5212 = vadd.xlane.f32.xlu0 %v5149
        %v5213 = vpop.xlane.xlu0 %5212
        %5214 = vadd.xlane.f32.xlu0 %v5151
        %v5215 = vpop.xlane.xlu0 %5214
        %5216 = vadd.xlane.f32.xlu0 %v5153
        %v5217 = vpop.xlane.xlu0 %5216
        %5218 = vadd.xlane.f32.xlu0 %v5155
        %v5219 = vpop.xlane.xlu0 %5218
        %5220 = vadd.xlane.f32.xlu0 %v5157
        %v5221 = vpop.xlane.xlu0 %5220
        %5222 = vadd.xlane.f32.xlu0 %v5159
        %v5223 = vpop.xlane.xlu0 %5222
        %5224 = vadd.xlane.f32.xlu0 %v5161
        %v5225 = vpop.xlane.xlu0 %5224
        %5226 = vadd.xlane.f32.xlu0 %v5163
        %v5227 = vpop.xlane.xlu0 %5226
        %5228 = vadd.xlane.f32.xlu0 %v5165
        %v5229 = vpop.xlane.xlu0 %5228
        %5230 = vadd.xlane.f32.xlu0 %v5167
        %v5231 = vpop.xlane.xlu0 %5230
        %5232 = vadd.xlane.f32.xlu0 %v5169
        %v5233 = vpop.xlane.xlu0 %5232
        %5234 = vadd.xlane.f32.xlu0 %v5171
        %v5235 = vpop.xlane.xlu0 %5234
        %5236 = vadd.xlane.f32.xlu0 %v5173
        %v5237 = vpop.xlane.xlu0 %5236
        %5238 = vadd.xlane.f32.xlu0 %v5175
        %v5239 = vpop.xlane.xlu0 %5238
        %5240 = vadd.xlane.f32.xlu0 %v5177
        %v5241 = vpop.xlane.xlu0 %5240
        %5242 = vadd.xlane.f32.xlu0 %v5179
        %v5243 = vpop.xlane.xlu0 %5242
        %5244 = vadd.xlane.f32.xlu0 %v5181
        %v5245 = vpop.xlane.xlu0 %5244
        %5246 = vadd.xlane.f32.xlu0 %v5183
        %v5247 = vpop.xlane.xlu0 %5246
        %5248 = vadd.xlane.f32.xlu0 %v5185
        %v5249 = vpop.xlane.xlu0 %5248
        %5250 = vadd.xlane.f32.xlu0 %v5187
        %v5251 = vpop.xlane.xlu0 %5250
        %5252 = vadd.xlane.f32.xlu0 %v5189
        %v5253 = vpop.xlane.xlu0 %5252
        %v5254 = vrcp.pop %v5191
        %v5255 = vrcp.pop %v5193
        %v5256 = vrcp.pop %v5195
        %v5257 = vrcp.pop %v5197
        %v5258 = vrcp.pop %v5199
        %v5259 = vrcp.pop %v5201
        %v5260 = vrcp.pop %v5203
        %v5261 = vrcp.pop %v5205
        %v5262 = vrcp.pop %v5207
        %v5263 = vrcp.pop %v5209
        %v5264 = vrcp.pop %v5211
        %v5265 = vrcp.pop %v5213
        %v5266 = vrcp.pop %v5215
        %v5267 = vrcp.pop %v5217
        %v5268 = vrcp.pop %v5219
        %v5269 = vrcp.pop %v5221
        %v5270 = vrcp.pop %v5223
        %v5271 = vrcp.pop %v5225
        %v5272 = vrcp.pop %v5227
        %v5273 = vrcp.pop %v5229
        %v5274 = vrcp.pop %v5231
        %v5275 = vrcp.pop %v5233
        %v5276 = vrcp.pop %v5235
        %v5277 = vrcp.pop %v5237
        %v5278 = vrcp.pop %v5239
        %v5279 = vrcp.pop %v5241
        %v5280 = vrcp.pop %v5243
        %v5281 = vrcp.pop %v5245
        %v5282 = vrcp.pop %v5247
        %v5283 = vrcp.pop %v5249
        %v5284 = vrcp.pop %v5251
        %v5285 = vrcp.pop %v5253
        %v5286 = vmul.f32 %v5127, %v5254
        %v5287 = vmul.f32 %v5129, %v5255
        %v5288 = vmul.f32 %v5131, %v5256
        %v5289 = vmul.f32 %v5133, %v5257
        %v5290 = vmul.f32 %v5135, %v5258
        %v5291 = vmul.f32 %v5137, %v5259
        %v5292 = vmul.f32 %v5139, %v5260
        %v5293 = vmul.f32 %v5141, %v5261
        %v5294 = vmul.f32 %v5143, %v5262
        %v5295 = vmul.f32 %v5145, %v5263
        %v5296 = vmul.f32 %v5147, %v5264
        %v5297 = vmul.f32 %v5149, %v5265
        %v5298 = vmul.f32 %v5151, %v5266
        %v5299 = vmul.f32 %v5153, %v5267
        %v5300 = vmul.f32 %v5155, %v5268
        %v5301 = vmul.f32 %v5157, %v5269
        %v5302 = vmul.f32 %v5159, %v5270
        %v5303 = vmul.f32 %v5161, %v5271
        %v5304 = vmul.f32 %v5163, %v5272
        %v5305 = vmul.f32 %v5165, %v5273
        %v5306 = vmul.f32 %v5167, %v5274
        %v5307 = vmul.f32 %v5169, %v5275
        %v5308 = vmul.f32 %v5171, %v5276
        %v5309 = vmul.f32 %v5173, %v5277
        %v5310 = vmul.f32 %v5175, %v5278
        %v5311 = vmul.f32 %v5177, %v5279
        %v5312 = vmul.f32 %v5179, %v5280
        %v5313 = vmul.f32 %v5181, %v5281
        %v5314 = vmul.f32 %v5183, %v5282
        %v5315 = vmul.f32 %v5185, %v5283
        %v5316 = vmul.f32 %v5187, %v5284
        %v5317 = vmul.f32 %v5189, %v5285
        %v5318 = vpack.c.bf16 %v5287, %v5286
        %v5319 = vpack.c.bf16 %v5289, %v5288
        %v5320 = vpack.c.bf16 %v5291, %v5290
        %v5321 = vpack.c.bf16 %v5293, %v5292
        %v5322 = vpack.c.bf16 %v5295, %v5294
        %v5323 = vpack.c.bf16 %v5297, %v5296
        %v5324 = vpack.c.bf16 %v5299, %v5298
        %v5325 = vpack.c.bf16 %v5301, %v5300
        %v5326 = vpack.c.bf16 %v5303, %v5302
        %v5327 = vpack.c.bf16 %v5305, %v5304
        %v5328 = vpack.c.bf16 %v5307, %v5306
        %v5329 = vpack.c.bf16 %v5309, %v5308
        %v5330 = vpack.c.bf16 %v5311, %v5310
        %v5331 = vpack.c.bf16 %v5313, %v5312
        %v5332 = vpack.c.bf16 %v5315, %v5314
        %v5333 = vpack.c.bf16 %v5317, %v5316
        %5334 = vxpose.xlu0.c.b16.start [1/8] %v1831, 128
        %5335 = vxpose.xlu0.c.b16.cont [2/8] %v1832, 128
        %5336 = vxpose.xlu0.c.b16.cont [3/8] %v1833, 128
        %5337 = vxpose.xlu0.c.b16.cont [4/8] %v1834, 128
        %5338 = vxpose.xlu0.c.b16.cont [5/8] %v1835, 128
        %5339 = vxpose.xlu0.c.b16.cont [6/8] %v1836, 128
        %5340 = vxpose.xlu0.c.b16.cont [7/8] %v1837, 128
        %5341 = vxpose.xlu0.c.b16.end [8/8] %v1838, 128
        %v5342 = vpop.trf.xlu0
        %v5343 = vpop.trf.xlu0
        %v5344 = vpop.trf.xlu0
        %v5345 = vpop.trf.xlu0
        %v5346 = vpop.trf.xlu0
        %v5347 = vpop.trf.xlu0
        %v5348 = vpop.trf.xlu0
        %v5349 = vpop.trf.xlu0
        %5350 = vxpose.xlu0.c.b16.start [1/8] %v4733, 128
        %5351 = vxpose.xlu0.c.b16.cont [2/8] %v4735, 128
        %5352 = vxpose.xlu0.c.b16.cont [3/8] %v4737, 128
        %5353 = vxpose.xlu0.c.b16.cont [4/8] %v4739, 128
        %5354 = vxpose.xlu0.c.b16.cont [5/8] %v4741, 128
        %5355 = vxpose.xlu0.c.b16.cont [6/8] %v4743, 128
        %5356 = vxpose.xlu0.c.b16.cont [7/8] %v4745, 128
        %5357 = vxpose.xlu0.c.b16.end [8/8] %v4747, 128
        %v5358 = vpop.trf.xlu0
        %v5359 = vpop.trf.xlu0
        %v5360 = vpop.trf.xlu0
        %v5361 = vpop.trf.xlu0
        %v5362 = vpop.trf.xlu0
        %v5363 = vpop.trf.xlu0
        %v5364 = vpop.trf.xlu0
        %v5365 = vpop.trf.xlu0
        %5366 = vmatprep.subr.bf16.mxu0 0
        %5367 = vmatpush1.bf16.xpose.msra.mxu0 %v5318
        %5368 = vmatprep.subr.bf16.mxu0 0
        %5369 = vmatpush1.bf16.xpose.msra.mxu0 %v5319
        %5370 = vmatprep.subr.bf16.mxu0 0
        %5371 = vmatpush1.bf16.xpose.msra.mxu0 %v5320
        %5372 = vmatprep.subr.bf16.mxu0 0
        %5373 = vmatpush1.bf16.xpose.msra.mxu0 %v5321
        %5374 = vmatprep.subr.bf16.mxu0 0
        %5375 = vmatpush1.bf16.xpose.msra.mxu0 %v5322
        %5376 = vmatprep.subr.bf16.mxu0 0
        %5377 = vmatpush1.bf16.xpose.msra.mxu0 %v5323
        %5378 = vmatprep.subr.bf16.mxu0 0
        %5379 = vmatpush1.bf16.xpose.msra.mxu0 %v5324
        %5380 = vmatprep.subr.bf16.mxu0 0
        %5381 = vmatpush1.bf16.xpose.msra.mxu0 %v5325
        %5382 = vmatprep.subr.bf16.mxu0 0
        %5383 = vmatpush1.bf16.xpose.msra.mxu0 0
        %5384 = vmatprep.subr.bf16.mxu0 0
        %5385 = vmatpush1.bf16.xpose.msra.mxu0 0
        %5386 = vmatprep.subr.bf16.mxu0 0
        %5387 = vmatpush1.bf16.xpose.msra.mxu0 0
        %5388 = vmatprep.subr.bf16.mxu0 0
        %5389 = vmatpush1.bf16.xpose.msra.mxu0 0
        %5390 = vmatprep.subr.bf16.mxu0 0
        %5391 = vmatpush1.bf16.xpose.msra.mxu0 0
        %5392 = vmatprep.subr.bf16.mxu0 0
        %5393 = vmatpush1.bf16.xpose.msra.mxu0 0
        %5394 = vmatprep.subr.bf16.mxu0 0
        %5395 = vmatpush1.bf16.xpose.msra.mxu0 0
        %5396 = vmatprep.subr.bf16.mxu0 0
        %5397 = vmatpush1.bf16.xpose.msra.mxu0 0
        %5398 = vmatprep.mubr.bf16.mxu0 0
        %5399 = vmatmul.mubr.bf16.gmra.mrb[0].mxu0 %v5342
        %v5400 = vpop.f32.mrb[0].mxu0
        %v5401 = vadd.f32 0.0, %v5400
        %v5402 = vpop.f32.mrb[0].mxu0
        %v5403 = vpop.f32.mrb[0].mxu0
        %v5404 = vadd.f32 0.0, %v5403
        %v5405 = vpop.f32.mrb[0].mxu0
        %5406 = vmatprep.mubr.bf16.mxu0 0
        %5407 = vmatmul.mubr.bf16.gmra.mrb[0].mxu0 %v5343
        %v5408 = vpop.f32.mrb[0].mxu0
        %v5409 = vadd.f32 0.0, %v5408
        %v5410 = vpop.f32.mrb[0].mxu0
        %v5411 = vpop.f32.mrb[0].mxu0
        %v5412 = vadd.f32 0.0, %v5411
        %v5413 = vpop.f32.mrb[0].mxu0
        %5414 = vmatprep.mubr.bf16.mxu0 0
        %5415 = vmatmul.mubr.bf16.gmra.mrb[0].mxu0 %v5344
        %v5416 = vpop.f32.mrb[0].mxu0
        %v5417 = vadd.f32 0.0, %v5416
        %v5418 = vpop.f32.mrb[0].mxu0
        %v5419 = vpop.f32.mrb[0].mxu0
        %v5420 = vadd.f32 0.0, %v5419
        %v5421 = vpop.f32.mrb[0].mxu0
        %5422 = vmatprep.mubr.bf16.mxu0 0
        %5423 = vmatmul.mubr.bf16.gmra.mrb[0].mxu0 %v5345
        %v5424 = vpop.f32.mrb[0].mxu0
        %v5425 = vadd.f32 0.0, %v5424
        %v5426 = vpop.f32.mrb[0].mxu0
        %v5427 = vpop.f32.mrb[0].mxu0
        %v5428 = vadd.f32 0.0, %v5427
        %v5429 = vpop.f32.mrb[0].mxu0
        %5430 = vdwg.mxu0
        %5431 = vmatprep.subr.bf16.mxu0 0
        %5432 = vmatpush1.bf16.xpose.msra.mxu0 %v5326
        %5433 = vmatprep.subr.bf16.mxu0 0
        %5434 = vmatpush1.bf16.xpose.msra.mxu0 %v5327
        %5435 = vmatprep.subr.bf16.mxu0 0
        %5436 = vmatpush1.bf16.xpose.msra.mxu0 %v5328
        %5437 = vmatprep.subr.bf16.mxu0 0
        %5438 = vmatpush1.bf16.xpose.msra.mxu0 %v5329
        %5439 = vmatprep.subr.bf16.mxu0 0
        %5440 = vmatpush1.bf16.xpose.msra.mxu0 %v5330
        %5441 = vmatprep.subr.bf16.mxu0 0
        %5442 = vmatpush1.bf16.xpose.msra.mxu0 %v5331
        %5443 = vmatprep.subr.bf16.mxu0 0
        %5444 = vmatpush1.bf16.xpose.msra.mxu0 %v5332
        %5445 = vmatprep.subr.bf16.mxu0 0
        %5446 = vmatpush1.bf16.xpose.msra.mxu0 %v5333
        %5447 = vmatprep.subr.bf16.mxu0 0
        %5448 = vmatpush1.bf16.xpose.msra.mxu0 0
        %5449 = vmatprep.subr.bf16.mxu0 0
        %5450 = vmatpush1.bf16.xpose.msra.mxu0 0
        %5451 = vmatprep.subr.bf16.mxu0 0
        %5452 = vmatpush1.bf16.xpose.msra.mxu0 0
        %5453 = vmatprep.subr.bf16.mxu0 0
        %5454 = vmatpush1.bf16.xpose.msra.mxu0 0
        %5455 = vmatprep.subr.bf16.mxu0 0
        %5456 = vmatpush1.bf16.xpose.msra.mxu0 0
        %5457 = vmatprep.subr.bf16.mxu0 0
        %5458 = vmatpush1.bf16.xpose.msra.mxu0 0
        %5459 = vmatprep.subr.bf16.mxu0 0
        %5460 = vmatpush1.bf16.xpose.msra.mxu0 0
        %5461 = vmatprep.subr.bf16.mxu0 0
        %5462 = vmatpush1.bf16.xpose.msra.mxu0 0
        %5463 = vmatprep.mubr.bf16.mxu0 0
        %5464 = vmatmul.mubr.bf16.gmra.mrb[0].mxu0 %v5358
        %v5465 = vpop.f32.mrb[0].mxu0
        %v5466 = vadd.f32 0.0, %v5465
        %v5467 = vpop.f32.mrb[0].mxu0
        %v5468 = vpop.f32.mrb[0].mxu0
        %v5469 = vadd.f32 0.0, %v5468
        %v5470 = vpop.f32.mrb[0].mxu0
        %5471 = vmatprep.mubr.bf16.mxu0 0
        %5472 = vmatmul.mubr.bf16.gmra.mrb[0].mxu0 %v5359
        %v5473 = vpop.f32.mrb[0].mxu0
        %v5474 = vadd.f32 0.0, %v5473
        %v5475 = vpop.f32.mrb[0].mxu0
        %v5476 = vpop.f32.mrb[0].mxu0
        %v5477 = vadd.f32 0.0, %v5476
        %v5478 = vpop.f32.mrb[0].mxu0
        %5479 = vmatprep.mubr.bf16.mxu0 0
        %5480 = vmatmul.mubr.bf16.gmra.mrb[0].mxu0 %v5360
        %v5481 = vpop.f32.mrb[0].mxu0
        %v5482 = vadd.f32 0.0, %v5481
        %v5483 = vpop.f32.mrb[0].mxu0
        %v5484 = vpop.f32.mrb[0].mxu0
        %v5485 = vadd.f32 0.0, %v5484
        %v5486 = vpop.f32.mrb[0].mxu0
        %5487 = vmatprep.mubr.bf16.mxu0 0
        %5488 = vmatmul.mubr.bf16.gmra.mrb[0].mxu0 %v5361
        %v5489 = vpop.f32.mrb[0].mxu0
        %v5490 = vadd.f32 0.0, %v5489
        %v5491 = vpop.f32.mrb[0].mxu0
        %v5492 = vpop.f32.mrb[0].mxu0
        %v5493 = vadd.f32 0.0, %v5492
        %v5494 = vpop.f32.mrb[0].mxu0
        %5495 = vdwg.mxu0
        %5496 = vxpose.xlu0.b32.start [1/16] %v5401, 128
        %5497 = vxpose.xlu0.b32.cont [2/16] %v5404, 128
        %5498 = vxpose.xlu0.b32.cont [3/16] %v5409, 128
        %5499 = vxpose.xlu0.b32.cont [4/16] %v5412, 128
        %5500 = vxpose.xlu0.b32.cont [5/16] %v5417, 128
        %5501 = vxpose.xlu0.b32.cont [6/16] %v5420, 128
        %5502 = vxpose.xlu0.b32.cont [7/16] %v5425, 128
        %5503 = vxpose.xlu0.b32.cont [8/16] %v5428, 128
        %5504 = vxpose.xlu0.b32.cont [9/16] 0.0, 128
        %5505 = vxpose.xlu0.b32.cont [10/16] 0.0, 128
        %5506 = vxpose.xlu0.b32.cont [11/16] 0.0, 128
        %5507 = vxpose.xlu0.b32.cont [12/16] 0.0, 128
        %5508 = vxpose.xlu0.b32.cont [13/16] 0.0, 128
        %5509 = vxpose.xlu0.b32.cont [14/16] 0.0, 128
        %5510 = vxpose.xlu0.b32.cont [15/16] 0.0, 128
        %5511 = vxpose.xlu0.b32.end [16/16] 0.0, 128
        %v5512 = vpop.trf.xlu0
        %v5513 = vpop.trf.xlu0
        %v5514 = vpop.trf.xlu0
        %v5515 = vpop.trf.xlu0
        %v5516 = vpop.trf.xlu0
        %v5517 = vpop.trf.xlu0
        %v5518 = vpop.trf.xlu0
        %v5519 = vpop.trf.xlu0
        %v5520 = vpop.trf.xlu0
        %v5521 = vpop.trf.xlu0
        %v5522 = vpop.trf.xlu0
        %v5523 = vpop.trf.xlu0
        %v5524 = vpop.trf.xlu0
        %v5525 = vpop.trf.xlu0
        %v5526 = vpop.trf.xlu0
        %v5527 = vpop.trf.xlu0
        %5528 = vxpose.xlu0.b32.start [1/16] %v5466, 128
        %5529 = vxpose.xlu0.b32.cont [2/16] %v5469, 128
        %5530 = vxpose.xlu0.b32.cont [3/16] %v5474, 128
        %5531 = vxpose.xlu0.b32.cont [4/16] %v5477, 128
        %5532 = vxpose.xlu0.b32.cont [5/16] %v5482, 128
        %5533 = vxpose.xlu0.b32.cont [6/16] %v5485, 128
        %5534 = vxpose.xlu0.b32.cont [7/16] %v5490, 128
        %5535 = vxpose.xlu0.b32.cont [8/16] %v5493, 128
        %5536 = vxpose.xlu0.b32.cont [9/16] 0.0, 128
        %5537 = vxpose.xlu0.b32.cont [10/16] 0.0, 128
        %5538 = vxpose.xlu0.b32.cont [11/16] 0.0, 128
        %5539 = vxpose.xlu0.b32.cont [12/16] 0.0, 128
        %5540 = vxpose.xlu0.b32.cont [13/16] 0.0, 128
        %5541 = vxpose.xlu0.b32.cont [14/16] 0.0, 128
        %5542 = vxpose.xlu0.b32.cont [15/16] 0.0, 128
        %5543 = vxpose.xlu0.b32.end [16/16] 0.0, 128
        %v5544 = vpop.trf.xlu0
        %v5545 = vpop.trf.xlu0
        %v5546 = vpop.trf.xlu0
        %v5547 = vpop.trf.xlu0
        %v5548 = vpop.trf.xlu0
        %v5549 = vpop.trf.xlu0
        %v5550 = vpop.trf.xlu0
        %v5551 = vpop.trf.xlu0
        %v5552 = vpop.trf.xlu0
        %v5553 = vpop.trf.xlu0
        %v5554 = vpop.trf.xlu0
        %v5555 = vpop.trf.xlu0
        %v5556 = vpop.trf.xlu0
        %v5557 = vpop.trf.xlu0
        %v5558 = vpop.trf.xlu0
        %v5559 = vpop.trf.xlu0
        %v5560 = vcombine.high %v5512, 0.0
        %v5562 = vunpack.c.l.s4 1983009808
        %v5563 = vunpack.c.0.s8 %v5562
        %v5564 = vlaneseq
        %v5565 = vshrl.u32 %v5564, 7
        %v5566 = vsub.s32 %v5563, %v5565
        %v5567 = vrot.slane %v5512, %v5566
        %v5569 = vunpack.c.l.s4 1983009808
        %v5570 = vunpack.c.0.s8 %v5569
        %v5571 = vlaneseq
        %v5572 = vshrl.u32 %v5571, 7
        %v5573 = vsub.s32 %v5570, %v5572
        %v5574 = vrot.slane %v5560, %v5573
        %v5575 = vcombine.high %v5544, 0.0
        %v5577 = vunpack.c.l.s4 1983009808
        %v5578 = vunpack.c.0.s8 %v5577
        %v5579 = vlaneseq
        %v5580 = vshrl.u32 %v5579, 7
        %v5581 = vsub.s32 %v5578, %v5580
        %v5582 = vrot.slane %v5544, %v5581
        %v5584 = vunpack.c.l.s4 1983009808
        %v5585 = vunpack.c.0.s8 %v5584
        %v5586 = vlaneseq
        %v5587 = vshrl.u32 %v5586, 7
        %v5588 = vsub.s32 %v5585, %v5587
        %v5589 = vrot.slane %v5575, %v5588
        %v5590 = vcombine.low %v5567, %v5582
        %v5591 = vcombine.high %v5567, %v5582
        %v5593 = vunpack.c.l.s4 1934713408
        %v5594 = vunpack.c.0.s8 %v5593
        %v5595 = vlaneseq
        %v5596 = vshrl.u32 %v5595, 7
        %v5597 = vsub.s32 %v5594, %v5596
        %v5598 = vrot.slane %v5590, %v5597
        %v5600 = vunpack.c.l.s4 1934713408
        %v5601 = vunpack.c.0.s8 %v5600
        %v5602 = vlaneseq
        %v5603 = vshrl.u32 %v5602, 7
        %v5604 = vsub.s32 %v5601, %v5603
        %v5605 = vrot.slane %v5591, %v5604
        %v5606 = vcombine.low %v5574, %v5589
        %v5607 = vcombine.high %v5574, %v5589
        %v5609 = vunpack.c.l.s4 1934713408
        %v5610 = vunpack.c.0.s8 %v5609
        %v5611 = vlaneseq
        %v5612 = vshrl.u32 %v5611, 7
        %v5613 = vsub.s32 %v5610, %v5612
        %v5614 = vrot.slane %v5606, %v5613
        %v5616 = vunpack.c.l.s4 1934713408
        %v5617 = vunpack.c.0.s8 %v5616
        %v5618 = vlaneseq
        %v5619 = vshrl.u32 %v5618, 7
        %v5620 = vsub.s32 %v5617, %v5619
        %v5621 = vrot.slane %v5607, %v5620
        %v5622 = vcombine.high %v5598, 0.0
        %v5623 = vcombine.high %v5605, 0.0
        %v5624 = vcombine.high %v5614, 0.0
        %v5625 = vcombine.high %v5621, 0.0
        %v5626 = vcombine.high %v5513, 0.0
        %v5628 = vunpack.c.l.s4 1983009808
        %v5629 = vunpack.c.0.s8 %v5628
        %v5630 = vlaneseq
        %v5631 = vshrl.u32 %v5630, 7
        %v5632 = vsub.s32 %v5629, %v5631
        %v5633 = vrot.slane %v5513, %v5632
        %v5635 = vunpack.c.l.s4 1983009808
        %v5636 = vunpack.c.0.s8 %v5635
        %v5637 = vlaneseq
        %v5638 = vshrl.u32 %v5637, 7
        %v5639 = vsub.s32 %v5636, %v5638
        %v5640 = vrot.slane %v5626, %v5639
        %v5641 = vcombine.high %v5545, 0.0
        %v5643 = vunpack.c.l.s4 1983009808
        %v5644 = vunpack.c.0.s8 %v5643
        %v5645 = vlaneseq
        %v5646 = vshrl.u32 %v5645, 7
        %v5647 = vsub.s32 %v5644, %v5646
        %v5648 = vrot.slane %v5545, %v5647
        %v5650 = vunpack.c.l.s4 1983009808
        %v5651 = vunpack.c.0.s8 %v5650
        %v5652 = vlaneseq
        %v5653 = vshrl.u32 %v5652, 7
        %v5654 = vsub.s32 %v5651, %v5653
        %v5655 = vrot.slane %v5641, %v5654
        %v5656 = vcombine.low %v5633, %v5648
        %v5657 = vcombine.high %v5633, %v5648
        %v5659 = vunpack.c.l.s4 1934713408
        %v5660 = vunpack.c.0.s8 %v5659
        %v5661 = vlaneseq
        %v5662 = vshrl.u32 %v5661, 7
        %v5663 = vsub.s32 %v5660, %v5662
        %v5664 = vrot.slane %v5656, %v5663
        %v5666 = vunpack.c.l.s4 1934713408
        %v5667 = vunpack.c.0.s8 %v5666
        %v5668 = vlaneseq
        %v5669 = vshrl.u32 %v5668, 7
        %v5670 = vsub.s32 %v5667, %v5669
        %v5671 = vrot.slane %v5657, %v5670
        %v5672 = vcombine.low %v5640, %v5655
        %v5673 = vcombine.high %v5640, %v5655
        %v5675 = vunpack.c.l.s4 1934713408
        %v5676 = vunpack.c.0.s8 %v5675
        %v5677 = vlaneseq
        %v5678 = vshrl.u32 %v5677, 7
        %v5679 = vsub.s32 %v5676, %v5678
        %v5680 = vrot.slane %v5672, %v5679
        %v5682 = vunpack.c.l.s4 1934713408
        %v5683 = vunpack.c.0.s8 %v5682
        %v5684 = vlaneseq
        %v5685 = vshrl.u32 %v5684, 7
        %v5686 = vsub.s32 %v5683, %v5685
        %v5687 = vrot.slane %v5673, %v5686
        %v5688 = vcombine.high %v5664, 0.0
        %v5689 = vcombine.high %v5671, 0.0
        %v5690 = vcombine.high %v5680, 0.0
        %v5691 = vcombine.high %v5687, 0.0
        %v5692 = vcombine.high %v5514, 0.0
        %v5694 = vunpack.c.l.s4 1983009808
        %v5695 = vunpack.c.0.s8 %v5694
        %v5696 = vlaneseq
        %v5697 = vshrl.u32 %v5696, 7
        %v5698 = vsub.s32 %v5695, %v5697
        %v5699 = vrot.slane %v5514, %v5698
        %v5701 = vunpack.c.l.s4 1983009808
        %v5702 = vunpack.c.0.s8 %v5701
        %v5703 = vlaneseq
        %v5704 = vshrl.u32 %v5703, 7
        %v5705 = vsub.s32 %v5702, %v5704
        %v5706 = vrot.slane %v5692, %v5705
        %v5707 = vcombine.high %v5546, 0.0
        %v5709 = vunpack.c.l.s4 1983009808
        %v5710 = vunpack.c.0.s8 %v5709
        %v5711 = vlaneseq
        %v5712 = vshrl.u32 %v5711, 7
        %v5713 = vsub.s32 %v5710, %v5712
        %v5714 = vrot.slane %v5546, %v5713
        %v5716 = vunpack.c.l.s4 1983009808
        %v5717 = vunpack.c.0.s8 %v5716
        %v5718 = vlaneseq
        %v5719 = vshrl.u32 %v5718, 7
        %v5720 = vsub.s32 %v5717, %v5719
        %v5721 = vrot.slane %v5707, %v5720
        %v5722 = vcombine.low %v5699, %v5714
        %v5723 = vcombine.high %v5699, %v5714
        %v5725 = vunpack.c.l.s4 1934713408
        %v5726 = vunpack.c.0.s8 %v5725
        %v5727 = vlaneseq
        %v5728 = vshrl.u32 %v5727, 7
        %v5729 = vsub.s32 %v5726, %v5728
        %v5730 = vrot.slane %v5722, %v5729
        %v5732 = vunpack.c.l.s4 1934713408
        %v5733 = vunpack.c.0.s8 %v5732
        %v5734 = vlaneseq
        %v5735 = vshrl.u32 %v5734, 7
        %v5736 = vsub.s32 %v5733, %v5735
        %v5737 = vrot.slane %v5723, %v5736
        %v5738 = vcombine.low %v5706, %v5721
        %v5739 = vcombine.high %v5706, %v5721
        %v5741 = vunpack.c.l.s4 1934713408
        %v5742 = vunpack.c.0.s8 %v5741
        %v5743 = vlaneseq
        %v5744 = vshrl.u32 %v5743, 7
        %v5745 = vsub.s32 %v5742, %v5744
        %v5746 = vrot.slane %v5738, %v5745
        %v5748 = vunpack.c.l.s4 1934713408
        %v5749 = vunpack.c.0.s8 %v5748
        %v5750 = vlaneseq
        %v5751 = vshrl.u32 %v5750, 7
        %v5752 = vsub.s32 %v5749, %v5751
        %v5753 = vrot.slane %v5739, %v5752
        %v5754 = vcombine.high %v5730, 0.0
        %v5755 = vcombine.high %v5737, 0.0
        %v5756 = vcombine.high %v5746, 0.0
        %v5757 = vcombine.high %v5753, 0.0
        %v5758 = vcombine.high %v5515, 0.0
        %v5760 = vunpack.c.l.s4 1983009808
        %v5761 = vunpack.c.0.s8 %v5760
        %v5762 = vlaneseq
        %v5763 = vshrl.u32 %v5762, 7
        %v5764 = vsub.s32 %v5761, %v5763
        %v5765 = vrot.slane %v5515, %v5764
        %v5767 = vunpack.c.l.s4 1983009808
        %v5768 = vunpack.c.0.s8 %v5767
        %v5769 = vlaneseq
        %v5770 = vshrl.u32 %v5769, 7
        %v5771 = vsub.s32 %v5768, %v5770
        %v5772 = vrot.slane %v5758, %v5771
        %v5773 = vcombine.high %v5547, 0.0
        %v5775 = vunpack.c.l.s4 1983009808
        %v5776 = vunpack.c.0.s8 %v5775
        %v5777 = vlaneseq
        %v5778 = vshrl.u32 %v5777, 7
        %v5779 = vsub.s32 %v5776, %v5778
        %v5780 = vrot.slane %v5547, %v5779
        %v5782 = vunpack.c.l.s4 1983009808
        %v5783 = vunpack.c.0.s8 %v5782
        %v5784 = vlaneseq
        %v5785 = vshrl.u32 %v5784, 7
        %v5786 = vsub.s32 %v5783, %v5785
        %v5787 = vrot.slane %v5773, %v5786
        %v5788 = vcombine.low %v5765, %v5780
        %v5789 = vcombine.high %v5765, %v5780
        %v5791 = vunpack.c.l.s4 1934713408
        %v5792 = vunpack.c.0.s8 %v5791
        %v5793 = vlaneseq
        %v5794 = vshrl.u32 %v5793, 7
        %v5795 = vsub.s32 %v5792, %v5794
        %v5796 = vrot.slane %v5788, %v5795
        %v5798 = vunpack.c.l.s4 1934713408
        %v5799 = vunpack.c.0.s8 %v5798
        %v5800 = vlaneseq
        %v5801 = vshrl.u32 %v5800, 7
        %v5802 = vsub.s32 %v5799, %v5801
        %v5803 = vrot.slane %v5789, %v5802
        %v5804 = vcombine.low %v5772, %v5787
        %v5805 = vcombine.high %v5772, %v5787
        %v5807 = vunpack.c.l.s4 1934713408
        %v5808 = vunpack.c.0.s8 %v5807
        %v5809 = vlaneseq
        %v5810 = vshrl.u32 %v5809, 7
        %v5811 = vsub.s32 %v5808, %v5810
        %v5812 = vrot.slane %v5804, %v5811
        %v5814 = vunpack.c.l.s4 1934713408
        %v5815 = vunpack.c.0.s8 %v5814
        %v5816 = vlaneseq
        %v5817 = vshrl.u32 %v5816, 7
        %v5818 = vsub.s32 %v5815, %v5817
        %v5819 = vrot.slane %v5805, %v5818
        %v5820 = vcombine.high %v5796, 0.0
        %v5821 = vcombine.high %v5803, 0.0
        %v5822 = vcombine.high %v5812, 0.0
        %v5823 = vcombine.high %v5819, 0.0
        %v5824 = vcombine.high %v5516, 0.0
        %v5826 = vunpack.c.l.s4 1983009808
        %v5827 = vunpack.c.0.s8 %v5826
        %v5828 = vlaneseq
        %v5829 = vshrl.u32 %v5828, 7
        %v5830 = vsub.s32 %v5827, %v5829
        %v5831 = vrot.slane %v5516, %v5830
        %v5833 = vunpack.c.l.s4 1983009808
        %v5834 = vunpack.c.0.s8 %v5833
        %v5835 = vlaneseq
        %v5836 = vshrl.u32 %v5835, 7
        %v5837 = vsub.s32 %v5834, %v5836
        %v5838 = vrot.slane %v5824, %v5837
        %v5839 = vcombine.high %v5548, 0.0
        %v5841 = vunpack.c.l.s4 1983009808
        %v5842 = vunpack.c.0.s8 %v5841
        %v5843 = vlaneseq
        %v5844 = vshrl.u32 %v5843, 7
        %v5845 = vsub.s32 %v5842, %v5844
        %v5846 = vrot.slane %v5548, %v5845
        %v5848 = vunpack.c.l.s4 1983009808
        %v5849 = vunpack.c.0.s8 %v5848
        %v5850 = vlaneseq
        %v5851 = vshrl.u32 %v5850, 7
        %v5852 = vsub.s32 %v5849, %v5851
        %v5853 = vrot.slane %v5839, %v5852
        %v5854 = vcombine.low %v5831, %v5846
        %v5855 = vcombine.high %v5831, %v5846
        %v5857 = vunpack.c.l.s4 1934713408
        %v5858 = vunpack.c.0.s8 %v5857
        %v5859 = vlaneseq
        %v5860 = vshrl.u32 %v5859, 7
        %v5861 = vsub.s32 %v5858, %v5860
        %v5862 = vrot.slane %v5854, %v5861
        %v5864 = vunpack.c.l.s4 1934713408
        %v5865 = vunpack.c.0.s8 %v5864
        %v5866 = vlaneseq
        %v5867 = vshrl.u32 %v5866, 7
        %v5868 = vsub.s32 %v5865, %v5867
        %v5869 = vrot.slane %v5855, %v5868
        %v5870 = vcombine.low %v5838, %v5853
        %v5871 = vcombine.high %v5838, %v5853
        %v5873 = vunpack.c.l.s4 1934713408
        %v5874 = vunpack.c.0.s8 %v5873
        %v5875 = vlaneseq
        %v5876 = vshrl.u32 %v5875, 7
        %v5877 = vsub.s32 %v5874, %v5876
        %v5878 = vrot.slane %v5870, %v5877
        %v5880 = vunpack.c.l.s4 1934713408
        %v5881 = vunpack.c.0.s8 %v5880
        %v5882 = vlaneseq
        %v5883 = vshrl.u32 %v5882, 7
        %v5884 = vsub.s32 %v5881, %v5883
        %v5885 = vrot.slane %v5871, %v5884
        %v5886 = vcombine.high %v5862, 0.0
        %v5887 = vcombine.high %v5869, 0.0
        %v5888 = vcombine.high %v5878, 0.0
        %v5889 = vcombine.high %v5885, 0.0
        %v5890 = vcombine.high %v5517, 0.0
        %v5892 = vunpack.c.l.s4 1983009808
        %v5893 = vunpack.c.0.s8 %v5892
        %v5894 = vlaneseq
        %v5895 = vshrl.u32 %v5894, 7
        %v5896 = vsub.s32 %v5893, %v5895
        %v5897 = vrot.slane %v5517, %v5896
        %v5899 = vunpack.c.l.s4 1983009808
        %v5900 = vunpack.c.0.s8 %v5899
        %v5901 = vlaneseq
        %v5902 = vshrl.u32 %v5901, 7
        %v5903 = vsub.s32 %v5900, %v5902
        %v5904 = vrot.slane %v5890, %v5903
        %v5905 = vcombine.high %v5549, 0.0
        %v5907 = vunpack.c.l.s4 1983009808
        %v5908 = vunpack.c.0.s8 %v5907
        %v5909 = vlaneseq
        %v5910 = vshrl.u32 %v5909, 7
        %v5911 = vsub.s32 %v5908, %v5910
        %v5912 = vrot.slane %v5549, %v5911
        %v5914 = vunpack.c.l.s4 1983009808
        %v5915 = vunpack.c.0.s8 %v5914
        %v5916 = vlaneseq
        %v5917 = vshrl.u32 %v5916, 7
        %v5918 = vsub.s32 %v5915, %v5917
        %v5919 = vrot.slane %v5905, %v5918
        %v5920 = vcombine.low %v5897, %v5912
        %v5921 = vcombine.high %v5897, %v5912
        %v5923 = vunpack.c.l.s4 1934713408
        %v5924 = vunpack.c.0.s8 %v5923
        %v5925 = vlaneseq
        %v5926 = vshrl.u32 %v5925, 7
        %v5927 = vsub.s32 %v5924, %v5926
        %v5928 = vrot.slane %v5920, %v5927
        %v5930 = vunpack.c.l.s4 1934713408
        %v5931 = vunpack.c.0.s8 %v5930
        %v5932 = vlaneseq
        %v5933 = vshrl.u32 %v5932, 7
        %v5934 = vsub.s32 %v5931, %v5933
        %v5935 = vrot.slane %v5921, %v5934
        %v5936 = vcombine.low %v5904, %v5919
        %v5937 = vcombine.high %v5904, %v5919
        %v5939 = vunpack.c.l.s4 1934713408
        %v5940 = vunpack.c.0.s8 %v5939
        %v5941 = vlaneseq
        %v5942 = vshrl.u32 %v5941, 7
        %v5943 = vsub.s32 %v5940, %v5942
        %v5944 = vrot.slane %v5936, %v5943
        %v5946 = vunpack.c.l.s4 1934713408
        %v5947 = vunpack.c.0.s8 %v5946
        %v5948 = vlaneseq
        %v5949 = vshrl.u32 %v5948, 7
        %v5950 = vsub.s32 %v5947, %v5949
        %v5951 = vrot.slane %v5937, %v5950
        %v5952 = vcombine.high %v5928, 0.0
        %v5953 = vcombine.high %v5935, 0.0
        %v5954 = vcombine.high %v5944, 0.0
        %v5955 = vcombine.high %v5951, 0.0
        %v5956 = vcombine.high %v5518, 0.0
        %v5958 = vunpack.c.l.s4 1983009808
        %v5959 = vunpack.c.0.s8 %v5958
        %v5960 = vlaneseq
        %v5961 = vshrl.u32 %v5960, 7
        %v5962 = vsub.s32 %v5959, %v5961
        %v5963 = vrot.slane %v5518, %v5962
        %v5965 = vunpack.c.l.s4 1983009808
        %v5966 = vunpack.c.0.s8 %v5965
        %v5967 = vlaneseq
        %v5968 = vshrl.u32 %v5967, 7
        %v5969 = vsub.s32 %v5966, %v5968
        %v5970 = vrot.slane %v5956, %v5969
        %v5971 = vcombine.high %v5550, 0.0
        %v5973 = vunpack.c.l.s4 1983009808
        %v5974 = vunpack.c.0.s8 %v5973
        %v5975 = vlaneseq
        %v5976 = vshrl.u32 %v5975, 7
        %v5977 = vsub.s32 %v5974, %v5976
        %v5978 = vrot.slane %v5550, %v5977
        %v5980 = vunpack.c.l.s4 1983009808
        %v5981 = vunpack.c.0.s8 %v5980
        %v5982 = vlaneseq
        %v5983 = vshrl.u32 %v5982, 7
        %v5984 = vsub.s32 %v5981, %v5983
        %v5985 = vrot.slane %v5971, %v5984
        %v5986 = vcombine.low %v5963, %v5978
        %v5987 = vcombine.high %v5963, %v5978
        %v5989 = vunpack.c.l.s4 1934713408
        %v5990 = vunpack.c.0.s8 %v5989
        %v5991 = vlaneseq
        %v5992 = vshrl.u32 %v5991, 7
        %v5993 = vsub.s32 %v5990, %v5992
        %v5994 = vrot.slane %v5986, %v5993
        %v5996 = vunpack.c.l.s4 1934713408
        %v5997 = vunpack.c.0.s8 %v5996
        %v5998 = vlaneseq
        %v5999 = vshrl.u32 %v5998, 7
        %v6000 = vsub.s32 %v5997, %v5999
        %v6001 = vrot.slane %v5987, %v6000
        %v6002 = vcombine.low %v5970, %v5985
        %v6003 = vcombine.high %v5970, %v5985
        %v6005 = vunpack.c.l.s4 1934713408
        %v6006 = vunpack.c.0.s8 %v6005
        %v6007 = vlaneseq
        %v6008 = vshrl.u32 %v6007, 7
        %v6009 = vsub.s32 %v6006, %v6008
        %v6010 = vrot.slane %v6002, %v6009
        %v6012 = vunpack.c.l.s4 1934713408
        %v6013 = vunpack.c.0.s8 %v6012
        %v6014 = vlaneseq
        %v6015 = vshrl.u32 %v6014, 7
        %v6016 = vsub.s32 %v6013, %v6015
        %v6017 = vrot.slane %v6003, %v6016
        %v6018 = vcombine.high %v5994, 0.0
        %v6019 = vcombine.high %v6001, 0.0
        %v6020 = vcombine.high %v6010, 0.0
        %v6021 = vcombine.high %v6017, 0.0
        %v6022 = vcombine.high %v5519, 0.0
        %v6024 = vunpack.c.l.s4 1983009808
        %v6025 = vunpack.c.0.s8 %v6024
        %v6026 = vlaneseq
        %v6027 = vshrl.u32 %v6026, 7
        %v6028 = vsub.s32 %v6025, %v6027
        %v6029 = vrot.slane %v5519, %v6028
        %v6031 = vunpack.c.l.s4 1983009808
        %v6032 = vunpack.c.0.s8 %v6031
        %v6033 = vlaneseq
        %v6034 = vshrl.u32 %v6033, 7
        %v6035 = vsub.s32 %v6032, %v6034
        %v6036 = vrot.slane %v6022, %v6035
        %v6037 = vcombine.high %v5551, 0.0
        %v6039 = vunpack.c.l.s4 1983009808
        %v6040 = vunpack.c.0.s8 %v6039
        %v6041 = vlaneseq
        %v6042 = vshrl.u32 %v6041, 7
        %v6043 = vsub.s32 %v6040, %v6042
        %v6044 = vrot.slane %v5551, %v6043
        %v6046 = vunpack.c.l.s4 1983009808
        %v6047 = vunpack.c.0.s8 %v6046
        %v6048 = vlaneseq
        %v6049 = vshrl.u32 %v6048, 7
        %v6050 = vsub.s32 %v6047, %v6049
        %v6051 = vrot.slane %v6037, %v6050
        %v6052 = vcombine.low %v6029, %v6044
        %v6053 = vcombine.high %v6029, %v6044
        %v6055 = vunpack.c.l.s4 1934713408
        %v6056 = vunpack.c.0.s8 %v6055
        %v6057 = vlaneseq
        %v6058 = vshrl.u32 %v6057, 7
        %v6059 = vsub.s32 %v6056, %v6058
        %v6060 = vrot.slane %v6052, %v6059
        %v6062 = vunpack.c.l.s4 1934713408
        %v6063 = vunpack.c.0.s8 %v6062
        %v6064 = vlaneseq
        %v6065 = vshrl.u32 %v6064, 7
        %v6066 = vsub.s32 %v6063, %v6065
        %v6067 = vrot.slane %v6053, %v6066
        %v6068 = vcombine.low %v6036, %v6051
        %v6069 = vcombine.high %v6036, %v6051
        %v6071 = vunpack.c.l.s4 1934713408
        %v6072 = vunpack.c.0.s8 %v6071
        %v6073 = vlaneseq
        %v6074 = vshrl.u32 %v6073, 7
        %v6075 = vsub.s32 %v6072, %v6074
        %v6076 = vrot.slane %v6068, %v6075
        %v6078 = vunpack.c.l.s4 1934713408
        %v6079 = vunpack.c.0.s8 %v6078
        %v6080 = vlaneseq
        %v6081 = vshrl.u32 %v6080, 7
        %v6082 = vsub.s32 %v6079, %v6081
        %v6083 = vrot.slane %v6069, %v6082
        %v6084 = vcombine.high %v6060, 0.0
        %v6085 = vcombine.high %v6067, 0.0
        %v6086 = vcombine.high %v6076, 0.0
        %v6087 = vcombine.high %v6083, 0.0
        %v6088 = vcombine.high %v5520, 0.0
        %v6090 = vunpack.c.l.s4 1983009808
        %v6091 = vunpack.c.0.s8 %v6090
        %v6092 = vlaneseq
        %v6093 = vshrl.u32 %v6092, 7
        %v6094 = vsub.s32 %v6091, %v6093
        %v6095 = vrot.slane %v5520, %v6094
        %v6097 = vunpack.c.l.s4 1983009808
        %v6098 = vunpack.c.0.s8 %v6097
        %v6099 = vlaneseq
        %v6100 = vshrl.u32 %v6099, 7
        %v6101 = vsub.s32 %v6098, %v6100
        %v6102 = vrot.slane %v6088, %v6101
        %v6103 = vcombine.high %v5552, 0.0
        %v6105 = vunpack.c.l.s4 1983009808
        %v6106 = vunpack.c.0.s8 %v6105
        %v6107 = vlaneseq
        %v6108 = vshrl.u32 %v6107, 7
        %v6109 = vsub.s32 %v6106, %v6108
        %v6110 = vrot.slane %v5552, %v6109
        %v6112 = vunpack.c.l.s4 1983009808
        %v6113 = vunpack.c.0.s8 %v6112
        %v6114 = vlaneseq
        %v6115 = vshrl.u32 %v6114, 7
        %v6116 = vsub.s32 %v6113, %v6115
        %v6117 = vrot.slane %v6103, %v6116
        %v6118 = vcombine.low %v6095, %v6110
        %v6119 = vcombine.high %v6095, %v6110
        %v6121 = vunpack.c.l.s4 1934713408
        %v6122 = vunpack.c.0.s8 %v6121
        %v6123 = vlaneseq
        %v6124 = vshrl.u32 %v6123, 7
        %v6125 = vsub.s32 %v6122, %v6124
        %v6126 = vrot.slane %v6118, %v6125
        %v6128 = vunpack.c.l.s4 1934713408
        %v6129 = vunpack.c.0.s8 %v6128
        %v6130 = vlaneseq
        %v6131 = vshrl.u32 %v6130, 7
        %v6132 = vsub.s32 %v6129, %v6131
        %v6133 = vrot.slane %v6119, %v6132
        %v6134 = vcombine.low %v6102, %v6117
        %v6135 = vcombine.high %v6102, %v6117
        %v6137 = vunpack.c.l.s4 1934713408
        %v6138 = vunpack.c.0.s8 %v6137
        %v6139 = vlaneseq
        %v6140 = vshrl.u32 %v6139, 7
        %v6141 = vsub.s32 %v6138, %v6140
        %v6142 = vrot.slane %v6134, %v6141
        %v6144 = vunpack.c.l.s4 1934713408
        %v6145 = vunpack.c.0.s8 %v6144
        %v6146 = vlaneseq
        %v6147 = vshrl.u32 %v6146, 7
        %v6148 = vsub.s32 %v6145, %v6147
        %v6149 = vrot.slane %v6135, %v6148
        %v6150 = vcombine.high %v6126, 0.0
        %v6151 = vcombine.high %v6133, 0.0
        %v6152 = vcombine.high %v6142, 0.0
        %v6153 = vcombine.high %v6149, 0.0
        %v6154 = vcombine.high %v5521, 0.0
        %v6156 = vunpack.c.l.s4 1983009808
        %v6157 = vunpack.c.0.s8 %v6156
        %v6158 = vlaneseq
        %v6159 = vshrl.u32 %v6158, 7
        %v6160 = vsub.s32 %v6157, %v6159
        %v6161 = vrot.slane %v5521, %v6160
        %v6163 = vunpack.c.l.s4 1983009808
        %v6164 = vunpack.c.0.s8 %v6163
        %v6165 = vlaneseq
        %v6166 = vshrl.u32 %v6165, 7
        %v6167 = vsub.s32 %v6164, %v6166
        %v6168 = vrot.slane %v6154, %v6167
        %v6169 = vcombine.high %v5553, 0.0
        %v6171 = vunpack.c.l.s4 1983009808
        %v6172 = vunpack.c.0.s8 %v6171
        %v6173 = vlaneseq
        %v6174 = vshrl.u32 %v6173, 7
        %v6175 = vsub.s32 %v6172, %v6174
        %v6176 = vrot.slane %v5553, %v6175
        %v6178 = vunpack.c.l.s4 1983009808
        %v6179 = vunpack.c.0.s8 %v6178
        %v6180 = vlaneseq
        %v6181 = vshrl.u32 %v6180, 7
        %v6182 = vsub.s32 %v6179, %v6181
        %v6183 = vrot.slane %v6169, %v6182
        %v6184 = vcombine.low %v6161, %v6176
        %v6185 = vcombine.high %v6161, %v6176
        %v6187 = vunpack.c.l.s4 1934713408
        %v6188 = vunpack.c.0.s8 %v6187
        %v6189 = vlaneseq
        %v6190 = vshrl.u32 %v6189, 7
        %v6191 = vsub.s32 %v6188, %v6190
        %v6192 = vrot.slane %v6184, %v6191
        %v6194 = vunpack.c.l.s4 1934713408
        %v6195 = vunpack.c.0.s8 %v6194
        %v6196 = vlaneseq
        %v6197 = vshrl.u32 %v6196, 7
        %v6198 = vsub.s32 %v6195, %v6197
        %v6199 = vrot.slane %v6185, %v6198
        %v6200 = vcombine.low %v6168, %v6183
        %v6201 = vcombine.high %v6168, %v6183
        %v6203 = vunpack.c.l.s4 1934713408
        %v6204 = vunpack.c.0.s8 %v6203
        %v6205 = vlaneseq
        %v6206 = vshrl.u32 %v6205, 7
        %v6207 = vsub.s32 %v6204, %v6206
        %v6208 = vrot.slane %v6200, %v6207
        %v6210 = vunpack.c.l.s4 1934713408
        %v6211 = vunpack.c.0.s8 %v6210
        %v6212 = vlaneseq
        %v6213 = vshrl.u32 %v6212, 7
        %v6214 = vsub.s32 %v6211, %v6213
        %v6215 = vrot.slane %v6201, %v6214
        %v6216 = vcombine.high %v6192, 0.0
        %v6217 = vcombine.high %v6199, 0.0
        %v6218 = vcombine.high %v6208, 0.0
        %v6219 = vcombine.high %v6215, 0.0
        %v6220 = vcombine.high %v5522, 0.0
        %v6222 = vunpack.c.l.s4 1983009808
        %v6223 = vunpack.c.0.s8 %v6222
        %v6224 = vlaneseq
        %v6225 = vshrl.u32 %v6224, 7
        %v6226 = vsub.s32 %v6223, %v6225
        %v6227 = vrot.slane %v5522, %v6226
        %v6229 = vunpack.c.l.s4 1983009808
        %v6230 = vunpack.c.0.s8 %v6229
        %v6231 = vlaneseq
        %v6232 = vshrl.u32 %v6231, 7
        %v6233 = vsub.s32 %v6230, %v6232
        %v6234 = vrot.slane %v6220, %v6233
        %v6235 = vcombine.high %v5554, 0.0
        %v6237 = vunpack.c.l.s4 1983009808
        %v6238 = vunpack.c.0.s8 %v6237
        %v6239 = vlaneseq
        %v6240 = vshrl.u32 %v6239, 7
        %v6241 = vsub.s32 %v6238, %v6240
        %v6242 = vrot.slane %v5554, %v6241
        %v6244 = vunpack.c.l.s4 1983009808
        %v6245 = vunpack.c.0.s8 %v6244
        %v6246 = vlaneseq
        %v6247 = vshrl.u32 %v6246, 7
        %v6248 = vsub.s32 %v6245, %v6247
        %v6249 = vrot.slane %v6235, %v6248
        %v6250 = vcombine.low %v6227, %v6242
        %v6251 = vcombine.high %v6227, %v6242
        %v6253 = vunpack.c.l.s4 1934713408
        %v6254 = vunpack.c.0.s8 %v6253
        %v6255 = vlaneseq
        %v6256 = vshrl.u32 %v6255, 7
        %v6257 = vsub.s32 %v6254, %v6256
        %v6258 = vrot.slane %v6250, %v6257
        %v6260 = vunpack.c.l.s4 1934713408
        %v6261 = vunpack.c.0.s8 %v6260
        %v6262 = vlaneseq
        %v6263 = vshrl.u32 %v6262, 7
        %v6264 = vsub.s32 %v6261, %v6263
        %v6265 = vrot.slane %v6251, %v6264
        %v6266 = vcombine.low %v6234, %v6249
        %v6267 = vcombine.high %v6234, %v6249
        %v6269 = vunpack.c.l.s4 1934713408
        %v6270 = vunpack.c.0.s8 %v6269
        %v6271 = vlaneseq
        %v6272 = vshrl.u32 %v6271, 7
        %v6273 = vsub.s32 %v6270, %v6272
        %v6274 = vrot.slane %v6266, %v6273
        %v6276 = vunpack.c.l.s4 1934713408
        %v6277 = vunpack.c.0.s8 %v6276
        %v6278 = vlaneseq
        %v6279 = vshrl.u32 %v6278, 7
        %v6280 = vsub.s32 %v6277, %v6279
        %v6281 = vrot.slane %v6267, %v6280
        %v6282 = vcombine.high %v6258, 0.0
        %v6283 = vcombine.high %v6265, 0.0
        %v6284 = vcombine.high %v6274, 0.0
        %v6285 = vcombine.high %v6281, 0.0
        %v6286 = vcombine.high %v5523, 0.0
        %v6288 = vunpack.c.l.s4 1983009808
        %v6289 = vunpack.c.0.s8 %v6288
        %v6290 = vlaneseq
        %v6291 = vshrl.u32 %v6290, 7
        %v6292 = vsub.s32 %v6289, %v6291
        %v6293 = vrot.slane %v5523, %v6292
        %v6295 = vunpack.c.l.s4 1983009808
        %v6296 = vunpack.c.0.s8 %v6295
        %v6297 = vlaneseq
        %v6298 = vshrl.u32 %v6297, 7
        %v6299 = vsub.s32 %v6296, %v6298
        %v6300 = vrot.slane %v6286, %v6299
        %v6301 = vcombine.high %v5555, 0.0
        %v6303 = vunpack.c.l.s4 1983009808
        %v6304 = vunpack.c.0.s8 %v6303
        %v6305 = vlaneseq
        %v6306 = vshrl.u32 %v6305, 7
        %v6307 = vsub.s32 %v6304, %v6306
        %v6308 = vrot.slane %v5555, %v6307
        %v6310 = vunpack.c.l.s4 1983009808
        %v6311 = vunpack.c.0.s8 %v6310
        %v6312 = vlaneseq
        %v6313 = vshrl.u32 %v6312, 7
        %v6314 = vsub.s32 %v6311, %v6313
        %v6315 = vrot.slane %v6301, %v6314
        %v6316 = vcombine.low %v6293, %v6308
        %v6317 = vcombine.high %v6293, %v6308
        %v6319 = vunpack.c.l.s4 1934713408
        %v6320 = vunpack.c.0.s8 %v6319
        %v6321 = vlaneseq
        %v6322 = vshrl.u32 %v6321, 7
        %v6323 = vsub.s32 %v6320, %v6322
        %v6324 = vrot.slane %v6316, %v6323
        %v6326 = vunpack.c.l.s4 1934713408
        %v6327 = vunpack.c.0.s8 %v6326
        %v6328 = vlaneseq
        %v6329 = vshrl.u32 %v6328, 7
        %v6330 = vsub.s32 %v6327, %v6329
        %v6331 = vrot.slane %v6317, %v6330
        %v6332 = vcombine.low %v6300, %v6315
        %v6333 = vcombine.high %v6300, %v6315
        %v6335 = vunpack.c.l.s4 1934713408
        %v6336 = vunpack.c.0.s8 %v6335
        %v6337 = vlaneseq
        %v6338 = vshrl.u32 %v6337, 7
        %v6339 = vsub.s32 %v6336, %v6338
        %v6340 = vrot.slane %v6332, %v6339
        %v6342 = vunpack.c.l.s4 1934713408
        %v6343 = vunpack.c.0.s8 %v6342
        %v6344 = vlaneseq
        %v6345 = vshrl.u32 %v6344, 7
        %v6346 = vsub.s32 %v6343, %v6345
        %v6347 = vrot.slane %v6333, %v6346
        %v6348 = vcombine.high %v6324, 0.0
        %v6349 = vcombine.high %v6331, 0.0
        %v6350 = vcombine.high %v6340, 0.0
        %v6351 = vcombine.high %v6347, 0.0
        %v6352 = vcombine.high %v5524, 0.0
        %v6354 = vunpack.c.l.s4 1983009808
        %v6355 = vunpack.c.0.s8 %v6354
        %v6356 = vlaneseq
        %v6357 = vshrl.u32 %v6356, 7
        %v6358 = vsub.s32 %v6355, %v6357
        %v6359 = vrot.slane %v5524, %v6358
        %v6361 = vunpack.c.l.s4 1983009808
        %v6362 = vunpack.c.0.s8 %v6361
        %v6363 = vlaneseq
        %v6364 = vshrl.u32 %v6363, 7
        %v6365 = vsub.s32 %v6362, %v6364
        %v6366 = vrot.slane %v6352, %v6365
        %v6367 = vcombine.high %v5556, 0.0
        %v6369 = vunpack.c.l.s4 1983009808
        %v6370 = vunpack.c.0.s8 %v6369
        %v6371 = vlaneseq
        %v6372 = vshrl.u32 %v6371, 7
        %v6373 = vsub.s32 %v6370, %v6372
        %v6374 = vrot.slane %v5556, %v6373
        %v6376 = vunpack.c.l.s4 1983009808
        %v6377 = vunpack.c.0.s8 %v6376
        %v6378 = vlaneseq
        %v6379 = vshrl.u32 %v6378, 7
        %v6380 = vsub.s32 %v6377, %v6379
        %v6381 = vrot.slane %v6367, %v6380
        %v6382 = vcombine.low %v6359, %v6374
        %v6383 = vcombine.high %v6359, %v6374
        %v6385 = vunpack.c.l.s4 1934713408
        %v6386 = vunpack.c.0.s8 %v6385
        %v6387 = vlaneseq
        %v6388 = vshrl.u32 %v6387, 7
        %v6389 = vsub.s32 %v6386, %v6388
        %v6390 = vrot.slane %v6382, %v6389
        %v6392 = vunpack.c.l.s4 1934713408
        %v6393 = vunpack.c.0.s8 %v6392
        %v6394 = vlaneseq
        %v6395 = vshrl.u32 %v6394, 7
        %v6396 = vsub.s32 %v6393, %v6395
        %v6397 = vrot.slane %v6383, %v6396
        %v6398 = vcombine.low %v6366, %v6381
        %v6399 = vcombine.high %v6366, %v6381
        %v6401 = vunpack.c.l.s4 1934713408
        %v6402 = vunpack.c.0.s8 %v6401
        %v6403 = vlaneseq
        %v6404 = vshrl.u32 %v6403, 7
        %v6405 = vsub.s32 %v6402, %v6404
        %v6406 = vrot.slane %v6398, %v6405
        %v6408 = vunpack.c.l.s4 1934713408
        %v6409 = vunpack.c.0.s8 %v6408
        %v6410 = vlaneseq
        %v6411 = vshrl.u32 %v6410, 7
        %v6412 = vsub.s32 %v6409, %v6411
        %v6413 = vrot.slane %v6399, %v6412
        %v6414 = vcombine.high %v6390, 0.0
        %v6415 = vcombine.high %v6397, 0.0
        %v6416 = vcombine.high %v6406, 0.0
        %v6417 = vcombine.high %v6413, 0.0
        %v6418 = vcombine.high %v5525, 0.0
        %v6420 = vunpack.c.l.s4 1983009808
        %v6421 = vunpack.c.0.s8 %v6420
        %v6422 = vlaneseq
        %v6423 = vshrl.u32 %v6422, 7
        %v6424 = vsub.s32 %v6421, %v6423
        %v6425 = vrot.slane %v5525, %v6424
        %v6427 = vunpack.c.l.s4 1983009808
        %v6428 = vunpack.c.0.s8 %v6427
        %v6429 = vlaneseq
        %v6430 = vshrl.u32 %v6429, 7
        %v6431 = vsub.s32 %v6428, %v6430
        %v6432 = vrot.slane %v6418, %v6431
        %v6433 = vcombine.high %v5557, 0.0
        %v6435 = vunpack.c.l.s4 1983009808
        %v6436 = vunpack.c.0.s8 %v6435
        %v6437 = vlaneseq
        %v6438 = vshrl.u32 %v6437, 7
        %v6439 = vsub.s32 %v6436, %v6438
        %v6440 = vrot.slane %v5557, %v6439
        %v6442 = vunpack.c.l.s4 1983009808
        %v6443 = vunpack.c.0.s8 %v6442
        %v6444 = vlaneseq
        %v6445 = vshrl.u32 %v6444, 7
        %v6446 = vsub.s32 %v6443, %v6445
        %v6447 = vrot.slane %v6433, %v6446
        %v6448 = vcombine.low %v6425, %v6440
        %v6449 = vcombine.high %v6425, %v6440
        %v6451 = vunpack.c.l.s4 1934713408
        %v6452 = vunpack.c.0.s8 %v6451
        %v6453 = vlaneseq
        %v6454 = vshrl.u32 %v6453, 7
        %v6455 = vsub.s32 %v6452, %v6454
        %v6456 = vrot.slane %v6448, %v6455
        %v6458 = vunpack.c.l.s4 1934713408
        %v6459 = vunpack.c.0.s8 %v6458
        %v6460 = vlaneseq
        %v6461 = vshrl.u32 %v6460, 7
        %v6462 = vsub.s32 %v6459, %v6461
        %v6463 = vrot.slane %v6449, %v6462
        %v6464 = vcombine.low %v6432, %v6447
        %v6465 = vcombine.high %v6432, %v6447
        %v6467 = vunpack.c.l.s4 1934713408
        %v6468 = vunpack.c.0.s8 %v6467
        %v6469 = vlaneseq
        %v6470 = vshrl.u32 %v6469, 7
        %v6471 = vsub.s32 %v6468, %v6470
        %v6472 = vrot.slane %v6464, %v6471
        %v6474 = vunpack.c.l.s4 1934713408
        %v6475 = vunpack.c.0.s8 %v6474
        %v6476 = vlaneseq
        %v6477 = vshrl.u32 %v6476, 7
        %v6478 = vsub.s32 %v6475, %v6477
        %v6479 = vrot.slane %v6465, %v6478
        %v6480 = vcombine.high %v6456, 0.0
        %v6481 = vcombine.high %v6463, 0.0
        %v6482 = vcombine.high %v6472, 0.0
        %v6483 = vcombine.high %v6479, 0.0
        %v6484 = vcombine.high %v5526, 0.0
        %v6486 = vunpack.c.l.s4 1983009808
        %v6487 = vunpack.c.0.s8 %v6486
        %v6488 = vlaneseq
        %v6489 = vshrl.u32 %v6488, 7
        %v6490 = vsub.s32 %v6487, %v6489
        %v6491 = vrot.slane %v5526, %v6490
        %v6493 = vunpack.c.l.s4 1983009808
        %v6494 = vunpack.c.0.s8 %v6493
        %v6495 = vlaneseq
        %v6496 = vshrl.u32 %v6495, 7
        %v6497 = vsub.s32 %v6494, %v6496
        %v6498 = vrot.slane %v6484, %v6497
        %v6499 = vcombine.high %v5558, 0.0
        %v6501 = vunpack.c.l.s4 1983009808
        %v6502 = vunpack.c.0.s8 %v6501
        %v6503 = vlaneseq
        %v6504 = vshrl.u32 %v6503, 7
        %v6505 = vsub.s32 %v6502, %v6504
        %v6506 = vrot.slane %v5558, %v6505
        %v6508 = vunpack.c.l.s4 1983009808
        %v6509 = vunpack.c.0.s8 %v6508
        %v6510 = vlaneseq
        %v6511 = vshrl.u32 %v6510, 7
        %v6512 = vsub.s32 %v6509, %v6511
        %v6513 = vrot.slane %v6499, %v6512
        %v6514 = vcombine.low %v6491, %v6506
        %v6515 = vcombine.high %v6491, %v6506
        %v6517 = vunpack.c.l.s4 1934713408
        %v6518 = vunpack.c.0.s8 %v6517
        %v6519 = vlaneseq
        %v6520 = vshrl.u32 %v6519, 7
        %v6521 = vsub.s32 %v6518, %v6520
        %v6522 = vrot.slane %v6514, %v6521
        %v6524 = vunpack.c.l.s4 1934713408
        %v6525 = vunpack.c.0.s8 %v6524
        %v6526 = vlaneseq
        %v6527 = vshrl.u32 %v6526, 7
        %v6528 = vsub.s32 %v6525, %v6527
        %v6529 = vrot.slane %v6515, %v6528
        %v6530 = vcombine.low %v6498, %v6513
        %v6531 = vcombine.high %v6498, %v6513
        %v6533 = vunpack.c.l.s4 1934713408
        %v6534 = vunpack.c.0.s8 %v6533
        %v6535 = vlaneseq
        %v6536 = vshrl.u32 %v6535, 7
        %v6537 = vsub.s32 %v6534, %v6536
        %v6538 = vrot.slane %v6530, %v6537
        %v6540 = vunpack.c.l.s4 1934713408
        %v6541 = vunpack.c.0.s8 %v6540
        %v6542 = vlaneseq
        %v6543 = vshrl.u32 %v6542, 7
        %v6544 = vsub.s32 %v6541, %v6543
        %v6545 = vrot.slane %v6531, %v6544
        %v6546 = vcombine.high %v6522, 0.0
        %v6547 = vcombine.high %v6529, 0.0
        %v6548 = vcombine.high %v6538, 0.0
        %v6549 = vcombine.high %v6545, 0.0
        %v6550 = vcombine.high %v5527, 0.0
        %v6552 = vunpack.c.l.s4 1983009808
        %v6553 = vunpack.c.0.s8 %v6552
        %v6554 = vlaneseq
        %v6555 = vshrl.u32 %v6554, 7
        %v6556 = vsub.s32 %v6553, %v6555
        %v6557 = vrot.slane %v5527, %v6556
        %v6559 = vunpack.c.l.s4 1983009808
        %v6560 = vunpack.c.0.s8 %v6559
        %v6561 = vlaneseq
        %v6562 = vshrl.u32 %v6561, 7
        %v6563 = vsub.s32 %v6560, %v6562
        %v6564 = vrot.slane %v6550, %v6563
        %v6565 = vcombine.high %v5559, 0.0
        %v6567 = vunpack.c.l.s4 1983009808
        %v6568 = vunpack.c.0.s8 %v6567
        %v6569 = vlaneseq
        %v6570 = vshrl.u32 %v6569, 7
        %v6571 = vsub.s32 %v6568, %v6570
        %v6572 = vrot.slane %v5559, %v6571
        %v6574 = vunpack.c.l.s4 1983009808
        %v6575 = vunpack.c.0.s8 %v6574
        %v6576 = vlaneseq
        %v6577 = vshrl.u32 %v6576, 7
        %v6578 = vsub.s32 %v6575, %v6577
        %v6579 = vrot.slane %v6565, %v6578
        %v6580 = vcombine.low %v6557, %v6572
        %v6581 = vcombine.high %v6557, %v6572
        %v6583 = vunpack.c.l.s4 1934713408
        %v6584 = vunpack.c.0.s8 %v6583
        %v6585 = vlaneseq
        %v6586 = vshrl.u32 %v6585, 7
        %v6587 = vsub.s32 %v6584, %v6586
        %v6588 = vrot.slane %v6580, %v6587
        %v6590 = vunpack.c.l.s4 1934713408
        %v6591 = vunpack.c.0.s8 %v6590
        %v6592 = vlaneseq
        %v6593 = vshrl.u32 %v6592, 7
        %v6594 = vsub.s32 %v6591, %v6593
        %v6595 = vrot.slane %v6581, %v6594
        %v6596 = vcombine.low %v6564, %v6579
        %v6597 = vcombine.high %v6564, %v6579
        %v6599 = vunpack.c.l.s4 1934713408
        %v6600 = vunpack.c.0.s8 %v6599
        %v6601 = vlaneseq
        %v6602 = vshrl.u32 %v6601, 7
        %v6603 = vsub.s32 %v6600, %v6602
        %v6604 = vrot.slane %v6596, %v6603
        %v6606 = vunpack.c.l.s4 1934713408
        %v6607 = vunpack.c.0.s8 %v6606
        %v6608 = vlaneseq
        %v6609 = vshrl.u32 %v6608, 7
        %v6610 = vsub.s32 %v6607, %v6609
        %v6611 = vrot.slane %v6597, %v6610
        %v6612 = vcombine.high %v6588, 0.0
        %v6613 = vcombine.high %v6595, 0.0
        %v6614 = vcombine.high %v6604, 0.0
        %v6615 = vcombine.high %v6611, 0.0
        %v6616 = vcombine.low %v5598, %v5605
        %v6618 = vunpack.c.l.s4 1983009808
        %v6619 = vunpack.c.0.s8 %v6618
        %v6620 = vlaneseq
        %v6621 = vshrl.u32 %v6620, 7
        %v6622 = vsub.s32 %v6619, %v6621
        %v6623 = vrot.slane %v6616, %v6622
        %v6624 = vcombine.low %v5622, %v5623
        %v6626 = vunpack.c.l.s4 1983009808
        %v6627 = vunpack.c.0.s8 %v6626
        %v6628 = vlaneseq
        %v6629 = vshrl.u32 %v6628, 7
        %v6630 = vsub.s32 %v6627, %v6629
        %v6631 = vrot.slane %v6624, %v6630
        %v6632 = vcombine.low %v5614, %v5621
        %v6634 = vunpack.c.l.s4 1983009808
        %v6635 = vunpack.c.0.s8 %v6634
        %v6636 = vlaneseq
        %v6637 = vshrl.u32 %v6636, 7
        %v6638 = vsub.s32 %v6635, %v6637
        %v6639 = vrot.slane %v6632, %v6638
        %v6640 = vcombine.low %v5624, %v5625
        %v6642 = vunpack.c.l.s4 1983009808
        %v6643 = vunpack.c.0.s8 %v6642
        %v6644 = vlaneseq
        %v6645 = vshrl.u32 %v6644, 7
        %v6646 = vsub.s32 %v6643, %v6645
        %v6647 = vrot.slane %v6640, %v6646
        %v6648 = vcombine.low %v6623, %v6631
        %v6650 = vunpack.c.l.s4 1934713408
        %v6651 = vunpack.c.0.s8 %v6650
        %v6652 = vlaneseq
        %v6653 = vshrl.u32 %v6652, 7
        %v6654 = vsub.s32 %v6651, %v6653
        %v6655 = vrot.slane %v6648, %v6654
        %v6656 = vcombine.low %v6639, %v6647
        %v6658 = vunpack.c.l.s4 1934713408
        %v6659 = vunpack.c.0.s8 %v6658
        %v6660 = vlaneseq
        %v6661 = vshrl.u32 %v6660, 7
        %v6662 = vsub.s32 %v6659, %v6661
        %v6663 = vrot.slane %v6656, %v6662
        %v6664 = vcombine.low %v6655, %v6663
        %v6665 = vcombine.high %v6655, %v6663
        %v6666 = vcombine.low %v5664, %v5671
        %v6668 = vunpack.c.l.s4 1983009808
        %v6669 = vunpack.c.0.s8 %v6668
        %v6670 = vlaneseq
        %v6671 = vshrl.u32 %v6670, 7
        %v6672 = vsub.s32 %v6669, %v6671
        %v6673 = vrot.slane %v6666, %v6672
        %v6674 = vcombine.low %v5688, %v5689
        %v6676 = vunpack.c.l.s4 1983009808
        %v6677 = vunpack.c.0.s8 %v6676
        %v6678 = vlaneseq
        %v6679 = vshrl.u32 %v6678, 7
        %v6680 = vsub.s32 %v6677, %v6679
        %v6681 = vrot.slane %v6674, %v6680
        %v6682 = vcombine.low %v5680, %v5687
        %v6684 = vunpack.c.l.s4 1983009808
        %v6685 = vunpack.c.0.s8 %v6684
        %v6686 = vlaneseq
        %v6687 = vshrl.u32 %v6686, 7
        %v6688 = vsub.s32 %v6685, %v6687
        %v6689 = vrot.slane %v6682, %v6688
        %v6690 = vcombine.low %v5690, %v5691
        %v6692 = vunpack.c.l.s4 1983009808
        %v6693 = vunpack.c.0.s8 %v6692
        %v6694 = vlaneseq
        %v6695 = vshrl.u32 %v6694, 7
        %v6696 = vsub.s32 %v6693, %v6695
        %v6697 = vrot.slane %v6690, %v6696
        %v6698 = vcombine.low %v6673, %v6681
        %v6700 = vunpack.c.l.s4 1934713408
        %v6701 = vunpack.c.0.s8 %v6700
        %v6702 = vlaneseq
        %v6703 = vshrl.u32 %v6702, 7
        %v6704 = vsub.s32 %v6701, %v6703
        %v6705 = vrot.slane %v6698, %v6704
        %v6706 = vcombine.low %v6689, %v6697
        %v6708 = vunpack.c.l.s4 1934713408
        %v6709 = vunpack.c.0.s8 %v6708
        %v6710 = vlaneseq
        %v6711 = vshrl.u32 %v6710, 7
        %v6712 = vsub.s32 %v6709, %v6711
        %v6713 = vrot.slane %v6706, %v6712
        %v6714 = vcombine.low %v6705, %v6713
        %v6715 = vcombine.high %v6705, %v6713
        %v6716 = vcombine.low %v5730, %v5737
        %v6718 = vunpack.c.l.s4 1983009808
        %v6719 = vunpack.c.0.s8 %v6718
        %v6720 = vlaneseq
        %v6721 = vshrl.u32 %v6720, 7
        %v6722 = vsub.s32 %v6719, %v6721
        %v6723 = vrot.slane %v6716, %v6722
        %v6724 = vcombine.low %v5754, %v5755
        %v6726 = vunpack.c.l.s4 1983009808
        %v6727 = vunpack.c.0.s8 %v6726
        %v6728 = vlaneseq
        %v6729 = vshrl.u32 %v6728, 7
        %v6730 = vsub.s32 %v6727, %v6729
        %v6731 = vrot.slane %v6724, %v6730
        %v6732 = vcombine.low %v5746, %v5753
        %v6734 = vunpack.c.l.s4 1983009808
        %v6735 = vunpack.c.0.s8 %v6734
        %v6736 = vlaneseq
        %v6737 = vshrl.u32 %v6736, 7
        %v6738 = vsub.s32 %v6735, %v6737
        %v6739 = vrot.slane %v6732, %v6738
        %v6740 = vcombine.low %v5756, %v5757
        %v6742 = vunpack.c.l.s4 1983009808
        %v6743 = vunpack.c.0.s8 %v6742
        %v6744 = vlaneseq
        %v6745 = vshrl.u32 %v6744, 7
        %v6746 = vsub.s32 %v6743, %v6745
        %v6747 = vrot.slane %v6740, %v6746
        %v6748 = vcombine.low %v6723, %v6731
        %v6750 = vunpack.c.l.s4 1934713408
        %v6751 = vunpack.c.0.s8 %v6750
        %v6752 = vlaneseq
        %v6753 = vshrl.u32 %v6752, 7
        %v6754 = vsub.s32 %v6751, %v6753
        %v6755 = vrot.slane %v6748, %v6754
        %v6756 = vcombine.low %v6739, %v6747
        %v6758 = vunpack.c.l.s4 1934713408
        %v6759 = vunpack.c.0.s8 %v6758
        %v6760 = vlaneseq
        %v6761 = vshrl.u32 %v6760, 7
        %v6762 = vsub.s32 %v6759, %v6761
        %v6763 = vrot.slane %v6756, %v6762
        %v6764 = vcombine.low %v6755, %v6763
        %v6765 = vcombine.high %v6755, %v6763
        %v6766 = vcombine.low %v5796, %v5803
        %v6768 = vunpack.c.l.s4 1983009808
        %v6769 = vunpack.c.0.s8 %v6768
        %v6770 = vlaneseq
        %v6771 = vshrl.u32 %v6770, 7
        %v6772 = vsub.s32 %v6769, %v6771
        %v6773 = vrot.slane %v6766, %v6772
        %v6774 = vcombine.low %v5820, %v5821
        %v6776 = vunpack.c.l.s4 1983009808
        %v6777 = vunpack.c.0.s8 %v6776
        %v6778 = vlaneseq
        %v6779 = vshrl.u32 %v6778, 7
        %v6780 = vsub.s32 %v6777, %v6779
        %v6781 = vrot.slane %v6774, %v6780
        %v6782 = vcombine.low %v5812, %v5819
        %v6784 = vunpack.c.l.s4 1983009808
        %v6785 = vunpack.c.0.s8 %v6784
        %v6786 = vlaneseq
        %v6787 = vshrl.u32 %v6786, 7
        %v6788 = vsub.s32 %v6785, %v6787
        %v6789 = vrot.slane %v6782, %v6788
        %v6790 = vcombine.low %v5822, %v5823
        %v6792 = vunpack.c.l.s4 1983009808
        %v6793 = vunpack.c.0.s8 %v6792
        %v6794 = vlaneseq
        %v6795 = vshrl.u32 %v6794, 7
        %v6796 = vsub.s32 %v6793, %v6795
        %v6797 = vrot.slane %v6790, %v6796
        %v6798 = vcombine.low %v6773, %v6781
        %v6800 = vunpack.c.l.s4 1934713408
        %v6801 = vunpack.c.0.s8 %v6800
        %v6802 = vlaneseq
        %v6803 = vshrl.u32 %v6802, 7
        %v6804 = vsub.s32 %v6801, %v6803
        %v6805 = vrot.slane %v6798, %v6804
        %v6806 = vcombine.low %v6789, %v6797
        %v6808 = vunpack.c.l.s4 1934713408
        %v6809 = vunpack.c.0.s8 %v6808
        %v6810 = vlaneseq
        %v6811 = vshrl.u32 %v6810, 7
        %v6812 = vsub.s32 %v6809, %v6811
        %v6813 = vrot.slane %v6806, %v6812
        %v6814 = vcombine.low %v6805, %v6813
        %v6815 = vcombine.high %v6805, %v6813
        %v6816 = vcombine.low %v5862, %v5869
        %v6818 = vunpack.c.l.s4 1983009808
        %v6819 = vunpack.c.0.s8 %v6818
        %v6820 = vlaneseq
        %v6821 = vshrl.u32 %v6820, 7
        %v6822 = vsub.s32 %v6819, %v6821
        %v6823 = vrot.slane %v6816, %v6822
        %v6824 = vcombine.low %v5886, %v5887
        %v6826 = vunpack.c.l.s4 1983009808
        %v6827 = vunpack.c.0.s8 %v6826
        %v6828 = vlaneseq
        %v6829 = vshrl.u32 %v6828, 7
        %v6830 = vsub.s32 %v6827, %v6829
        %v6831 = vrot.slane %v6824, %v6830
        %v6832 = vcombine.low %v5878, %v5885
        %v6834 = vunpack.c.l.s4 1983009808
        %v6835 = vunpack.c.0.s8 %v6834
        %v6836 = vlaneseq
        %v6837 = vshrl.u32 %v6836, 7
        %v6838 = vsub.s32 %v6835, %v6837
        %v6839 = vrot.slane %v6832, %v6838
        %v6840 = vcombine.low %v5888, %v5889
        %v6842 = vunpack.c.l.s4 1983009808
        %v6843 = vunpack.c.0.s8 %v6842
        %v6844 = vlaneseq
        %v6845 = vshrl.u32 %v6844, 7
        %v6846 = vsub.s32 %v6843, %v6845
        %v6847 = vrot.slane %v6840, %v6846
        %v6848 = vcombine.low %v6823, %v6831
        %v6850 = vunpack.c.l.s4 1934713408
        %v6851 = vunpack.c.0.s8 %v6850
        %v6852 = vlaneseq
        %v6853 = vshrl.u32 %v6852, 7
        %v6854 = vsub.s32 %v6851, %v6853
        %v6855 = vrot.slane %v6848, %v6854
        %v6856 = vcombine.low %v6839, %v6847
        %v6858 = vunpack.c.l.s4 1934713408
        %v6859 = vunpack.c.0.s8 %v6858
        %v6860 = vlaneseq
        %v6861 = vshrl.u32 %v6860, 7
        %v6862 = vsub.s32 %v6859, %v6861
        %v6863 = vrot.slane %v6856, %v6862
        %v6864 = vcombine.low %v6855, %v6863
        %v6865 = vcombine.high %v6855, %v6863
        %v6866 = vcombine.low %v5928, %v5935
        %v6868 = vunpack.c.l.s4 1983009808
        %v6869 = vunpack.c.0.s8 %v6868
        %v6870 = vlaneseq
        %v6871 = vshrl.u32 %v6870, 7
        %v6872 = vsub.s32 %v6869, %v6871
        %v6873 = vrot.slane %v6866, %v6872
        %v6874 = vcombine.low %v5952, %v5953
        %v6876 = vunpack.c.l.s4 1983009808
        %v6877 = vunpack.c.0.s8 %v6876
        %v6878 = vlaneseq
        %v6879 = vshrl.u32 %v6878, 7
        %v6880 = vsub.s32 %v6877, %v6879
        %v6881 = vrot.slane %v6874, %v6880
        %v6882 = vcombine.low %v5944, %v5951
        %v6884 = vunpack.c.l.s4 1983009808
        %v6885 = vunpack.c.0.s8 %v6884
        %v6886 = vlaneseq
        %v6887 = vshrl.u32 %v6886, 7
        %v6888 = vsub.s32 %v6885, %v6887
        %v6889 = vrot.slane %v6882, %v6888
        %v6890 = vcombine.low %v5954, %v5955
        %v6892 = vunpack.c.l.s4 1983009808
        %v6893 = vunpack.c.0.s8 %v6892
        %v6894 = vlaneseq
        %v6895 = vshrl.u32 %v6894, 7
        %v6896 = vsub.s32 %v6893, %v6895
        %v6897 = vrot.slane %v6890, %v6896
        %v6898 = vcombine.low %v6873, %v6881
        %v6900 = vunpack.c.l.s4 1934713408
        %v6901 = vunpack.c.0.s8 %v6900
        %v6902 = vlaneseq
        %v6903 = vshrl.u32 %v6902, 7
        %v6904 = vsub.s32 %v6901, %v6903
        %v6905 = vrot.slane %v6898, %v6904
        %v6906 = vcombine.low %v6889, %v6897
        %v6908 = vunpack.c.l.s4 1934713408
        %v6909 = vunpack.c.0.s8 %v6908
        %v6910 = vlaneseq
        %v6911 = vshrl.u32 %v6910, 7
        %v6912 = vsub.s32 %v6909, %v6911
        %v6913 = vrot.slane %v6906, %v6912
        %v6914 = vcombine.low %v6905, %v6913
        %v6915 = vcombine.high %v6905, %v6913
        %v6916 = vcombine.low %v5994, %v6001
        %v6918 = vunpack.c.l.s4 1983009808
        %v6919 = vunpack.c.0.s8 %v6918
        %v6920 = vlaneseq
        %v6921 = vshrl.u32 %v6920, 7
        %v6922 = vsub.s32 %v6919, %v6921
        %v6923 = vrot.slane %v6916, %v6922
        %v6924 = vcombine.low %v6018, %v6019
        %v6926 = vunpack.c.l.s4 1983009808
        %v6927 = vunpack.c.0.s8 %v6926
        %v6928 = vlaneseq
        %v6929 = vshrl.u32 %v6928, 7
        %v6930 = vsub.s32 %v6927, %v6929
        %v6931 = vrot.slane %v6924, %v6930
        %v6932 = vcombine.low %v6010, %v6017
        %v6934 = vunpack.c.l.s4 1983009808
        %v6935 = vunpack.c.0.s8 %v6934
        %v6936 = vlaneseq
        %v6937 = vshrl.u32 %v6936, 7
        %v6938 = vsub.s32 %v6935, %v6937
        %v6939 = vrot.slane %v6932, %v6938
        %v6940 = vcombine.low %v6020, %v6021
        %v6942 = vunpack.c.l.s4 1983009808
        %v6943 = vunpack.c.0.s8 %v6942
        %v6944 = vlaneseq
        %v6945 = vshrl.u32 %v6944, 7
        %v6946 = vsub.s32 %v6943, %v6945
        %v6947 = vrot.slane %v6940, %v6946
        %v6948 = vcombine.low %v6923, %v6931
        %v6950 = vunpack.c.l.s4 1934713408
        %v6951 = vunpack.c.0.s8 %v6950
        %v6952 = vlaneseq
        %v6953 = vshrl.u32 %v6952, 7
        %v6954 = vsub.s32 %v6951, %v6953
        %v6955 = vrot.slane %v6948, %v6954
        %v6956 = vcombine.low %v6939, %v6947
        %v6958 = vunpack.c.l.s4 1934713408
        %v6959 = vunpack.c.0.s8 %v6958
        %v6960 = vlaneseq
        %v6961 = vshrl.u32 %v6960, 7
        %v6962 = vsub.s32 %v6959, %v6961
        %v6963 = vrot.slane %v6956, %v6962
        %v6964 = vcombine.low %v6955, %v6963
        %v6965 = vcombine.high %v6955, %v6963
        %v6966 = vcombine.low %v6060, %v6067
        %v6968 = vunpack.c.l.s4 1983009808
        %v6969 = vunpack.c.0.s8 %v6968
        %v6970 = vlaneseq
        %v6971 = vshrl.u32 %v6970, 7
        %v6972 = vsub.s32 %v6969, %v6971
        %v6973 = vrot.slane %v6966, %v6972
        %v6974 = vcombine.low %v6084, %v6085
        %v6976 = vunpack.c.l.s4 1983009808
        %v6977 = vunpack.c.0.s8 %v6976
        %v6978 = vlaneseq
        %v6979 = vshrl.u32 %v6978, 7
        %v6980 = vsub.s32 %v6977, %v6979
        %v6981 = vrot.slane %v6974, %v6980
        %v6982 = vcombine.low %v6076, %v6083
        %v6984 = vunpack.c.l.s4 1983009808
        %v6985 = vunpack.c.0.s8 %v6984
        %v6986 = vlaneseq
        %v6987 = vshrl.u32 %v6986, 7
        %v6988 = vsub.s32 %v6985, %v6987
        %v6989 = vrot.slane %v6982, %v6988
        %v6990 = vcombine.low %v6086, %v6087
        %v6992 = vunpack.c.l.s4 1983009808
        %v6993 = vunpack.c.0.s8 %v6992
        %v6994 = vlaneseq
        %v6995 = vshrl.u32 %v6994, 7
        %v6996 = vsub.s32 %v6993, %v6995
        %v6997 = vrot.slane %v6990, %v6996
        %v6998 = vcombine.low %v6973, %v6981
        %v7000 = vunpack.c.l.s4 1934713408
        %v7001 = vunpack.c.0.s8 %v7000
        %v7002 = vlaneseq
        %v7003 = vshrl.u32 %v7002, 7
        %v7004 = vsub.s32 %v7001, %v7003
        %v7005 = vrot.slane %v6998, %v7004
        %v7006 = vcombine.low %v6989, %v6997
        %v7008 = vunpack.c.l.s4 1934713408
        %v7009 = vunpack.c.0.s8 %v7008
        %v7010 = vlaneseq
        %v7011 = vshrl.u32 %v7010, 7
        %v7012 = vsub.s32 %v7009, %v7011
        %v7013 = vrot.slane %v7006, %v7012
        %v7014 = vcombine.low %v7005, %v7013
        %v7015 = vcombine.high %v7005, %v7013
        %v7016 = vcombine.low %v6126, %v6133
        %v7018 = vunpack.c.l.s4 1983009808
        %v7019 = vunpack.c.0.s8 %v7018
        %v7020 = vlaneseq
        %v7021 = vshrl.u32 %v7020, 7
        %v7022 = vsub.s32 %v7019, %v7021
        %v7023 = vrot.slane %v7016, %v7022
        %v7024 = vcombine.low %v6150, %v6151
        %v7026 = vunpack.c.l.s4 1983009808
        %v7027 = vunpack.c.0.s8 %v7026
        %v7028 = vlaneseq
        %v7029 = vshrl.u32 %v7028, 7
        %v7030 = vsub.s32 %v7027, %v7029
        %v7031 = vrot.slane %v7024, %v7030
        %v7032 = vcombine.low %v6142, %v6149
        %v7034 = vunpack.c.l.s4 1983009808
        %v7035 = vunpack.c.0.s8 %v7034
        %v7036 = vlaneseq
        %v7037 = vshrl.u32 %v7036, 7
        %v7038 = vsub.s32 %v7035, %v7037
        %v7039 = vrot.slane %v7032, %v7038
        %v7040 = vcombine.low %v6152, %v6153
        %v7042 = vunpack.c.l.s4 1983009808
        %v7043 = vunpack.c.0.s8 %v7042
        %v7044 = vlaneseq
        %v7045 = vshrl.u32 %v7044, 7
        %v7046 = vsub.s32 %v7043, %v7045
        %v7047 = vrot.slane %v7040, %v7046
        %v7048 = vcombine.low %v7023, %v7031
        %v7050 = vunpack.c.l.s4 1934713408
        %v7051 = vunpack.c.0.s8 %v7050
        %v7052 = vlaneseq
        %v7053 = vshrl.u32 %v7052, 7
        %v7054 = vsub.s32 %v7051, %v7053
        %v7055 = vrot.slane %v7048, %v7054
        %v7056 = vcombine.low %v7039, %v7047
        %v7058 = vunpack.c.l.s4 1934713408
        %v7059 = vunpack.c.0.s8 %v7058
        %v7060 = vlaneseq
        %v7061 = vshrl.u32 %v7060, 7
        %v7062 = vsub.s32 %v7059, %v7061
        %v7063 = vrot.slane %v7056, %v7062
        %v7064 = vcombine.low %v7055, %v7063
        %v7065 = vcombine.high %v7055, %v7063
        %v7066 = vcombine.low %v6192, %v6199
        %v7068 = vunpack.c.l.s4 1983009808
        %v7069 = vunpack.c.0.s8 %v7068
        %v7070 = vlaneseq
        %v7071 = vshrl.u32 %v7070, 7
        %v7072 = vsub.s32 %v7069, %v7071
        %v7073 = vrot.slane %v7066, %v7072
        %v7074 = vcombine.low %v6216, %v6217
        %v7076 = vunpack.c.l.s4 1983009808
        %v7077 = vunpack.c.0.s8 %v7076
        %v7078 = vlaneseq
        %v7079 = vshrl.u32 %v7078, 7
        %v7080 = vsub.s32 %v7077, %v7079
        %v7081 = vrot.slane %v7074, %v7080
        %v7082 = vcombine.low %v6208, %v6215
        %v7084 = vunpack.c.l.s4 1983009808
        %v7085 = vunpack.c.0.s8 %v7084
        %v7086 = vlaneseq
        %v7087 = vshrl.u32 %v7086, 7
        %v7088 = vsub.s32 %v7085, %v7087
        %v7089 = vrot.slane %v7082, %v7088
        %v7090 = vcombine.low %v6218, %v6219
        %v7092 = vunpack.c.l.s4 1983009808
        %v7093 = vunpack.c.0.s8 %v7092
        %v7094 = vlaneseq
        %v7095 = vshrl.u32 %v7094, 7
        %v7096 = vsub.s32 %v7093, %v7095
        %v7097 = vrot.slane %v7090, %v7096
        %v7098 = vcombine.low %v7073, %v7081
        %v7100 = vunpack.c.l.s4 1934713408
        %v7101 = vunpack.c.0.s8 %v7100
        %v7102 = vlaneseq
        %v7103 = vshrl.u32 %v7102, 7
        %v7104 = vsub.s32 %v7101, %v7103
        %v7105 = vrot.slane %v7098, %v7104
        %v7106 = vcombine.low %v7089, %v7097
        %v7108 = vunpack.c.l.s4 1934713408
        %v7109 = vunpack.c.0.s8 %v7108
        %v7110 = vlaneseq
        %v7111 = vshrl.u32 %v7110, 7
        %v7112 = vsub.s32 %v7109, %v7111
        %v7113 = vrot.slane %v7106, %v7112
        %v7114 = vcombine.low %v7105, %v7113
        %v7115 = vcombine.high %v7105, %v7113
        %v7116 = vcombine.low %v6258, %v6265
        %v7118 = vunpack.c.l.s4 1983009808
        %v7119 = vunpack.c.0.s8 %v7118
        %v7120 = vlaneseq
        %v7121 = vshrl.u32 %v7120, 7
        %v7122 = vsub.s32 %v7119, %v7121
        %v7123 = vrot.slane %v7116, %v7122
        %v7124 = vcombine.low %v6282, %v6283
        %v7126 = vunpack.c.l.s4 1983009808
        %v7127 = vunpack.c.0.s8 %v7126
        %v7128 = vlaneseq
        %v7129 = vshrl.u32 %v7128, 7
        %v7130 = vsub.s32 %v7127, %v7129
        %v7131 = vrot.slane %v7124, %v7130
        %v7132 = vcombine.low %v6274, %v6281
        %v7134 = vunpack.c.l.s4 1983009808
        %v7135 = vunpack.c.0.s8 %v7134
        %v7136 = vlaneseq
        %v7137 = vshrl.u32 %v7136, 7
        %v7138 = vsub.s32 %v7135, %v7137
        %v7139 = vrot.slane %v7132, %v7138
        %v7140 = vcombine.low %v6284, %v6285
        %v7142 = vunpack.c.l.s4 1983009808
        %v7143 = vunpack.c.0.s8 %v7142
        %v7144 = vlaneseq
        %v7145 = vshrl.u32 %v7144, 7
        %v7146 = vsub.s32 %v7143, %v7145
        %v7147 = vrot.slane %v7140, %v7146
        %v7148 = vcombine.low %v7123, %v7131
        %v7150 = vunpack.c.l.s4 1934713408
        %v7151 = vunpack.c.0.s8 %v7150
        %v7152 = vlaneseq
        %v7153 = vshrl.u32 %v7152, 7
        %v7154 = vsub.s32 %v7151, %v7153
        %v7155 = vrot.slane %v7148, %v7154
        %v7156 = vcombine.low %v7139, %v7147
        %v7158 = vunpack.c.l.s4 1934713408
        %v7159 = vunpack.c.0.s8 %v7158
        %v7160 = vlaneseq
        %v7161 = vshrl.u32 %v7160, 7
        %v7162 = vsub.s32 %v7159, %v7161
        %v7163 = vrot.slane %v7156, %v7162
        %v7164 = vcombine.low %v7155, %v7163
        %v7165 = vcombine.high %v7155, %v7163
        %v7166 = vcombine.low %v6324, %v6331
        %v7168 = vunpack.c.l.s4 1983009808
        %v7169 = vunpack.c.0.s8 %v7168
        %v7170 = vlaneseq
        %v7171 = vshrl.u32 %v7170, 7
        %v7172 = vsub.s32 %v7169, %v7171
        %v7173 = vrot.slane %v7166, %v7172
        %v7174 = vcombine.low %v6348, %v6349
        %v7176 = vunpack.c.l.s4 1983009808
        %v7177 = vunpack.c.0.s8 %v7176
        %v7178 = vlaneseq
        %v7179 = vshrl.u32 %v7178, 7
        %v7180 = vsub.s32 %v7177, %v7179
        %v7181 = vrot.slane %v7174, %v7180
        %v7182 = vcombine.low %v6340, %v6347
        %v7184 = vunpack.c.l.s4 1983009808
        %v7185 = vunpack.c.0.s8 %v7184
        %v7186 = vlaneseq
        %v7187 = vshrl.u32 %v7186, 7
        %v7188 = vsub.s32 %v7185, %v7187
        %v7189 = vrot.slane %v7182, %v7188
        %v7190 = vcombine.low %v6350, %v6351
        %v7192 = vunpack.c.l.s4 1983009808
        %v7193 = vunpack.c.0.s8 %v7192
        %v7194 = vlaneseq
        %v7195 = vshrl.u32 %v7194, 7
        %v7196 = vsub.s32 %v7193, %v7195
        %v7197 = vrot.slane %v7190, %v7196
        %v7198 = vcombine.low %v7173, %v7181
        %v7200 = vunpack.c.l.s4 1934713408
        %v7201 = vunpack.c.0.s8 %v7200
        %v7202 = vlaneseq
        %v7203 = vshrl.u32 %v7202, 7
        %v7204 = vsub.s32 %v7201, %v7203
        %v7205 = vrot.slane %v7198, %v7204
        %v7206 = vcombine.low %v7189, %v7197
        %v7208 = vunpack.c.l.s4 1934713408
        %v7209 = vunpack.c.0.s8 %v7208
        %v7210 = vlaneseq
        %v7211 = vshrl.u32 %v7210, 7
        %v7212 = vsub.s32 %v7209, %v7211
        %v7213 = vrot.slane %v7206, %v7212
        %v7214 = vcombine.low %v7205, %v7213
        %v7215 = vcombine.high %v7205, %v7213
        %v7216 = vcombine.low %v6390, %v6397
        %v7218 = vunpack.c.l.s4 1983009808
        %v7219 = vunpack.c.0.s8 %v7218
        %v7220 = vlaneseq
        %v7221 = vshrl.u32 %v7220, 7
        %v7222 = vsub.s32 %v7219, %v7221
        %v7223 = vrot.slane %v7216, %v7222
        %v7224 = vcombine.low %v6414, %v6415
        %v7226 = vunpack.c.l.s4 1983009808
        %v7227 = vunpack.c.0.s8 %v7226
        %v7228 = vlaneseq
        %v7229 = vshrl.u32 %v7228, 7
        %v7230 = vsub.s32 %v7227, %v7229
        %v7231 = vrot.slane %v7224, %v7230
        %v7232 = vcombine.low %v6406, %v6413
        %v7234 = vunpack.c.l.s4 1983009808
        %v7235 = vunpack.c.0.s8 %v7234
        %v7236 = vlaneseq
        %v7237 = vshrl.u32 %v7236, 7
        %v7238 = vsub.s32 %v7235, %v7237
        %v7239 = vrot.slane %v7232, %v7238
        %v7240 = vcombine.low %v6416, %v6417
        %v7242 = vunpack.c.l.s4 1983009808
        %v7243 = vunpack.c.0.s8 %v7242
        %v7244 = vlaneseq
        %v7245 = vshrl.u32 %v7244, 7
        %v7246 = vsub.s32 %v7243, %v7245
        %v7247 = vrot.slane %v7240, %v7246
        %v7248 = vcombine.low %v7223, %v7231
        %v7250 = vunpack.c.l.s4 1934713408
        %v7251 = vunpack.c.0.s8 %v7250
        %v7252 = vlaneseq
        %v7253 = vshrl.u32 %v7252, 7
        %v7254 = vsub.s32 %v7251, %v7253
        %v7255 = vrot.slane %v7248, %v7254
        %v7256 = vcombine.low %v7239, %v7247
        %v7258 = vunpack.c.l.s4 1934713408
        %v7259 = vunpack.c.0.s8 %v7258
        %v7260 = vlaneseq
        %v7261 = vshrl.u32 %v7260, 7
        %v7262 = vsub.s32 %v7259, %v7261
        %v7263 = vrot.slane %v7256, %v7262
        %v7264 = vcombine.low %v7255, %v7263
        %v7265 = vcombine.high %v7255, %v7263
        %v7266 = vcombine.low %v6456, %v6463
        %v7268 = vunpack.c.l.s4 1983009808
        %v7269 = vunpack.c.0.s8 %v7268
        %v7270 = vlaneseq
        %v7271 = vshrl.u32 %v7270, 7
        %v7272 = vsub.s32 %v7269, %v7271
        %v7273 = vrot.slane %v7266, %v7272
        %v7274 = vcombine.low %v6480, %v6481
        %v7276 = vunpack.c.l.s4 1983009808
        %v7277 = vunpack.c.0.s8 %v7276
        %v7278 = vlaneseq
        %v7279 = vshrl.u32 %v7278, 7
        %v7280 = vsub.s32 %v7277, %v7279
        %v7281 = vrot.slane %v7274, %v7280
        %v7282 = vcombine.low %v6472, %v6479
        %v7284 = vunpack.c.l.s4 1983009808
        %v7285 = vunpack.c.0.s8 %v7284
        %v7286 = vlaneseq
        %v7287 = vshrl.u32 %v7286, 7
        %v7288 = vsub.s32 %v7285, %v7287
        %v7289 = vrot.slane %v7282, %v7288
        %v7290 = vcombine.low %v6482, %v6483
        %v7292 = vunpack.c.l.s4 1983009808
        %v7293 = vunpack.c.0.s8 %v7292
        %v7294 = vlaneseq
        %v7295 = vshrl.u32 %v7294, 7
        %v7296 = vsub.s32 %v7293, %v7295
        %v7297 = vrot.slane %v7290, %v7296
        %v7298 = vcombine.low %v7273, %v7281
        %v7300 = vunpack.c.l.s4 1934713408
        %v7301 = vunpack.c.0.s8 %v7300
        %v7302 = vlaneseq
        %v7303 = vshrl.u32 %v7302, 7
        %v7304 = vsub.s32 %v7301, %v7303
        %v7305 = vrot.slane %v7298, %v7304
        %v7306 = vcombine.low %v7289, %v7297
        %v7308 = vunpack.c.l.s4 1934713408
        %v7309 = vunpack.c.0.s8 %v7308
        %v7310 = vlaneseq
        %v7311 = vshrl.u32 %v7310, 7
        %v7312 = vsub.s32 %v7309, %v7311
        %v7313 = vrot.slane %v7306, %v7312
        %v7314 = vcombine.low %v7305, %v7313
        %v7315 = vcombine.high %v7305, %v7313
        %v7316 = vcombine.low %v6522, %v6529
        %v7318 = vunpack.c.l.s4 1983009808
        %v7319 = vunpack.c.0.s8 %v7318
        %v7320 = vlaneseq
        %v7321 = vshrl.u32 %v7320, 7
        %v7322 = vsub.s32 %v7319, %v7321
        %v7323 = vrot.slane %v7316, %v7322
        %v7324 = vcombine.low %v6546, %v6547
        %v7326 = vunpack.c.l.s4 1983009808
        %v7327 = vunpack.c.0.s8 %v7326
        %v7328 = vlaneseq
        %v7329 = vshrl.u32 %v7328, 7
        %v7330 = vsub.s32 %v7327, %v7329
        %v7331 = vrot.slane %v7324, %v7330
        %v7332 = vcombine.low %v6538, %v6545
        %v7334 = vunpack.c.l.s4 1983009808
        %v7335 = vunpack.c.0.s8 %v7334
        %v7336 = vlaneseq
        %v7337 = vshrl.u32 %v7336, 7
        %v7338 = vsub.s32 %v7335, %v7337
        %v7339 = vrot.slane %v7332, %v7338
        %v7340 = vcombine.low %v6548, %v6549
        %v7342 = vunpack.c.l.s4 1983009808
        %v7343 = vunpack.c.0.s8 %v7342
        %v7344 = vlaneseq
        %v7345 = vshrl.u32 %v7344, 7
        %v7346 = vsub.s32 %v7343, %v7345
        %v7347 = vrot.slane %v7340, %v7346
        %v7348 = vcombine.low %v7323, %v7331
        %v7350 = vunpack.c.l.s4 1934713408
        %v7351 = vunpack.c.0.s8 %v7350
        %v7352 = vlaneseq
        %v7353 = vshrl.u32 %v7352, 7
        %v7354 = vsub.s32 %v7351, %v7353
        %v7355 = vrot.slane %v7348, %v7354
        %v7356 = vcombine.low %v7339, %v7347
        %v7358 = vunpack.c.l.s4 1934713408
        %v7359 = vunpack.c.0.s8 %v7358
        %v7360 = vlaneseq
        %v7361 = vshrl.u32 %v7360, 7
        %v7362 = vsub.s32 %v7359, %v7361
        %v7363 = vrot.slane %v7356, %v7362
        %v7364 = vcombine.low %v7355, %v7363
        %v7365 = vcombine.high %v7355, %v7363
        %v7366 = vcombine.low %v6588, %v6595
        %v7368 = vunpack.c.l.s4 1983009808
        %v7369 = vunpack.c.0.s8 %v7368
        %v7370 = vlaneseq
        %v7371 = vshrl.u32 %v7370, 7
        %v7372 = vsub.s32 %v7369, %v7371
        %v7373 = vrot.slane %v7366, %v7372
        %v7374 = vcombine.low %v6612, %v6613
        %v7376 = vunpack.c.l.s4 1983009808
        %v7377 = vunpack.c.0.s8 %v7376
        %v7378 = vlaneseq
        %v7379 = vshrl.u32 %v7378, 7
        %v7380 = vsub.s32 %v7377, %v7379
        %v7381 = vrot.slane %v7374, %v7380
        %v7382 = vcombine.low %v6604, %v6611
        %v7384 = vunpack.c.l.s4 1983009808
        %v7385 = vunpack.c.0.s8 %v7384
        %v7386 = vlaneseq
        %v7387 = vshrl.u32 %v7386, 7
        %v7388 = vsub.s32 %v7385, %v7387
        %v7389 = vrot.slane %v7382, %v7388
        %v7390 = vcombine.low %v6614, %v6615
        %v7392 = vunpack.c.l.s4 1983009808
        %v7393 = vunpack.c.0.s8 %v7392
        %v7394 = vlaneseq
        %v7395 = vshrl.u32 %v7394, 7
        %v7396 = vsub.s32 %v7393, %v7395
        %v7397 = vrot.slane %v7390, %v7396
        %v7398 = vcombine.low %v7373, %v7381
        %v7400 = vunpack.c.l.s4 1934713408
        %v7401 = vunpack.c.0.s8 %v7400
        %v7402 = vlaneseq
        %v7403 = vshrl.u32 %v7402, 7
        %v7404 = vsub.s32 %v7401, %v7403
        %v7405 = vrot.slane %v7398, %v7404
        %v7406 = vcombine.low %v7389, %v7397
        %v7408 = vunpack.c.l.s4 1934713408
        %v7409 = vunpack.c.0.s8 %v7408
        %v7410 = vlaneseq
        %v7411 = vshrl.u32 %v7410, 7
        %v7412 = vsub.s32 %v7409, %v7411
        %v7413 = vrot.slane %v7406, %v7412
        %v7414 = vcombine.low %v7405, %v7413
        %v7415 = vcombine.high %v7405, %v7413
        %7432 = vrot.lane.b32.xlu0 %v6665, 64
        %v7433 = vpop.permute.xlu0 %7432
        %7434 = vrot.lane.b32.xlu0 %v6715, 64
        %v7435 = vpop.permute.xlu0 %7434
        %7436 = vrot.lane.b32.xlu0 %v6765, 64
        %v7437 = vpop.permute.xlu0 %7436
        %7438 = vrot.lane.b32.xlu0 %v6815, 64
        %v7439 = vpop.permute.xlu0 %7438
        %7440 = vrot.lane.b32.xlu0 %v6865, 64
        %v7441 = vpop.permute.xlu0 %7440
        %7442 = vrot.lane.b32.xlu0 %v6915, 64
        %v7443 = vpop.permute.xlu0 %7442
        %7444 = vrot.lane.b32.xlu0 %v6965, 64
        %v7445 = vpop.permute.xlu0 %7444
        %7446 = vrot.lane.b32.xlu0 %v7015, 64
        %v7447 = vpop.permute.xlu0 %7446
        %7448 = vrot.lane.b32.xlu0 %v7065, 64
        %v7449 = vpop.permute.xlu0 %7448
        %7450 = vrot.lane.b32.xlu0 %v7115, 64
        %v7451 = vpop.permute.xlu0 %7450
        %7452 = vrot.lane.b32.xlu0 %v7165, 64
        %v7453 = vpop.permute.xlu0 %7452
        %7454 = vrot.lane.b32.xlu0 %v7215, 64
        %v7455 = vpop.permute.xlu0 %7454
        %7456 = vrot.lane.b32.xlu0 %v7265, 64
        %v7457 = vpop.permute.xlu0 %7456
        %7458 = vrot.lane.b32.xlu0 %v7315, 64
        %v7459 = vpop.permute.xlu0 %7458
        %7460 = vrot.lane.b32.xlu0 %v7365, 64
        %v7461 = vpop.permute.xlu0 %7460
        %7462 = vrot.lane.b32.xlu0 %v7415, 64
        %v7463 = vpop.permute.xlu0 %7462
        %v7480 = vsel %vm1959, %v6664, %v7433
        %v7481 = vsel %vm1959, %v6714, %v7435
        %v7482 = vsel %vm1959, %v6764, %v7437
        %v7483 = vsel %vm1959, %v6814, %v7439
        %v7484 = vsel %vm1959, %v6864, %v7441
        %v7485 = vsel %vm1959, %v6914, %v7443
        %v7486 = vsel %vm1959, %v6964, %v7445
        %v7487 = vsel %vm1959, %v7014, %v7447
        %v7488 = vsel %vm1959, %v7064, %v7449
        %v7489 = vsel %vm1959, %v7114, %v7451
        %v7490 = vsel %vm1959, %v7164, %v7453
        %v7491 = vsel %vm1959, %v7214, %v7455
        %v7492 = vsel %vm1959, %v7264, %v7457
        %v7493 = vsel %vm1959, %v7314, %v7459
        %v7494 = vsel %vm1959, %v7364, %v7461
        %v7495 = vsel %vm1959, %v7414, %v7463
        %v7496 = vpack.c.bf16 %v4653, %v4652
        %v7497 = vpack.c.bf16 %v4655, %v4654
        %v7498 = vpack.c.bf16 %v4657, %v4656
        %v7499 = vpack.c.bf16 %v4659, %v4658
        %v7500 = vpack.c.bf16 %v4661, %v4660
        %v7501 = vpack.c.bf16 %v4663, %v4662
        %v7502 = vpack.c.bf16 %v4665, %v4664
        %v7503 = vpack.c.bf16 %v4667, %v4666
        %v7504 = vpack.c.bf16 %v7481, %v7480
        %v7505 = vpack.c.bf16 %v7483, %v7482
        %v7506 = vpack.c.bf16 %v7485, %v7484
        %v7507 = vpack.c.bf16 %v7487, %v7486
        %v7508 = vpack.c.bf16 %v7489, %v7488
        %v7509 = vpack.c.bf16 %v7491, %v7490
        %v7510 = vpack.c.bf16 %v7493, %v7492
        %v7511 = vpack.c.bf16 %v7495, %v7494
        %v7512 = vld [vmem:[%s532] sm:$0xf]
        %v7513 = vld [vmem:[%s532 + $0x4] sm:$0xf]
        %v7514 = vld [vmem:[%s532 + $0x8] sm:$0xf]
        %v7515 = vld [vmem:[%s532 + $0xc] sm:$0xf]
        %v7516 = vld [vmem:[%s532 + $0x10] sm:$0xf]
        %v7517 = vld [vmem:[%s532 + $0x14] sm:$0xf]
        %v7518 = vld [vmem:[%s532 + $0x18] sm:$0xf]
        %v7519 = vld [vmem:[%s532 + $0x1c] sm:$0xf]
        %v7520 = vld [vmem:[%s532 + $0x20] sm:$0xf]
        %v7521 = vld [vmem:[%s532 + $0x24] sm:$0xf]
        %v7522 = vld [vmem:[%s532 + $0x28] sm:$0xf]
        %v7523 = vld [vmem:[%s532 + $0x2c] sm:$0xf]
        %v7524 = vld [vmem:[%s532 + $0x30] sm:$0xf]
        %v7525 = vld [vmem:[%s532 + $0x34] sm:$0xf]
        %v7526 = vld [vmem:[%s532 + $0x38] sm:$0xf]
        %v7527 = vld [vmem:[%s532 + $0x3c] sm:$0xf]
        %v7528 = vlaneseq
        %v7529 = vshrl.u32 %v7528, 7
        %v7530 = vsub.s32 3, %v7529
        %v7531 = vrot.slane %v1085, %v7530
        %v7548 = vunpack.c.l.b16 %v7512
        %v7549 = vunpack.c.l.b16 %v7513
        %v7550 = vunpack.c.l.b16 %v7514
        %v7551 = vunpack.c.l.b16 %v7515
        %v7552 = vunpack.c.l.b16 %v7516
        %v7553 = vunpack.c.l.b16 %v7517
        %v7554 = vunpack.c.l.b16 %v7518
        %v7555 = vunpack.c.l.b16 %v7519
        %v7556 = vunpack.c.l.b16 %v7520
        %v7557 = vunpack.c.l.b16 %v7521
        %v7558 = vunpack.c.l.b16 %v7522
        %v7559 = vunpack.c.l.b16 %v7523
        %v7560 = vunpack.c.l.b16 %v7524
        %v7561 = vunpack.c.l.b16 %v7525
        %v7562 = vunpack.c.l.b16 %v7526
        %v7563 = vunpack.c.l.b16 %v7527
        %v7564 = vpack.c.b16 %v7549, %v7548
        %v7565 = vpack.c.b16 %v7551, %v7550
        %v7566 = vpack.c.b16 %v7553, %v7552
        %v7567 = vpack.c.b16 %v7555, %v7554
        %v7568 = vpack.c.b16 %v7557, %v7556
        %v7569 = vpack.c.b16 %v7559, %v7558
        %v7570 = vpack.c.b16 %v7561, %v7560
        %v7571 = vpack.c.b16 %v7563, %v7562
        %7580 = vmatprep.subr.bf16.mxu0 0
        %7581 = vmatpush1.bf16.msra.mxu0 %v7564
        %7582 = vmatprep.subr.bf16.mxu0 0
        %7583 = vmatpush1.bf16.msra.mxu0 %v7565
        %7584 = vmatprep.subr.bf16.mxu0 0
        %7585 = vmatpush1.bf16.msra.mxu0 %v7566
        %7586 = vmatprep.subr.bf16.mxu0 0
        %7587 = vmatpush1.bf16.msra.mxu0 %v7567
        %7588 = vmatprep.subr.bf16.mxu0 0
        %7589 = vmatpush1.bf16.msra.mxu0 %v7568
        %7590 = vmatprep.subr.bf16.mxu0 0
        %7591 = vmatpush1.bf16.msra.mxu0 %v7569
        %7592 = vmatprep.subr.bf16.mxu0 0
        %7593 = vmatpush1.bf16.msra.mxu0 %v7570
        %7594 = vmatprep.subr.bf16.mxu0 0
        %7595 = vmatpush1.bf16.msra.mxu0 %v7571
        %7596 = vmatprep.subr.bf16.mxu0 0
        %7597 = vmatpush1.bf16.msra.mxu0 0
        %7598 = vmatprep.subr.bf16.mxu0 0
        %7599 = vmatpush1.bf16.msra.mxu0 0
        %7600 = vmatprep.subr.bf16.mxu0 0
        %7601 = vmatpush1.bf16.msra.mxu0 0
        %7602 = vmatprep.subr.bf16.mxu0 0
        %7603 = vmatpush1.bf16.msra.mxu0 0
        %7604 = vmatprep.subr.bf16.mxu0 0
        %7605 = vmatpush1.bf16.msra.mxu0 0
        %7606 = vmatprep.subr.bf16.mxu0 0
        %7607 = vmatpush1.bf16.msra.mxu0 0
        %7608 = vmatprep.subr.bf16.mxu0 0
        %7609 = vmatpush1.bf16.msra.mxu0 0
        %7610 = vmatprep.subr.bf16.mxu0 0
        %7611 = vmatpush1.bf16.msra.mxu0 0
        %7612 = vmatprep.mubr.bf16.mxu0 0
        %7613 = vmatmul.mubr.bf16.gmra.mrb[0].mxu0 %v7496
        %v7614 = vpop.f32.mrb[0].mxu0
        %v7615 = vadd.f32 %v7531, %v7614
        %v7616 = vpop.f32.mrb[0].mxu0
        %v7617 = vpop.f32.mrb[0].mxu0
        %v7618 = vadd.f32 %v7531, %v7617
        %v7619 = vpop.f32.mrb[0].mxu0
        %7620 = vmatprep.mubr.bf16.mxu0 0
        %7621 = vmatmul.mubr.bf16.gmra.mrb[0].mxu0 %v7497
        %v7622 = vpop.f32.mrb[0].mxu0
        %v7623 = vadd.f32 %v7531, %v7622
        %v7624 = vpop.f32.mrb[0].mxu0
        %v7625 = vpop.f32.mrb[0].mxu0
        %v7626 = vadd.f32 %v7531, %v7625
        %v7627 = vpop.f32.mrb[0].mxu0
        %7628 = vmatprep.mubr.bf16.mxu0 0
        %7629 = vmatmul.mubr.bf16.gmra.mrb[0].mxu0 %v7498
        %v7630 = vpop.f32.mrb[0].mxu0
        %v7631 = vadd.f32 %v7531, %v7630
        %v7632 = vpop.f32.mrb[0].mxu0
        %v7633 = vpop.f32.mrb[0].mxu0
        %v7634 = vadd.f32 %v7531, %v7633
        %v7635 = vpop.f32.mrb[0].mxu0
        %7636 = vmatprep.mubr.bf16.mxu0 0
        %7637 = vmatmul.mubr.bf16.gmra.mrb[0].mxu0 %v7499
        %v7638 = vpop.f32.mrb[0].mxu0
        %v7639 = vadd.f32 %v7531, %v7638
        %v7640 = vpop.f32.mrb[0].mxu0
        %v7641 = vpop.f32.mrb[0].mxu0
        %v7642 = vadd.f32 %v7531, %v7641
        %v7643 = vpop.f32.mrb[0].mxu0
        %7644 = vmatprep.mubr.bf16.mxu0 0
        %7645 = vmatmul.mubr.bf16.gmra.mrb[0].mxu0 %v7500
        %v7646 = vpop.f32.mrb[0].mxu0
        %v7647 = vadd.f32 %v7531, %v7646
        %v7648 = vpop.f32.mrb[0].mxu0
        %v7649 = vpop.f32.mrb[0].mxu0
        %v7650 = vadd.f32 %v7531, %v7649
        %v7651 = vpop.f32.mrb[0].mxu0
        %7652 = vmatprep.mubr.bf16.mxu0 0
        %7653 = vmatmul.mubr.bf16.gmra.mrb[0].mxu0 %v7501
        %v7654 = vpop.f32.mrb[0].mxu0
        %v7655 = vadd.f32 %v7531, %v7654
        %v7656 = vpop.f32.mrb[0].mxu0
        %v7657 = vpop.f32.mrb[0].mxu0
        %v7658 = vadd.f32 %v7531, %v7657
        %v7659 = vpop.f32.mrb[0].mxu0
        %7660 = vmatprep.mubr.bf16.mxu0 0
        %7661 = vmatmul.mubr.bf16.gmra.mrb[0].mxu0 %v7502
        %v7662 = vpop.f32.mrb[0].mxu0
        %v7663 = vadd.f32 %v7531, %v7662
        %v7664 = vpop.f32.mrb[0].mxu0
        %v7665 = vpop.f32.mrb[0].mxu0
        %v7666 = vadd.f32 %v7531, %v7665
        %v7667 = vpop.f32.mrb[0].mxu0
        %7668 = vmatprep.mubr.bf16.mxu0 0
        %7669 = vmatmul.mubr.bf16.gmra.mrb[0].mxu0 %v7503
        %v7670 = vpop.f32.mrb[0].mxu0
        %v7671 = vadd.f32 %v7531, %v7670
        %v7672 = vpop.f32.mrb[0].mxu0
        %v7673 = vpop.f32.mrb[0].mxu0
        %v7674 = vadd.f32 %v7531, %v7673
        %v7675 = vpop.f32.mrb[0].mxu0
        %7676 = vmatprep.mubr.bf16.mxu0 0
        %7677 = vmatmul.mubr.bf16.gmra.mrb[0].mxu0 %v7504
        %v7678 = vpop.f32.mrb[0].mxu0
        %v7679 = vadd.f32 %v7531, %v7678
        %v7680 = vpop.f32.mrb[0].mxu0
        %v7681 = vpop.f32.mrb[0].mxu0
        %v7682 = vadd.f32 %v7531, %v7681
        %v7683 = vpop.f32.mrb[0].mxu0
        %7684 = vmatprep.mubr.bf16.mxu0 0
        %7685 = vmatmul.mubr.bf16.gmra.mrb[0].mxu0 %v7505
        %v7686 = vpop.f32.mrb[0].mxu0
        %v7687 = vadd.f32 %v7531, %v7686
        %v7688 = vpop.f32.mrb[0].mxu0
        %v7689 = vpop.f32.mrb[0].mxu0
        %v7690 = vadd.f32 %v7531, %v7689
        %v7691 = vpop.f32.mrb[0].mxu0
        %7692 = vmatprep.mubr.bf16.mxu0 0
        %7693 = vmatmul.mubr.bf16.gmra.mrb[0].mxu0 %v7506
        %v7694 = vpop.f32.mrb[0].mxu0
        %v7695 = vadd.f32 %v7531, %v7694
        %v7696 = vpop.f32.mrb[0].mxu0
        %v7697 = vpop.f32.mrb[0].mxu0
        %v7698 = vadd.f32 %v7531, %v7697
        %v7699 = vpop.f32.mrb[0].mxu0
        %7700 = vmatprep.mubr.bf16.mxu0 0
        %7701 = vmatmul.mubr.bf16.gmra.mrb[0].mxu0 %v7507
        %v7702 = vpop.f32.mrb[0].mxu0
        %v7703 = vadd.f32 %v7531, %v7702
        %v7704 = vpop.f32.mrb[0].mxu0
        %v7705 = vpop.f32.mrb[0].mxu0
        %v7706 = vadd.f32 %v7531, %v7705
        %v7707 = vpop.f32.mrb[0].mxu0
        %7708 = vmatprep.mubr.bf16.mxu0 0
        %7709 = vmatmul.mubr.bf16.gmra.mrb[0].mxu0 %v7508
        %v7710 = vpop.f32.mrb[0].mxu0
        %v7711 = vadd.f32 %v7531, %v7710
        %v7712 = vpop.f32.mrb[0].mxu0
        %v7713 = vpop.f32.mrb[0].mxu0
        %v7714 = vadd.f32 %v7531, %v7713
        %v7715 = vpop.f32.mrb[0].mxu0
        %7716 = vmatprep.mubr.bf16.mxu0 0
        %7717 = vmatmul.mubr.bf16.gmra.mrb[0].mxu0 %v7509
        %v7718 = vpop.f32.mrb[0].mxu0
        %v7719 = vadd.f32 %v7531, %v7718
        %v7720 = vpop.f32.mrb[0].mxu0
        %v7721 = vpop.f32.mrb[0].mxu0
        %v7722 = vadd.f32 %v7531, %v7721
        %v7723 = vpop.f32.mrb[0].mxu0
        %7724 = vmatprep.mubr.bf16.mxu0 0
        %7725 = vmatmul.mubr.bf16.gmra.mrb[0].mxu0 %v7510
        %v7726 = vpop.f32.mrb[0].mxu0
        %v7727 = vadd.f32 %v7531, %v7726
        %v7728 = vpop.f32.mrb[0].mxu0
        %v7729 = vpop.f32.mrb[0].mxu0
        %v7730 = vadd.f32 %v7531, %v7729
        %v7731 = vpop.f32.mrb[0].mxu0
        %7732 = vmatprep.mubr.bf16.mxu0 0
        %7733 = vmatmul.mubr.bf16.gmra.mrb[0].mxu0 %v7511
        %v7734 = vpop.f32.mrb[0].mxu0
        %v7735 = vadd.f32 %v7531, %v7734
        %v7736 = vpop.f32.mrb[0].mxu0
        %v7737 = vpop.f32.mrb[0].mxu0
        %v7738 = vadd.f32 %v7531, %v7737
        %v7739 = vpop.f32.mrb[0].mxu0
        %7740 = vdwg.mxu0
        %v7741 = vadd.f32 %v1053, %v7615
        %v7742 = vadd.f32 %v1054, %v7618
        %v7743 = vadd.f32 %v1055, %v7623
        %v7744 = vadd.f32 %v1056, %v7626
        %v7745 = vadd.f32 %v1057, %v7631
        %v7746 = vadd.f32 %v1058, %v7634
        %v7747 = vadd.f32 %v1059, %v7639
        %v7748 = vadd.f32 %v1060, %v7642
        %v7749 = vadd.f32 %v1061, %v7647
        %v7750 = vadd.f32 %v1062, %v7650
        %v7751 = vadd.f32 %v1063, %v7655
        %v7752 = vadd.f32 %v1064, %v7658
        %v7753 = vadd.f32 %v1065, %v7663
        %v7754 = vadd.f32 %v1066, %v7666
        %v7755 = vadd.f32 %v1067, %v7671
        %v7756 = vadd.f32 %v1068, %v7674
        %v7757 = vadd.f32 %v1069, %v7679
        %v7758 = vadd.f32 %v1070, %v7682
        %v7759 = vadd.f32 %v1071, %v7687
        %v7760 = vadd.f32 %v1072, %v7690
        %v7761 = vadd.f32 %v1073, %v7695
        %v7762 = vadd.f32 %v1074, %v7698
        %v7763 = vadd.f32 %v1075, %v7703
        %v7764 = vadd.f32 %v1076, %v7706
        %v7765 = vadd.f32 %v1077, %v7711
        %v7766 = vadd.f32 %v1078, %v7714
        %v7767 = vadd.f32 %v1079, %v7719
        %v7768 = vadd.f32 %v1080, %v7722
        %v7769 = vadd.f32 %v1081, %v7727
        %v7770 = vadd.f32 %v1082, %v7730
        %v7771 = vadd.f32 %v1083, %v7735
        %v7772 = vadd.f32 %v1084, %v7738
        %7773 = vadd.xlane.f32.xlu0 %v7741
        %v7774 = vpop.xlane.xlu0 %7773
        %7775 = vadd.xlane.f32.xlu0 %v7742
        %v7776 = vpop.xlane.xlu0 %7775
        %7777 = vadd.xlane.f32.xlu0 %v7743
        %v7778 = vpop.xlane.xlu0 %7777
        %7779 = vadd.xlane.f32.xlu0 %v7744
        %v7780 = vpop.xlane.xlu0 %7779
        %7781 = vadd.xlane.f32.xlu0 %v7745
        %v7782 = vpop.xlane.xlu0 %7781
        %7783 = vadd.xlane.f32.xlu0 %v7746
        %v7784 = vpop.xlane.xlu0 %7783
        %7785 = vadd.xlane.f32.xlu0 %v7747
        %v7786 = vpop.xlane.xlu0 %7785
        %7787 = vadd.xlane.f32.xlu0 %v7748
        %v7788 = vpop.xlane.xlu0 %7787
        %7789 = vadd.xlane.f32.xlu0 %v7749
        %v7790 = vpop.xlane.xlu0 %7789
        %7791 = vadd.xlane.f32.xlu0 %v7750
        %v7792 = vpop.xlane.xlu0 %7791
        %7793 = vadd.xlane.f32.xlu0 %v7751
        %v7794 = vpop.xlane.xlu0 %7793
        %7795 = vadd.xlane.f32.xlu0 %v7752
        %v7796 = vpop.xlane.xlu0 %7795
        %7797 = vadd.xlane.f32.xlu0 %v7753
        %v7798 = vpop.xlane.xlu0 %7797
        %7799 = vadd.xlane.f32.xlu0 %v7754
        %v7800 = vpop.xlane.xlu0 %7799
        %7801 = vadd.xlane.f32.xlu0 %v7755
        %v7802 = vpop.xlane.xlu0 %7801
        %7803 = vadd.xlane.f32.xlu0 %v7756
        %v7804 = vpop.xlane.xlu0 %7803
        %7805 = vadd.xlane.f32.xlu0 %v7757
        %v7806 = vpop.xlane.xlu0 %7805
        %7807 = vadd.xlane.f32.xlu0 %v7758
        %v7808 = vpop.xlane.xlu0 %7807
        %7809 = vadd.xlane.f32.xlu0 %v7759
        %v7810 = vpop.xlane.xlu0 %7809
        %7811 = vadd.xlane.f32.xlu0 %v7760
        %v7812 = vpop.xlane.xlu0 %7811
        %7813 = vadd.xlane.f32.xlu0 %v7761
        %v7814 = vpop.xlane.xlu0 %7813
        %7815 = vadd.xlane.f32.xlu0 %v7762
        %v7816 = vpop.xlane.xlu0 %7815
        %7817 = vadd.xlane.f32.xlu0 %v7763
        %v7818 = vpop.xlane.xlu0 %7817
        %7819 = vadd.xlane.f32.xlu0 %v7764
        %v7820 = vpop.xlane.xlu0 %7819
        %7821 = vadd.xlane.f32.xlu0 %v7765
        %v7822 = vpop.xlane.xlu0 %7821
        %7823 = vadd.xlane.f32.xlu0 %v7766
        %v7824 = vpop.xlane.xlu0 %7823
        %7825 = vadd.xlane.f32.xlu0 %v7767
        %v7826 = vpop.xlane.xlu0 %7825
        %7827 = vadd.xlane.f32.xlu0 %v7768
        %v7828 = vpop.xlane.xlu0 %7827
        %7829 = vadd.xlane.f32.xlu0 %v7769
        %v7830 = vpop.xlane.xlu0 %7829
        %7831 = vadd.xlane.f32.xlu0 %v7770
        %v7832 = vpop.xlane.xlu0 %7831
        %7833 = vadd.xlane.f32.xlu0 %v7771
        %v7834 = vpop.xlane.xlu0 %7833
        %7835 = vadd.xlane.f32.xlu0 %v7772
        %v7836 = vpop.xlane.xlu0 %7835
        %v7837 = vrcp.pop 128.0
        %v7838 = vmul.f32 %v7774, %v7837
        %v7839 = vmul.f32 %v7776, %v7837
        %v7840 = vmul.f32 %v7778, %v7837
        %v7841 = vmul.f32 %v7780, %v7837
        %v7842 = vmul.f32 %v7782, %v7837
        %v7843 = vmul.f32 %v7784, %v7837
        %v7844 = vmul.f32 %v7786, %v7837
        %v7845 = vmul.f32 %v7788, %v7837
        %v7846 = vmul.f32 %v7790, %v7837
        %v7847 = vmul.f32 %v7792, %v7837
        %v7848 = vmul.f32 %v7794, %v7837
        %v7849 = vmul.f32 %v7796, %v7837
        %v7850 = vmul.f32 %v7798, %v7837
        %v7851 = vmul.f32 %v7800, %v7837
        %v7852 = vmul.f32 %v7802, %v7837
        %v7853 = vmul.f32 %v7804, %v7837
        %v7854 = vmul.f32 %v7806, %v7837
        %v7855 = vmul.f32 %v7808, %v7837
        %v7856 = vmul.f32 %v7810, %v7837
        %v7857 = vmul.f32 %v7812, %v7837
        %v7858 = vmul.f32 %v7814, %v7837
        %v7859 = vmul.f32 %v7816, %v7837
        %v7860 = vmul.f32 %v7818, %v7837
        %v7861 = vmul.f32 %v7820, %v7837
        %v7862 = vmul.f32 %v7822, %v7837
        %v7863 = vmul.f32 %v7824, %v7837
        %v7864 = vmul.f32 %v7826, %v7837
        %v7865 = vmul.f32 %v7828, %v7837
        %v7866 = vmul.f32 %v7830, %v7837
        %v7867 = vmul.f32 %v7832, %v7837
        %v7868 = vmul.f32 %v7834, %v7837
        %v7869 = vmul.f32 %v7836, %v7837
        %v7870 = vsub.f32 %v7741, %v7838
        %v7871 = vsub.f32 %v7742, %v7839
        %v7872 = vsub.f32 %v7743, %v7840
        %v7873 = vsub.f32 %v7744, %v7841
        %v7874 = vsub.f32 %v7745, %v7842
        %v7875 = vsub.f32 %v7746, %v7843
        %v7876 = vsub.f32 %v7747, %v7844
        %v7877 = vsub.f32 %v7748, %v7845
        %v7878 = vsub.f32 %v7749, %v7846
        %v7879 = vsub.f32 %v7750, %v7847
        %v7880 = vsub.f32 %v7751, %v7848
        %v7881 = vsub.f32 %v7752, %v7849
        %v7882 = vsub.f32 %v7753, %v7850
        %v7883 = vsub.f32 %v7754, %v7851
        %v7884 = vsub.f32 %v7755, %v7852
        %v7885 = vsub.f32 %v7756, %v7853
        %v7886 = vsub.f32 %v7757, %v7854
        %v7887 = vsub.f32 %v7758, %v7855
        %v7888 = vsub.f32 %v7759, %v7856
        %v7889 = vsub.f32 %v7760, %v7857
        %v7890 = vsub.f32 %v7761, %v7858
        %v7891 = vsub.f32 %v7762, %v7859
        %v7892 = vsub.f32 %v7763, %v7860
        %v7893 = vsub.f32 %v7764, %v7861
        %v7894 = vsub.f32 %v7765, %v7862
        %v7895 = vsub.f32 %v7766, %v7863
        %v7896 = vsub.f32 %v7767, %v7864
        %v7897 = vsub.f32 %v7768, %v7865
        %v7898 = vsub.f32 %v7769, %v7866
        %v7899 = vsub.f32 %v7770, %v7867
        %v7900 = vsub.f32 %v7771, %v7868
        %v7901 = vsub.f32 %v7772, %v7869
        %v7902 = vmul.f32 %v7870, %v7870
        %v7903 = vmul.f32 %v7871, %v7871
        %v7904 = vmul.f32 %v7872, %v7872
        %v7905 = vmul.f32 %v7873, %v7873
        %v7906 = vmul.f32 %v7874, %v7874
        %v7907 = vmul.f32 %v7875, %v7875
        %v7908 = vmul.f32 %v7876, %v7876
        %v7909 = vmul.f32 %v7877, %v7877
        %v7910 = vmul.f32 %v7878, %v7878
        %v7911 = vmul.f32 %v7879, %v7879
        %v7912 = vmul.f32 %v7880, %v7880
        %v7913 = vmul.f32 %v7881, %v7881
        %v7914 = vmul.f32 %v7882, %v7882
        %v7915 = vmul.f32 %v7883, %v7883
        %v7916 = vmul.f32 %v7884, %v7884
        %v7917 = vmul.f32 %v7885, %v7885
        %v7918 = vmul.f32 %v7886, %v7886
        %v7919 = vmul.f32 %v7887, %v7887
        %v7920 = vmul.f32 %v7888, %v7888
        %v7921 = vmul.f32 %v7889, %v7889
        %v7922 = vmul.f32 %v7890, %v7890
        %v7923 = vmul.f32 %v7891, %v7891
        %v7924 = vmul.f32 %v7892, %v7892
        %v7925 = vmul.f32 %v7893, %v7893
        %v7926 = vmul.f32 %v7894, %v7894
        %v7927 = vmul.f32 %v7895, %v7895
        %v7928 = vmul.f32 %v7896, %v7896
        %v7929 = vmul.f32 %v7897, %v7897
        %v7930 = vmul.f32 %v7898, %v7898
        %v7931 = vmul.f32 %v7899, %v7899
        %v7932 = vmul.f32 %v7900, %v7900
        %v7933 = vmul.f32 %v7901, %v7901
        %7934 = vadd.xlane.f32.xlu0 %v7902
        %v7935 = vpop.xlane.xlu0 %7934
        %7936 = vadd.xlane.f32.xlu0 %v7903
        %v7937 = vpop.xlane.xlu0 %7936
        %7938 = vadd.xlane.f32.xlu0 %v7904
        %v7939 = vpop.xlane.xlu0 %7938
        %7940 = vadd.xlane.f32.xlu0 %v7905
        %v7941 = vpop.xlane.xlu0 %7940
        %7942 = vadd.xlane.f32.xlu0 %v7906
        %v7943 = vpop.xlane.xlu0 %7942
        %7944 = vadd.xlane.f32.xlu0 %v7907
        %v7945 = vpop.xlane.xlu0 %7944
        %7946 = vadd.xlane.f32.xlu0 %v7908
        %v7947 = vpop.xlane.xlu0 %7946
        %7948 = vadd.xlane.f32.xlu0 %v7909
        %v7949 = vpop.xlane.xlu0 %7948
        %7950 = vadd.xlane.f32.xlu0 %v7910
        %v7951 = vpop.xlane.xlu0 %7950
        %7952 = vadd.xlane.f32.xlu0 %v7911
        %v7953 = vpop.xlane.xlu0 %7952
        %7954 = vadd.xlane.f32.xlu0 %v7912
        %v7955 = vpop.xlane.xlu0 %7954
        %7956 = vadd.xlane.f32.xlu0 %v7913
        %v7957 = vpop.xlane.xlu0 %7956
        %7958 = vadd.xlane.f32.xlu0 %v7914
        %v7959 = vpop.xlane.xlu0 %7958
        %7960 = vadd.xlane.f32.xlu0 %v7915
        %v7961 = vpop.xlane.xlu0 %7960
        %7962 = vadd.xlane.f32.xlu0 %v7916
        %v7963 = vpop.xlane.xlu0 %7962
        %7964 = vadd.xlane.f32.xlu0 %v7917
        %v7965 = vpop.xlane.xlu0 %7964
        %7966 = vadd.xlane.f32.xlu0 %v7918
        %v7967 = vpop.xlane.xlu0 %7966
        %7968 = vadd.xlane.f32.xlu0 %v7919
        %v7969 = vpop.xlane.xlu0 %7968
        %7970 = vadd.xlane.f32.xlu0 %v7920
        %v7971 = vpop.xlane.xlu0 %7970
        %7972 = vadd.xlane.f32.xlu0 %v7921
        %v7973 = vpop.xlane.xlu0 %7972
        %7974 = vadd.xlane.f32.xlu0 %v7922
        %v7975 = vpop.xlane.xlu0 %7974
        %7976 = vadd.xlane.f32.xlu0 %v7923
        %v7977 = vpop.xlane.xlu0 %7976
        %7978 = vadd.xlane.f32.xlu0 %v7924
        %v7979 = vpop.xlane.xlu0 %7978
        %7980 = vadd.xlane.f32.xlu0 %v7925
        %v7981 = vpop.xlane.xlu0 %7980
        %7982 = vadd.xlane.f32.xlu0 %v7926
        %v7983 = vpop.xlane.xlu0 %7982
        %7984 = vadd.xlane.f32.xlu0 %v7927
        %v7985 = vpop.xlane.xlu0 %7984
        %7986 = vadd.xlane.f32.xlu0 %v7928
        %v7987 = vpop.xlane.xlu0 %7986
        %7988 = vadd.xlane.f32.xlu0 %v7929
        %v7989 = vpop.xlane.xlu0 %7988
        %7990 = vadd.xlane.f32.xlu0 %v7930
        %v7991 = vpop.xlane.xlu0 %7990
        %7992 = vadd.xlane.f32.xlu0 %v7931
        %v7993 = vpop.xlane.xlu0 %7992
        %7994 = vadd.xlane.f32.xlu0 %v7932
        %v7995 = vpop.xlane.xlu0 %7994
        %7996 = vadd.xlane.f32.xlu0 %v7933
        %v7997 = vpop.xlane.xlu0 %7996
        %v7998 = vmul.f32 %v7935, %v7837
        %v7999 = vmul.f32 %v7937, %v7837
        %v8000 = vmul.f32 %v7939, %v7837
        %v8001 = vmul.f32 %v7941, %v7837
        %v8002 = vmul.f32 %v7943, %v7837
        %v8003 = vmul.f32 %v7945, %v7837
        %v8004 = vmul.f32 %v7947, %v7837
        %v8005 = vmul.f32 %v7949, %v7837
        %v8006 = vmul.f32 %v7951, %v7837
        %v8007 = vmul.f32 %v7953, %v7837
        %v8008 = vmul.f32 %v7955, %v7837
        %v8009 = vmul.f32 %v7957, %v7837
        %v8010 = vmul.f32 %v7959, %v7837
        %v8011 = vmul.f32 %v7961, %v7837
        %v8012 = vmul.f32 %v7963, %v7837
        %v8013 = vmul.f32 %v7965, %v7837
        %v8014 = vmul.f32 %v7967, %v7837
        %v8015 = vmul.f32 %v7969, %v7837
        %v8016 = vmul.f32 %v7971, %v7837
        %v8017 = vmul.f32 %v7973, %v7837
        %v8018 = vmul.f32 %v7975, %v7837
        %v8019 = vmul.f32 %v7977, %v7837
        %v8020 = vmul.f32 %v7979, %v7837
        %v8021 = vmul.f32 %v7981, %v7837
        %v8022 = vmul.f32 %v7983, %v7837
        %v8023 = vmul.f32 %v7985, %v7837
        %v8024 = vmul.f32 %v7987, %v7837
        %v8025 = vmul.f32 %v7989, %v7837
        %v8026 = vmul.f32 %v7991, %v7837
        %v8027 = vmul.f32 %v7993, %v7837
        %v8028 = vmul.f32 %v7995, %v7837
        %v8029 = vmul.f32 %v7997, %v7837
        %v8030 = vadd.f32 %v7998, 1e-12
        %v8031 = vadd.f32 %v7999, 1e-12
        %v8032 = vadd.f32 %v8000, 1e-12
        %v8033 = vadd.f32 %v8001, 1e-12
        %v8034 = vadd.f32 %v8002, 1e-12
        %v8035 = vadd.f32 %v8003, 1e-12
        %v8036 = vadd.f32 %v8004, 1e-12
        %v8037 = vadd.f32 %v8005, 1e-12
        %v8038 = vadd.f32 %v8006, 1e-12
        %v8039 = vadd.f32 %v8007, 1e-12
        %v8040 = vadd.f32 %v8008, 1e-12
        %v8041 = vadd.f32 %v8009, 1e-12
        %v8042 = vadd.f32 %v8010, 1e-12
        %v8043 = vadd.f32 %v8011, 1e-12
        %v8044 = vadd.f32 %v8012, 1e-12
        %v8045 = vadd.f32 %v8013, 1e-12
        %v8046 = vadd.f32 %v8014, 1e-12
        %v8047 = vadd.f32 %v8015, 1e-12
        %v8048 = vadd.f32 %v8016, 1e-12
        %v8049 = vadd.f32 %v8017, 1e-12
        %v8050 = vadd.f32 %v8018, 1e-12
        %v8051 = vadd.f32 %v8019, 1e-12
        %v8052 = vadd.f32 %v8020, 1e-12
        %v8053 = vadd.f32 %v8021, 1e-12
        %v8054 = vadd.f32 %v8022, 1e-12
        %v8055 = vadd.f32 %v8023, 1e-12
        %v8056 = vadd.f32 %v8024, 1e-12
        %v8057 = vadd.f32 %v8025, 1e-12
        %v8058 = vadd.f32 %v8026, 1e-12
        %v8059 = vadd.f32 %v8027, 1e-12
        %v8060 = vadd.f32 %v8028, 1e-12
        %v8061 = vadd.f32 %v8029, 1e-12
        %v8062 = vrsqrt.pop %v8030
        %v8063 = vrsqrt.pop %v8031
        %v8064 = vrsqrt.pop %v8032
        %v8065 = vrsqrt.pop %v8033
        %v8066 = vrsqrt.pop %v8034
        %v8067 = vrsqrt.pop %v8035
        %v8068 = vrsqrt.pop %v8036
        %v8069 = vrsqrt.pop %v8037
        %v8070 = vrsqrt.pop %v8038
        %v8071 = vrsqrt.pop %v8039
        %v8072 = vrsqrt.pop %v8040
        %v8073 = vrsqrt.pop %v8041
        %v8074 = vrsqrt.pop %v8042
        %v8075 = vrsqrt.pop %v8043
        %v8076 = vrsqrt.pop %v8044
        %v8077 = vrsqrt.pop %v8045
        %v8078 = vrsqrt.pop %v8046
        %v8079 = vrsqrt.pop %v8047
        %v8080 = vrsqrt.pop %v8048
        %v8081 = vrsqrt.pop %v8049
        %v8082 = vrsqrt.pop %v8050
        %v8083 = vrsqrt.pop %v8051
        %v8084 = vrsqrt.pop %v8052
        %v8085 = vrsqrt.pop %v8053
        %v8086 = vrsqrt.pop %v8054
        %v8087 = vrsqrt.pop %v8055
        %v8088 = vrsqrt.pop %v8056
        %v8089 = vrsqrt.pop %v8057
        %v8090 = vrsqrt.pop %v8058
        %v8091 = vrsqrt.pop %v8059
        %v8092 = vrsqrt.pop %v8060
        %v8093 = vrsqrt.pop %v8061
        %v8094 = vmul.f32 %v7870, %v8062
        %v8095 = vmul.f32 %v7871, %v8063
        %v8096 = vmul.f32 %v7872, %v8064
        %v8097 = vmul.f32 %v7873, %v8065
        %v8098 = vmul.f32 %v7874, %v8066
        %v8099 = vmul.f32 %v7875, %v8067
        %v8100 = vmul.f32 %v7876, %v8068
        %v8101 = vmul.f32 %v7877, %v8069
        %v8102 = vmul.f32 %v7878, %v8070
        %v8103 = vmul.f32 %v7879, %v8071
        %v8104 = vmul.f32 %v7880, %v8072
        %v8105 = vmul.f32 %v7881, %v8073
        %v8106 = vmul.f32 %v7882, %v8074
        %v8107 = vmul.f32 %v7883, %v8075
        %v8108 = vmul.f32 %v7884, %v8076
        %v8109 = vmul.f32 %v7885, %v8077
        %v8110 = vmul.f32 %v7886, %v8078
        %v8111 = vmul.f32 %v7887, %v8079
        %v8112 = vmul.f32 %v7888, %v8080
        %v8113 = vmul.f32 %v7889, %v8081
        %v8114 = vmul.f32 %v7890, %v8082
        %v8115 = vmul.f32 %v7891, %v8083
        %v8116 = vmul.f32 %v7892, %v8084
        %v8117 = vmul.f32 %v7893, %v8085
        %v8118 = vmul.f32 %v7894, %v8086
        %v8119 = vmul.f32 %v7895, %v8087
        %v8120 = vmul.f32 %v7896, %v8088
        %v8121 = vmul.f32 %v7897, %v8089
        %v8122 = vmul.f32 %v7898, %v8090
        %v8123 = vmul.f32 %v7899, %v8091
        %v8124 = vmul.f32 %v7900, %v8092
        %v8125 = vmul.f32 %v7901, %v8093
        %v8126 = vlaneseq
        %v8127 = vshrl.u32 %v8126, 7
        %v8128 = vsub.s32 5, %v8127
        %v8129 = vrot.slane %v1085, %v8128
        %v8130 = vmul.f32 %v8094, %v8129
        %v8131 = vmul.f32 %v8095, %v8129
        %v8132 = vmul.f32 %v8096, %v8129
        %v8133 = vmul.f32 %v8097, %v8129
        %v8134 = vmul.f32 %v8098, %v8129
        %v8135 = vmul.f32 %v8099, %v8129
        %v8136 = vmul.f32 %v8100, %v8129
        %v8137 = vmul.f32 %v8101, %v8129
        %v8138 = vmul.f32 %v8102, %v8129
        %v8139 = vmul.f32 %v8103, %v8129
        %v8140 = vmul.f32 %v8104, %v8129
        %v8141 = vmul.f32 %v8105, %v8129
        %v8142 = vmul.f32 %v8106, %v8129
        %v8143 = vmul.f32 %v8107, %v8129
        %v8144 = vmul.f32 %v8108, %v8129
        %v8145 = vmul.f32 %v8109, %v8129
        %v8146 = vmul.f32 %v8110, %v8129
        %v8147 = vmul.f32 %v8111, %v8129
        %v8148 = vmul.f32 %v8112, %v8129
        %v8149 = vmul.f32 %v8113, %v8129
        %v8150 = vmul.f32 %v8114, %v8129
        %v8151 = vmul.f32 %v8115, %v8129
        %v8152 = vmul.f32 %v8116, %v8129
        %v8153 = vmul.f32 %v8117, %v8129
        %v8154 = vmul.f32 %v8118, %v8129
        %v8155 = vmul.f32 %v8119, %v8129
        %v8156 = vmul.f32 %v8120, %v8129
        %v8157 = vmul.f32 %v8121, %v8129
        %v8158 = vmul.f32 %v8122, %v8129
        %v8159 = vmul.f32 %v8123, %v8129
        %v8160 = vmul.f32 %v8124, %v8129
        %v8161 = vmul.f32 %v8125, %v8129
        %v8162 = vlaneseq
        %v8163 = vshrl.u32 %v8162, 7
        %v8164 = vsub.s32 6, %v8163
        %v8165 = vrot.slane %v1085, %v8164
        %v8166 = vadd.f32 %v8130, %v8165
        %v8167 = vadd.f32 %v8131, %v8165
        %v8168 = vadd.f32 %v8132, %v8165
        %v8169 = vadd.f32 %v8133, %v8165
        %v8170 = vadd.f32 %v8134, %v8165
        %v8171 = vadd.f32 %v8135, %v8165
        %v8172 = vadd.f32 %v8136, %v8165
        %v8173 = vadd.f32 %v8137, %v8165
        %v8174 = vadd.f32 %v8138, %v8165
        %v8175 = vadd.f32 %v8139, %v8165
        %v8176 = vadd.f32 %v8140, %v8165
        %v8177 = vadd.f32 %v8141, %v8165
        %v8178 = vadd.f32 %v8142, %v8165
        %v8179 = vadd.f32 %v8143, %v8165
        %v8180 = vadd.f32 %v8144, %v8165
        %v8181 = vadd.f32 %v8145, %v8165
        %v8182 = vadd.f32 %v8146, %v8165
        %v8183 = vadd.f32 %v8147, %v8165
        %v8184 = vadd.f32 %v8148, %v8165
        %v8185 = vadd.f32 %v8149, %v8165
        %v8186 = vadd.f32 %v8150, %v8165
        %v8187 = vadd.f32 %v8151, %v8165
        %v8188 = vadd.f32 %v8152, %v8165
        %v8189 = vadd.f32 %v8153, %v8165
        %v8190 = vadd.f32 %v8154, %v8165
        %v8191 = vadd.f32 %v8155, %v8165
        %v8192 = vadd.f32 %v8156, %v8165
        %v8193 = vadd.f32 %v8157, %v8165
        %v8194 = vadd.f32 %v8158, %v8165
        %v8195 = vadd.f32 %v8159, %v8165
        %v8196 = vadd.f32 %v8160, %v8165
        %v8197 = vadd.f32 %v8161, %v8165
        %v8198 = vpack.c.bf16 %v8167, %v8166
        %v8199 = vpack.c.bf16 %v8169, %v8168
        %v8200 = vpack.c.bf16 %v8171, %v8170
        %v8201 = vpack.c.bf16 %v8173, %v8172
        %v8202 = vpack.c.bf16 %v8175, %v8174
        %v8203 = vpack.c.bf16 %v8177, %v8176
        %v8204 = vpack.c.bf16 %v8179, %v8178
        %v8205 = vpack.c.bf16 %v8181, %v8180
        %v8206 = vpack.c.bf16 %v8183, %v8182
        %v8207 = vpack.c.bf16 %v8185, %v8184
        %v8208 = vpack.c.bf16 %v8187, %v8186
        %v8209 = vpack.c.bf16 %v8189, %v8188
        %v8210 = vpack.c.bf16 %v8191, %v8190
        %v8211 = vpack.c.bf16 %v8193, %v8192
        %v8212 = vpack.c.bf16 %v8195, %v8194
        %v8213 = vpack.c.bf16 %v8197, %v8196
        %v8214 = vld [vmem:[%s537] sm:$0xff]
        %v8215 = vld [vmem:[%s537 + $0x8] sm:$0xff]
        %v8216 = vld [vmem:[%s537 + $0x10] sm:$0xff]
        %v8217 = vld [vmem:[%s537 + $0x18] sm:$0xff]
        %v8218 = vld [vmem:[%s537 + $0x20] sm:$0xff]
        %v8219 = vld [vmem:[%s537 + $0x28] sm:$0xff]
        %v8220 = vld [vmem:[%s537 + $0x30] sm:$0xff]
        %v8221 = vld [vmem:[%s537 + $0x38] sm:$0xff]
        %v8222 = vld [vmem:[%s537 + $0x40] sm:$0xff]
        %v8223 = vld [vmem:[%s537 + $0x48] sm:$0xff]
        %v8224 = vld [vmem:[%s537 + $0x50] sm:$0xff]
        %v8225 = vld [vmem:[%s537 + $0x58] sm:$0xff]
        %v8226 = vld [vmem:[%s537 + $0x60] sm:$0xff]
        %v8227 = vld [vmem:[%s537 + $0x68] sm:$0xff]
        %v8228 = vld [vmem:[%s537 + $0x70] sm:$0xff]
        %v8229 = vld [vmem:[%s537 + $0x78] sm:$0xff]
        %v8230 = vld [vmem:[%s537 + $0x80] sm:$0xff]
        %v8231 = vld [vmem:[%s537 + $0x88] sm:$0xff]
        %v8232 = vld [vmem:[%s537 + $0x90] sm:$0xff]
        %v8233 = vld [vmem:[%s537 + $0x98] sm:$0xff]
        %v8234 = vld [vmem:[%s537 + $0xa0] sm:$0xff]
        %v8235 = vld [vmem:[%s537 + $0xa8] sm:$0xff]
        %v8236 = vld [vmem:[%s537 + $0xb0] sm:$0xff]
        %v8237 = vld [vmem:[%s537 + $0xb8] sm:$0xff]
        %v8238 = vld [vmem:[%s537 + $0xc0] sm:$0xff]
        %v8239 = vld [vmem:[%s537 + $0xc8] sm:$0xff]
        %v8240 = vld [vmem:[%s537 + $0xd0] sm:$0xff]
        %v8241 = vld [vmem:[%s537 + $0xd8] sm:$0xff]
        %v8242 = vld [vmem:[%s537 + $0xe0] sm:$0xff]
        %v8243 = vld [vmem:[%s537 + $0xe8] sm:$0xff]
        %v8244 = vld [vmem:[%s537 + $0xf0] sm:$0xff]
        %v8245 = vld [vmem:[%s537 + $0xf8] sm:$0xff]
        %v8247 = vlaneseq
        %v8248 = vshrl.u32 %v8247, 7
        %v8249 = vsub.s32 0, %v8248
        %v8250 = vrot.slane %v1087, %v8249
        %v8251 = vlaneseq
        %v8252 = vshrl.u32 %v8251, 7
        %v8253 = vsub.s32 1, %v8252
        %v8254 = vrot.slane %v1087, %v8253
        %v8255 = vlaneseq
        %v8256 = vshrl.u32 %v8255, 7
        %v8257 = vsub.s32 2, %v8256
        %v8258 = vrot.slane %v1087, %v8257
        %v8259 = vlaneseq
        %v8260 = vshrl.u32 %v8259, 7
        %v8261 = vsub.s32 3, %v8260
        %v8262 = vrot.slane %v1087, %v8261
        %v8299 = vunpack.c.l.b16 %v8214
        %v8300 = vunpack.c.h.b16 %v8214
        %v8301 = vunpack.c.l.b16 %v8215
        %v8302 = vunpack.c.h.b16 %v8215
        %v8303 = vunpack.c.l.b16 %v8216
        %v8304 = vunpack.c.h.b16 %v8216
        %v8305 = vunpack.c.l.b16 %v8217
        %v8306 = vunpack.c.h.b16 %v8217
        %v8307 = vunpack.c.l.b16 %v8218
        %v8308 = vunpack.c.h.b16 %v8218
        %v8309 = vunpack.c.l.b16 %v8219
        %v8310 = vunpack.c.h.b16 %v8219
        %v8311 = vunpack.c.l.b16 %v8220
        %v8312 = vunpack.c.h.b16 %v8220
        %v8313 = vunpack.c.l.b16 %v8221
        %v8314 = vunpack.c.h.b16 %v8221
        %v8315 = vunpack.c.l.b16 %v8222
        %v8316 = vunpack.c.h.b16 %v8222
        %v8317 = vunpack.c.l.b16 %v8223
        %v8318 = vunpack.c.h.b16 %v8223
        %v8319 = vunpack.c.l.b16 %v8224
        %v8320 = vunpack.c.h.b16 %v8224
        %v8321 = vunpack.c.l.b16 %v8225
        %v8322 = vunpack.c.h.b16 %v8225
        %v8323 = vunpack.c.l.b16 %v8226
        %v8324 = vunpack.c.h.b16 %v8226
        %v8325 = vunpack.c.l.b16 %v8227
        %v8326 = vunpack.c.h.b16 %v8227
        %v8327 = vunpack.c.l.b16 %v8228
        %v8328 = vunpack.c.h.b16 %v8228
        %v8329 = vunpack.c.l.b16 %v8229
        %v8330 = vunpack.c.h.b16 %v8229
        %v8331 = vunpack.c.l.b16 %v8230
        %v8332 = vunpack.c.h.b16 %v8230
        %v8333 = vunpack.c.l.b16 %v8231
        %v8334 = vunpack.c.h.b16 %v8231
        %v8335 = vunpack.c.l.b16 %v8232
        %v8336 = vunpack.c.h.b16 %v8232
        %v8337 = vunpack.c.l.b16 %v8233
        %v8338 = vunpack.c.h.b16 %v8233
        %v8339 = vunpack.c.l.b16 %v8234
        %v8340 = vunpack.c.h.b16 %v8234
        %v8341 = vunpack.c.l.b16 %v8235
        %v8342 = vunpack.c.h.b16 %v8235
        %v8343 = vunpack.c.l.b16 %v8236
        %v8344 = vunpack.c.h.b16 %v8236
        %v8345 = vunpack.c.l.b16 %v8237
        %v8346 = vunpack.c.h.b16 %v8237
        %v8347 = vunpack.c.l.b16 %v8238
        %v8348 = vunpack.c.h.b16 %v8238
        %v8349 = vunpack.c.l.b16 %v8239
        %v8350 = vunpack.c.h.b16 %v8239
        %v8351 = vunpack.c.l.b16 %v8240
        %v8352 = vunpack.c.h.b16 %v8240
        %v8353 = vunpack.c.l.b16 %v8241
        %v8354 = vunpack.c.h.b16 %v8241
        %v8355 = vunpack.c.l.b16 %v8242
        %v8356 = vunpack.c.h.b16 %v8242
        %v8357 = vunpack.c.l.b16 %v8243
        %v8358 = vunpack.c.h.b16 %v8243
        %v8359 = vunpack.c.l.b16 %v8244
        %v8360 = vunpack.c.h.b16 %v8244
        %v8361 = vunpack.c.l.b16 %v8245
        %v8362 = vunpack.c.h.b16 %v8245
        %v8363 = vpack.c.b16 %v8303, %v8299
        %v8364 = vpack.c.b16 %v8304, %v8300
        %v8365 = vpack.c.b16 %v8305, %v8301
        %v8366 = vpack.c.b16 %v8306, %v8302
        %v8367 = vpack.c.b16 %v8311, %v8307
        %v8368 = vpack.c.b16 %v8312, %v8308
        %v8369 = vpack.c.b16 %v8313, %v8309
        %v8370 = vpack.c.b16 %v8314, %v8310
        %v8371 = vpack.c.b16 %v8319, %v8315
        %v8372 = vpack.c.b16 %v8320, %v8316
        %v8373 = vpack.c.b16 %v8321, %v8317
        %v8374 = vpack.c.b16 %v8322, %v8318
        %v8375 = vpack.c.b16 %v8327, %v8323
        %v8376 = vpack.c.b16 %v8328, %v8324
        %v8377 = vpack.c.b16 %v8329, %v8325
        %v8378 = vpack.c.b16 %v8330, %v8326
        %v8379 = vpack.c.b16 %v8335, %v8331
        %v8380 = vpack.c.b16 %v8336, %v8332
        %v8381 = vpack.c.b16 %v8337, %v8333
        %v8382 = vpack.c.b16 %v8338, %v8334
        %v8383 = vpack.c.b16 %v8343, %v8339
        %v8384 = vpack.c.b16 %v8344, %v8340
        %v8385 = vpack.c.b16 %v8345, %v8341
        %v8386 = vpack.c.b16 %v8346, %v8342
        %v8387 = vpack.c.b16 %v8351, %v8347
        %v8388 = vpack.c.b16 %v8352, %v8348
        %v8389 = vpack.c.b16 %v8353, %v8349
        %v8390 = vpack.c.b16 %v8354, %v8350
        %v8391 = vpack.c.b16 %v8359, %v8355
        %v8392 = vpack.c.b16 %v8360, %v8356
        %v8393 = vpack.c.b16 %v8361, %v8357
        %v8394 = vpack.c.b16 %v8362, %v8358
        %8427 = vmatprep.subr.bf16.mxu0 %v8364
        %8428 = vmatpush1.bf16.msra.mxu0 %v8363
        %8429 = vmatprep.subr.bf16.mxu0 %v8368
        %8430 = vmatpush1.bf16.msra.mxu0 %v8367
        %8431 = vmatprep.subr.bf16.mxu0 %v8372
        %8432 = vmatpush1.bf16.msra.mxu0 %v8371
        %8433 = vmatprep.subr.bf16.mxu0 %v8376
        %8434 = vmatpush1.bf16.msra.mxu0 %v8375
        %8435 = vmatprep.subr.bf16.mxu0 %v8380
        %8436 = vmatpush1.bf16.msra.mxu0 %v8379
        %8437 = vmatprep.subr.bf16.mxu0 %v8384
        %8438 = vmatpush1.bf16.msra.mxu0 %v8383
        %8439 = vmatprep.subr.bf16.mxu0 %v8388
        %8440 = vmatpush1.bf16.msra.mxu0 %v8387
        %8441 = vmatprep.subr.bf16.mxu0 %v8392
        %8442 = vmatpush1.bf16.msra.mxu0 %v8391
        %8443 = vmatprep.subr.bf16.mxu0 0
        %8444 = vmatpush1.bf16.msra.mxu0 0
        %8445 = vmatprep.subr.bf16.mxu0 0
        %8446 = vmatpush1.bf16.msra.mxu0 0
        %8447 = vmatprep.subr.bf16.mxu0 0
        %8448 = vmatpush1.bf16.msra.mxu0 0
        %8449 = vmatprep.subr.bf16.mxu0 0
        %8450 = vmatpush1.bf16.msra.mxu0 0
        %8451 = vmatprep.subr.bf16.mxu0 0
        %8452 = vmatpush1.bf16.msra.mxu0 0
        %8453 = vmatprep.subr.bf16.mxu0 0
        %8454 = vmatpush1.bf16.msra.mxu0 0
        %8455 = vmatprep.subr.bf16.mxu0 0
        %8456 = vmatpush1.bf16.msra.mxu0 0
        %8457 = vmatprep.subr.bf16.mxu0 0
        %8458 = vmatpush1.bf16.msra.mxu0 0
        %8459 = vmatprep.mubr.bf16.mxu0 0
        %8460 = vmatmul.mubr.bf16.gmra.mrb[0].mxu0 %v8198
        %v8461 = vpop.f32.mrb[0].mxu0
        %v8462 = vadd.f32 %v8250, %v8461
        %v8463 = vpop.f32.mrb[0].mxu0
        %v8464 = vadd.f32 %v8254, %v8463
        %v8465 = vpop.f32.mrb[0].mxu0
        %v8466 = vadd.f32 %v8250, %v8465
        %v8467 = vpop.f32.mrb[0].mxu0
        %v8468 = vadd.f32 %v8254, %v8467
        %8469 = vmatprep.mubr.bf16.mxu0 0
        %8470 = vmatmul.mubr.bf16.gmra.mrb[0].mxu0 %v8199
        %v8471 = vpop.f32.mrb[0].mxu0
        %v8472 = vadd.f32 %v8250, %v8471
        %v8473 = vpop.f32.mrb[0].mxu0
        %v8474 = vadd.f32 %v8254, %v8473
        %v8475 = vpop.f32.mrb[0].mxu0
        %v8476 = vadd.f32 %v8250, %v8475
        %v8477 = vpop.f32.mrb[0].mxu0
        %v8478 = vadd.f32 %v8254, %v8477
        %8479 = vmatprep.mubr.bf16.mxu0 0
        %8480 = vmatmul.mubr.bf16.gmra.mrb[0].mxu0 %v8200
        %v8481 = vpop.f32.mrb[0].mxu0
        %v8482 = vadd.f32 %v8250, %v8481
        %v8483 = vpop.f32.mrb[0].mxu0
        %v8484 = vadd.f32 %v8254, %v8483
        %v8485 = vpop.f32.mrb[0].mxu0
        %v8486 = vadd.f32 %v8250, %v8485
        %v8487 = vpop.f32.mrb[0].mxu0
        %v8488 = vadd.f32 %v8254, %v8487
        %8489 = vmatprep.mubr.bf16.mxu0 0
        %8490 = vmatmul.mubr.bf16.gmra.mrb[0].mxu0 %v8201
        %v8491 = vpop.f32.mrb[0].mxu0
        %v8492 = vadd.f32 %v8250, %v8491
        %v8493 = vpop.f32.mrb[0].mxu0
        %v8494 = vadd.f32 %v8254, %v8493
        %v8495 = vpop.f32.mrb[0].mxu0
        %v8496 = vadd.f32 %v8250, %v8495
        %v8497 = vpop.f32.mrb[0].mxu0
        %v8498 = vadd.f32 %v8254, %v8497
        %8499 = vmatprep.mubr.bf16.mxu0 0
        %8500 = vmatmul.mubr.bf16.gmra.mrb[0].mxu0 %v8202
        %v8501 = vpop.f32.mrb[0].mxu0
        %v8502 = vadd.f32 %v8250, %v8501
        %v8503 = vpop.f32.mrb[0].mxu0
        %v8504 = vadd.f32 %v8254, %v8503
        %v8505 = vpop.f32.mrb[0].mxu0
        %v8506 = vadd.f32 %v8250, %v8505
        %v8507 = vpop.f32.mrb[0].mxu0
        %v8508 = vadd.f32 %v8254, %v8507
        %8509 = vmatprep.mubr.bf16.mxu0 0
        %8510 = vmatmul.mubr.bf16.gmra.mrb[0].mxu0 %v8203
        %v8511 = vpop.f32.mrb[0].mxu0
        %v8512 = vadd.f32 %v8250, %v8511
        %v8513 = vpop.f32.mrb[0].mxu0
        %v8514 = vadd.f32 %v8254, %v8513
        %v8515 = vpop.f32.mrb[0].mxu0
        %v8516 = vadd.f32 %v8250, %v8515
        %v8517 = vpop.f32.mrb[0].mxu0
        %v8518 = vadd.f32 %v8254, %v8517
        %8519 = vmatprep.mubr.bf16.mxu0 0
        %8520 = vmatmul.mubr.bf16.gmra.mrb[0].mxu0 %v8204
        %v8521 = vpop.f32.mrb[0].mxu0
        %v8522 = vadd.f32 %v8250, %v8521
        %v8523 = vpop.f32.mrb[0].mxu0
        %v8524 = vadd.f32 %v8254, %v8523
        %v8525 = vpop.f32.mrb[0].mxu0
        %v8526 = vadd.f32 %v8250, %v8525
        %v8527 = vpop.f32.mrb[0].mxu0
        %v8528 = vadd.f32 %v8254, %v8527
        %8529 = vmatprep.mubr.bf16.mxu0 0
        %8530 = vmatmul.mubr.bf16.gmra.mrb[0].mxu0 %v8205
        %v8531 = vpop.f32.mrb[0].mxu0
        %v8532 = vadd.f32 %v8250, %v8531
        %v8533 = vpop.f32.mrb[0].mxu0
        %v8534 = vadd.f32 %v8254, %v8533
        %v8535 = vpop.f32.mrb[0].mxu0
        %v8536 = vadd.f32 %v8250, %v8535
        %v8537 = vpop.f32.mrb[0].mxu0
        %v8538 = vadd.f32 %v8254, %v8537
        %8539 = vmatprep.mubr.bf16.mxu0 0
        %8540 = vmatmul.mubr.bf16.gmra.mrb[0].mxu0 %v8206
        %v8541 = vpop.f32.mrb[0].mxu0
        %v8542 = vadd.f32 %v8250, %v8541
        %v8543 = vpop.f32.mrb[0].mxu0
        %v8544 = vadd.f32 %v8254, %v8543
        %v8545 = vpop.f32.mrb[0].mxu0
        %v8546 = vadd.f32 %v8250, %v8545
        %v8547 = vpop.f32.mrb[0].mxu0
        %v8548 = vadd.f32 %v8254, %v8547
        %8549 = vmatprep.mubr.bf16.mxu0 0
        %8550 = vmatmul.mubr.bf16.gmra.mrb[0].mxu0 %v8207
        %v8551 = vpop.f32.mrb[0].mxu0
        %v8552 = vadd.f32 %v8250, %v8551
        %v8553 = vpop.f32.mrb[0].mxu0
        %v8554 = vadd.f32 %v8254, %v8553
        %v8555 = vpop.f32.mrb[0].mxu0
        %v8556 = vadd.f32 %v8250, %v8555
        %v8557 = vpop.f32.mrb[0].mxu0
        %v8558 = vadd.f32 %v8254, %v8557
        %8559 = vmatprep.mubr.bf16.mxu0 0
        %8560 = vmatmul.mubr.bf16.gmra.mrb[0].mxu0 %v8208
        %v8561 = vpop.f32.mrb[0].mxu0
        %v8562 = vadd.f32 %v8250, %v8561
        %v8563 = vpop.f32.mrb[0].mxu0
        %v8564 = vadd.f32 %v8254, %v8563
        %v8565 = vpop.f32.mrb[0].mxu0
        %v8566 = vadd.f32 %v8250, %v8565
        %v8567 = vpop.f32.mrb[0].mxu0
        %v8568 = vadd.f32 %v8254, %v8567
        %8569 = vmatprep.mubr.bf16.mxu0 0
        %8570 = vmatmul.mubr.bf16.gmra.mrb[0].mxu0 %v8209
        %v8571 = vpop.f32.mrb[0].mxu0
        %v8572 = vadd.f32 %v8250, %v8571
        %v8573 = vpop.f32.mrb[0].mxu0
        %v8574 = vadd.f32 %v8254, %v8573
        %v8575 = vpop.f32.mrb[0].mxu0
        %v8576 = vadd.f32 %v8250, %v8575
        %v8577 = vpop.f32.mrb[0].mxu0
        %v8578 = vadd.f32 %v8254, %v8577
        %8579 = vmatprep.mubr.bf16.mxu0 0
        %8580 = vmatmul.mubr.bf16.gmra.mrb[0].mxu0 %v8210
        %v8581 = vpop.f32.mrb[0].mxu0
        %v8582 = vadd.f32 %v8250, %v8581
        %v8583 = vpop.f32.mrb[0].mxu0
        %v8584 = vadd.f32 %v8254, %v8583
        %v8585 = vpop.f32.mrb[0].mxu0
        %v8586 = vadd.f32 %v8250, %v8585
        %v8587 = vpop.f32.mrb[0].mxu0
        %v8588 = vadd.f32 %v8254, %v8587
        %8589 = vmatprep.mubr.bf16.mxu0 0
        %8590 = vmatmul.mubr.bf16.gmra.mrb[0].mxu0 %v8211
        %v8591 = vpop.f32.mrb[0].mxu0
        %v8592 = vadd.f32 %v8250, %v8591
        %v8593 = vpop.f32.mrb[0].mxu0
        %v8594 = vadd.f32 %v8254, %v8593
        %v8595 = vpop.f32.mrb[0].mxu0
        %v8596 = vadd.f32 %v8250, %v8595
        %v8597 = vpop.f32.mrb[0].mxu0
        %v8598 = vadd.f32 %v8254, %v8597
        %8599 = vmatprep.mubr.bf16.mxu0 0
        %8600 = vmatmul.mubr.bf16.gmra.mrb[0].mxu0 %v8212
        %v8601 = vpop.f32.mrb[0].mxu0
        %v8602 = vadd.f32 %v8250, %v8601
        %v8603 = vpop.f32.mrb[0].mxu0
        %v8604 = vadd.f32 %v8254, %v8603
        %v8605 = vpop.f32.mrb[0].mxu0
        %v8606 = vadd.f32 %v8250, %v8605
        %v8607 = vpop.f32.mrb[0].mxu0
        %v8608 = vadd.f32 %v8254, %v8607
        %8609 = vmatprep.mubr.bf16.mxu0 0
        %8610 = vmatmul.mubr.bf16.gmra.mrb[0].mxu0 %v8213
        %v8611 = vpop.f32.mrb[0].mxu0
        %v8612 = vadd.f32 %v8250, %v8611
        %v8613 = vpop.f32.mrb[0].mxu0
        %v8614 = vadd.f32 %v8254, %v8613
        %v8615 = vpop.f32.mrb[0].mxu0
        %v8616 = vadd.f32 %v8250, %v8615
        %v8617 = vpop.f32.mrb[0].mxu0
        %v8618 = vadd.f32 %v8254, %v8617
        %8619 = vdwg.mxu0
        %8620 = vmatprep.subr.bf16.mxu0 %v8366
        %8621 = vmatpush1.bf16.msra.mxu0 %v8365
        %8622 = vmatprep.subr.bf16.mxu0 %v8370
        %8623 = vmatpush1.bf16.msra.mxu0 %v8369
        %8624 = vmatprep.subr.bf16.mxu0 %v8374
        %8625 = vmatpush1.bf16.msra.mxu0 %v8373
        %8626 = vmatprep.subr.bf16.mxu0 %v8378
        %8627 = vmatpush1.bf16.msra.mxu0 %v8377
        %8628 = vmatprep.subr.bf16.mxu0 %v8382
        %8629 = vmatpush1.bf16.msra.mxu0 %v8381
        %8630 = vmatprep.subr.bf16.mxu0 %v8386
        %8631 = vmatpush1.bf16.msra.mxu0 %v8385
        %8632 = vmatprep.subr.bf16.mxu0 %v8390
        %8633 = vmatpush1.bf16.msra.mxu0 %v8389
        %8634 = vmatprep.subr.bf16.mxu0 %v8394
        %8635 = vmatpush1.bf16.msra.mxu0 %v8393
        %8636 = vmatprep.subr.bf16.mxu0 0
        %8637 = vmatpush1.bf16.msra.mxu0 0
        %8638 = vmatprep.subr.bf16.mxu0 0
        %8639 = vmatpush1.bf16.msra.mxu0 0
        %8640 = vmatprep.subr.bf16.mxu0 0
        %8641 = vmatpush1.bf16.msra.mxu0 0
        %8642 = vmatprep.subr.bf16.mxu0 0
        %8643 = vmatpush1.bf16.msra.mxu0 0
        %8644 = vmatprep.subr.bf16.mxu0 0
        %8645 = vmatpush1.bf16.msra.mxu0 0
        %8646 = vmatprep.subr.bf16.mxu0 0
        %8647 = vmatpush1.bf16.msra.mxu0 0
        %8648 = vmatprep.subr.bf16.mxu0 0
        %8649 = vmatpush1.bf16.msra.mxu0 0
        %8650 = vmatprep.subr.bf16.mxu0 0
        %8651 = vmatpush1.bf16.msra.mxu0 0
        %8652 = vmatprep.mubr.bf16.mxu0 0
        %8653 = vmatmul.mubr.bf16.gmra.mrb[0].mxu0 %v8198
        %v8654 = vpop.f32.mrb[0].mxu0
        %v8655 = vadd.f32 %v8258, %v8654
        %v8656 = vpop.f32.mrb[0].mxu0
        %v8657 = vadd.f32 %v8262, %v8656
        %v8658 = vpop.f32.mrb[0].mxu0
        %v8659 = vadd.f32 %v8258, %v8658
        %v8660 = vpop.f32.mrb[0].mxu0
        %v8661 = vadd.f32 %v8262, %v8660
        %8662 = vmatprep.mubr.bf16.mxu0 0
        %8663 = vmatmul.mubr.bf16.gmra.mrb[0].mxu0 %v8199
        %v8664 = vpop.f32.mrb[0].mxu0
        %v8665 = vadd.f32 %v8258, %v8664
        %v8666 = vpop.f32.mrb[0].mxu0
        %v8667 = vadd.f32 %v8262, %v8666
        %v8668 = vpop.f32.mrb[0].mxu0
        %v8669 = vadd.f32 %v8258, %v8668
        %v8670 = vpop.f32.mrb[0].mxu0
        %v8671 = vadd.f32 %v8262, %v8670
        %8672 = vmatprep.mubr.bf16.mxu0 0
        %8673 = vmatmul.mubr.bf16.gmra.mrb[0].mxu0 %v8200
        %v8674 = vpop.f32.mrb[0].mxu0
        %v8675 = vadd.f32 %v8258, %v8674
        %v8676 = vpop.f32.mrb[0].mxu0
        %v8677 = vadd.f32 %v8262, %v8676
        %v8678 = vpop.f32.mrb[0].mxu0
        %v8679 = vadd.f32 %v8258, %v8678
        %v8680 = vpop.f32.mrb[0].mxu0
        %v8681 = vadd.f32 %v8262, %v8680
        %8682 = vmatprep.mubr.bf16.mxu0 0
        %8683 = vmatmul.mubr.bf16.gmra.mrb[0].mxu0 %v8201
        %v8684 = vpop.f32.mrb[0].mxu0
        %v8685 = vadd.f32 %v8258, %v8684
        %v8686 = vpop.f32.mrb[0].mxu0
        %v8687 = vadd.f32 %v8262, %v8686
        %v8688 = vpop.f32.mrb[0].mxu0
        %v8689 = vadd.f32 %v8258, %v8688
        %v8690 = vpop.f32.mrb[0].mxu0
        %v8691 = vadd.f32 %v8262, %v8690
        %8692 = vmatprep.mubr.bf16.mxu0 0
        %8693 = vmatmul.mubr.bf16.gmra.mrb[0].mxu0 %v8202
        %v8694 = vpop.f32.mrb[0].mxu0
        %v8695 = vadd.f32 %v8258, %v8694
        %v8696 = vpop.f32.mrb[0].mxu0
        %v8697 = vadd.f32 %v8262, %v8696
        %v8698 = vpop.f32.mrb[0].mxu0
        %v8699 = vadd.f32 %v8258, %v8698
        %v8700 = vpop.f32.mrb[0].mxu0
        %v8701 = vadd.f32 %v8262, %v8700
        %8702 = vmatprep.mubr.bf16.mxu0 0
        %8703 = vmatmul.mubr.bf16.gmra.mrb[0].mxu0 %v8203
        %v8704 = vpop.f32.mrb[0].mxu0
        %v8705 = vadd.f32 %v8258, %v8704
        %v8706 = vpop.f32.mrb[0].mxu0
        %v8707 = vadd.f32 %v8262, %v8706
        %v8708 = vpop.f32.mrb[0].mxu0
        %v8709 = vadd.f32 %v8258, %v8708
        %v8710 = vpop.f32.mrb[0].mxu0
        %v8711 = vadd.f32 %v8262, %v8710
        %8712 = vmatprep.mubr.bf16.mxu0 0
        %8713 = vmatmul.mubr.bf16.gmra.mrb[0].mxu0 %v8204
        %v8714 = vpop.f32.mrb[0].mxu0
        %v8715 = vadd.f32 %v8258, %v8714
        %v8716 = vpop.f32.mrb[0].mxu0
        %v8717 = vadd.f32 %v8262, %v8716
        %v8718 = vpop.f32.mrb[0].mxu0
        %v8719 = vadd.f32 %v8258, %v8718
        %v8720 = vpop.f32.mrb[0].mxu0
        %v8721 = vadd.f32 %v8262, %v8720
        %8722 = vmatprep.mubr.bf16.mxu0 0
        %8723 = vmatmul.mubr.bf16.gmra.mrb[0].mxu0 %v8205
        %v8724 = vpop.f32.mrb[0].mxu0
        %v8725 = vadd.f32 %v8258, %v8724
        %v8726 = vpop.f32.mrb[0].mxu0
        %v8727 = vadd.f32 %v8262, %v8726
        %v8728 = vpop.f32.mrb[0].mxu0
        %v8729 = vadd.f32 %v8258, %v8728
        %v8730 = vpop.f32.mrb[0].mxu0
        %v8731 = vadd.f32 %v8262, %v8730
        %8732 = vmatprep.mubr.bf16.mxu0 0
        %8733 = vmatmul.mubr.bf16.gmra.mrb[0].mxu0 %v8206
        %v8734 = vpop.f32.mrb[0].mxu0
        %v8735 = vadd.f32 %v8258, %v8734
        %v8736 = vpop.f32.mrb[0].mxu0
        %v8737 = vadd.f32 %v8262, %v8736
        %v8738 = vpop.f32.mrb[0].mxu0
        %v8739 = vadd.f32 %v8258, %v8738
        %v8740 = vpop.f32.mrb[0].mxu0
        %v8741 = vadd.f32 %v8262, %v8740
        %8742 = vmatprep.mubr.bf16.mxu0 0
        %8743 = vmatmul.mubr.bf16.gmra.mrb[0].mxu0 %v8207
        %v8744 = vpop.f32.mrb[0].mxu0
        %v8745 = vadd.f32 %v8258, %v8744
        %v8746 = vpop.f32.mrb[0].mxu0
        %v8747 = vadd.f32 %v8262, %v8746
        %v8748 = vpop.f32.mrb[0].mxu0
        %v8749 = vadd.f32 %v8258, %v8748
        %v8750 = vpop.f32.mrb[0].mxu0
        %v8751 = vadd.f32 %v8262, %v8750
        %8752 = vmatprep.mubr.bf16.mxu0 0
        %8753 = vmatmul.mubr.bf16.gmra.mrb[0].mxu0 %v8208
        %v8754 = vpop.f32.mrb[0].mxu0
        %v8755 = vadd.f32 %v8258, %v8754
        %v8756 = vpop.f32.mrb[0].mxu0
        %v8757 = vadd.f32 %v8262, %v8756
        %v8758 = vpop.f32.mrb[0].mxu0
        %v8759 = vadd.f32 %v8258, %v8758
        %v8760 = vpop.f32.mrb[0].mxu0
        %v8761 = vadd.f32 %v8262, %v8760
        %8762 = vmatprep.mubr.bf16.mxu0 0
        %8763 = vmatmul.mubr.bf16.gmra.mrb[0].mxu0 %v8209
        %v8764 = vpop.f32.mrb[0].mxu0
        %v8765 = vadd.f32 %v8258, %v8764
        %v8766 = vpop.f32.mrb[0].mxu0
        %v8767 = vadd.f32 %v8262, %v8766
        %v8768 = vpop.f32.mrb[0].mxu0
        %v8769 = vadd.f32 %v8258, %v8768
        %v8770 = vpop.f32.mrb[0].mxu0
        %v8771 = vadd.f32 %v8262, %v8770
        %8772 = vmatprep.mubr.bf16.mxu0 0
        %8773 = vmatmul.mubr.bf16.gmra.mrb[0].mxu0 %v8210
        %v8774 = vpop.f32.mrb[0].mxu0
        %v8775 = vadd.f32 %v8258, %v8774
        %v8776 = vpop.f32.mrb[0].mxu0
        %v8777 = vadd.f32 %v8262, %v8776
        %v8778 = vpop.f32.mrb[0].mxu0
        %v8779 = vadd.f32 %v8258, %v8778
        %v8780 = vpop.f32.mrb[0].mxu0
        %v8781 = vadd.f32 %v8262, %v8780
        %8782 = vmatprep.mubr.bf16.mxu0 0
        %8783 = vmatmul.mubr.bf16.gmra.mrb[0].mxu0 %v8211
        %v8784 = vpop.f32.mrb[0].mxu0
        %v8785 = vadd.f32 %v8258, %v8784
        %v8786 = vpop.f32.mrb[0].mxu0
        %v8787 = vadd.f32 %v8262, %v8786
        %v8788 = vpop.f32.mrb[0].mxu0
        %v8789 = vadd.f32 %v8258, %v8788
        %v8790 = vpop.f32.mrb[0].mxu0
        %v8791 = vadd.f32 %v8262, %v8790
        %8792 = vmatprep.mubr.bf16.mxu0 0
        %8793 = vmatmul.mubr.bf16.gmra.mrb[0].mxu0 %v8212
        %v8794 = vpop.f32.mrb[0].mxu0
        %v8795 = vadd.f32 %v8258, %v8794
        %v8796 = vpop.f32.mrb[0].mxu0
        %v8797 = vadd.f32 %v8262, %v8796
        %v8798 = vpop.f32.mrb[0].mxu0
        %v8799 = vadd.f32 %v8258, %v8798
        %v8800 = vpop.f32.mrb[0].mxu0
        %v8801 = vadd.f32 %v8262, %v8800
        %8802 = vmatprep.mubr.bf16.mxu0 0
        %8803 = vmatmul.mubr.bf16.gmra.mrb[0].mxu0 %v8213
        %v8804 = vpop.f32.mrb[0].mxu0
        %v8805 = vadd.f32 %v8258, %v8804
        %v8806 = vpop.f32.mrb[0].mxu0
        %v8807 = vadd.f32 %v8262, %v8806
        %v8808 = vpop.f32.mrb[0].mxu0
        %v8809 = vadd.f32 %v8258, %v8808
        %v8810 = vpop.f32.mrb[0].mxu0
        %v8811 = vadd.f32 %v8262, %v8810
        %8812 = vdwg.mxu0
        %v8813 = vmul.f32 %v8462, %v8462
        %v8814 = vmul.f32 %v8464, %v8464
        %v8815 = vmul.f32 %v8655, %v8655
        %v8816 = vmul.f32 %v8657, %v8657
        %v8817 = vmul.f32 %v8466, %v8466
        %v8818 = vmul.f32 %v8468, %v8468
        %v8819 = vmul.f32 %v8659, %v8659
        %v8820 = vmul.f32 %v8661, %v8661
        %v8821 = vmul.f32 %v8472, %v8472
        %v8822 = vmul.f32 %v8474, %v8474
        %v8823 = vmul.f32 %v8665, %v8665
        %v8824 = vmul.f32 %v8667, %v8667
        %v8825 = vmul.f32 %v8476, %v8476
        %v8826 = vmul.f32 %v8478, %v8478
        %v8827 = vmul.f32 %v8669, %v8669
        %v8828 = vmul.f32 %v8671, %v8671
        %v8829 = vmul.f32 %v8482, %v8482
        %v8830 = vmul.f32 %v8484, %v8484
        %v8831 = vmul.f32 %v8675, %v8675
        %v8832 = vmul.f32 %v8677, %v8677
        %v8833 = vmul.f32 %v8486, %v8486
        %v8834 = vmul.f32 %v8488, %v8488
        %v8835 = vmul.f32 %v8679, %v8679
        %v8836 = vmul.f32 %v8681, %v8681
        %v8837 = vmul.f32 %v8492, %v8492
        %v8838 = vmul.f32 %v8494, %v8494
        %v8839 = vmul.f32 %v8685, %v8685
        %v8840 = vmul.f32 %v8687, %v8687
        %v8841 = vmul.f32 %v8496, %v8496
        %v8842 = vmul.f32 %v8498, %v8498
        %v8843 = vmul.f32 %v8689, %v8689
        %v8844 = vmul.f32 %v8691, %v8691
        %v8845 = vmul.f32 %v8502, %v8502
        %v8846 = vmul.f32 %v8504, %v8504
        %v8847 = vmul.f32 %v8695, %v8695
        %v8848 = vmul.f32 %v8697, %v8697
        %v8849 = vmul.f32 %v8506, %v8506
        %v8850 = vmul.f32 %v8508, %v8508
        %v8851 = vmul.f32 %v8699, %v8699
        %v8852 = vmul.f32 %v8701, %v8701
        %v8853 = vmul.f32 %v8512, %v8512
        %v8854 = vmul.f32 %v8514, %v8514
        %v8855 = vmul.f32 %v8705, %v8705
        %v8856 = vmul.f32 %v8707, %v8707
        %v8857 = vmul.f32 %v8516, %v8516
        %v8858 = vmul.f32 %v8518, %v8518
        %v8859 = vmul.f32 %v8709, %v8709
        %v8860 = vmul.f32 %v8711, %v8711
        %v8861 = vmul.f32 %v8522, %v8522
        %v8862 = vmul.f32 %v8524, %v8524
        %v8863 = vmul.f32 %v8715, %v8715
        %v8864 = vmul.f32 %v8717, %v8717
        %v8865 = vmul.f32 %v8526, %v8526
        %v8866 = vmul.f32 %v8528, %v8528
        %v8867 = vmul.f32 %v8719, %v8719
        %v8868 = vmul.f32 %v8721, %v8721
        %v8869 = vmul.f32 %v8532, %v8532
        %v8870 = vmul.f32 %v8534, %v8534
        %v8871 = vmul.f32 %v8725, %v8725
        %v8872 = vmul.f32 %v8727, %v8727
        %v8873 = vmul.f32 %v8536, %v8536
        %v8874 = vmul.f32 %v8538, %v8538
        %v8875 = vmul.f32 %v8729, %v8729
        %v8876 = vmul.f32 %v8731, %v8731
        %v8877 = vmul.f32 %v8542, %v8542
        %v8878 = vmul.f32 %v8544, %v8544
        %v8879 = vmul.f32 %v8735, %v8735
        %v8880 = vmul.f32 %v8737, %v8737
        %v8881 = vmul.f32 %v8546, %v8546
        %v8882 = vmul.f32 %v8548, %v8548
        %v8883 = vmul.f32 %v8739, %v8739
        %v8884 = vmul.f32 %v8741, %v8741
        %v8885 = vmul.f32 %v8552, %v8552
        %v8886 = vmul.f32 %v8554, %v8554
        %v8887 = vmul.f32 %v8745, %v8745
        %v8888 = vmul.f32 %v8747, %v8747
        %v8889 = vmul.f32 %v8556, %v8556
        %v8890 = vmul.f32 %v8558, %v8558
        %v8891 = vmul.f32 %v8749, %v8749
        %v8892 = vmul.f32 %v8751, %v8751
        %v8893 = vmul.f32 %v8562, %v8562
        %v8894 = vmul.f32 %v8564, %v8564
        %v8895 = vmul.f32 %v8755, %v8755
        %v8896 = vmul.f32 %v8757, %v8757
        %v8897 = vmul.f32 %v8566, %v8566
        %v8898 = vmul.f32 %v8568, %v8568
        %v8899 = vmul.f32 %v8759, %v8759
        %v8900 = vmul.f32 %v8761, %v8761
        %v8901 = vmul.f32 %v8572, %v8572
        %v8902 = vmul.f32 %v8574, %v8574
        %v8903 = vmul.f32 %v8765, %v8765
        %v8904 = vmul.f32 %v8767, %v8767
        %v8905 = vmul.f32 %v8576, %v8576
        %v8906 = vmul.f32 %v8578, %v8578
        %v8907 = vmul.f32 %v8769, %v8769
        %v8908 = vmul.f32 %v8771, %v8771
        %v8909 = vmul.f32 %v8582, %v8582
        %v8910 = vmul.f32 %v8584, %v8584
        %v8911 = vmul.f32 %v8775, %v8775
        %v8912 = vmul.f32 %v8777, %v8777
        %v8913 = vmul.f32 %v8586, %v8586
        %v8914 = vmul.f32 %v8588, %v8588
        %v8915 = vmul.f32 %v8779, %v8779
        %v8916 = vmul.f32 %v8781, %v8781
        %v8917 = vmul.f32 %v8592, %v8592
        %v8918 = vmul.f32 %v8594, %v8594
        %v8919 = vmul.f32 %v8785, %v8785
        %v8920 = vmul.f32 %v8787, %v8787
        %v8921 = vmul.f32 %v8596, %v8596
        %v8922 = vmul.f32 %v8598, %v8598
        %v8923 = vmul.f32 %v8789, %v8789
        %v8924 = vmul.f32 %v8791, %v8791
        %v8925 = vmul.f32 %v8602, %v8602
        %v8926 = vmul.f32 %v8604, %v8604
        %v8927 = vmul.f32 %v8795, %v8795
        %v8928 = vmul.f32 %v8797, %v8797
        %v8929 = vmul.f32 %v8606, %v8606
        %v8930 = vmul.f32 %v8608, %v8608
        %v8931 = vmul.f32 %v8799, %v8799
        %v8932 = vmul.f32 %v8801, %v8801
        %v8933 = vmul.f32 %v8612, %v8612
        %v8934 = vmul.f32 %v8614, %v8614
        %v8935 = vmul.f32 %v8805, %v8805
        %v8936 = vmul.f32 %v8807, %v8807
        %v8937 = vmul.f32 %v8616, %v8616
        %v8938 = vmul.f32 %v8618, %v8618
        %v8939 = vmul.f32 %v8809, %v8809
        %v8940 = vmul.f32 %v8811, %v8811
        %v8941 = vmul.f32 %v8462, %v8813
        %v8942 = vmul.f32 %v8464, %v8814
        %v8943 = vmul.f32 %v8655, %v8815
        %v8944 = vmul.f32 %v8657, %v8816
        %v8945 = vmul.f32 %v8466, %v8817
        %v8946 = vmul.f32 %v8468, %v8818
        %v8947 = vmul.f32 %v8659, %v8819
        %v8948 = vmul.f32 %v8661, %v8820
        %v8949 = vmul.f32 %v8472, %v8821
        %v8950 = vmul.f32 %v8474, %v8822
        %v8951 = vmul.f32 %v8665, %v8823
        %v8952 = vmul.f32 %v8667, %v8824
        %v8953 = vmul.f32 %v8476, %v8825
        %v8954 = vmul.f32 %v8478, %v8826
        %v8955 = vmul.f32 %v8669, %v8827
        %v8956 = vmul.f32 %v8671, %v8828
        %v8957 = vmul.f32 %v8482, %v8829
        %v8958 = vmul.f32 %v8484, %v8830
        %v8959 = vmul.f32 %v8675, %v8831
        %v8960 = vmul.f32 %v8677, %v8832
        %v8961 = vmul.f32 %v8486, %v8833
        %v8962 = vmul.f32 %v8488, %v8834
        %v8963 = vmul.f32 %v8679, %v8835
        %v8964 = vmul.f32 %v8681, %v8836
        %v8965 = vmul.f32 %v8492, %v8837
        %v8966 = vmul.f32 %v8494, %v8838
        %v8967 = vmul.f32 %v8685, %v8839
        %v8968 = vmul.f32 %v8687, %v8840
        %v8969 = vmul.f32 %v8496, %v8841
        %v8970 = vmul.f32 %v8498, %v8842
        %v8971 = vmul.f32 %v8689, %v8843
        %v8972 = vmul.f32 %v8691, %v8844
        %v8973 = vmul.f32 %v8502, %v8845
        %v8974 = vmul.f32 %v8504, %v8846
        %v8975 = vmul.f32 %v8695, %v8847
        %v8976 = vmul.f32 %v8697, %v8848
        %v8977 = vmul.f32 %v8506, %v8849
        %v8978 = vmul.f32 %v8508, %v8850
        %v8979 = vmul.f32 %v8699, %v8851
        %v8980 = vmul.f32 %v8701, %v8852
        %v8981 = vmul.f32 %v8512, %v8853
        %v8982 = vmul.f32 %v8514, %v8854
        %v8983 = vmul.f32 %v8705, %v8855
        %v8984 = vmul.f32 %v8707, %v8856
        %v8985 = vmul.f32 %v8516, %v8857
        %v8986 = vmul.f32 %v8518, %v8858
        %v8987 = vmul.f32 %v8709, %v8859
        %v8988 = vmul.f32 %v8711, %v8860
        %v8989 = vmul.f32 %v8522, %v8861
        %v8990 = vmul.f32 %v8524, %v8862
        %v8991 = vmul.f32 %v8715, %v8863
        %v8992 = vmul.f32 %v8717, %v8864
        %v8993 = vmul.f32 %v8526, %v8865
        %v8994 = vmul.f32 %v8528, %v8866
        %v8995 = vmul.f32 %v8719, %v8867
        %v8996 = vmul.f32 %v8721, %v8868
        %v8997 = vmul.f32 %v8532, %v8869
        %v8998 = vmul.f32 %v8534, %v8870
        %v8999 = vmul.f32 %v8725, %v8871
        %v9000 = vmul.f32 %v8727, %v8872
        %v9001 = vmul.f32 %v8536, %v8873
        %v9002 = vmul.f32 %v8538, %v8874
        %v9003 = vmul.f32 %v8729, %v8875
        %v9004 = vmul.f32 %v8731, %v8876
        %v9005 = vmul.f32 %v8542, %v8877
        %v9006 = vmul.f32 %v8544, %v8878
        %v9007 = vmul.f32 %v8735, %v8879
        %v9008 = vmul.f32 %v8737, %v8880
        %v9009 = vmul.f32 %v8546, %v8881
        %v9010 = vmul.f32 %v8548, %v8882
        %v9011 = vmul.f32 %v8739, %v8883
        %v9012 = vmul.f32 %v8741, %v8884
        %v9013 = vmul.f32 %v8552, %v8885
        %v9014 = vmul.f32 %v8554, %v8886
        %v9015 = vmul.f32 %v8745, %v8887
        %v9016 = vmul.f32 %v8747, %v8888
        %v9017 = vmul.f32 %v8556, %v8889
        %v9018 = vmul.f32 %v8558, %v8890
        %v9019 = vmul.f32 %v8749, %v8891
        %v9020 = vmul.f32 %v8751, %v8892
        %v9021 = vmul.f32 %v8562, %v8893
        %v9022 = vmul.f32 %v8564, %v8894
        %v9023 = vmul.f32 %v8755, %v8895
        %v9024 = vmul.f32 %v8757, %v8896
        %v9025 = vmul.f32 %v8566, %v8897
        %v9026 = vmul.f32 %v8568, %v8898
        %v9027 = vmul.f32 %v8759, %v8899
        %v9028 = vmul.f32 %v8761, %v8900
        %v9029 = vmul.f32 %v8572, %v8901
        %v9030 = vmul.f32 %v8574, %v8902
        %v9031 = vmul.f32 %v8765, %v8903
        %v9032 = vmul.f32 %v8767, %v8904
        %v9033 = vmul.f32 %v8576, %v8905
        %v9034 = vmul.f32 %v8578, %v8906
        %v9035 = vmul.f32 %v8769, %v8907
        %v9036 = vmul.f32 %v8771, %v8908
        %v9037 = vmul.f32 %v8582, %v8909
        %v9038 = vmul.f32 %v8584, %v8910
        %v9039 = vmul.f32 %v8775, %v8911
        %v9040 = vmul.f32 %v8777, %v8912
        %v9041 = vmul.f32 %v8586, %v8913
        %v9042 = vmul.f32 %v8588, %v8914
        %v9043 = vmul.f32 %v8779, %v8915
        %v9044 = vmul.f32 %v8781, %v8916
        %v9045 = vmul.f32 %v8592, %v8917
        %v9046 = vmul.f32 %v8594, %v8918
        %v9047 = vmul.f32 %v8785, %v8919
        %v9048 = vmul.f32 %v8787, %v8920
        %v9049 = vmul.f32 %v8596, %v8921
        %v9050 = vmul.f32 %v8598, %v8922
        %v9051 = vmul.f32 %v8789, %v8923
        %v9052 = vmul.f32 %v8791, %v8924
        %v9053 = vmul.f32 %v8602, %v8925
        %v9054 = vmul.f32 %v8604, %v8926
        %v9055 = vmul.f32 %v8795, %v8927
        %v9056 = vmul.f32 %v8797, %v8928
        %v9057 = vmul.f32 %v8606, %v8929
        %v9058 = vmul.f32 %v8608, %v8930
        %v9059 = vmul.f32 %v8799, %v8931
        %v9060 = vmul.f32 %v8801, %v8932
        %v9061 = vmul.f32 %v8612, %v8933
        %v9062 = vmul.f32 %v8614, %v8934
        %v9063 = vmul.f32 %v8805, %v8935
        %v9064 = vmul.f32 %v8807, %v8936
        %v9065 = vmul.f32 %v8616, %v8937
        %v9066 = vmul.f32 %v8618, %v8938
        %v9067 = vmul.f32 %v8809, %v8939
        %v9068 = vmul.f32 %v8811, %v8940
        %v9069 = vmul.f32 %v8941, 0.044715
        %v9070 = vmul.f32 %v8942, 0.044715
        %v9071 = vmul.f32 %v8943, 0.044715
        %v9072 = vmul.f32 %v8944, 0.044715
        %v9073 = vmul.f32 %v8945, 0.044715
        %v9074 = vmul.f32 %v8946, 0.044715
        %v9075 = vmul.f32 %v8947, 0.044715
        %v9076 = vmul.f32 %v8948, 0.044715
        %v9077 = vmul.f32 %v8949, 0.044715
        %v9078 = vmul.f32 %v8950, 0.044715
        %v9079 = vmul.f32 %v8951, 0.044715
        %v9080 = vmul.f32 %v8952, 0.044715
        %v9081 = vmul.f32 %v8953, 0.044715
        %v9082 = vmul.f32 %v8954, 0.044715
        %v9083 = vmul.f32 %v8955, 0.044715
        %v9084 = vmul.f32 %v8956, 0.044715
        %v9085 = vmul.f32 %v8957, 0.044715
        %v9086 = vmul.f32 %v8958, 0.044715
        %v9087 = vmul.f32 %v8959, 0.044715
        %v9088 = vmul.f32 %v8960, 0.044715
        %v9089 = vmul.f32 %v8961, 0.044715
        %v9090 = vmul.f32 %v8962, 0.044715
        %v9091 = vmul.f32 %v8963, 0.044715
        %v9092 = vmul.f32 %v8964, 0.044715
        %v9093 = vmul.f32 %v8965, 0.044715
        %v9094 = vmul.f32 %v8966, 0.044715
        %v9095 = vmul.f32 %v8967, 0.044715
        %v9096 = vmul.f32 %v8968, 0.044715
        %v9097 = vmul.f32 %v8969, 0.044715
        %v9098 = vmul.f32 %v8970, 0.044715
        %v9099 = vmul.f32 %v8971, 0.044715
        %v9100 = vmul.f32 %v8972, 0.044715
        %v9101 = vmul.f32 %v8973, 0.044715
        %v9102 = vmul.f32 %v8974, 0.044715
        %v9103 = vmul.f32 %v8975, 0.044715
        %v9104 = vmul.f32 %v8976, 0.044715
        %v9105 = vmul.f32 %v8977, 0.044715
        %v9106 = vmul.f32 %v8978, 0.044715
        %v9107 = vmul.f32 %v8979, 0.044715
        %v9108 = vmul.f32 %v8980, 0.044715
        %v9109 = vmul.f32 %v8981, 0.044715
        %v9110 = vmul.f32 %v8982, 0.044715
        %v9111 = vmul.f32 %v8983, 0.044715
        %v9112 = vmul.f32 %v8984, 0.044715
        %v9113 = vmul.f32 %v8985, 0.044715
        %v9114 = vmul.f32 %v8986, 0.044715
        %v9115 = vmul.f32 %v8987, 0.044715
        %v9116 = vmul.f32 %v8988, 0.044715
        %v9117 = vmul.f32 %v8989, 0.044715
        %v9118 = vmul.f32 %v8990, 0.044715
        %v9119 = vmul.f32 %v8991, 0.044715
        %v9120 = vmul.f32 %v8992, 0.044715
        %v9121 = vmul.f32 %v8993, 0.044715
        %v9122 = vmul.f32 %v8994, 0.044715
        %v9123 = vmul.f32 %v8995, 0.044715
        %v9124 = vmul.f32 %v8996, 0.044715
        %v9125 = vmul.f32 %v8997, 0.044715
        %v9126 = vmul.f32 %v8998, 0.044715
        %v9127 = vmul.f32 %v8999, 0.044715
        %v9128 = vmul.f32 %v9000, 0.044715
        %v9129 = vmul.f32 %v9001, 0.044715
        %v9130 = vmul.f32 %v9002, 0.044715
        %v9131 = vmul.f32 %v9003, 0.044715
        %v9132 = vmul.f32 %v9004, 0.044715
        %v9133 = vmul.f32 %v9005, 0.044715
        %v9134 = vmul.f32 %v9006, 0.044715
        %v9135 = vmul.f32 %v9007, 0.044715
        %v9136 = vmul.f32 %v9008, 0.044715
        %v9137 = vmul.f32 %v9009, 0.044715
        %v9138 = vmul.f32 %v9010, 0.044715
        %v9139 = vmul.f32 %v9011, 0.044715
        %v9140 = vmul.f32 %v9012, 0.044715
        %v9141 = vmul.f32 %v9013, 0.044715
        %v9142 = vmul.f32 %v9014, 0.044715
        %v9143 = vmul.f32 %v9015, 0.044715
        %v9144 = vmul.f32 %v9016, 0.044715
        %v9145 = vmul.f32 %v9017, 0.044715
        %v9146 = vmul.f32 %v9018, 0.044715
        %v9147 = vmul.f32 %v9019, 0.044715
        %v9148 = vmul.f32 %v9020, 0.044715
        %v9149 = vmul.f32 %v9021, 0.044715
        %v9150 = vmul.f32 %v9022, 0.044715
        %v9151 = vmul.f32 %v9023, 0.044715
        %v9152 = vmul.f32 %v9024, 0.044715
        %v9153 = vmul.f32 %v9025, 0.044715
        %v9154 = vmul.f32 %v9026, 0.044715
        %v9155 = vmul.f32 %v9027, 0.044715
        %v9156 = vmul.f32 %v9028, 0.044715
        %v9157 = vmul.f32 %v9029, 0.044715
        %v9158 = vmul.f32 %v9030, 0.044715
        %v9159 = vmul.f32 %v9031, 0.044715
        %v9160 = vmul.f32 %v9032, 0.044715
        %v9161 = vmul.f32 %v9033, 0.044715
        %v9162 = vmul.f32 %v9034, 0.044715
        %v9163 = vmul.f32 %v9035, 0.044715
        %v9164 = vmul.f32 %v9036, 0.044715
        %v9165 = vmul.f32 %v9037, 0.044715
        %v9166 = vmul.f32 %v9038, 0.044715
        %v9167 = vmul.f32 %v9039, 0.044715
        %v9168 = vmul.f32 %v9040, 0.044715
        %v9169 = vmul.f32 %v9041, 0.044715
        %v9170 = vmul.f32 %v9042, 0.044715
        %v9171 = vmul.f32 %v9043, 0.044715
        %v9172 = vmul.f32 %v9044, 0.044715
        %v9173 = vmul.f32 %v9045, 0.044715
        %v9174 = vmul.f32 %v9046, 0.044715
        %v9175 = vmul.f32 %v9047, 0.044715
        %v9176 = vmul.f32 %v9048, 0.044715
        %v9177 = vmul.f32 %v9049, 0.044715
        %v9178 = vmul.f32 %v9050, 0.044715
        %v9179 = vmul.f32 %v9051, 0.044715
        %v9180 = vmul.f32 %v9052, 0.044715
        %v9181 = vmul.f32 %v9053, 0.044715
        %v9182 = vmul.f32 %v9054, 0.044715
        %v9183 = vmul.f32 %v9055, 0.044715
        %v9184 = vmul.f32 %v9056, 0.044715
        %v9185 = vmul.f32 %v9057, 0.044715
        %v9186 = vmul.f32 %v9058, 0.044715
        %v9187 = vmul.f32 %v9059, 0.044715
        %v9188 = vmul.f32 %v9060, 0.044715
        %v9189 = vmul.f32 %v9061, 0.044715
        %v9190 = vmul.f32 %v9062, 0.044715
        %v9191 = vmul.f32 %v9063, 0.044715
        %v9192 = vmul.f32 %v9064, 0.044715
        %v9193 = vmul.f32 %v9065, 0.044715
        %v9194 = vmul.f32 %v9066, 0.044715
        %v9195 = vmul.f32 %v9067, 0.044715
        %v9196 = vmul.f32 %v9068, 0.044715
        %v9197 = vadd.f32 %v8462, %v9069
        %v9198 = vadd.f32 %v8464, %v9070
        %v9199 = vadd.f32 %v8655, %v9071
        %v9200 = vadd.f32 %v8657, %v9072
        %v9201 = vadd.f32 %v8466, %v9073
        %v9202 = vadd.f32 %v8468, %v9074
        %v9203 = vadd.f32 %v8659, %v9075
        %v9204 = vadd.f32 %v8661, %v9076
        %v9205 = vadd.f32 %v8472, %v9077
        %v9206 = vadd.f32 %v8474, %v9078
        %v9207 = vadd.f32 %v8665, %v9079
        %v9208 = vadd.f32 %v8667, %v9080
        %v9209 = vadd.f32 %v8476, %v9081
        %v9210 = vadd.f32 %v8478, %v9082
        %v9211 = vadd.f32 %v8669, %v9083
        %v9212 = vadd.f32 %v8671, %v9084
        %v9213 = vadd.f32 %v8482, %v9085
        %v9214 = vadd.f32 %v8484, %v9086
        %v9215 = vadd.f32 %v8675, %v9087
        %v9216 = vadd.f32 %v8677, %v9088
        %v9217 = vadd.f32 %v8486, %v9089
        %v9218 = vadd.f32 %v8488, %v9090
        %v9219 = vadd.f32 %v8679, %v9091
        %v9220 = vadd.f32 %v8681, %v9092
        %v9221 = vadd.f32 %v8492, %v9093
        %v9222 = vadd.f32 %v8494, %v9094
        %v9223 = vadd.f32 %v8685, %v9095
        %v9224 = vadd.f32 %v8687, %v9096
        %v9225 = vadd.f32 %v8496, %v9097
        %v9226 = vadd.f32 %v8498, %v9098
        %v9227 = vadd.f32 %v8689, %v9099
        %v9228 = vadd.f32 %v8691, %v9100
        %v9229 = vadd.f32 %v8502, %v9101
        %v9230 = vadd.f32 %v8504, %v9102
        %v9231 = vadd.f32 %v8695, %v9103
        %v9232 = vadd.f32 %v8697, %v9104
        %v9233 = vadd.f32 %v8506, %v9105
        %v9234 = vadd.f32 %v8508, %v9106
        %v9235 = vadd.f32 %v8699, %v9107
        %v9236 = vadd.f32 %v8701, %v9108
        %v9237 = vadd.f32 %v8512, %v9109
        %v9238 = vadd.f32 %v8514, %v9110
        %v9239 = vadd.f32 %v8705, %v9111
        %v9240 = vadd.f32 %v8707, %v9112
        %v9241 = vadd.f32 %v8516, %v9113
        %v9242 = vadd.f32 %v8518, %v9114
        %v9243 = vadd.f32 %v8709, %v9115
        %v9244 = vadd.f32 %v8711, %v9116
        %v9245 = vadd.f32 %v8522, %v9117
        %v9246 = vadd.f32 %v8524, %v9118
        %v9247 = vadd.f32 %v8715, %v9119
        %v9248 = vadd.f32 %v8717, %v9120
        %v9249 = vadd.f32 %v8526, %v9121
        %v9250 = vadd.f32 %v8528, %v9122
        %v9251 = vadd.f32 %v8719, %v9123
        %v9252 = vadd.f32 %v8721, %v9124
        %v9253 = vadd.f32 %v8532, %v9125
        %v9254 = vadd.f32 %v8534, %v9126
        %v9255 = vadd.f32 %v8725, %v9127
        %v9256 = vadd.f32 %v8727, %v9128
        %v9257 = vadd.f32 %v8536, %v9129
        %v9258 = vadd.f32 %v8538, %v9130
        %v9259 = vadd.f32 %v8729, %v9131
        %v9260 = vadd.f32 %v8731, %v9132
        %v9261 = vadd.f32 %v8542, %v9133
        %v9262 = vadd.f32 %v8544, %v9134
        %v9263 = vadd.f32 %v8735, %v9135
        %v9264 = vadd.f32 %v8737, %v9136
        %v9265 = vadd.f32 %v8546, %v9137
        %v9266 = vadd.f32 %v8548, %v9138
        %v9267 = vadd.f32 %v8739, %v9139
        %v9268 = vadd.f32 %v8741, %v9140
        %v9269 = vadd.f32 %v8552, %v9141
        %v9270 = vadd.f32 %v8554, %v9142
        %v9271 = vadd.f32 %v8745, %v9143
        %v9272 = vadd.f32 %v8747, %v9144
        %v9273 = vadd.f32 %v8556, %v9145
        %v9274 = vadd.f32 %v8558, %v9146
        %v9275 = vadd.f32 %v8749, %v9147
        %v9276 = vadd.f32 %v8751, %v9148
        %v9277 = vadd.f32 %v8562, %v9149
        %v9278 = vadd.f32 %v8564, %v9150
        %v9279 = vadd.f32 %v8755, %v9151
        %v9280 = vadd.f32 %v8757, %v9152
        %v9281 = vadd.f32 %v8566, %v9153
        %v9282 = vadd.f32 %v8568, %v9154
        %v9283 = vadd.f32 %v8759, %v9155
        %v9284 = vadd.f32 %v8761, %v9156
        %v9285 = vadd.f32 %v8572, %v9157
        %v9286 = vadd.f32 %v8574, %v9158
        %v9287 = vadd.f32 %v8765, %v9159
        %v9288 = vadd.f32 %v8767, %v9160
        %v9289 = vadd.f32 %v8576, %v9161
        %v9290 = vadd.f32 %v8578, %v9162
        %v9291 = vadd.f32 %v8769, %v9163
        %v9292 = vadd.f32 %v8771, %v9164
        %v9293 = vadd.f32 %v8582, %v9165
        %v9294 = vadd.f32 %v8584, %v9166
        %v9295 = vadd.f32 %v8775, %v9167
        %v9296 = vadd.f32 %v8777, %v9168
        %v9297 = vadd.f32 %v8586, %v9169
        %v9298 = vadd.f32 %v8588, %v9170
        %v9299 = vadd.f32 %v8779, %v9171
        %v9300 = vadd.f32 %v8781, %v9172
        %v9301 = vadd.f32 %v8592, %v9173
        %v9302 = vadd.f32 %v8594, %v9174
        %v9303 = vadd.f32 %v8785, %v9175
        %v9304 = vadd.f32 %v8787, %v9176
        %v9305 = vadd.f32 %v8596, %v9177
        %v9306 = vadd.f32 %v8598, %v9178
        %v9307 = vadd.f32 %v8789, %v9179
        %v9308 = vadd.f32 %v8791, %v9180
        %v9309 = vadd.f32 %v8602, %v9181
        %v9310 = vadd.f32 %v8604, %v9182
        %v9311 = vadd.f32 %v8795, %v9183
        %v9312 = vadd.f32 %v8797, %v9184
        %v9313 = vadd.f32 %v8606, %v9185
        %v9314 = vadd.f32 %v8608, %v9186
        %v9315 = vadd.f32 %v8799, %v9187
        %v9316 = vadd.f32 %v8801, %v9188
        %v9317 = vadd.f32 %v8612, %v9189
        %v9318 = vadd.f32 %v8614, %v9190
        %v9319 = vadd.f32 %v8805, %v9191
        %v9320 = vadd.f32 %v8807, %v9192
        %v9321 = vadd.f32 %v8616, %v9193
        %v9322 = vadd.f32 %v8618, %v9194
        %v9323 = vadd.f32 %v8809, %v9195
        %v9324 = vadd.f32 %v8811, %v9196
        %v9325 = vmul.f32 %v9197, 0.7978846
        %v9326 = vmul.f32 %v9198, 0.7978846
        %v9327 = vmul.f32 %v9199, 0.7978846
        %v9328 = vmul.f32 %v9200, 0.7978846
        %v9329 = vmul.f32 %v9201, 0.7978846
        %v9330 = vmul.f32 %v9202, 0.7978846
        %v9331 = vmul.f32 %v9203, 0.7978846
        %v9332 = vmul.f32 %v9204, 0.7978846
        %v9333 = vmul.f32 %v9205, 0.7978846
        %v9334 = vmul.f32 %v9206, 0.7978846
        %v9335 = vmul.f32 %v9207, 0.7978846
        %v9336 = vmul.f32 %v9208, 0.7978846
        %v9337 = vmul.f32 %v9209, 0.7978846
        %v9338 = vmul.f32 %v9210, 0.7978846
        %v9339 = vmul.f32 %v9211, 0.7978846
        %v9340 = vmul.f32 %v9212, 0.7978846
        %v9341 = vmul.f32 %v9213, 0.7978846
        %v9342 = vmul.f32 %v9214, 0.7978846
        %v9343 = vmul.f32 %v9215, 0.7978846
        %v9344 = vmul.f32 %v9216, 0.7978846
        %v9345 = vmul.f32 %v9217, 0.7978846
        %v9346 = vmul.f32 %v9218, 0.7978846
        %v9347 = vmul.f32 %v9219, 0.7978846
        %v9348 = vmul.f32 %v9220, 0.7978846
        %v9349 = vmul.f32 %v9221, 0.7978846
        %v9350 = vmul.f32 %v9222, 0.7978846
        %v9351 = vmul.f32 %v9223, 0.7978846
        %v9352 = vmul.f32 %v9224, 0.7978846
        %v9353 = vmul.f32 %v9225, 0.7978846
        %v9354 = vmul.f32 %v9226, 0.7978846
        %v9355 = vmul.f32 %v9227, 0.7978846
        %v9356 = vmul.f32 %v9228, 0.7978846
        %v9357 = vmul.f32 %v9229, 0.7978846
        %v9358 = vmul.f32 %v9230, 0.7978846
        %v9359 = vmul.f32 %v9231, 0.7978846
        %v9360 = vmul.f32 %v9232, 0.7978846
        %v9361 = vmul.f32 %v9233, 0.7978846
        %v9362 = vmul.f32 %v9234, 0.7978846
        %v9363 = vmul.f32 %v9235, 0.7978846
        %v9364 = vmul.f32 %v9236, 0.7978846
        %v9365 = vmul.f32 %v9237, 0.7978846
        %v9366 = vmul.f32 %v9238, 0.7978846
        %v9367 = vmul.f32 %v9239, 0.7978846
        %v9368 = vmul.f32 %v9240, 0.7978846
        %v9369 = vmul.f32 %v9241, 0.7978846
        %v9370 = vmul.f32 %v9242, 0.7978846
        %v9371 = vmul.f32 %v9243, 0.7978846
        %v9372 = vmul.f32 %v9244, 0.7978846
        %v9373 = vmul.f32 %v9245, 0.7978846
        %v9374 = vmul.f32 %v9246, 0.7978846
        %v9375 = vmul.f32 %v9247, 0.7978846
        %v9376 = vmul.f32 %v9248, 0.7978846
        %v9377 = vmul.f32 %v9249, 0.7978846
        %v9378 = vmul.f32 %v9250, 0.7978846
        %v9379 = vmul.f32 %v9251, 0.7978846
        %v9380 = vmul.f32 %v9252, 0.7978846
        %v9381 = vmul.f32 %v9253, 0.7978846
        %v9382 = vmul.f32 %v9254, 0.7978846
        %v9383 = vmul.f32 %v9255, 0.7978846
        %v9384 = vmul.f32 %v9256, 0.7978846
        %v9385 = vmul.f32 %v9257, 0.7978846
        %v9386 = vmul.f32 %v9258, 0.7978846
        %v9387 = vmul.f32 %v9259, 0.7978846
        %v9388 = vmul.f32 %v9260, 0.7978846
        %v9389 = vmul.f32 %v9261, 0.7978846
        %v9390 = vmul.f32 %v9262, 0.7978846
        %v9391 = vmul.f32 %v9263, 0.7978846
        %v9392 = vmul.f32 %v9264, 0.7978846
        %v9393 = vmul.f32 %v9265, 0.7978846
        %v9394 = vmul.f32 %v9266, 0.7978846
        %v9395 = vmul.f32 %v9267, 0.7978846
        %v9396 = vmul.f32 %v9268, 0.7978846
        %v9397 = vmul.f32 %v9269, 0.7978846
        %v9398 = vmul.f32 %v9270, 0.7978846
        %v9399 = vmul.f32 %v9271, 0.7978846
        %v9400 = vmul.f32 %v9272, 0.7978846
        %v9401 = vmul.f32 %v9273, 0.7978846
        %v9402 = vmul.f32 %v9274, 0.7978846
        %v9403 = vmul.f32 %v9275, 0.7978846
        %v9404 = vmul.f32 %v9276, 0.7978846
        %v9405 = vmul.f32 %v9277, 0.7978846
        %v9406 = vmul.f32 %v9278, 0.7978846
        %v9407 = vmul.f32 %v9279, 0.7978846
        %v9408 = vmul.f32 %v9280, 0.7978846
        %v9409 = vmul.f32 %v9281, 0.7978846
        %v9410 = vmul.f32 %v9282, 0.7978846
        %v9411 = vmul.f32 %v9283, 0.7978846
        %v9412 = vmul.f32 %v9284, 0.7978846
        %v9413 = vmul.f32 %v9285, 0.7978846
        %v9414 = vmul.f32 %v9286, 0.7978846
        %v9415 = vmul.f32 %v9287, 0.7978846
        %v9416 = vmul.f32 %v9288, 0.7978846
        %v9417 = vmul.f32 %v9289, 0.7978846
        %v9418 = vmul.f32 %v9290, 0.7978846
        %v9419 = vmul.f32 %v9291, 0.7978846
        %v9420 = vmul.f32 %v9292, 0.7978846
        %v9421 = vmul.f32 %v9293, 0.7978846
        %v9422 = vmul.f32 %v9294, 0.7978846
        %v9423 = vmul.f32 %v9295, 0.7978846
        %v9424 = vmul.f32 %v9296, 0.7978846
        %v9425 = vmul.f32 %v9297, 0.7978846
        %v9426 = vmul.f32 %v9298, 0.7978846
        %v9427 = vmul.f32 %v9299, 0.7978846
        %v9428 = vmul.f32 %v9300, 0.7978846
        %v9429 = vmul.f32 %v9301, 0.7978846
        %v9430 = vmul.f32 %v9302, 0.7978846
        %v9431 = vmul.f32 %v9303, 0.7978846
        %v9432 = vmul.f32 %v9304, 0.7978846
        %v9433 = vmul.f32 %v9305, 0.7978846
        %v9434 = vmul.f32 %v9306, 0.7978846
        %v9435 = vmul.f32 %v9307, 0.7978846
        %v9436 = vmul.f32 %v9308, 0.7978846
        %v9437 = vmul.f32 %v9309, 0.7978846
        %v9438 = vmul.f32 %v9310, 0.7978846
        %v9439 = vmul.f32 %v9311, 0.7978846
        %v9440 = vmul.f32 %v9312, 0.7978846
        %v9441 = vmul.f32 %v9313, 0.7978846
        %v9442 = vmul.f32 %v9314, 0.7978846
        %v9443 = vmul.f32 %v9315, 0.7978846
        %v9444 = vmul.f32 %v9316, 0.7978846
        %v9445 = vmul.f32 %v9317, 0.7978846
        %v9446 = vmul.f32 %v9318, 0.7978846
        %v9447 = vmul.f32 %v9319, 0.7978846
        %v9448 = vmul.f32 %v9320, 0.7978846
        %v9449 = vmul.f32 %v9321, 0.7978846
        %v9450 = vmul.f32 %v9322, 0.7978846
        %v9451 = vmul.f32 %v9323, 0.7978846
        %v9452 = vmul.f32 %v9324, 0.7978846
        %v9453 = vtanh.pop %v9325
        %v9454 = vtanh.pop %v9326
        %v9455 = vtanh.pop %v9327
        %v9456 = vtanh.pop %v9328
        %v9457 = vtanh.pop %v9329
        %v9458 = vtanh.pop %v9330
        %v9459 = vtanh.pop %v9331
        %v9460 = vtanh.pop %v9332
        %v9461 = vtanh.pop %v9333
        %v9462 = vtanh.pop %v9334
        %v9463 = vtanh.pop %v9335
        %v9464 = vtanh.pop %v9336
        %v9465 = vtanh.pop %v9337
        %v9466 = vtanh.pop %v9338
        %v9467 = vtanh.pop %v9339
        %v9468 = vtanh.pop %v9340
        %v9469 = vtanh.pop %v9341
        %v9470 = vtanh.pop %v9342
        %v9471 = vtanh.pop %v9343
        %v9472 = vtanh.pop %v9344
        %v9473 = vtanh.pop %v9345
        %v9474 = vtanh.pop %v9346
        %v9475 = vtanh.pop %v9347
        %v9476 = vtanh.pop %v9348
        %v9477 = vtanh.pop %v9349
        %v9478 = vtanh.pop %v9350
        %v9479 = vtanh.pop %v9351
        %v9480 = vtanh.pop %v9352
        %v9481 = vtanh.pop %v9353
        %v9482 = vtanh.pop %v9354
        %v9483 = vtanh.pop %v9355
        %v9484 = vtanh.pop %v9356
        %v9485 = vtanh.pop %v9357
        %v9486 = vtanh.pop %v9358
        %v9487 = vtanh.pop %v9359
        %v9488 = vtanh.pop %v9360
        %v9489 = vtanh.pop %v9361
        %v9490 = vtanh.pop %v9362
        %v9491 = vtanh.pop %v9363
        %v9492 = vtanh.pop %v9364
        %v9493 = vtanh.pop %v9365
        %v9494 = vtanh.pop %v9366
        %v9495 = vtanh.pop %v9367
        %v9496 = vtanh.pop %v9368
        %v9497 = vtanh.pop %v9369
        %v9498 = vtanh.pop %v9370
        %v9499 = vtanh.pop %v9371
        %v9500 = vtanh.pop %v9372
        %v9501 = vtanh.pop %v9373
        %v9502 = vtanh.pop %v9374
        %v9503 = vtanh.pop %v9375
        %v9504 = vtanh.pop %v9376
        %v9505 = vtanh.pop %v9377
        %v9506 = vtanh.pop %v9378
        %v9507 = vtanh.pop %v9379
        %v9508 = vtanh.pop %v9380
        %v9509 = vtanh.pop %v9381
        %v9510 = vtanh.pop %v9382
        %v9511 = vtanh.pop %v9383
        %v9512 = vtanh.pop %v9384
        %v9513 = vtanh.pop %v9385
        %v9514 = vtanh.pop %v9386
        %v9515 = vtanh.pop %v9387
        %v9516 = vtanh.pop %v9388
        %v9517 = vtanh.pop %v9389
        %v9518 = vtanh.pop %v9390
        %v9519 = vtanh.pop %v9391
        %v9520 = vtanh.pop %v9392
        %v9521 = vtanh.pop %v9393
        %v9522 = vtanh.pop %v9394
        %v9523 = vtanh.pop %v9395
        %v9524 = vtanh.pop %v9396
        %v9525 = vtanh.pop %v9397
        %v9526 = vtanh.pop %v9398
        %v9527 = vtanh.pop %v9399
        %v9528 = vtanh.pop %v9400
        %v9529 = vtanh.pop %v9401
        %v9530 = vtanh.pop %v9402
        %v9531 = vtanh.pop %v9403
        %v9532 = vtanh.pop %v9404
        %v9533 = vtanh.pop %v9405
        %v9534 = vtanh.pop %v9406
        %v9535 = vtanh.pop %v9407
        %v9536 = vtanh.pop %v9408
        %v9537 = vtanh.pop %v9409
        %v9538 = vtanh.pop %v9410
        %v9539 = vtanh.pop %v9411
        %v9540 = vtanh.pop %v9412
        %v9541 = vtanh.pop %v9413
        %v9542 = vtanh.pop %v9414
        %v9543 = vtanh.pop %v9415
        %v9544 = vtanh.pop %v9416
        %v9545 = vtanh.pop %v9417
        %v9546 = vtanh.pop %v9418
        %v9547 = vtanh.pop %v9419
        %v9548 = vtanh.pop %v9420
        %v9549 = vtanh.pop %v9421
        %v9550 = vtanh.pop %v9422
        %v9551 = vtanh.pop %v9423
        %v9552 = vtanh.pop %v9424
        %v9553 = vtanh.pop %v9425
        %v9554 = vtanh.pop %v9426
        %v9555 = vtanh.pop %v9427
        %v9556 = vtanh.pop %v9428
        %v9557 = vtanh.pop %v9429
        %v9558 = vtanh.pop %v9430
        %v9559 = vtanh.pop %v9431
        %v9560 = vtanh.pop %v9432
        %v9561 = vtanh.pop %v9433
        %v9562 = vtanh.pop %v9434
        %v9563 = vtanh.pop %v9435
        %v9564 = vtanh.pop %v9436
        %v9565 = vtanh.pop %v9437
        %v9566 = vtanh.pop %v9438
        %v9567 = vtanh.pop %v9439
        %v9568 = vtanh.pop %v9440
        %v9569 = vtanh.pop %v9441
        %v9570 = vtanh.pop %v9442
        %v9571 = vtanh.pop %v9443
        %v9572 = vtanh.pop %v9444
        %v9573 = vtanh.pop %v9445
        %v9574 = vtanh.pop %v9446
        %v9575 = vtanh.pop %v9447
        %v9576 = vtanh.pop %v9448
        %v9577 = vtanh.pop %v9449
        %v9578 = vtanh.pop %v9450
        %v9579 = vtanh.pop %v9451
        %v9580 = vtanh.pop %v9452
        %v9581 = vadd.f32 %v9453, 1.0
        %v9582 = vadd.f32 %v9454, 1.0
        %v9583 = vadd.f32 %v9455, 1.0
        %v9584 = vadd.f32 %v9456, 1.0
        %v9585 = vadd.f32 %v9457, 1.0
        %v9586 = vadd.f32 %v9458, 1.0
        %v9587 = vadd.f32 %v9459, 1.0
        %v9588 = vadd.f32 %v9460, 1.0
        %v9589 = vadd.f32 %v9461, 1.0
        %v9590 = vadd.f32 %v9462, 1.0
        %v9591 = vadd.f32 %v9463, 1.0
        %v9592 = vadd.f32 %v9464, 1.0
        %v9593 = vadd.f32 %v9465, 1.0
        %v9594 = vadd.f32 %v9466, 1.0
        %v9595 = vadd.f32 %v9467, 1.0
        %v9596 = vadd.f32 %v9468, 1.0
        %v9597 = vadd.f32 %v9469, 1.0
        %v9598 = vadd.f32 %v9470, 1.0
        %v9599 = vadd.f32 %v9471, 1.0
        %v9600 = vadd.f32 %v9472, 1.0
        %v9601 = vadd.f32 %v9473, 1.0
        %v9602 = vadd.f32 %v9474, 1.0
        %v9603 = vadd.f32 %v9475, 1.0
        %v9604 = vadd.f32 %v9476, 1.0
        %v9605 = vadd.f32 %v9477, 1.0
        %v9606 = vadd.f32 %v9478, 1.0
        %v9607 = vadd.f32 %v9479, 1.0
        %v9608 = vadd.f32 %v9480, 1.0
        %v9609 = vadd.f32 %v9481, 1.0
        %v9610 = vadd.f32 %v9482, 1.0
        %v9611 = vadd.f32 %v9483, 1.0
        %v9612 = vadd.f32 %v9484, 1.0
        %v9613 = vadd.f32 %v9485, 1.0
        %v9614 = vadd.f32 %v9486, 1.0
        %v9615 = vadd.f32 %v9487, 1.0
        %v9616 = vadd.f32 %v9488, 1.0
        %v9617 = vadd.f32 %v9489, 1.0
        %v9618 = vadd.f32 %v9490, 1.0
        %v9619 = vadd.f32 %v9491, 1.0
        %v9620 = vadd.f32 %v9492, 1.0
        %v9621 = vadd.f32 %v9493, 1.0
        %v9622 = vadd.f32 %v9494, 1.0
        %v9623 = vadd.f32 %v9495, 1.0
        %v9624 = vadd.f32 %v9496, 1.0
        %v9625 = vadd.f32 %v9497, 1.0
        %v9626 = vadd.f32 %v9498, 1.0
        %v9627 = vadd.f32 %v9499, 1.0
        %v9628 = vadd.f32 %v9500, 1.0
        %v9629 = vadd.f32 %v9501, 1.0
        %v9630 = vadd.f32 %v9502, 1.0
        %v9631 = vadd.f32 %v9503, 1.0
        %v9632 = vadd.f32 %v9504, 1.0
        %v9633 = vadd.f32 %v9505, 1.0
        %v9634 = vadd.f32 %v9506, 1.0
        %v9635 = vadd.f32 %v9507, 1.0
        %v9636 = vadd.f32 %v9508, 1.0
        %v9637 = vadd.f32 %v9509, 1.0
        %v9638 = vadd.f32 %v9510, 1.0
        %v9639 = vadd.f32 %v9511, 1.0
        %v9640 = vadd.f32 %v9512, 1.0
        %v9641 = vadd.f32 %v9513, 1.0
        %v9642 = vadd.f32 %v9514, 1.0
        %v9643 = vadd.f32 %v9515, 1.0
        %v9644 = vadd.f32 %v9516, 1.0
        %v9645 = vadd.f32 %v9517, 1.0
        %v9646 = vadd.f32 %v9518, 1.0
        %v9647 = vadd.f32 %v9519, 1.0
        %v9648 = vadd.f32 %v9520, 1.0
        %v9649 = vadd.f32 %v9521, 1.0
        %v9650 = vadd.f32 %v9522, 1.0
        %v9651 = vadd.f32 %v9523, 1.0
        %v9652 = vadd.f32 %v9524, 1.0
        %v9653 = vadd.f32 %v9525, 1.0
        %v9654 = vadd.f32 %v9526, 1.0
        %v9655 = vadd.f32 %v9527, 1.0
        %v9656 = vadd.f32 %v9528, 1.0
        %v9657 = vadd.f32 %v9529, 1.0
        %v9658 = vadd.f32 %v9530, 1.0
        %v9659 = vadd.f32 %v9531, 1.0
        %v9660 = vadd.f32 %v9532, 1.0
        %v9661 = vadd.f32 %v9533, 1.0
        %v9662 = vadd.f32 %v9534, 1.0
        %v9663 = vadd.f32 %v9535, 1.0
        %v9664 = vadd.f32 %v9536, 1.0
        %v9665 = vadd.f32 %v9537, 1.0
        %v9666 = vadd.f32 %v9538, 1.0
        %v9667 = vadd.f32 %v9539, 1.0
        %v9668 = vadd.f32 %v9540, 1.0
        %v9669 = vadd.f32 %v9541, 1.0
        %v9670 = vadd.f32 %v9542, 1.0
        %v9671 = vadd.f32 %v9543, 1.0
        %v9672 = vadd.f32 %v9544, 1.0
        %v9673 = vadd.f32 %v9545, 1.0
        %v9674 = vadd.f32 %v9546, 1.0
        %v9675 = vadd.f32 %v9547, 1.0
        %v9676 = vadd.f32 %v9548, 1.0
        %v9677 = vadd.f32 %v9549, 1.0
        %v9678 = vadd.f32 %v9550, 1.0
        %v9679 = vadd.f32 %v9551, 1.0
        %v9680 = vadd.f32 %v9552, 1.0
        %v9681 = vadd.f32 %v9553, 1.0
        %v9682 = vadd.f32 %v9554, 1.0
        %v9683 = vadd.f32 %v9555, 1.0
        %v9684 = vadd.f32 %v9556, 1.0
        %v9685 = vadd.f32 %v9557, 1.0
        %v9686 = vadd.f32 %v9558, 1.0
        %v9687 = vadd.f32 %v9559, 1.0
        %v9688 = vadd.f32 %v9560, 1.0
        %v9689 = vadd.f32 %v9561, 1.0
        %v9690 = vadd.f32 %v9562, 1.0
        %v9691 = vadd.f32 %v9563, 1.0
        %v9692 = vadd.f32 %v9564, 1.0
        %v9693 = vadd.f32 %v9565, 1.0
        %v9694 = vadd.f32 %v9566, 1.0
        %v9695 = vadd.f32 %v9567, 1.0
        %v9696 = vadd.f32 %v9568, 1.0
        %v9697 = vadd.f32 %v9569, 1.0
        %v9698 = vadd.f32 %v9570, 1.0
        %v9699 = vadd.f32 %v9571, 1.0
        %v9700 = vadd.f32 %v9572, 1.0
        %v9701 = vadd.f32 %v9573, 1.0
        %v9702 = vadd.f32 %v9574, 1.0
        %v9703 = vadd.f32 %v9575, 1.0
        %v9704 = vadd.f32 %v9576, 1.0
        %v9705 = vadd.f32 %v9577, 1.0
        %v9706 = vadd.f32 %v9578, 1.0
        %v9707 = vadd.f32 %v9579, 1.0
        %v9708 = vadd.f32 %v9580, 1.0
        %v9709 = vmul.f32 %v9581, 0.5
        %v9710 = vmul.f32 %v9582, 0.5
        %v9711 = vmul.f32 %v9583, 0.5
        %v9712 = vmul.f32 %v9584, 0.5
        %v9713 = vmul.f32 %v9585, 0.5
        %v9714 = vmul.f32 %v9586, 0.5
        %v9715 = vmul.f32 %v9587, 0.5
        %v9716 = vmul.f32 %v9588, 0.5
        %v9717 = vmul.f32 %v9589, 0.5
        %v9718 = vmul.f32 %v9590, 0.5
        %v9719 = vmul.f32 %v9591, 0.5
        %v9720 = vmul.f32 %v9592, 0.5
        %v9721 = vmul.f32 %v9593, 0.5
        %v9722 = vmul.f32 %v9594, 0.5
        %v9723 = vmul.f32 %v9595, 0.5
        %v9724 = vmul.f32 %v9596, 0.5
        %v9725 = vmul.f32 %v9597, 0.5
        %v9726 = vmul.f32 %v9598, 0.5
        %v9727 = vmul.f32 %v9599, 0.5
        %v9728 = vmul.f32 %v9600, 0.5
        %v9729 = vmul.f32 %v9601, 0.5
        %v9730 = vmul.f32 %v9602, 0.5
        %v9731 = vmul.f32 %v9603, 0.5
        %v9732 = vmul.f32 %v9604, 0.5
        %v9733 = vmul.f32 %v9605, 0.5
        %v9734 = vmul.f32 %v9606, 0.5
        %v9735 = vmul.f32 %v9607, 0.5
        %v9736 = vmul.f32 %v9608, 0.5
        %v9737 = vmul.f32 %v9609, 0.5
        %v9738 = vmul.f32 %v9610, 0.5
        %v9739 = vmul.f32 %v9611, 0.5
        %v9740 = vmul.f32 %v9612, 0.5
        %v9741 = vmul.f32 %v9613, 0.5
        %v9742 = vmul.f32 %v9614, 0.5
        %v9743 = vmul.f32 %v9615, 0.5
        %v9744 = vmul.f32 %v9616, 0.5
        %v9745 = vmul.f32 %v9617, 0.5
        %v9746 = vmul.f32 %v9618, 0.5
        %v9747 = vmul.f32 %v9619, 0.5
        %v9748 = vmul.f32 %v9620, 0.5
        %v9749 = vmul.f32 %v9621, 0.5
        %v9750 = vmul.f32 %v9622, 0.5
        %v9751 = vmul.f32 %v9623, 0.5
        %v9752 = vmul.f32 %v9624, 0.5
        %v9753 = vmul.f32 %v9625, 0.5
        %v9754 = vmul.f32 %v9626, 0.5
        %v9755 = vmul.f32 %v9627, 0.5
        %v9756 = vmul.f32 %v9628, 0.5
        %v9757 = vmul.f32 %v9629, 0.5
        %v9758 = vmul.f32 %v9630, 0.5
        %v9759 = vmul.f32 %v9631, 0.5
        %v9760 = vmul.f32 %v9632, 0.5
        %v9761 = vmul.f32 %v9633, 0.5
        %v9762 = vmul.f32 %v9634, 0.5
        %v9763 = vmul.f32 %v9635, 0.5
        %v9764 = vmul.f32 %v9636, 0.5
        %v9765 = vmul.f32 %v9637, 0.5
        %v9766 = vmul.f32 %v9638, 0.5
        %v9767 = vmul.f32 %v9639, 0.5
        %v9768 = vmul.f32 %v9640, 0.5
        %v9769 = vmul.f32 %v9641, 0.5
        %v9770 = vmul.f32 %v9642, 0.5
        %v9771 = vmul.f32 %v9643, 0.5
        %v9772 = vmul.f32 %v9644, 0.5
        %v9773 = vmul.f32 %v9645, 0.5
        %v9774 = vmul.f32 %v9646, 0.5
        %v9775 = vmul.f32 %v9647, 0.5
        %v9776 = vmul.f32 %v9648, 0.5
        %v9777 = vmul.f32 %v9649, 0.5
        %v9778 = vmul.f32 %v9650, 0.5
        %v9779 = vmul.f32 %v9651, 0.5
        %v9780 = vmul.f32 %v9652, 0.5
        %v9781 = vmul.f32 %v9653, 0.5
        %v9782 = vmul.f32 %v9654, 0.5
        %v9783 = vmul.f32 %v9655, 0.5
        %v9784 = vmul.f32 %v9656, 0.5
        %v9785 = vmul.f32 %v9657, 0.5
        %v9786 = vmul.f32 %v9658, 0.5
        %v9787 = vmul.f32 %v9659, 0.5
        %v9788 = vmul.f32 %v9660, 0.5
        %v9789 = vmul.f32 %v9661, 0.5
        %v9790 = vmul.f32 %v9662, 0.5
        %v9791 = vmul.f32 %v9663, 0.5
        %v9792 = vmul.f32 %v9664, 0.5
        %v9793 = vmul.f32 %v9665, 0.5
        %v9794 = vmul.f32 %v9666, 0.5
        %v9795 = vmul.f32 %v9667, 0.5
        %v9796 = vmul.f32 %v9668, 0.5
        %v9797 = vmul.f32 %v9669, 0.5
        %v9798 = vmul.f32 %v9670, 0.5
        %v9799 = vmul.f32 %v9671, 0.5
        %v9800 = vmul.f32 %v9672, 0.5
        %v9801 = vmul.f32 %v9673, 0.5
        %v9802 = vmul.f32 %v9674, 0.5
        %v9803 = vmul.f32 %v9675, 0.5
        %v9804 = vmul.f32 %v9676, 0.5
        %v9805 = vmul.f32 %v9677, 0.5
        %v9806 = vmul.f32 %v9678, 0.5
        %v9807 = vmul.f32 %v9679, 0.5
        %v9808 = vmul.f32 %v9680, 0.5
        %v9809 = vmul.f32 %v9681, 0.5
        %v9810 = vmul.f32 %v9682, 0.5
        %v9811 = vmul.f32 %v9683, 0.5
        %v9812 = vmul.f32 %v9684, 0.5
        %v9813 = vmul.f32 %v9685, 0.5
        %v9814 = vmul.f32 %v9686, 0.5
        %v9815 = vmul.f32 %v9687, 0.5
        %v9816 = vmul.f32 %v9688, 0.5
        %v9817 = vmul.f32 %v9689, 0.5
        %v9818 = vmul.f32 %v9690, 0.5
        %v9819 = vmul.f32 %v9691, 0.5
        %v9820 = vmul.f32 %v9692, 0.5
        %v9821 = vmul.f32 %v9693, 0.5
        %v9822 = vmul.f32 %v9694, 0.5
        %v9823 = vmul.f32 %v9695, 0.5
        %v9824 = vmul.f32 %v9696, 0.5
        %v9825 = vmul.f32 %v9697, 0.5
        %v9826 = vmul.f32 %v9698, 0.5
        %v9827 = vmul.f32 %v9699, 0.5
        %v9828 = vmul.f32 %v9700, 0.5
        %v9829 = vmul.f32 %v9701, 0.5
        %v9830 = vmul.f32 %v9702, 0.5
        %v9831 = vmul.f32 %v9703, 0.5
        %v9832 = vmul.f32 %v9704, 0.5
        %v9833 = vmul.f32 %v9705, 0.5
        %v9834 = vmul.f32 %v9706, 0.5
        %v9835 = vmul.f32 %v9707, 0.5
        %v9836 = vmul.f32 %v9708, 0.5
        %v9837 = vmul.f32 %v8462, %v9709
        %v9838 = vmul.f32 %v8464, %v9710
        %v9839 = vmul.f32 %v8655, %v9711
        %v9840 = vmul.f32 %v8657, %v9712
        %v9841 = vmul.f32 %v8466, %v9713
        %v9842 = vmul.f32 %v8468, %v9714
        %v9843 = vmul.f32 %v8659, %v9715
        %v9844 = vmul.f32 %v8661, %v9716
        %v9845 = vmul.f32 %v8472, %v9717
        %v9846 = vmul.f32 %v8474, %v9718
        %v9847 = vmul.f32 %v8665, %v9719
        %v9848 = vmul.f32 %v8667, %v9720
        %v9849 = vmul.f32 %v8476, %v9721
        %v9850 = vmul.f32 %v8478, %v9722
        %v9851 = vmul.f32 %v8669, %v9723
        %v9852 = vmul.f32 %v8671, %v9724
        %v9853 = vmul.f32 %v8482, %v9725
        %v9854 = vmul.f32 %v8484, %v9726
        %v9855 = vmul.f32 %v8675, %v9727
        %v9856 = vmul.f32 %v8677, %v9728
        %v9857 = vmul.f32 %v8486, %v9729
        %v9858 = vmul.f32 %v8488, %v9730
        %v9859 = vmul.f32 %v8679, %v9731
        %v9860 = vmul.f32 %v8681, %v9732
        %v9861 = vmul.f32 %v8492, %v9733
        %v9862 = vmul.f32 %v8494, %v9734
        %v9863 = vmul.f32 %v8685, %v9735
        %v9864 = vmul.f32 %v8687, %v9736
        %v9865 = vmul.f32 %v8496, %v9737
        %v9866 = vmul.f32 %v8498, %v9738
        %v9867 = vmul.f32 %v8689, %v9739
        %v9868 = vmul.f32 %v8691, %v9740
        %v9869 = vmul.f32 %v8502, %v9741
        %v9870 = vmul.f32 %v8504, %v9742
        %v9871 = vmul.f32 %v8695, %v9743
        %v9872 = vmul.f32 %v8697, %v9744
        %v9873 = vmul.f32 %v8506, %v9745
        %v9874 = vmul.f32 %v8508, %v9746
        %v9875 = vmul.f32 %v8699, %v9747
        %v9876 = vmul.f32 %v8701, %v9748
        %v9877 = vmul.f32 %v8512, %v9749
        %v9878 = vmul.f32 %v8514, %v9750
        %v9879 = vmul.f32 %v8705, %v9751
        %v9880 = vmul.f32 %v8707, %v9752
        %v9881 = vmul.f32 %v8516, %v9753
        %v9882 = vmul.f32 %v8518, %v9754
        %v9883 = vmul.f32 %v8709, %v9755
        %v9884 = vmul.f32 %v8711, %v9756
        %v9885 = vmul.f32 %v8522, %v9757
        %v9886 = vmul.f32 %v8524, %v9758
        %v9887 = vmul.f32 %v8715, %v9759
        %v9888 = vmul.f32 %v8717, %v9760
        %v9889 = vmul.f32 %v8526, %v9761
        %v9890 = vmul.f32 %v8528, %v9762
        %v9891 = vmul.f32 %v8719, %v9763
        %v9892 = vmul.f32 %v8721, %v9764
        %v9893 = vmul.f32 %v8532, %v9765
        %v9894 = vmul.f32 %v8534, %v9766
        %v9895 = vmul.f32 %v8725, %v9767
        %v9896 = vmul.f32 %v8727, %v9768
        %v9897 = vmul.f32 %v8536, %v9769
        %v9898 = vmul.f32 %v8538, %v9770
        %v9899 = vmul.f32 %v8729, %v9771
        %v9900 = vmul.f32 %v8731, %v9772
        %v9901 = vmul.f32 %v8542, %v9773
        %v9902 = vmul.f32 %v8544, %v9774
        %v9903 = vmul.f32 %v8735, %v9775
        %v9904 = vmul.f32 %v8737, %v9776
        %v9905 = vmul.f32 %v8546, %v9777
        %v9906 = vmul.f32 %v8548, %v9778
        %v9907 = vmul.f32 %v8739, %v9779
        %v9908 = vmul.f32 %v8741, %v9780
        %v9909 = vmul.f32 %v8552, %v9781
        %v9910 = vmul.f32 %v8554, %v9782
        %v9911 = vmul.f32 %v8745, %v9783
        %v9912 = vmul.f32 %v8747, %v9784
        %v9913 = vmul.f32 %v8556, %v9785
        %v9914 = vmul.f32 %v8558, %v9786
        %v9915 = vmul.f32 %v8749, %v9787
        %v9916 = vmul.f32 %v8751, %v9788
        %v9917 = vmul.f32 %v8562, %v9789
        %v9918 = vmul.f32 %v8564, %v9790
        %v9919 = vmul.f32 %v8755, %v9791
        %v9920 = vmul.f32 %v8757, %v9792
        %v9921 = vmul.f32 %v8566, %v9793
        %v9922 = vmul.f32 %v8568, %v9794
        %v9923 = vmul.f32 %v8759, %v9795
        %v9924 = vmul.f32 %v8761, %v9796
        %v9925 = vmul.f32 %v8572, %v9797
        %v9926 = vmul.f32 %v8574, %v9798
        %v9927 = vmul.f32 %v8765, %v9799
        %v9928 = vmul.f32 %v8767, %v9800
        %v9929 = vmul.f32 %v8576, %v9801
        %v9930 = vmul.f32 %v8578, %v9802
        %v9931 = vmul.f32 %v8769, %v9803
        %v9932 = vmul.f32 %v8771, %v9804
        %v9933 = vmul.f32 %v8582, %v9805
        %v9934 = vmul.f32 %v8584, %v9806
        %v9935 = vmul.f32 %v8775, %v9807
        %v9936 = vmul.f32 %v8777, %v9808
        %v9937 = vmul.f32 %v8586, %v9809
        %v9938 = vmul.f32 %v8588, %v9810
        %v9939 = vmul.f32 %v8779, %v9811
        %v9940 = vmul.f32 %v8781, %v9812
        %v9941 = vmul.f32 %v8592, %v9813
        %v9942 = vmul.f32 %v8594, %v9814
        %v9943 = vmul.f32 %v8785, %v9815
        %v9944 = vmul.f32 %v8787, %v9816
        %v9945 = vmul.f32 %v8596, %v9817
        %v9946 = vmul.f32 %v8598, %v9818
        %v9947 = vmul.f32 %v8789, %v9819
        %v9948 = vmul.f32 %v8791, %v9820
        %v9949 = vmul.f32 %v8602, %v9821
        %v9950 = vmul.f32 %v8604, %v9822
        %v9951 = vmul.f32 %v8795, %v9823
        %v9952 = vmul.f32 %v8797, %v9824
        %v9953 = vmul.f32 %v8606, %v9825
        %v9954 = vmul.f32 %v8608, %v9826
        %v9955 = vmul.f32 %v8799, %v9827
        %v9956 = vmul.f32 %v8801, %v9828
        %v9957 = vmul.f32 %v8612, %v9829
        %v9958 = vmul.f32 %v8614, %v9830
        %v9959 = vmul.f32 %v8805, %v9831
        %v9960 = vmul.f32 %v8807, %v9832
        %v9961 = vmul.f32 %v8616, %v9833
        %v9962 = vmul.f32 %v8618, %v9834
        %v9963 = vmul.f32 %v8809, %v9835
        %v9964 = vmul.f32 %v8811, %v9836
        %v9965 = vpack.c.bf16 %v9841, %v9837
        %v9966 = vpack.c.bf16 %v9842, %v9838
        %v9967 = vpack.c.bf16 %v9843, %v9839
        %v9968 = vpack.c.bf16 %v9844, %v9840
        %v9969 = vpack.c.bf16 %v9849, %v9845
        %v9970 = vpack.c.bf16 %v9850, %v9846
        %v9971 = vpack.c.bf16 %v9851, %v9847
        %v9972 = vpack.c.bf16 %v9852, %v9848
        %v9973 = vpack.c.bf16 %v9857, %v9853
        %v9974 = vpack.c.bf16 %v9858, %v9854
        %v9975 = vpack.c.bf16 %v9859, %v9855
        %v9976 = vpack.c.bf16 %v9860, %v9856
        %v9977 = vpack.c.bf16 %v9865, %v9861
        %v9978 = vpack.c.bf16 %v9866, %v9862
        %v9979 = vpack.c.bf16 %v9867, %v9863
        %v9980 = vpack.c.bf16 %v9868, %v9864
        %v9981 = vpack.c.bf16 %v9873, %v9869
        %v9982 = vpack.c.bf16 %v9874, %v9870
        %v9983 = vpack.c.bf16 %v9875, %v9871
        %v9984 = vpack.c.bf16 %v9876, %v9872
        %v9985 = vpack.c.bf16 %v9881, %v9877
        %v9986 = vpack.c.bf16 %v9882, %v9878
        %v9987 = vpack.c.bf16 %v9883, %v9879
        %v9988 = vpack.c.bf16 %v9884, %v9880
        %v9989 = vpack.c.bf16 %v9889, %v9885
        %v9990 = vpack.c.bf16 %v9890, %v9886
        %v9991 = vpack.c.bf16 %v9891, %v9887
        %v9992 = vpack.c.bf16 %v9892, %v9888
        %v9993 = vpack.c.bf16 %v9897, %v9893
        %v9994 = vpack.c.bf16 %v9898, %v9894
        %v9995 = vpack.c.bf16 %v9899, %v9895
        %v9996 = vpack.c.bf16 %v9900, %v9896
        %v9997 = vpack.c.bf16 %v9905, %v9901
        %v9998 = vpack.c.bf16 %v9906, %v9902
        %v9999 = vpack.c.bf16 %v9907, %v9903
        %v10000 = vpack.c.bf16 %v9908, %v9904
        %v10001 = vpack.c.bf16 %v9913, %v9909
        %v10002 = vpack.c.bf16 %v9914, %v9910
        %v10003 = vpack.c.bf16 %v9915, %v9911
        %v10004 = vpack.c.bf16 %v9916, %v9912
        %v10005 = vpack.c.bf16 %v9921, %v9917
        %v10006 = vpack.c.bf16 %v9922, %v9918
        %v10007 = vpack.c.bf16 %v9923, %v9919
        %v10008 = vpack.c.bf16 %v9924, %v9920
        %v10009 = vpack.c.bf16 %v9929, %v9925
        %v10010 = vpack.c.bf16 %v9930, %v9926
        %v10011 = vpack.c.bf16 %v9931, %v9927
        %v10012 = vpack.c.bf16 %v9932, %v9928
        %v10013 = vpack.c.bf16 %v9937, %v9933
        %v10014 = vpack.c.bf16 %v9938, %v9934
        %v10015 = vpack.c.bf16 %v9939, %v9935
        %v10016 = vpack.c.bf16 %v9940, %v9936
        %v10017 = vpack.c.bf16 %v9945, %v9941
        %v10018 = vpack.c.bf16 %v9946, %v9942
        %v10019 = vpack.c.bf16 %v9947, %v9943
        %v10020 = vpack.c.bf16 %v9948, %v9944
        %v10021 = vpack.c.bf16 %v9953, %v9949
        %v10022 = vpack.c.bf16 %v9954, %v9950
        %v10023 = vpack.c.bf16 %v9955, %v9951
        %v10024 = vpack.c.bf16 %v9956, %v9952
        %v10025 = vpack.c.bf16 %v9961, %v9957
        %v10026 = vpack.c.bf16 %v9962, %v9958
        %v10027 = vpack.c.bf16 %v9963, %v9959
        %v10028 = vpack.c.bf16 %v9964, %v9960
        %v10029 = vld [vmem:[%s542] sm:$0xf]
        %v10030 = vld [vmem:[%s542 + $0x4] sm:$0xf]
        %v10031 = vld [vmem:[%s542 + $0x8] sm:$0xf]
        %v10032 = vld [vmem:[%s542 + $0xc] sm:$0xf]
        %v10033 = vld [vmem:[%s542 + $0x10] sm:$0xf]
        %v10034 = vld [vmem:[%s542 + $0x14] sm:$0xf]
        %v10035 = vld [vmem:[%s542 + $0x18] sm:$0xf]
        %v10036 = vld [vmem:[%s542 + $0x1c] sm:$0xf]
        %v10037 = vld [vmem:[%s542 + $0x20] sm:$0xf]
        %v10038 = vld [vmem:[%s542 + $0x24] sm:$0xf]
        %v10039 = vld [vmem:[%s542 + $0x28] sm:$0xf]
        %v10040 = vld [vmem:[%s542 + $0x2c] sm:$0xf]
        %v10041 = vld [vmem:[%s542 + $0x30] sm:$0xf]
        %v10042 = vld [vmem:[%s542 + $0x34] sm:$0xf]
        %v10043 = vld [vmem:[%s542 + $0x38] sm:$0xf]
        %v10044 = vld [vmem:[%s542 + $0x3c] sm:$0xf]
        %v10045 = vld [vmem:[%s542 + $0x40] sm:$0xf]
        %v10046 = vld [vmem:[%s542 + $0x44] sm:$0xf]
        %v10047 = vld [vmem:[%s542 + $0x48] sm:$0xf]
        %v10048 = vld [vmem:[%s542 + $0x4c] sm:$0xf]
        %v10049 = vld [vmem:[%s542 + $0x50] sm:$0xf]
        %v10050 = vld [vmem:[%s542 + $0x54] sm:$0xf]
        %v10051 = vld [vmem:[%s542 + $0x58] sm:$0xf]
        %v10052 = vld [vmem:[%s542 + $0x5c] sm:$0xf]
        %v10053 = vld [vmem:[%s542 + $0x60] sm:$0xf]
        %v10054 = vld [vmem:[%s542 + $0x64] sm:$0xf]
        %v10055 = vld [vmem:[%s542 + $0x68] sm:$0xf]
        %v10056 = vld [vmem:[%s542 + $0x6c] sm:$0xf]
        %v10057 = vld [vmem:[%s542 + $0x70] sm:$0xf]
        %v10058 = vld [vmem:[%s542 + $0x74] sm:$0xf]
        %v10059 = vld [vmem:[%s542 + $0x78] sm:$0xf]
        %v10060 = vld [vmem:[%s542 + $0x7c] sm:$0xf]
        %v10061 = vld [vmem:[%s542 + $0x80] sm:$0xf]
        %v10062 = vld [vmem:[%s542 + $0x84] sm:$0xf]
        %v10063 = vld [vmem:[%s542 + $0x88] sm:$0xf]
        %v10064 = vld [vmem:[%s542 + $0x8c] sm:$0xf]
        %v10065 = vld [vmem:[%s542 + $0x90] sm:$0xf]
        %v10066 = vld [vmem:[%s542 + $0x94] sm:$0xf]
        %v10067 = vld [vmem:[%s542 + $0x98] sm:$0xf]
        %v10068 = vld [vmem:[%s542 + $0x9c] sm:$0xf]
        %v10069 = vld [vmem:[%s542 + $0xa0] sm:$0xf]
        %v10070 = vld [vmem:[%s542 + $0xa4] sm:$0xf]
        %v10071 = vld [vmem:[%s542 + $0xa8] sm:$0xf]
        %v10072 = vld [vmem:[%s542 + $0xac] sm:$0xf]
        %v10073 = vld [vmem:[%s542 + $0xb0] sm:$0xf]
        %v10074 = vld [vmem:[%s542 + $0xb4] sm:$0xf]
        %v10075 = vld [vmem:[%s542 + $0xb8] sm:$0xf]
        %v10076 = vld [vmem:[%s542 + $0xbc] sm:$0xf]
        %v10077 = vld [vmem:[%s542 + $0xc0] sm:$0xf]
        %v10078 = vld [vmem:[%s542 + $0xc4] sm:$0xf]
        %v10079 = vld [vmem:[%s542 + $0xc8] sm:$0xf]
        %v10080 = vld [vmem:[%s542 + $0xcc] sm:$0xf]
        %v10081 = vld [vmem:[%s542 + $0xd0] sm:$0xf]
        %v10082 = vld [vmem:[%s542 + $0xd4] sm:$0xf]
        %v10083 = vld [vmem:[%s542 + $0xd8] sm:$0xf]
        %v10084 = vld [vmem:[%s542 + $0xdc] sm:$0xf]
        %v10085 = vld [vmem:[%s542 + $0xe0] sm:$0xf]
        %v10086 = vld [vmem:[%s542 + $0xe4] sm:$0xf]
        %v10087 = vld [vmem:[%s542 + $0xe8] sm:$0xf]
        %v10088 = vld [vmem:[%s542 + $0xec] sm:$0xf]
        %v10089 = vld [vmem:[%s542 + $0xf0] sm:$0xf]
        %v10090 = vld [vmem:[%s542 + $0xf4] sm:$0xf]
        %v10091 = vld [vmem:[%s542 + $0xf8] sm:$0xf]
        %v10092 = vld [vmem:[%s542 + $0xfc] sm:$0xf]
        %v10093 = vlaneseq
        %v10094 = vshrl.u32 %v10093, 7
        %v10095 = vsub.s32 4, %v10094
        %v10096 = vrot.slane %v1085, %v10095
        %v10161 = vunpack.c.l.b16 %v10029
        %v10162 = vunpack.c.l.b16 %v10030
        %v10163 = vunpack.c.l.b16 %v10031
        %v10164 = vunpack.c.l.b16 %v10032
        %v10165 = vunpack.c.l.b16 %v10033
        %v10166 = vunpack.c.l.b16 %v10034
        %v10167 = vunpack.c.l.b16 %v10035
        %v10168 = vunpack.c.l.b16 %v10036
        %v10169 = vunpack.c.l.b16 %v10037
        %v10170 = vunpack.c.l.b16 %v10038
        %v10171 = vunpack.c.l.b16 %v10039
        %v10172 = vunpack.c.l.b16 %v10040
        %v10173 = vunpack.c.l.b16 %v10041
        %v10174 = vunpack.c.l.b16 %v10042
        %v10175 = vunpack.c.l.b16 %v10043
        %v10176 = vunpack.c.l.b16 %v10044
        %v10177 = vunpack.c.l.b16 %v10045
        %v10178 = vunpack.c.l.b16 %v10046
        %v10179 = vunpack.c.l.b16 %v10047
        %v10180 = vunpack.c.l.b16 %v10048
        %v10181 = vunpack.c.l.b16 %v10049
        %v10182 = vunpack.c.l.b16 %v10050
        %v10183 = vunpack.c.l.b16 %v10051
        %v10184 = vunpack.c.l.b16 %v10052
        %v10185 = vunpack.c.l.b16 %v10053
        %v10186 = vunpack.c.l.b16 %v10054
        %v10187 = vunpack.c.l.b16 %v10055
        %v10188 = vunpack.c.l.b16 %v10056
        %v10189 = vunpack.c.l.b16 %v10057
        %v10190 = vunpack.c.l.b16 %v10058
        %v10191 = vunpack.c.l.b16 %v10059
        %v10192 = vunpack.c.l.b16 %v10060
        %v10193 = vunpack.c.l.b16 %v10061
        %v10194 = vunpack.c.l.b16 %v10062
        %v10195 = vunpack.c.l.b16 %v10063
        %v10196 = vunpack.c.l.b16 %v10064
        %v10197 = vunpack.c.l.b16 %v10065
        %v10198 = vunpack.c.l.b16 %v10066
        %v10199 = vunpack.c.l.b16 %v10067
        %v10200 = vunpack.c.l.b16 %v10068
        %v10201 = vunpack.c.l.b16 %v10069
        %v10202 = vunpack.c.l.b16 %v10070
        %v10203 = vunpack.c.l.b16 %v10071
        %v10204 = vunpack.c.l.b16 %v10072
        %v10205 = vunpack.c.l.b16 %v10073
        %v10206 = vunpack.c.l.b16 %v10074
        %v10207 = vunpack.c.l.b16 %v10075
        %v10208 = vunpack.c.l.b16 %v10076
        %v10209 = vunpack.c.l.b16 %v10077
        %v10210 = vunpack.c.l.b16 %v10078
        %v10211 = vunpack.c.l.b16 %v10079
        %v10212 = vunpack.c.l.b16 %v10080
        %v10213 = vunpack.c.l.b16 %v10081
        %v10214 = vunpack.c.l.b16 %v10082
        %v10215 = vunpack.c.l.b16 %v10083
        %v10216 = vunpack.c.l.b16 %v10084
        %v10217 = vunpack.c.l.b16 %v10085
        %v10218 = vunpack.c.l.b16 %v10086
        %v10219 = vunpack.c.l.b16 %v10087
        %v10220 = vunpack.c.l.b16 %v10088
        %v10221 = vunpack.c.l.b16 %v10089
        %v10222 = vunpack.c.l.b16 %v10090
        %v10223 = vunpack.c.l.b16 %v10091
        %v10224 = vunpack.c.l.b16 %v10092
        %v10225 = vpack.c.b16 %v10162, %v10161
        %v10226 = vpack.c.b16 %v10164, %v10163
        %v10227 = vpack.c.b16 %v10166, %v10165
        %v10228 = vpack.c.b16 %v10168, %v10167
        %v10229 = vpack.c.b16 %v10170, %v10169
        %v10230 = vpack.c.b16 %v10172, %v10171
        %v10231 = vpack.c.b16 %v10174, %v10173
        %v10232 = vpack.c.b16 %v10176, %v10175
        %v10233 = vpack.c.b16 %v10178, %v10177
        %v10234 = vpack.c.b16 %v10180, %v10179
        %v10235 = vpack.c.b16 %v10182, %v10181
        %v10236 = vpack.c.b16 %v10184, %v10183
        %v10237 = vpack.c.b16 %v10186, %v10185
        %v10238 = vpack.c.b16 %v10188, %v10187
        %v10239 = vpack.c.b16 %v10190, %v10189
        %v10240 = vpack.c.b16 %v10192, %v10191
        %v10241 = vpack.c.b16 %v10194, %v10193
        %v10242 = vpack.c.b16 %v10196, %v10195
        %v10243 = vpack.c.b16 %v10198, %v10197
        %v10244 = vpack.c.b16 %v10200, %v10199
        %v10245 = vpack.c.b16 %v10202, %v10201
        %v10246 = vpack.c.b16 %v10204, %v10203
        %v10247 = vpack.c.b16 %v10206, %v10205
        %v10248 = vpack.c.b16 %v10208, %v10207
        %v10249 = vpack.c.b16 %v10210, %v10209
        %v10250 = vpack.c.b16 %v10212, %v10211
        %v10251 = vpack.c.b16 %v10214, %v10213
        %v10252 = vpack.c.b16 %v10216, %v10215
        %v10253 = vpack.c.b16 %v10218, %v10217
        %v10254 = vpack.c.b16 %v10220, %v10219
        %v10255 = vpack.c.b16 %v10222, %v10221
        %v10256 = vpack.c.b16 %v10224, %v10223
        %10289 = vmatprep.subr.bf16.mxu0 0
        %10290 = vmatpush1.bf16.msra.mxu0 %v10225
        %10291 = vmatprep.subr.bf16.mxu0 0
        %10292 = vmatpush1.bf16.msra.mxu0 %v10226
        %10293 = vmatprep.subr.bf16.mxu0 0
        %10294 = vmatpush1.bf16.msra.mxu0 %v10227
        %10295 = vmatprep.subr.bf16.mxu0 0
        %10296 = vmatpush1.bf16.msra.mxu0 %v10228
        %10297 = vmatprep.subr.bf16.mxu0 0
        %10298 = vmatpush1.bf16.msra.mxu0 %v10229
        %10299 = vmatprep.subr.bf16.mxu0 0
        %10300 = vmatpush1.bf16.msra.mxu0 %v10230
        %10301 = vmatprep.subr.bf16.mxu0 0
        %10302 = vmatpush1.bf16.msra.mxu0 %v10231
        %10303 = vmatprep.subr.bf16.mxu0 0
        %10304 = vmatpush1.bf16.msra.mxu0 %v10232
        %10305 = vmatprep.subr.bf16.mxu0 0
        %10306 = vmatpush1.bf16.msra.mxu0 %v10233
        %10307 = vmatprep.subr.bf16.mxu0 0
        %10308 = vmatpush1.bf16.msra.mxu0 %v10234
        %10309 = vmatprep.subr.bf16.mxu0 0
        %10310 = vmatpush1.bf16.msra.mxu0 %v10235
        %10311 = vmatprep.subr.bf16.mxu0 0
        %10312 = vmatpush1.bf16.msra.mxu0 %v10236
        %10313 = vmatprep.subr.bf16.mxu0 0
        %10314 = vmatpush1.bf16.msra.mxu0 %v10237
        %10315 = vmatprep.subr.bf16.mxu0 0
        %10316 = vmatpush1.bf16.msra.mxu0 %v10238
        %10317 = vmatprep.subr.bf16.mxu0 0
        %10318 = vmatpush1.bf16.msra.mxu0 %v10239
        %10319 = vmatprep.subr.bf16.mxu0 0
        %10320 = vmatpush1.bf16.msra.mxu0 %v10240
        %10321 = vmatprep.mubr.bf16.mxu0 %v9966
        %10322 = vmatmul.mubr.bf16.gmra.mrb[0].mxu0 %v9965
        %v10323 = vpop.f32.mrb[0].mxu0
        %v10324 = vadd.f32 %v10096, %v10323
        %v10325 = vpop.f32.mrb[0].mxu0
        %v10326 = vpop.f32.mrb[0].mxu0
        %v10327 = vadd.f32 %v10096, %v10326
        %v10328 = vpop.f32.mrb[0].mxu0
        %10329 = vmatprep.mubr.bf16.mxu0 %v9970
        %10330 = vmatmul.mubr.bf16.gmra.mrb[0].mxu0 %v9969
        %v10331 = vpop.f32.mrb[0].mxu0
        %v10332 = vadd.f32 %v10096, %v10331
        %v10333 = vpop.f32.mrb[0].mxu0
        %v10334 = vpop.f32.mrb[0].mxu0
        %v10335 = vadd.f32 %v10096, %v10334
        %v10336 = vpop.f32.mrb[0].mxu0
        %10337 = vmatprep.mubr.bf16.mxu0 %v9974
        %10338 = vmatmul.mubr.bf16.gmra.mrb[0].mxu0 %v9973
        %v10339 = vpop.f32.mrb[0].mxu0
        %v10340 = vadd.f32 %v10096, %v10339
        %v10341 = vpop.f32.mrb[0].mxu0
        %v10342 = vpop.f32.mrb[0].mxu0
        %v10343 = vadd.f32 %v10096, %v10342
        %v10344 = vpop.f32.mrb[0].mxu0
        %10345 = vmatprep.mubr.bf16.mxu0 %v9978
        %10346 = vmatmul.mubr.bf16.gmra.mrb[0].mxu0 %v9977
        %v10347 = vpop.f32.mrb[0].mxu0
        %v10348 = vadd.f32 %v10096, %v10347
        %v10349 = vpop.f32.mrb[0].mxu0
        %v10350 = vpop.f32.mrb[0].mxu0
        %v10351 = vadd.f32 %v10096, %v10350
        %v10352 = vpop.f32.mrb[0].mxu0
        %10353 = vmatprep.mubr.bf16.mxu0 %v9982
        %10354 = vmatmul.mubr.bf16.gmra.mrb[0].mxu0 %v9981
        %v10355 = vpop.f32.mrb[0].mxu0
        %v10356 = vadd.f32 %v10096, %v10355
        %v10357 = vpop.f32.mrb[0].mxu0
        %v10358 = vpop.f32.mrb[0].mxu0
        %v10359 = vadd.f32 %v10096, %v10358
        %v10360 = vpop.f32.mrb[0].mxu0
        %10361 = vmatprep.mubr.bf16.mxu0 %v9986
        %10362 = vmatmul.mubr.bf16.gmra.mrb[0].mxu0 %v9985
        %v10363 = vpop.f32.mrb[0].mxu0
        %v10364 = vadd.f32 %v10096, %v10363
        %v10365 = vpop.f32.mrb[0].mxu0
        %v10366 = vpop.f32.mrb[0].mxu0
        %v10367 = vadd.f32 %v10096, %v10366
        %v10368 = vpop.f32.mrb[0].mxu0
        %10369 = vmatprep.mubr.bf16.mxu0 %v9990
        %10370 = vmatmul.mubr.bf16.gmra.mrb[0].mxu0 %v9989
        %v10371 = vpop.f32.mrb[0].mxu0
        %v10372 = vadd.f32 %v10096, %v10371
        %v10373 = vpop.f32.mrb[0].mxu0
        %v10374 = vpop.f32.mrb[0].mxu0
        %v10375 = vadd.f32 %v10096, %v10374
        %v10376 = vpop.f32.mrb[0].mxu0
        %10377 = vmatprep.mubr.bf16.mxu0 %v9994
        %10378 = vmatmul.mubr.bf16.gmra.mrb[0].mxu0 %v9993
        %v10379 = vpop.f32.mrb[0].mxu0
        %v10380 = vadd.f32 %v10096, %v10379
        %v10381 = vpop.f32.mrb[0].mxu0
        %v10382 = vpop.f32.mrb[0].mxu0
        %v10383 = vadd.f32 %v10096, %v10382
        %v10384 = vpop.f32.mrb[0].mxu0
        %10385 = vmatprep.mubr.bf16.mxu0 %v9998
        %10386 = vmatmul.mubr.bf16.gmra.mrb[0].mxu0 %v9997
        %v10387 = vpop.f32.mrb[0].mxu0
        %v10388 = vadd.f32 %v10096, %v10387
        %v10389 = vpop.f32.mrb[0].mxu0
        %v10390 = vpop.f32.mrb[0].mxu0
        %v10391 = vadd.f32 %v10096, %v10390
        %v10392 = vpop.f32.mrb[0].mxu0
        %10393 = vmatprep.mubr.bf16.mxu0 %v10002
        %10394 = vmatmul.mubr.bf16.gmra.mrb[0].mxu0 %v10001
        %v10395 = vpop.f32.mrb[0].mxu0
        %v10396 = vadd.f32 %v10096, %v10395
        %v10397 = vpop.f32.mrb[0].mxu0
        %v10398 = vpop.f32.mrb[0].mxu0
        %v10399 = vadd.f32 %v10096, %v10398
        %v10400 = vpop.f32.mrb[0].mxu0
        %10401 = vmatprep.mubr.bf16.mxu0 %v10006
        %10402 = vmatmul.mubr.bf16.gmra.mrb[0].mxu0 %v10005
        %v10403 = vpop.f32.mrb[0].mxu0
        %v10404 = vadd.f32 %v10096, %v10403
        %v10405 = vpop.f32.mrb[0].mxu0
        %v10406 = vpop.f32.mrb[0].mxu0
        %v10407 = vadd.f32 %v10096, %v10406
        %v10408 = vpop.f32.mrb[0].mxu0
        %10409 = vmatprep.mubr.bf16.mxu0 %v10010
        %10410 = vmatmul.mubr.bf16.gmra.mrb[0].mxu0 %v10009
        %v10411 = vpop.f32.mrb[0].mxu0
        %v10412 = vadd.f32 %v10096, %v10411
        %v10413 = vpop.f32.mrb[0].mxu0
        %v10414 = vpop.f32.mrb[0].mxu0
        %v10415 = vadd.f32 %v10096, %v10414
        %v10416 = vpop.f32.mrb[0].mxu0
        %10417 = vmatprep.mubr.bf16.mxu0 %v10014
        %10418 = vmatmul.mubr.bf16.gmra.mrb[0].mxu0 %v10013
        %v10419 = vpop.f32.mrb[0].mxu0
        %v10420 = vadd.f32 %v10096, %v10419
        %v10421 = vpop.f32.mrb[0].mxu0
        %v10422 = vpop.f32.mrb[0].mxu0
        %v10423 = vadd.f32 %v10096, %v10422
        %v10424 = vpop.f32.mrb[0].mxu0
        %10425 = vmatprep.mubr.bf16.mxu0 %v10018
        %10426 = vmatmul.mubr.bf16.gmra.mrb[0].mxu0 %v10017
        %v10427 = vpop.f32.mrb[0].mxu0
        %v10428 = vadd.f32 %v10096, %v10427
        %v10429 = vpop.f32.mrb[0].mxu0
        %v10430 = vpop.f32.mrb[0].mxu0
        %v10431 = vadd.f32 %v10096, %v10430
        %v10432 = vpop.f32.mrb[0].mxu0
        %10433 = vmatprep.mubr.bf16.mxu0 %v10022
        %10434 = vmatmul.mubr.bf16.gmra.mrb[0].mxu0 %v10021
        %v10435 = vpop.f32.mrb[0].mxu0
        %v10436 = vadd.f32 %v10096, %v10435
        %v10437 = vpop.f32.mrb[0].mxu0
        %v10438 = vpop.f32.mrb[0].mxu0
        %v10439 = vadd.f32 %v10096, %v10438
        %v10440 = vpop.f32.mrb[0].mxu0
        %10441 = vmatprep.mubr.bf16.mxu0 %v10026
        %10442 = vmatmul.mubr.bf16.gmra.mrb[0].mxu0 %v10025
        %v10443 = vpop.f32.mrb[0].mxu0
        %v10444 = vadd.f32 %v10096, %v10443
        %v10445 = vpop.f32.mrb[0].mxu0
        %v10446 = vpop.f32.mrb[0].mxu0
        %v10447 = vadd.f32 %v10096, %v10446
        %v10448 = vpop.f32.mrb[0].mxu0
        %10449 = vdwg.mxu0
        %10450 = vmatprep.subr.bf16.mxu0 0
        %10451 = vmatpush1.bf16.msra.mxu0 %v10241
        %10452 = vmatprep.subr.bf16.mxu0 0
        %10453 = vmatpush1.bf16.msra.mxu0 %v10242
        %10454 = vmatprep.subr.bf16.mxu0 0
        %10455 = vmatpush1.bf16.msra.mxu0 %v10243
        %10456 = vmatprep.subr.bf16.mxu0 0
        %10457 = vmatpush1.bf16.msra.mxu0 %v10244
        %10458 = vmatprep.subr.bf16.mxu0 0
        %10459 = vmatpush1.bf16.msra.mxu0 %v10245
        %10460 = vmatprep.subr.bf16.mxu0 0
        %10461 = vmatpush1.bf16.msra.mxu0 %v10246
        %10462 = vmatprep.subr.bf16.mxu0 0
        %10463 = vmatpush1.bf16.msra.mxu0 %v10247
        %10464 = vmatprep.subr.bf16.mxu0 0
        %10465 = vmatpush1.bf16.msra.mxu0 %v10248
        %10466 = vmatprep.subr.bf16.mxu0 0
        %10467 = vmatpush1.bf16.msra.mxu0 %v10249
        %10468 = vmatprep.subr.bf16.mxu0 0
        %10469 = vmatpush1.bf16.msra.mxu0 %v10250
        %10470 = vmatprep.subr.bf16.mxu0 0
        %10471 = vmatpush1.bf16.msra.mxu0 %v10251
        %10472 = vmatprep.subr.bf16.mxu0 0
        %10473 = vmatpush1.bf16.msra.mxu0 %v10252
        %10474 = vmatprep.subr.bf16.mxu0 0
        %10475 = vmatpush1.bf16.msra.mxu0 %v10253
        %10476 = vmatprep.subr.bf16.mxu0 0
        %10477 = vmatpush1.bf16.msra.mxu0 %v10254
        %10478 = vmatprep.subr.bf16.mxu0 0
        %10479 = vmatpush1.bf16.msra.mxu0 %v10255
        %10480 = vmatprep.subr.bf16.mxu0 0
        %10481 = vmatpush1.bf16.msra.mxu0 %v10256
        %10482 = vmatprep.mubr.bf16.mxu0 %v9968
        %10483 = vmatmul.mubr.bf16.gmra.mrb[0].mxu0 %v9967
        %v10484 = vpop.f32.mrb[0].mxu0
        %v10485 = vadd.f32 %v10324, %v10484
        %v10486 = vpop.f32.mrb[0].mxu0
        %v10487 = vpop.f32.mrb[0].mxu0
        %v10488 = vadd.f32 %v10327, %v10487
        %v10489 = vpop.f32.mrb[0].mxu0
        %10490 = vmatprep.mubr.bf16.mxu0 %v9972
        %10491 = vmatmul.mubr.bf16.gmra.mrb[0].mxu0 %v9971
        %v10492 = vpop.f32.mrb[0].mxu0
        %v10493 = vadd.f32 %v10332, %v10492
        %v10494 = vpop.f32.mrb[0].mxu0
        %v10495 = vpop.f32.mrb[0].mxu0
        %v10496 = vadd.f32 %v10335, %v10495
        %v10497 = vpop.f32.mrb[0].mxu0
        %10498 = vmatprep.mubr.bf16.mxu0 %v9976
        %10499 = vmatmul.mubr.bf16.gmra.mrb[0].mxu0 %v9975
        %v10500 = vpop.f32.mrb[0].mxu0
        %v10501 = vadd.f32 %v10340, %v10500
        %v10502 = vpop.f32.mrb[0].mxu0
        %v10503 = vpop.f32.mrb[0].mxu0
        %v10504 = vadd.f32 %v10343, %v10503
        %v10505 = vpop.f32.mrb[0].mxu0
        %10506 = vmatprep.mubr.bf16.mxu0 %v9980
        %10507 = vmatmul.mubr.bf16.gmra.mrb[0].mxu0 %v9979
        %v10508 = vpop.f32.mrb[0].mxu0
        %v10509 = vadd.f32 %v10348, %v10508
        %v10510 = vpop.f32.mrb[0].mxu0
        %v10511 = vpop.f32.mrb[0].mxu0
        %v10512 = vadd.f32 %v10351, %v10511
        %v10513 = vpop.f32.mrb[0].mxu0
        %10514 = vmatprep.mubr.bf16.mxu0 %v9984
        %10515 = vmatmul.mubr.bf16.gmra.mrb[0].mxu0 %v9983
        %v10516 = vpop.f32.mrb[0].mxu0
        %v10517 = vadd.f32 %v10356, %v10516
        %v10518 = vpop.f32.mrb[0].mxu0
        %v10519 = vpop.f32.mrb[0].mxu0
        %v10520 = vadd.f32 %v10359, %v10519
        %v10521 = vpop.f32.mrb[0].mxu0
        %10522 = vmatprep.mubr.bf16.mxu0 %v9988
        %10523 = vmatmul.mubr.bf16.gmra.mrb[0].mxu0 %v9987
        %v10524 = vpop.f32.mrb[0].mxu0
        %v10525 = vadd.f32 %v10364, %v10524
        %v10526 = vpop.f32.mrb[0].mxu0
        %v10527 = vpop.f32.mrb[0].mxu0
        %v10528 = vadd.f32 %v10367, %v10527
        %v10529 = vpop.f32.mrb[0].mxu0
        %10530 = vmatprep.mubr.bf16.mxu0 %v9992
        %10531 = vmatmul.mubr.bf16.gmra.mrb[0].mxu0 %v9991
        %v10532 = vpop.f32.mrb[0].mxu0
        %v10533 = vadd.f32 %v10372, %v10532
        %v10534 = vpop.f32.mrb[0].mxu0
        %v10535 = vpop.f32.mrb[0].mxu0
        %v10536 = vadd.f32 %v10375, %v10535
        %v10537 = vpop.f32.mrb[0].mxu0
        %10538 = vmatprep.mubr.bf16.mxu0 %v9996
        %10539 = vmatmul.mubr.bf16.gmra.mrb[0].mxu0 %v9995
        %v10540 = vpop.f32.mrb[0].mxu0
        %v10541 = vadd.f32 %v10380, %v10540
        %v10542 = vpop.f32.mrb[0].mxu0
        %v10543 = vpop.f32.mrb[0].mxu0
        %v10544 = vadd.f32 %v10383, %v10543
        %v10545 = vpop.f32.mrb[0].mxu0
        %10546 = vmatprep.mubr.bf16.mxu0 %v10000
        %10547 = vmatmul.mubr.bf16.gmra.mrb[0].mxu0 %v9999
        %v10548 = vpop.f32.mrb[0].mxu0
        %v10549 = vadd.f32 %v10388, %v10548
        %v10550 = vpop.f32.mrb[0].mxu0
        %v10551 = vpop.f32.mrb[0].mxu0
        %v10552 = vadd.f32 %v10391, %v10551
        %v10553 = vpop.f32.mrb[0].mxu0
        %10554 = vmatprep.mubr.bf16.mxu0 %v10004
        %10555 = vmatmul.mubr.bf16.gmra.mrb[0].mxu0 %v10003
        %v10556 = vpop.f32.mrb[0].mxu0
        %v10557 = vadd.f32 %v10396, %v10556
        %v10558 = vpop.f32.mrb[0].mxu0
        %v10559 = vpop.f32.mrb[0].mxu0
        %v10560 = vadd.f32 %v10399, %v10559
        %v10561 = vpop.f32.mrb[0].mxu0
        %10562 = vmatprep.mubr.bf16.mxu0 %v10008
        %10563 = vmatmul.mubr.bf16.gmra.mrb[0].mxu0 %v10007
        %v10564 = vpop.f32.mrb[0].mxu0
        %v10565 = vadd.f32 %v10404, %v10564
        %v10566 = vpop.f32.mrb[0].mxu0
        %v10567 = vpop.f32.mrb[0].mxu0
        %v10568 = vadd.f32 %v10407, %v10567
        %v10569 = vpop.f32.mrb[0].mxu0
        %10570 = vmatprep.mubr.bf16.mxu0 %v10012
        %10571 = vmatmul.mubr.bf16.gmra.mrb[0].mxu0 %v10011
        %v10572 = vpop.f32.mrb[0].mxu0
        %v10573 = vadd.f32 %v10412, %v10572
        %v10574 = vpop.f32.mrb[0].mxu0
        %v10575 = vpop.f32.mrb[0].mxu0
        %v10576 = vadd.f32 %v10415, %v10575
        %v10577 = vpop.f32.mrb[0].mxu0
        %10578 = vmatprep.mubr.bf16.mxu0 %v10016
        %10579 = vmatmul.mubr.bf16.gmra.mrb[0].mxu0 %v10015
        %v10580 = vpop.f32.mrb[0].mxu0
        %v10581 = vadd.f32 %v10420, %v10580
        %v10582 = vpop.f32.mrb[0].mxu0
        %v10583 = vpop.f32.mrb[0].mxu0
        %v10584 = vadd.f32 %v10423, %v10583
        %v10585 = vpop.f32.mrb[0].mxu0
        %10586 = vmatprep.mubr.bf16.mxu0 %v10020
        %10587 = vmatmul.mubr.bf16.gmra.mrb[0].mxu0 %v10019
        %v10588 = vpop.f32.mrb[0].mxu0
        %v10589 = vadd.f32 %v10428, %v10588
        %v10590 = vpop.f32.mrb[0].mxu0
        %v10591 = vpop.f32.mrb[0].mxu0
        %v10592 = vadd.f32 %v10431, %v10591
        %v10593 = vpop.f32.mrb[0].mxu0
        %10594 = vmatprep.mubr.bf16.mxu0 %v10024
        %10595 = vmatmul.mubr.bf16.gmra.mrb[0].mxu0 %v10023
        %v10596 = vpop.f32.mrb[0].mxu0
        %v10597 = vadd.f32 %v10436, %v10596
        %v10598 = vpop.f32.mrb[0].mxu0
        %v10599 = vpop.f32.mrb[0].mxu0
        %v10600 = vadd.f32 %v10439, %v10599
        %v10601 = vpop.f32.mrb[0].mxu0
        %10602 = vmatprep.mubr.bf16.mxu0 %v10028
        %10603 = vmatmul.mubr.bf16.gmra.mrb[0].mxu0 %v10027
        %v10604 = vpop.f32.mrb[0].mxu0
        %v10605 = vadd.f32 %v10444, %v10604
        %v10606 = vpop.f32.mrb[0].mxu0
        %v10607 = vpop.f32.mrb[0].mxu0
        %v10608 = vadd.f32 %v10447, %v10607
        %v10609 = vpop.f32.mrb[0].mxu0
        %10610 = vdwg.mxu0
        %v10611 = vadd.f32 %v8166, %v10485
        %v10612 = vadd.f32 %v8167, %v10488
        %v10613 = vadd.f32 %v8168, %v10493
        %v10614 = vadd.f32 %v8169, %v10496
        %v10615 = vadd.f32 %v8170, %v10501
        %v10616 = vadd.f32 %v8171, %v10504
        %v10617 = vadd.f32 %v8172, %v10509
        %v10618 = vadd.f32 %v8173, %v10512
        %v10619 = vadd.f32 %v8174, %v10517
        %v10620 = vadd.f32 %v8175, %v10520
        %v10621 = vadd.f32 %v8176, %v10525
        %v10622 = vadd.f32 %v8177, %v10528
        %v10623 = vadd.f32 %v8178, %v10533
        %v10624 = vadd.f32 %v8179, %v10536
        %v10625 = vadd.f32 %v8180, %v10541
        %v10626 = vadd.f32 %v8181, %v10544
        %v10627 = vadd.f32 %v8182, %v10549
        %v10628 = vadd.f32 %v8183, %v10552
        %v10629 = vadd.f32 %v8184, %v10557
        %v10630 = vadd.f32 %v8185, %v10560
        %v10631 = vadd.f32 %v8186, %v10565
        %v10632 = vadd.f32 %v8187, %v10568
        %v10633 = vadd.f32 %v8188, %v10573
        %v10634 = vadd.f32 %v8189, %v10576
        %v10635 = vadd.f32 %v8190, %v10581
        %v10636 = vadd.f32 %v8191, %v10584
        %v10637 = vadd.f32 %v8192, %v10589
        %v10638 = vadd.f32 %v8193, %v10592
        %v10639 = vadd.f32 %v8194, %v10597
        %v10640 = vadd.f32 %v8195, %v10600
        %v10641 = vadd.f32 %v8196, %v10605
        %v10642 = vadd.f32 %v8197, %v10608
        %10643 = vadd.xlane.f32.xlu0 %v10611
        %v10644 = vpop.xlane.xlu0 %10643
        %10645 = vadd.xlane.f32.xlu0 %v10612
        %v10646 = vpop.xlane.xlu0 %10645
        %10647 = vadd.xlane.f32.xlu0 %v10613
        %v10648 = vpop.xlane.xlu0 %10647
        %10649 = vadd.xlane.f32.xlu0 %v10614
        %v10650 = vpop.xlane.xlu0 %10649
        %10651 = vadd.xlane.f32.xlu0 %v10615
        %v10652 = vpop.xlane.xlu0 %10651
        %10653 = vadd.xlane.f32.xlu0 %v10616
        %v10654 = vpop.xlane.xlu0 %10653
        %10655 = vadd.xlane.f32.xlu0 %v10617
        %v10656 = vpop.xlane.xlu0 %10655
        %10657 = vadd.xlane.f32.xlu0 %v10618
        %v10658 = vpop.xlane.xlu0 %10657
        %10659 = vadd.xlane.f32.xlu0 %v10619
        %v10660 = vpop.xlane.xlu0 %10659
        %10661 = vadd.xlane.f32.xlu0 %v10620
        %v10662 = vpop.xlane.xlu0 %10661
        %10663 = vadd.xlane.f32.xlu0 %v10621
        %v10664 = vpop.xlane.xlu0 %10663
        %10665 = vadd.xlane.f32.xlu0 %v10622
        %v10666 = vpop.xlane.xlu0 %10665
        %10667 = vadd.xlane.f32.xlu0 %v10623
        %v10668 = vpop.xlane.xlu0 %10667
        %10669 = vadd.xlane.f32.xlu0 %v10624
        %v10670 = vpop.xlane.xlu0 %10669
        %10671 = vadd.xlane.f32.xlu0 %v10625
        %v10672 = vpop.xlane.xlu0 %10671
        %10673 = vadd.xlane.f32.xlu0 %v10626
        %v10674 = vpop.xlane.xlu0 %10673
        %10675 = vadd.xlane.f32.xlu0 %v10627
        %v10676 = vpop.xlane.xlu0 %10675
        %10677 = vadd.xlane.f32.xlu0 %v10628
        %v10678 = vpop.xlane.xlu0 %10677
        %10679 = vadd.xlane.f32.xlu0 %v10629
        %v10680 = vpop.xlane.xlu0 %10679
        %10681 = vadd.xlane.f32.xlu0 %v10630
        %v10682 = vpop.xlane.xlu0 %10681
        %10683 = vadd.xlane.f32.xlu0 %v10631
        %v10684 = vpop.xlane.xlu0 %10683
        %10685 = vadd.xlane.f32.xlu0 %v10632
        %v10686 = vpop.xlane.xlu0 %10685
        %10687 = vadd.xlane.f32.xlu0 %v10633
        %v10688 = vpop.xlane.xlu0 %10687
        %10689 = vadd.xlane.f32.xlu0 %v10634
        %v10690 = vpop.xlane.xlu0 %10689
        %10691 = vadd.xlane.f32.xlu0 %v10635
        %v10692 = vpop.xlane.xlu0 %10691
        %10693 = vadd.xlane.f32.xlu0 %v10636
        %v10694 = vpop.xlane.xlu0 %10693
        %10695 = vadd.xlane.f32.xlu0 %v10637
        %v10696 = vpop.xlane.xlu0 %10695
        %10697 = vadd.xlane.f32.xlu0 %v10638
        %v10698 = vpop.xlane.xlu0 %10697
        %10699 = vadd.xlane.f32.xlu0 %v10639
        %v10700 = vpop.xlane.xlu0 %10699
        %10701 = vadd.xlane.f32.xlu0 %v10640
        %v10702 = vpop.xlane.xlu0 %10701
        %10703 = vadd.xlane.f32.xlu0 %v10641
        %v10704 = vpop.xlane.xlu0 %10703
        %10705 = vadd.xlane.f32.xlu0 %v10642
        %v10706 = vpop.xlane.xlu0 %10705
        %v10707 = vmul.f32 %v10644, %v7837
        %v10708 = vmul.f32 %v10646, %v7837
        %v10709 = vmul.f32 %v10648, %v7837
        %v10710 = vmul.f32 %v10650, %v7837
        %v10711 = vmul.f32 %v10652, %v7837
        %v10712 = vmul.f32 %v10654, %v7837
        %v10713 = vmul.f32 %v10656, %v7837
        %v10714 = vmul.f32 %v10658, %v7837
        %v10715 = vmul.f32 %v10660, %v7837
        %v10716 = vmul.f32 %v10662, %v7837
        %v10717 = vmul.f32 %v10664, %v7837
        %v10718 = vmul.f32 %v10666, %v7837
        %v10719 = vmul.f32 %v10668, %v7837
        %v10720 = vmul.f32 %v10670, %v7837
        %v10721 = vmul.f32 %v10672, %v7837
        %v10722 = vmul.f32 %v10674, %v7837
        %v10723 = vmul.f32 %v10676, %v7837
        %v10724 = vmul.f32 %v10678, %v7837
        %v10725 = vmul.f32 %v10680, %v7837
        %v10726 = vmul.f32 %v10682, %v7837
        %v10727 = vmul.f32 %v10684, %v7837
        %v10728 = vmul.f32 %v10686, %v7837
        %v10729 = vmul.f32 %v10688, %v7837
        %v10730 = vmul.f32 %v10690, %v7837
        %v10731 = vmul.f32 %v10692, %v7837
        %v10732 = vmul.f32 %v10694, %v7837
        %v10733 = vmul.f32 %v10696, %v7837
        %v10734 = vmul.f32 %v10698, %v7837
        %v10735 = vmul.f32 %v10700, %v7837
        %v10736 = vmul.f32 %v10702, %v7837
        %v10737 = vmul.f32 %v10704, %v7837
        %v10738 = vmul.f32 %v10706, %v7837
        %v10739 = vsub.f32 %v10611, %v10707
        %v10740 = vsub.f32 %v10612, %v10708
        %v10741 = vsub.f32 %v10613, %v10709
        %v10742 = vsub.f32 %v10614, %v10710
        %v10743 = vsub.f32 %v10615, %v10711
        %v10744 = vsub.f32 %v10616, %v10712
        %v10745 = vsub.f32 %v10617, %v10713
        %v10746 = vsub.f32 %v10618, %v10714
        %v10747 = vsub.f32 %v10619, %v10715
        %v10748 = vsub.f32 %v10620, %v10716
        %v10749 = vsub.f32 %v10621, %v10717
        %v10750 = vsub.f32 %v10622, %v10718
        %v10751 = vsub.f32 %v10623, %v10719
        %v10752 = vsub.f32 %v10624, %v10720
        %v10753 = vsub.f32 %v10625, %v10721
        %v10754 = vsub.f32 %v10626, %v10722
        %v10755 = vsub.f32 %v10627, %v10723
        %v10756 = vsub.f32 %v10628, %v10724
        %v10757 = vsub.f32 %v10629, %v10725
        %v10758 = vsub.f32 %v10630, %v10726
        %v10759 = vsub.f32 %v10631, %v10727
        %v10760 = vsub.f32 %v10632, %v10728
        %v10761 = vsub.f32 %v10633, %v10729
        %v10762 = vsub.f32 %v10634, %v10730
        %v10763 = vsub.f32 %v10635, %v10731
        %v10764 = vsub.f32 %v10636, %v10732
        %v10765 = vsub.f32 %v10637, %v10733
        %v10766 = vsub.f32 %v10638, %v10734
        %v10767 = vsub.f32 %v10639, %v10735
        %v10768 = vsub.f32 %v10640, %v10736
        %v10769 = vsub.f32 %v10641, %v10737
        %v10770 = vsub.f32 %v10642, %v10738
        %v10771 = vmul.f32 %v10739, %v10739
        %v10772 = vmul.f32 %v10740, %v10740
        %v10773 = vmul.f32 %v10741, %v10741
        %v10774 = vmul.f32 %v10742, %v10742
        %v10775 = vmul.f32 %v10743, %v10743
        %v10776 = vmul.f32 %v10744, %v10744
        %v10777 = vmul.f32 %v10745, %v10745
        %v10778 = vmul.f32 %v10746, %v10746
        %v10779 = vmul.f32 %v10747, %v10747
        %v10780 = vmul.f32 %v10748, %v10748
        %v10781 = vmul.f32 %v10749, %v10749
        %v10782 = vmul.f32 %v10750, %v10750
        %v10783 = vmul.f32 %v10751, %v10751
        %v10784 = vmul.f32 %v10752, %v10752
        %v10785 = vmul.f32 %v10753, %v10753
        %v10786 = vmul.f32 %v10754, %v10754
        %v10787 = vmul.f32 %v10755, %v10755
        %v10788 = vmul.f32 %v10756, %v10756
        %v10789 = vmul.f32 %v10757, %v10757
        %v10790 = vmul.f32 %v10758, %v10758
        %v10791 = vmul.f32 %v10759, %v10759
        %v10792 = vmul.f32 %v10760, %v10760
        %v10793 = vmul.f32 %v10761, %v10761
        %v10794 = vmul.f32 %v10762, %v10762
        %v10795 = vmul.f32 %v10763, %v10763
        %v10796 = vmul.f32 %v10764, %v10764
        %v10797 = vmul.f32 %v10765, %v10765
        %v10798 = vmul.f32 %v10766, %v10766
        %v10799 = vmul.f32 %v10767, %v10767
        %v10800 = vmul.f32 %v10768, %v10768
        %v10801 = vmul.f32 %v10769, %v10769
        %v10802 = vmul.f32 %v10770, %v10770
        %10803 = vadd.xlane.f32.xlu0 %v10771
        %v10804 = vpop.xlane.xlu0 %10803
        %10805 = vadd.xlane.f32.xlu0 %v10772
        %v10806 = vpop.xlane.xlu0 %10805
        %10807 = vadd.xlane.f32.xlu0 %v10773
        %v10808 = vpop.xlane.xlu0 %10807
        %10809 = vadd.xlane.f32.xlu0 %v10774
        %v10810 = vpop.xlane.xlu0 %10809
        %10811 = vadd.xlane.f32.xlu0 %v10775
        %v10812 = vpop.xlane.xlu0 %10811
        %10813 = vadd.xlane.f32.xlu0 %v10776
        %v10814 = vpop.xlane.xlu0 %10813
        %10815 = vadd.xlane.f32.xlu0 %v10777
        %v10816 = vpop.xlane.xlu0 %10815
        %10817 = vadd.xlane.f32.xlu0 %v10778
        %v10818 = vpop.xlane.xlu0 %10817
        %10819 = vadd.xlane.f32.xlu0 %v10779
        %v10820 = vpop.xlane.xlu0 %10819
        %10821 = vadd.xlane.f32.xlu0 %v10780
        %v10822 = vpop.xlane.xlu0 %10821
        %10823 = vadd.xlane.f32.xlu0 %v10781
        %v10824 = vpop.xlane.xlu0 %10823
        %10825 = vadd.xlane.f32.xlu0 %v10782
        %v10826 = vpop.xlane.xlu0 %10825
        %10827 = vadd.xlane.f32.xlu0 %v10783
        %v10828 = vpop.xlane.xlu0 %10827
        %10829 = vadd.xlane.f32.xlu0 %v10784
        %v10830 = vpop.xlane.xlu0 %10829
        %10831 = vadd.xlane.f32.xlu0 %v10785
        %v10832 = vpop.xlane.xlu0 %10831
        %10833 = vadd.xlane.f32.xlu0 %v10786
        %v10834 = vpop.xlane.xlu0 %10833
        %10835 = vadd.xlane.f32.xlu0 %v10787
        %v10836 = vpop.xlane.xlu0 %10835
        %10837 = vadd.xlane.f32.xlu0 %v10788
        %v10838 = vpop.xlane.xlu0 %10837
        %10839 = vadd.xlane.f32.xlu0 %v10789
        %v10840 = vpop.xlane.xlu0 %10839
        %10841 = vadd.xlane.f32.xlu0 %v10790
        %v10842 = vpop.xlane.xlu0 %10841
        %10843 = vadd.xlane.f32.xlu0 %v10791
        %v10844 = vpop.xlane.xlu0 %10843
        %10845 = vadd.xlane.f32.xlu0 %v10792
        %v10846 = vpop.xlane.xlu0 %10845
        %10847 = vadd.xlane.f32.xlu0 %v10793
        %v10848 = vpop.xlane.xlu0 %10847
        %10849 = vadd.xlane.f32.xlu0 %v10794
        %v10850 = vpop.xlane.xlu0 %10849
        %10851 = vadd.xlane.f32.xlu0 %v10795
        %v10852 = vpop.xlane.xlu0 %10851
        %10853 = vadd.xlane.f32.xlu0 %v10796
        %v10854 = vpop.xlane.xlu0 %10853
        %10855 = vadd.xlane.f32.xlu0 %v10797
        %v10856 = vpop.xlane.xlu0 %10855
        %10857 = vadd.xlane.f32.xlu0 %v10798
        %v10858 = vpop.xlane.xlu0 %10857
        %10859 = vadd.xlane.f32.xlu0 %v10799
        %v10860 = vpop.xlane.xlu0 %10859
        %10861 = vadd.xlane.f32.xlu0 %v10800
        %v10862 = vpop.xlane.xlu0 %10861
        %10863 = vadd.xlane.f32.xlu0 %v10801
        %v10864 = vpop.xlane.xlu0 %10863
        %10865 = vadd.xlane.f32.xlu0 %v10802
        %v10866 = vpop.xlane.xlu0 %10865
        %v10867 = vmul.f32 %v10804, %v7837
        %v10868 = vmul.f32 %v10806, %v7837
        %v10869 = vmul.f32 %v10808, %v7837
        %v10870 = vmul.f32 %v10810, %v7837
        %v10871 = vmul.f32 %v10812, %v7837
        %v10872 = vmul.f32 %v10814, %v7837
        %v10873 = vmul.f32 %v10816, %v7837
        %v10874 = vmul.f32 %v10818, %v7837
        %v10875 = vmul.f32 %v10820, %v7837
        %v10876 = vmul.f32 %v10822, %v7837
        %v10877 = vmul.f32 %v10824, %v7837
        %v10878 = vmul.f32 %v10826, %v7837
        %v10879 = vmul.f32 %v10828, %v7837
        %v10880 = vmul.f32 %v10830, %v7837
        %v10881 = vmul.f32 %v10832, %v7837
        %v10882 = vmul.f32 %v10834, %v7837
        %v10883 = vmul.f32 %v10836, %v7837
        %v10884 = vmul.f32 %v10838, %v7837
        %v10885 = vmul.f32 %v10840, %v7837
        %v10886 = vmul.f32 %v10842, %v7837
        %v10887 = vmul.f32 %v10844, %v7837
        %v10888 = vmul.f32 %v10846, %v7837
        %v10889 = vmul.f32 %v10848, %v7837
        %v10890 = vmul.f32 %v10850, %v7837
        %v10891 = vmul.f32 %v10852, %v7837
        %v10892 = vmul.f32 %v10854, %v7837
        %v10893 = vmul.f32 %v10856, %v7837
        %v10894 = vmul.f32 %v10858, %v7837
        %v10895 = vmul.f32 %v10860, %v7837
        %v10896 = vmul.f32 %v10862, %v7837
        %v10897 = vmul.f32 %v10864, %v7837
        %v10898 = vmul.f32 %v10866, %v7837
        %v10899 = vadd.f32 %v10867, 1e-12
        %v10900 = vadd.f32 %v10868, 1e-12
        %v10901 = vadd.f32 %v10869, 1e-12
        %v10902 = vadd.f32 %v10870, 1e-12
        %v10903 = vadd.f32 %v10871, 1e-12
        %v10904 = vadd.f32 %v10872, 1e-12
        %v10905 = vadd.f32 %v10873, 1e-12
        %v10906 = vadd.f32 %v10874, 1e-12
        %v10907 = vadd.f32 %v10875, 1e-12
        %v10908 = vadd.f32 %v10876, 1e-12
        %v10909 = vadd.f32 %v10877, 1e-12
        %v10910 = vadd.f32 %v10878, 1e-12
        %v10911 = vadd.f32 %v10879, 1e-12
        %v10912 = vadd.f32 %v10880, 1e-12
        %v10913 = vadd.f32 %v10881, 1e-12
        %v10914 = vadd.f32 %v10882, 1e-12
        %v10915 = vadd.f32 %v10883, 1e-12
        %v10916 = vadd.f32 %v10884, 1e-12
        %v10917 = vadd.f32 %v10885, 1e-12
        %v10918 = vadd.f32 %v10886, 1e-12
        %v10919 = vadd.f32 %v10887, 1e-12
        %v10920 = vadd.f32 %v10888, 1e-12
        %v10921 = vadd.f32 %v10889, 1e-12
        %v10922 = vadd.f32 %v10890, 1e-12
        %v10923 = vadd.f32 %v10891, 1e-12
        %v10924 = vadd.f32 %v10892, 1e-12
        %v10925 = vadd.f32 %v10893, 1e-12
        %v10926 = vadd.f32 %v10894, 1e-12
        %v10927 = vadd.f32 %v10895, 1e-12
        %v10928 = vadd.f32 %v10896, 1e-12
        %v10929 = vadd.f32 %v10897, 1e-12
        %v10930 = vadd.f32 %v10898, 1e-12
        %v10931 = vrsqrt.pop %v10899
        %v10932 = vrsqrt.pop %v10900
        %v10933 = vrsqrt.pop %v10901
        %v10934 = vrsqrt.pop %v10902
        %v10935 = vrsqrt.pop %v10903
        %v10936 = vrsqrt.pop %v10904
        %v10937 = vrsqrt.pop %v10905
        %v10938 = vrsqrt.pop %v10906
        %v10939 = vrsqrt.pop %v10907
        %v10940 = vrsqrt.pop %v10908
        %v10941 = vrsqrt.pop %v10909
        %v10942 = vrsqrt.pop %v10910
        %v10943 = vrsqrt.pop %v10911
        %v10944 = vrsqrt.pop %v10912
        %v10945 = vrsqrt.pop %v10913
        %v10946 = vrsqrt.pop %v10914
        %v10947 = vrsqrt.pop %v10915
        %v10948 = vrsqrt.pop %v10916
        %v10949 = vrsqrt.pop %v10917
        %v10950 = vrsqrt.pop %v10918
        %v10951 = vrsqrt.pop %v10919
        %v10952 = vrsqrt.pop %v10920
        %v10953 = vrsqrt.pop %v10921
        %v10954 = vrsqrt.pop %v10922
        %v10955 = vrsqrt.pop %v10923
        %v10956 = vrsqrt.pop %v10924
        %v10957 = vrsqrt.pop %v10925
        %v10958 = vrsqrt.pop %v10926
        %v10959 = vrsqrt.pop %v10927
        %v10960 = vrsqrt.pop %v10928
        %v10961 = vrsqrt.pop %v10929
        %v10962 = vrsqrt.pop %v10930
        %v10963 = vmul.f32 %v10739, %v10931
        %v10964 = vmul.f32 %v10740, %v10932
        %v10965 = vmul.f32 %v10741, %v10933
        %v10966 = vmul.f32 %v10742, %v10934
        %v10967 = vmul.f32 %v10743, %v10935
        %v10968 = vmul.f32 %v10744, %v10936
        %v10969 = vmul.f32 %v10745, %v10937
        %v10970 = vmul.f32 %v10746, %v10938
        %v10971 = vmul.f32 %v10747, %v10939
        %v10972 = vmul.f32 %v10748, %v10940
        %v10973 = vmul.f32 %v10749, %v10941
        %v10974 = vmul.f32 %v10750, %v10942
        %v10975 = vmul.f32 %v10751, %v10943
        %v10976 = vmul.f32 %v10752, %v10944
        %v10977 = vmul.f32 %v10753, %v10945
        %v10978 = vmul.f32 %v10754, %v10946
        %v10979 = vmul.f32 %v10755, %v10947
        %v10980 = vmul.f32 %v10756, %v10948
        %v10981 = vmul.f32 %v10757, %v10949
        %v10982 = vmul.f32 %v10758, %v10950
        %v10983 = vmul.f32 %v10759, %v10951
        %v10984 = vmul.f32 %v10760, %v10952
        %v10985 = vmul.f32 %v10761, %v10953
        %v10986 = vmul.f32 %v10762, %v10954
        %v10987 = vmul.f32 %v10763, %v10955
        %v10988 = vmul.f32 %v10764, %v10956
        %v10989 = vmul.f32 %v10765, %v10957
        %v10990 = vmul.f32 %v10766, %v10958
        %v10991 = vmul.f32 %v10767, %v10959
        %v10992 = vmul.f32 %v10768, %v10960
        %v10993 = vmul.f32 %v10769, %v10961
        %v10994 = vmul.f32 %v10770, %v10962
        %v10995 = vlaneseq
        %v10996 = vshrl.u32 %v10995, 7
        %v10997 = vsub.s32 7, %v10996
        %v10998 = vrot.slane %v1085, %v10997
        %v10999 = vmul.f32 %v10963, %v10998
        %v11000 = vmul.f32 %v10964, %v10998
        %v11001 = vmul.f32 %v10965, %v10998
        %v11002 = vmul.f32 %v10966, %v10998
        %v11003 = vmul.f32 %v10967, %v10998
        %v11004 = vmul.f32 %v10968, %v10998
        %v11005 = vmul.f32 %v10969, %v10998
        %v11006 = vmul.f32 %v10970, %v10998
        %v11007 = vmul.f32 %v10971, %v10998
        %v11008 = vmul.f32 %v10972, %v10998
        %v11009 = vmul.f32 %v10973, %v10998
        %v11010 = vmul.f32 %v10974, %v10998
        %v11011 = vmul.f32 %v10975, %v10998
        %v11012 = vmul.f32 %v10976, %v10998
        %v11013 = vmul.f32 %v10977, %v10998
        %v11014 = vmul.f32 %v10978, %v10998
        %v11015 = vmul.f32 %v10979, %v10998
        %v11016 = vmul.f32 %v10980, %v10998
        %v11017 = vmul.f32 %v10981, %v10998
        %v11018 = vmul.f32 %v10982, %v10998
        %v11019 = vmul.f32 %v10983, %v10998
        %v11020 = vmul.f32 %v10984, %v10998
        %v11021 = vmul.f32 %v10985, %v10998
        %v11022 = vmul.f32 %v10986, %v10998
        %v11023 = vmul.f32 %v10987, %v10998
        %v11024 = vmul.f32 %v10988, %v10998
        %v11025 = vmul.f32 %v10989, %v10998
        %v11026 = vmul.f32 %v10990, %v10998
        %v11027 = vmul.f32 %v10991, %v10998
        %v11028 = vmul.f32 %v10992, %v10998
        %v11029 = vmul.f32 %v10993, %v10998
        %v11030 = vmul.f32 %v10994, %v10998
        %v11031 = vlaneseq
        %v11032 = vshrl.u32 %v11031, 7
        %v11033 = vsub.s32 0, %v11032
        %v11034 = vrot.slane %v1086, %v11033
        %v11035 = vadd.f32 %v10999, %v11034
        %v11036 = vadd.f32 %v11000, %v11034
        %v11037 = vadd.f32 %v11001, %v11034
        %v11038 = vadd.f32 %v11002, %v11034
        %v11039 = vadd.f32 %v11003, %v11034
        %v11040 = vadd.f32 %v11004, %v11034
        %v11041 = vadd.f32 %v11005, %v11034
        %v11042 = vadd.f32 %v11006, %v11034
        %v11043 = vadd.f32 %v11007, %v11034
        %v11044 = vadd.f32 %v11008, %v11034
        %v11045 = vadd.f32 %v11009, %v11034
        %v11046 = vadd.f32 %v11010, %v11034
        %v11047 = vadd.f32 %v11011, %v11034
        %v11048 = vadd.f32 %v11012, %v11034
        %v11049 = vadd.f32 %v11013, %v11034
        %v11050 = vadd.f32 %v11014, %v11034
        %v11051 = vadd.f32 %v11015, %v11034
        %v11052 = vadd.f32 %v11016, %v11034
        %v11053 = vadd.f32 %v11017, %v11034
        %v11054 = vadd.f32 %v11018, %v11034
        %v11055 = vadd.f32 %v11019, %v11034
        %v11056 = vadd.f32 %v11020, %v11034
        %v11057 = vadd.f32 %v11021, %v11034
        %v11058 = vadd.f32 %v11022, %v11034
        %v11059 = vadd.f32 %v11023, %v11034
        %v11060 = vadd.f32 %v11024, %v11034
        %v11061 = vadd.f32 %v11025, %v11034
        %v11062 = vadd.f32 %v11026, %v11034
        %v11063 = vadd.f32 %v11027, %v11034
        %v11064 = vadd.f32 %v11028, %v11034
        %v11065 = vadd.f32 %v11029, %v11034
        %v11066 = vadd.f32 %v11030, %v11034
        %11067 = vst [vmem:[#allocation2] sm:$0xff] %v11035
        %11068 = vst [vmem:[#allocation2 + $0x8] sm:$0xff] %v11036
        %11069 = vst [vmem:[#allocation2 + $0x10] sm:$0xff] %v11037
        %11070 = vst [vmem:[#allocation2 + $0x18] sm:$0xff] %v11038
        %11071 = vst [vmem:[#allocation2 + $0x20] sm:$0xff] %v11039
        %11072 = vst [vmem:[#allocation2 + $0x28] sm:$0xff] %v11040
        %11073 = vst [vmem:[#allocation2 + $0x30] sm:$0xff] %v11041
        %11074 = vst [vmem:[#allocation2 + $0x38] sm:$0xff] %v11042
        %11075 = vst [vmem:[#allocation2 + $0x40] sm:$0xff] %v11043
        %11076 = vst [vmem:[#allocation2 + $0x48] sm:$0xff] %v11044
        %11077 = vst [vmem:[#allocation2 + $0x50] sm:$0xff] %v11045
        %11078 = vst [vmem:[#allocation2 + $0x58] sm:$0xff] %v11046
        %11079 = vst [vmem:[#allocation2 + $0x60] sm:$0xff] %v11047
        %11080 = vst [vmem:[#allocation2 + $0x68] sm:$0xff] %v11048
        %11081 = vst [vmem:[#allocation2 + $0x70] sm:$0xff] %v11049
        %11082 = vst [vmem:[#allocation2 + $0x78] sm:$0xff] %v11050
        %11083 = vst [vmem:[#allocation2 + $0x80] sm:$0xff] %v11051
        %11084 = vst [vmem:[#allocation2 + $0x88] sm:$0xff] %v11052
        %11085 = vst [vmem:[#allocation2 + $0x90] sm:$0xff] %v11053
        %11086 = vst [vmem:[#allocation2 + $0x98] sm:$0xff] %v11054
        %11087 = vst [vmem:[#allocation2 + $0xa0] sm:$0xff] %v11055
        %11088 = vst [vmem:[#allocation2 + $0xa8] sm:$0xff] %v11056
        %11089 = vst [vmem:[#allocation2 + $0xb0] sm:$0xff] %v11057
        %11090 = vst [vmem:[#allocation2 + $0xb8] sm:$0xff] %v11058
        %11091 = vst [vmem:[#allocation2 + $0xc0] sm:$0xff] %v11059
        %11092 = vst [vmem:[#allocation2 + $0xc8] sm:$0xff] %v11060
        %11093 = vst [vmem:[#allocation2 + $0xd0] sm:$0xff] %v11061
        %11094 = vst [vmem:[#allocation2 + $0xd8] sm:$0xff] %v11062
        %11095 = vst [vmem:[#allocation2 + $0xe0] sm:$0xff] %v11063
        %11096 = vst [vmem:[#allocation2 + $0xe8] sm:$0xff] %v11064
        %11097 = vst [vmem:[#allocation2 + $0xf0] sm:$0xff] %v11065
        %11098 = vst [vmem:[#allocation2 + $0xf8] sm:$0xff] %v11066
        %p11099 = scmp.eq.s32.totalorder %s28, 1
        // Predicated region
        $region69: #{kosimct_forward.1} parent=63 // pred_check
          %p11100 = pneg %p11099
        $region70: #{kosimct_forward.1} parent=63 // pred_check_branch
          %11102 = sbr.rel (%p11100) target = $region72
        $region71: #{kosimct_forward.1} parent=63 // pred_region
          %11103 = vst [vmem:[#allocation3] sm:$0x1] %v11035
          %s11104 = scalar_lea.vmem [#allocation3], 1
          %11105 = vst [vmem:[%s11104] sm:$0x1] %v11051
        $region72: #{kosimct_forward.1} parent=63 // pred_fallthru
          _
        // Predicated region
        $region73: #{kosimct_forward.1} parent=63 // pred_check
          %p11106 = pneg %p329
        $region74: #{kosimct_forward.1} parent=63 // pred_check_branch
          %11108 = sbr.rel (%p11106) target = $region76
        $region75: #{kosimct_forward.1} parent=63 // pred_region
          %s11109 = smul.u32 2, %s27
          %s11111 = ssub.s32 32, 32
          %11112 = vsyncadd [#allocation4], %s11111
          %s11113 = smul.addr %s11109, 16
          %s11114 = scalar_lea.hbm %s11, %s11113
          %s11115 = sshll.u32 [#allocation3], 4
          %s11116 = int_to_ptr.vmem [resolvable:$true] %s11115
          %11121 = dma.vmem_to_hbm [thread:$0]  %s11116, 32, %s11114, [#allocation4], 16, 16, 1
        $region76: #{kosimct_forward.1} parent=63 // pred_fallthru
          _
        // Predicated region
        $region77: #{kosimct_forward.1} parent=63 // pred_check
          %p11122 = pneg %p329
        $region78: #{kosimct_forward.1} parent=63 // pred_check_branch
          %11124 = sbr.rel (%p11122) target = $region80
        $region79: #{kosimct_forward.1} parent=63 // pred_region
          %11125 = dma.done [#allocation4], 32
        $region80: #{kosimct_forward.1} parent=63 // pred_fallthru
          _
      $region64: #{kosimct_forward.1} parent=5 // pred_fallthru
        _
      %p11126 = scmp.le.s32.totalorder 2, %s18
      // Predicated region
      $region81: #{kosimct_forward.1} parent=5 // pred_check
        %p11127 = pneg %p11126
      $region82: #{kosimct_forward.1} parent=5 // pred_check_branch
        %11129 = sbr.rel (%p11127) target = $region84
      $region83: #{kosimct_forward.1} parent=5 // pred_region
        %s11130 = ssub.s32 %s18, 2
      $region84: #{kosimct_forward.1} parent=5 // pred_fallthru
        _
    $region6: #{kosimct_forward.1} parent=1 // loop_footer
      %s22 = sadd.s32 1, %s18
    $region7: #{kosimct_forward.1} parent=1 // loop_footer_branch
      %17 = sbr.rel target = $region3
    $region8: #{kosimct_forward.1} parent=1 // loop_exit
      _
    %11131 = vsyncpa [#allocation4], 1
    %s11132 = scalar_lea.sflag [#allocation4], 1
    %11133 = vsyncpa %s11132, 1

</llo_original>
